<compile_context>
chip_gen: v6e
topology: v6e:2x2x1
jax: 0.10.0
libtpu: 0.0.40
codegen_flags: <defaults>
</compile_context>

<pallas_src>
import jax
import jax.numpy as jnp
from jax.experimental import pallas as pl
from jax.experimental.pallas import tpu as pltpu


# ----------------------------- Pallas kernels -----------------------------

def shared_net_kernel(xu1_ref, w1_ref, b1_ref, w2_ref, b2_ref, w3_ref, b3_ref,
                      w4_ref, b4_ref, feat_ref, y1_scr, y2_scr, y3_scr):
    """Entire sharedNet CNN for one domain half (N samples), fully VMEM-resident.

    xu1_ref : (1, N*Lc1, K1)  stage-1 im2col rows, all samples of this half stacked in M
    w1_ref  : (K1, 16)        stage-1 matmul weight (BN scale folded in)
    wX_ref  : (K, Ci, Co)     stages 2-4 per-tap weight slices (BN scale folded in)
    bX_ref  : (1, Co)         folded conv-bias + BN shift
    feat_ref: (1, N, 4, 64)   adaptive-pooled features, time-major per sample
    yX_scr  : VMEM scratch holding stage conv outputs (read back with stride-2 for pooling)
    """
    n_samp = feat_ref.shape[1]
    lc1 = xu1_ref.shape[1] // n_samp

    # ---- stage 1: one batched matmul over all rows of this half ----
    y1 = jnp.dot(xu1_ref[0], w1_ref[...], preferred_element_type=jnp.float32)
    y1_scr[...] = jnp.maximum(y1 + b1_ref[...], 0.0)

    k2, k3, k4 = w2_ref.shape[0], w3_ref.shape[0], w4_ref.shape[0]
    co2, co3, co4 = w2_ref.shape[2], w3_ref.shape[2], w4_ref.shape[2]

    lp1 = lc1 // 2                 # MaxPool(2,2) floor mode
    lc2 = lp1 - k2 + 1
    lp2 = lc2 // 2
    lc3 = lp2 - k3 + 1
    lp3 = lc3 // 2
    lc4 = lp3 - k4 + 1

    for n in range(n_samp):        # static unroll over the samples of this half
        base = n * lc1
        # MaxPool1d(2,2) over the stage-1 output rows of sample n (stride-2 ref reads).
        h1 = jnp.maximum(y1_scr[pl.ds(base, lp1, stride=2), :],
                         y1_scr[pl.ds(base + 1, lp1, stride=2), :])          # (lp1, 16)

        # ---- stage 2: conv as sum over kernel taps + folded shift + ReLU ----
        acc2 = jnp.zeros((lc2, co2), jnp.float32)
        for k in range(k2):
            acc2 = acc2 + jnp.dot(h1[k:k + lc2, :], w2_ref[k],
                                  preferred_element_type=jnp.float32)
        y2_scr[...] = jnp.maximum(acc2 + b2_ref[...], 0.0)                   # (lc2, 32)
        h2 = jnp.maximum(y2_scr[pl.ds(0, lp2, stride=2), :],
                         y2_scr[pl.ds(1, lp2, stride=2), :])                 # (lp2, 32)

        # ---- stage 3 ----
        acc3 = jnp.zeros((lc3, co3), jnp.float32)
        for k in range(k3):
            acc3 = acc3 + jnp.dot(h2[k:k + lc3, :], w3_ref[k],
                                  preferred_element_type=jnp.float32)
        y3_scr[...] = jnp.maximum(acc3 + b3_ref[...], 0.0)                   # (lc3, 64)
        h3 = jnp.maximum(y3_scr[pl.ds(0, lp3, stride=2), :],
                         y3_scr[pl.ds(1, lp3, stride=2), :])                 # (lp3, 64)

        # ---- stage 4 + AdaptiveMaxPool1d(4) ----
        acc4 = jnp.zeros((lc4, co4), jnp.float32)
        for k in range(k4):
            acc4 = acc4 + jnp.dot(h3[k:k + lc4, :], w4_ref[k],
                                  preferred_element_type=jnp.float32)
        y4 = jnp.maximum(acc4 + b4_ref[...], 0.0)                            # (lc4, 64)

        pieces = []
        for i in range(4):  # PyTorch adaptive-pooling window math, static windows
            s = (i * lc4) // 4
            e = -((-(i + 1) * lc4) // 4)
            pieces.append(jnp.max(y4[s:e, :], axis=0, keepdims=True))
        feat_ref[0, n] = jnp.concatenate(pieces, axis=0)                     # (4, 64)


def heads_kernel(f_ref, w01_ref, b01_ref, wa2_ref, ba2_ref, o_ref):
    """cls_fc and domain_fc fused; cls weight and ad_layer1 weight share one matmul.

    f_ref : (Nc, 256); w01_ref : (256, num_classes + 128); wa2_ref : (128, 2)
    o_ref : (Nc, num_classes + 2) single output slab = [cls | domain], split in JAX.
    """
    nc = o_ref.shape[-1] - 2
    z = jnp.dot(f_ref[...], w01_ref[...], preferred_element_type=jnp.float32) + b01_ref[...]
    cls = z[:, :nc]
    h = jnp.maximum(z[:, nc:], 0.0)
    # TODO(synk): Dropout(0.5) is identity here (eval-mode semantics); training-mode masking omitted.
    dom = jnp.dot(h, wa2_ref[...], preferred_element_type=jnp.float32) + ba2_ref[...]
    o_ref[...] = jnp.concatenate([cls, dom], axis=-1)


# ----------------------------- JAX glue / wrappers -----------------------------

def _fold_bn(w, b, gamma, beta, mean, var, eps=1e-5):
    """Fold conv bias + BatchNorm (running stats) into (scaled weight, shift)."""
    scale = gamma / jnp.sqrt(var + eps)
    shift = beta + scale * (b - mean)
    wf = (w * scale[:, None, None]).astype(jnp.float32)          # (Co, Ci, K)
    return wf, shift.reshape(1, -1).astype(jnp.float32)


def shared_net(x, p):
    """x: (2, N, L) combined source/target batch -> (2*N, 256) features (PyTorch order)."""
    D, N, L = x.shape
    w1f, b1 = _fold_bn(p["w1"], p["b1"], p["g1"], p["be1"], p["m1"], p["v1"])
    w2f, b2 = _fold_bn(p["w2"], p["b2"], p["g2"], p["be2"], p["m2"], p["v2"])
    w3f, b3 = _fold_bn(p["w3"], p["b3"], p["g3"], p["be3"], p["m3"], p["v3"])
    w4f, b4 = _fold_bn(p["w4"], p["b4"], p["g4"], p["be4"], p["m4"], p["v4"])

    k1 = w1f.shape[2]
    lc1 = L - k1 + 1
    # Stage-1 im2col (input layer only — all later stages unfold inside the kernel).
    xu1 = jnp.stack([x[:, :, k:k + lc1] for k in range(k1)], axis=-1)   # (2, N, Lc1, K1)
    xu1 = xu1.reshape(D, N * lc1, k1).astype(jnp.float32)

    w1m = jnp.transpose(w1f[:, 0, :], (1, 0))        # (K1, 16)
    w2k = jnp.transpose(w2f, (2, 1, 0))              # (16, 16, 32) per-tap (Ci, Co)
    w3k = jnp.transpose(w3f, (2, 1, 0))              # (5, 32, 64)
    w4k = jnp.transpose(w4f, (2, 1, 0))              # (5, 64, 64)

    lp1 = lc1 // 2
    lc2 = lp1 - w2k.shape[0] + 1
    lc3 = lc2 // 2 - w3k.shape[0] + 1
    co4 = w4k.shape[2]

    feat_tm = pl.pallas_call(
        shared_net_kernel,
        out_shape=jax.ShapeDtypeStruct((D, N, 4, co4), jnp.float32),
        grid=(D,),
        in_specs=[
            pl.BlockSpec((1, N * lc1, k1), lambda d: (d, 0, 0)),
            pl.BlockSpec(w1m.shape, lambda d: (0, 0)),
            pl.BlockSpec(b1.shape, lambda d: (0, 0)),
            pl.BlockSpec(w2k.shape, lambda d: (0, 0, 0)),
            pl.BlockSpec(b2.shape, lambda d: (0, 0)),
            pl.BlockSpec(w3k.shape, lambda d: (0, 0, 0)),
            pl.BlockSpec(b3.shape, lambda d: (0, 0)),
            pl.BlockSpec(w4k.shape, lambda d: (0, 0, 0)),
            pl.BlockSpec(b4.shape, lambda d: (0, 0)),
        ],
        out_specs=pl.BlockSpec((1, N, 4, co4), lambda d: (d, 0, 0, 0)),
        scratch_shapes=[
            pltpu.VMEM((N * lc1, w1m.shape[1]), jnp.float32),
            pltpu.VMEM((lc2, w2k.shape[2]), jnp.float32),
            pltpu.VMEM((lc3, w3k.shape[2]), jnp.float32),
        ],
        compiler_params=pltpu.CompilerParams(dimension_semantics=("parallel",)),
    )(xu1, w1m, b1, w2k, b2, w3k, b3, w4k, b4)

    # PyTorch flattens (N, C=64, 4) channel-major; kernel emits time-major (N, 4, 64).
    feat = jnp.transpose(feat_tm, (0, 1, 3, 2)).reshape(D * N, 4 * co4)     # (2N, 256)
    return feat


def heads(feat, p):
    nc = p["wc"].shape[1]
    w01 = jnp.concatenate([p["wc"], p["wa1"]], axis=1)    # (256, nc + 128)
    b01 = jnp.concatenate([p["bc"], p["ba1"]], axis=1)    # (1, nc + 128)
    out = pl.pallas_call(
        heads_kernel,
        out_shape=jax.ShapeDtypeStruct((feat.shape[0], nc + 2), jnp.float32),
    )(feat, w01, b01, p["wa2"], p["ba2"])
    return out[:, :nc], out[:, nc:]


def secnn_1dmix_ad_forward(source, target, params):
    N = source.shape[0]
    x = jnp.stack([source, target], axis=0).astype(jnp.float32)   # (2, N, L)
    feat = shared_net(x, params)                                  # (2N, 256)
    cls, dom = heads(feat, params)
    source_fea, target_fea = feat[:N], feat[N:]
    src_cls, tgt_cls = cls[:N], cls[N:]
    src_dlabel, tar_dlabel = dom[:N], dom[N:]
    return src_cls, tgt_cls, source_fea, target_fea, src_dlabel, tar_dlabel


# ----------------------------- deterministic parameter init -----------------------------

def init_params(key, num_classes=31):
    keys = iter(jax.random.split(key, 32))

    def conv(co, ci, k, std=0.05):
        return std * jax.random.normal(next(keys), (co, ci, k), jnp.float32)

    def vec(c, std=0.05):
        return std * jax.random.normal(next(keys), (c,), jnp.float32)

    def bn(c):
        gamma = 1.0 + 0.1 * jax.random.normal(next(keys), (c,), jnp.float32)
        beta = 0.1 * jax.random.normal(next(keys), (c,), jnp.float32)
        mean = 0.05 * jax.random.normal(next(keys), (c,), jnp.float32)
        var = 0.5 + 0.1 * jnp.abs(jax.random.normal(next(keys), (c,), jnp.float32))
        return gamma, beta, mean, var

    def lin(din, dout, std=0.05):
        w = std * jax.random.normal(next(keys), (din, dout), jnp.float32)
        b = std * jax.random.normal(next(keys), (1, dout), jnp.float32)
        return w, b

    p = {}
    p["w1"], p["b1"] = conv(16, 1, 64), vec(16)
    p["g1"], p["be1"], p["m1"], p["v1"] = bn(16)
    p["w2"], p["b2"] = conv(32, 16, 16), vec(32)
    p["g2"], p["be2"], p["m2"], p["v2"] = bn(32)
    p["w3"], p["b3"] = conv(64, 32, 5), vec(64)
    p["g3"], p["be3"], p["m3"], p["v3"] = bn(64)
    p["w4"], p["b4"] = conv(64, 64, 5), vec(64)
    p["g4"], p["be4"], p["m4"], p["v4"] = bn(64)
    p["wc"], p["bc"] = lin(256, num_classes)          # cls_fc
    p["wa1"], p["ba1"] = lin(256, 128)                # domain_fc.ad_layer1
    p["wa2"], p["ba2"] = lin(128, 2)                  # domain_fc.ad_layer2
    return p


# ----------------------------- main -----------------------------

if __name__ == "__main__":
    key = jax.random.PRNGKey(0)
    kp, ksrc, ktgt = jax.random.split(key, 3)
    params = init_params(kp, num_classes=31)

    N, L = 2, 200   # raw 1-D signals; long enough for the four conv/pool stages
    source = jax.random.normal(ksrc, (N, L), jnp.float32)
    target = jax.random.normal(ktgt, (N, L), jnp.float32)

    fwd = jax.jit(lambda s, t: secnn_1dmix_ad_forward(s, t, params))
    outs = fwd(source, target)
    jax.block_until_ready(outs)

    src_cls, tgt_cls, src_fea, tgt_fea, src_dom, tgt_dom = outs
    assert src_cls.shape == (N, 31) and tgt_cls.shape == (N, 31)
    assert src_fea.shape == (N, 256) and tgt_fea.shape == (N, 256)
    assert src_dom.shape == (N, 2) and tgt_dom.shape == (N, 2)
    print("KERNEL_OK")
</pallas_src>

<mosaic_0001>
module attributes {stable_mosaic.version = 11 : i64} {
  func.func @shared_net_kernel(%arg0: i32, %arg1: memref<1x274x64xf32, #tpu.memory_space<vmem>>, %arg2: memref<64x16xf32, #tpu.memory_space<vmem>>, %arg3: memref<1x16xf32, #tpu.memory_space<vmem>>, %arg4: memref<16x16x32xf32, #tpu.memory_space<vmem>>, %arg5: memref<1x32xf32, #tpu.memory_space<vmem>>, %arg6: memref<5x32x64xf32, #tpu.memory_space<vmem>>, %arg7: memref<1x64xf32, #tpu.memory_space<vmem>>, %arg8: memref<5x64x64xf32, #tpu.memory_space<vmem>>, %arg9: memref<1x64xf32, #tpu.memory_space<vmem>>, %arg10: memref<1x2x4x64xf32, #tpu.memory_space<vmem>>, %arg11: memref<274x16xf32, #tpu.memory_space<vmem>>, %arg12: memref<53x32xf32, #tpu.memory_space<vmem>>, %arg13: memref<22x64xf32, #tpu.memory_space<vmem>>) attributes {dimension_semantics = [#tpu.dimension_semantics<parallel>], iteration_bounds = array<i64: 2>, scalar_prefetch = 0 : i64, scratch_operands = 3 : i64, tpu.core_type = #tpu.core_type<tc>, window_params = [{transform_indices = @transform_0, window_bounds = array<i64: 1, 274, 64>}, {pipeline_mode = #tpu.pipeline_mode<synchronous>, transform_indices = @transform_1, window_bounds = array<i64: 64, 16>}, {pipeline_mode = #tpu.pipeline_mode<synchronous>, transform_indices = @transform_2, window_bounds = array<i64: 1, 16>}, {pipeline_mode = #tpu.pipeline_mode<synchronous>, transform_indices = @transform_3, window_bounds = array<i64: 16, 16, 32>}, {pipeline_mode = #tpu.pipeline_mode<synchronous>, transform_indices = @transform_4, window_bounds = array<i64: 1, 32>}, {pipeline_mode = #tpu.pipeline_mode<synchronous>, transform_indices = @transform_5, window_bounds = array<i64: 5, 32, 64>}, {pipeline_mode = #tpu.pipeline_mode<synchronous>, transform_indices = @transform_6, window_bounds = array<i64: 1, 64>}, {pipeline_mode = #tpu.pipeline_mode<synchronous>, transform_indices = @transform_7, window_bounds = array<i64: 5, 64, 64>}, {pipeline_mode = #tpu.pipeline_mode<synchronous>, transform_indices = @transform_8, window_bounds = array<i64: 1, 64>}, {transform_indices = @transform_9, window_bounds = array<i64: 1, 2, 4, 64>}]} {
    %c0 = arith.constant 0 : index
    %c0_0 = arith.constant 0 : index
    %c0_1 = arith.constant 0 : index
    %0 = vector.load %arg1[%c0, %c0_0, %c0_1] : memref<1x274x64xf32, #tpu.memory_space<vmem>>, vector<1x274x64xf32>
    %1 = vector.shape_cast %0 : vector<1x274x64xf32> to vector<274x64xf32>
    %c0_2 = arith.constant 0 : index
    %c0_3 = arith.constant 0 : index
    %2 = vector.load %arg2[%c0_2, %c0_3] : memref<64x16xf32, #tpu.memory_space<vmem>>, vector<64x16xf32>
    %cst = arith.constant dense<0.000000e+00> : vector<274x16xf32>
    %3 = tpu.matmul %1, %2, %cst {dimension_numbers = #tpu.dot_dimension_numbers<[1], [0], [0], [1], [0, 0, 1, 1], [], []>} : vector<274x64xf32>, vector<64x16xf32>, vector<274x16xf32> -> vector<274x16xf32>
    %c0_4 = arith.constant 0 : index
    %c0_5 = arith.constant 0 : index
    %4 = vector.load %arg3[%c0_4, %c0_5] : memref<1x16xf32, #tpu.memory_space<vmem>>, vector<1x16xf32>
    %5 = vector.broadcast %4 : vector<1x16xf32> to vector<274x16xf32>
    %6 = arith.addf %3, %5 : vector<274x16xf32>
    %cst_6 = arith.constant 0.000000e+00 : f32
    %7 = vector.broadcast %cst_6 : f32 to vector<274x16xf32>
    %8 = arith.maximumf %6, %7 : vector<274x16xf32>
    %c0_7 = arith.constant 0 : index
    %c0_8 = arith.constant 0 : index
    %9 = vector.load %arg11[%c0_7, %c0_8] : memref<274x16xf32, #tpu.memory_space<vmem>>, vector<274x16xf32>
    tpu.vector_store %arg11[%c0_7, %c0_8], %8 {strides = array<i32>} : memref<274x16xf32, #tpu.memory_space<vmem>>, vector<274x16xf32>,
    %c0_9 = arith.constant 0 : index
    %c0_10 = arith.constant 0 : index
    %10 = tpu.strided_load %arg11[%c0_9, %c0_10] {strides = array<i32: 2, 1>} : memref<274x16xf32, #tpu.memory_space<vmem>>, vector<68x16xf32>
    %c1 = arith.constant 1 : index
    %c0_11 = arith.constant 0 : index
    %11 = tpu.strided_load %arg11[%c1, %c0_11] {strides = array<i32: 2, 1>} : memref<274x16xf32, #tpu.memory_space<vmem>>, vector<68x16xf32>
    %12 = arith.maximumf %10, %11 : vector<68x16xf32>
    %cst_12 = arith.constant 0.000000e+00 : f32
    %13 = vector.broadcast %cst_12 : f32 to vector<53x32xf32>
    %14 = vector.extract_strided_slice %12 {offsets = [0, 0], sizes = [53, 16], strides = [1, 1]} : vector<68x16xf32> to vector<53x16xf32>
    %c0_13 = arith.constant 0 : index
    %c0_14 = arith.constant 0 : index
    %c0_15 = arith.constant 0 : index
    %15 = vector.load %arg4[%c0_13, %c0_14, %c0_15] : memref<16x16x32xf32, #tpu.memory_space<vmem>>, vector<1x16x32xf32>
    %16 = vector.shape_cast %15 : vector<1x16x32xf32> to vector<16x32xf32>
    %cst_16 = arith.constant dense<0.000000e+00> : vector<53x32xf32>
    %17 = tpu.matmul %14, %16, %cst_16 {dimension_numbers = #tpu.dot_dimension_numbers<[1], [0], [0], [1], [0, 0, 1, 1], [], []>} : vector<53x16xf32>, vector<16x32xf32>, vector<53x32xf32> -> vector<53x32xf32>
    %18 = arith.addf %13, %17 : vector<53x32xf32>
    %19 = vector.extract_strided_slice %12 {offsets = [1, 0], sizes = [53, 16], strides = [1, 1]} : vector<68x16xf32> to vector<53x16xf32>
    %c1_17 = arith.constant 1 : index
    %c0_18 = arith.constant 0 : index
    %c0_19 = arith.constant 0 : index
    %20 = vector.load %arg4[%c1_17, %c0_18, %c0_19] : memref<16x16x32xf32, #tpu.memory_space<vmem>>, vector<1x16x32xf32>
    %21 = vector.shape_cast %20 : vector<1x16x32xf32> to vector<16x32xf32>
    %cst_20 = arith.constant dense<0.000000e+00> : vector<53x32xf32>
    %22 = tpu.matmul %19, %21, %cst_20 {dimension_numbers = #tpu.dot_dimension_numbers<[1], [0], [0], [1], [0, 0, 1, 1], [], []>} : vector<53x16xf32>, vector<16x32xf32>, vector<53x32xf32> -> vector<53x32xf32>
    %23 = arith.addf %18, %22 : vector<53x32xf32>
    %24 = vector.extract_strided_slice %12 {offsets = [2, 0], sizes = [53, 16], strides = [1, 1]} : vector<68x16xf32> to vector<53x16xf32>
    %c2 = arith.constant 2 : index
    %c0_21 = arith.constant 0 : index
    %c0_22 = arith.constant 0 : index
    %25 = vector.load %arg4[%c2, %c0_21, %c0_22] : memref<16x16x32xf32, #tpu.memory_space<vmem>>, vector<1x16x32xf32>
    %26 = vector.shape_cast %25 : vector<1x16x32xf32> to vector<16x32xf32>
    %cst_23 = arith.constant dense<0.000000e+00> : vector<53x32xf32>
    %27 = tpu.matmul %24, %26, %cst_23 {dimension_numbers = #tpu.dot_dimension_numbers<[1], [0], [0], [1], [0, 0, 1, 1], [], []>} : vector<53x16xf32>, vector<16x32xf32>, vector<53x32xf32> -> vector<53x32xf32>
    %28 = arith.addf %23, %27 : vector<53x32xf32>
    %29 = vector.extract_strided_slice %12 {offsets = [3, 0], sizes = [53, 16], strides = [1, 1]} : vector<68x16xf32> to vector<53x16xf32>
    %c3 = arith.constant 3 : index
    %c0_24 = arith.constant 0 : index
    %c0_25 = arith.constant 0 : index
    %30 = vector.load %arg4[%c3, %c0_24, %c0_25] : memref<16x16x32xf32, #tpu.memory_space<vmem>>, vector<1x16x32xf32>
    %31 = vector.shape_cast %30 : vector<1x16x32xf32> to vector<16x32xf32>
    %cst_26 = arith.constant dense<0.000000e+00> : vector<53x32xf32>
    %32 = tpu.matmul %29, %31, %cst_26 {dimension_numbers = #tpu.dot_dimension_numbers<[1], [0], [0], [1], [0, 0, 1, 1], [], []>} : vector<53x16xf32>, vector<16x32xf32>, vector<53x32xf32> -> vector<53x32xf32>
    %33 = arith.addf %28, %32 : vector<53x32xf32>
    %34 = vector.extract_strided_slice %12 {offsets = [4, 0], sizes = [53, 16], strides = [1, 1]} : vector<68x16xf32> to vector<53x16xf32>
    %c4 = arith.constant 4 : index
    %c0_27 = arith.constant 0 : index
    %c0_28 = arith.constant 0 : index
    %35 = vector.load %arg4[%c4, %c0_27, %c0_28] : memref<16x16x32xf32, #tpu.memory_space<vmem>>, vector<1x16x32xf32>
    %36 = vector.shape_cast %35 : vector<1x16x32xf32> to vector<16x32xf32>
    %cst_29 = arith.constant dense<0.000000e+00> : vector<53x32xf32>
    %37 = tpu.matmul %34, %36, %cst_29 {dimension_numbers = #tpu.dot_dimension_numbers<[1], [0], [0], [1], [0, 0, 1, 1], [], []>} : vector<53x16xf32>, vector<16x32xf32>, vector<53x32xf32> -> vector<53x32xf32>
    %38 = arith.addf %33, %37 : vector<53x32xf32>
    %39 = vector.extract_strided_slice %12 {offsets = [5, 0], sizes = [53, 16], strides = [1, 1]} : vector<68x16xf32> to vector<53x16xf32>
    %c5 = arith.constant 5 : index
    %c0_30 = arith.constant 0 : index
    %c0_31 = arith.constant 0 : index
    %40 = vector.load %arg4[%c5, %c0_30, %c0_31] : memref<16x16x32xf32, #tpu.memory_space<vmem>>, vector<1x16x32xf32>
    %41 = vector.shape_cast %40 : vector<1x16x32xf32> to vector<16x32xf32>
    %cst_32 = arith.constant dense<0.000000e+00> : vector<53x32xf32>
    %42 = tpu.matmul %39, %41, %cst_32 {dimension_numbers = #tpu.dot_dimension_numbers<[1], [0], [0], [1], [0, 0, 1, 1], [], []>} : vector<53x16xf32>, vector<16x32xf32>, vector<53x32xf32> -> vector<53x32xf32>
    %43 = arith.addf %38, %42 : vector<53x32xf32>
    %44 = vector.extract_strided_slice %12 {offsets = [6, 0], sizes = [53, 16], strides = [1, 1]} : vector<68x16xf32> to vector<53x16xf32>
    %c6 = arith.constant 6 : index
    %c0_33 = arith.constant 0 : index
    %c0_34 = arith.constant 0 : index
    %45 = vector.load %arg4[%c6, %c0_33, %c0_34] : memref<16x16x32xf32, #tpu.memory_space<vmem>>, vector<1x16x32xf32>
    %46 = vector.shape_cast %45 : vector<1x16x32xf32> to vector<16x32xf32>
    %cst_35 = arith.constant dense<0.000000e+00> : vector<53x32xf32>
    %47 = tpu.matmul %44, %46, %cst_35 {dimension_numbers = #tpu.dot_dimension_numbers<[1], [0], [0], [1], [0, 0, 1, 1], [], []>} : vector<53x16xf32>, vector<16x32xf32>, vector<53x32xf32> -> vector<53x32xf32>
    %48 = arith.addf %43, %47 : vector<53x32xf32>
    %49 = vector.extract_strided_slice %12 {offsets = [7, 0], sizes = [53, 16], strides = [1, 1]} : vector<68x16xf32> to vector<53x16xf32>
    %c7 = arith.constant 7 : index
    %c0_36 = arith.constant 0 : index
    %c0_37 = arith.constant 0 : index
    %50 = vector.load %arg4[%c7, %c0_36, %c0_37] : memref<16x16x32xf32, #tpu.memory_space<vmem>>, vector<1x16x32xf32>
    %51 = vector.shape_cast %50 : vector<1x16x32xf32> to vector<16x32xf32>
    %cst_38 = arith.constant dense<0.000000e+00> : vector<53x32xf32>
    %52 = tpu.matmul %49, %51, %cst_38 {dimension_numbers = #tpu.dot_dimension_numbers<[1], [0], [0], [1], [0, 0, 1, 1], [], []>} : vector<53x16xf32>, vector<16x32xf32>, vector<53x32xf32> -> vector<53x32xf32>
    %53 = arith.addf %48, %52 : vector<53x32xf32>
    %54 = vector.extract_strided_slice %12 {offsets = [8, 0], sizes = [53, 16], strides = [1, 1]} : vector<68x16xf32> to vector<53x16xf32>
    %c8 = arith.constant 8 : index
    %c0_39 = arith.constant 0 : index
    %c0_40 = arith.constant 0 : index
    %55 = vector.load %arg4[%c8, %c0_39, %c0_40] : memref<16x16x32xf32, #tpu.memory_space<vmem>>, vector<1x16x32xf32>
    %56 = vector.shape_cast %55 : vector<1x16x32xf32> to vector<16x32xf32>
    %cst_41 = arith.constant dense<0.000000e+00> : vector<53x32xf32>
    %57 = tpu.matmul %54, %56, %cst_41 {dimension_numbers = #tpu.dot_dimension_numbers<[1], [0], [0], [1], [0, 0, 1, 1], [], []>} : vector<53x16xf32>, vector<16x32xf32>, vector<53x32xf32> -> vector<53x32xf32>
    %58 = arith.addf %53, %57 : vector<53x32xf32>
    %59 = vector.extract_strided_slice %12 {offsets = [9, 0], sizes = [53, 16], strides = [1, 1]} : vector<68x16xf32> to vector<53x16xf32>
    %c9 = arith.constant 9 : index
    %c0_42 = arith.constant 0 : index
    %c0_43 = arith.constant 0 : index
    %60 = vector.load %arg4[%c9, %c0_42, %c0_43] : memref<16x16x32xf32, #tpu.memory_space<vmem>>, vector<1x16x32xf32>
    %61 = vector.shape_cast %60 : vector<1x16x32xf32> to vector<16x32xf32>
    %cst_44 = arith.constant dense<0.000000e+00> : vector<53x32xf32>
    %62 = tpu.matmul %59, %61, %cst_44 {dimension_numbers = #tpu.dot_dimension_numbers<[1], [0], [0], [1], [0, 0, 1, 1], [], []>} : vector<53x16xf32>, vector<16x32xf32>, vector<53x32xf32> -> vector<53x32xf32>
    %63 = arith.addf %58, %62 : vector<53x32xf32>
    %64 = vector.extract_strided_slice %12 {offsets = [10, 0], sizes = [53, 16], strides = [1, 1]} : vector<68x16xf32> to vector<53x16xf32>
    %c10 = arith.constant 10 : index
    %c0_45 = arith.constant 0 : index
    %c0_46 = arith.constant 0 : index
    %65 = vector.load %arg4[%c10, %c0_45, %c0_46] : memref<16x16x32xf32, #tpu.memory_space<vmem>>, vector<1x16x32xf32>
    %66 = vector.shape_cast %65 : vector<1x16x32xf32> to vector<16x32xf32>
    %cst_47 = arith.constant dense<0.000000e+00> : vector<53x32xf32>
    %67 = tpu.matmul %64, %66, %cst_47 {dimension_numbers = #tpu.dot_dimension_numbers<[1], [0], [0], [1], [0, 0, 1, 1], [], []>} : vector<53x16xf32>, vector<16x32xf32>, vector<53x32xf32> -> vector<53x32xf32>
    %68 = arith.addf %63, %67 : vector<53x32xf32>
    %69 = vector.extract_strided_slice %12 {offsets = [11, 0], sizes = [53, 16], strides = [1, 1]} : vector<68x16xf32> to vector<53x16xf32>
    %c11 = arith.constant 11 : index
    %c0_48 = arith.constant 0 : index
    %c0_49 = arith.constant 0 : index
    %70 = vector.load %arg4[%c11, %c0_48, %c0_49] : memref<16x16x32xf32, #tpu.memory_space<vmem>>, vector<1x16x32xf32>
    %71 = vector.shape_cast %70 : vector<1x16x32xf32> to vector<16x32xf32>
    %cst_50 = arith.constant dense<0.000000e+00> : vector<53x32xf32>
    %72 = tpu.matmul %69, %71, %cst_50 {dimension_numbers = #tpu.dot_dimension_numbers<[1], [0], [0], [1], [0, 0, 1, 1], [], []>} : vector<53x16xf32>, vector<16x32xf32>, vector<53x32xf32> -> vector<53x32xf32>
    %73 = arith.addf %68, %72 : vector<53x32xf32>
    %74 = vector.extract_strided_slice %12 {offsets = [12, 0], sizes = [53, 16], strides = [1, 1]} : vector<68x16xf32> to vector<53x16xf32>
    %c12 = arith.constant 12 : index
    %c0_51 = arith.constant 0 : index
    %c0_52 = arith.constant 0 : index
    %75 = vector.load %arg4[%c12, %c0_51, %c0_52] : memref<16x16x32xf32, #tpu.memory_space<vmem>>, vector<1x16x32xf32>
    %76 = vector.shape_cast %75 : vector<1x16x32xf32> to vector<16x32xf32>
    %cst_53 = arith.constant dense<0.000000e+00> : vector<53x32xf32>
    %77 = tpu.matmul %74, %76, %cst_53 {dimension_numbers = #tpu.dot_dimension_numbers<[1], [0], [0], [1], [0, 0, 1, 1], [], []>} : vector<53x16xf32>, vector<16x32xf32>, vector<53x32xf32> -> vector<53x32xf32>
    %78 = arith.addf %73, %77 : vector<53x32xf32>
    %79 = vector.extract_strided_slice %12 {offsets = [13, 0], sizes = [53, 16], strides = [1, 1]} : vector<68x16xf32> to vector<53x16xf32>
    %c13 = arith.constant 13 : index
    %c0_54 = arith.constant 0 : index
    %c0_55 = arith.constant 0 : index
    %80 = vector.load %arg4[%c13, %c0_54, %c0_55] : memref<16x16x32xf32, #tpu.memory_space<vmem>>, vector<1x16x32xf32>
    %81 = vector.shape_cast %80 : vector<1x16x32xf32> to vector<16x32xf32>
    %cst_56 = arith.constant dense<0.000000e+00> : vector<53x32xf32>
    %82 = tpu.matmul %79, %81, %cst_56 {dimension_numbers = #tpu.dot_dimension_numbers<[1], [0], [0], [1], [0, 0, 1, 1], [], []>} : vector<53x16xf32>, vector<16x32xf32>, vector<53x32xf32> -> vector<53x32xf32>
    %83 = arith.addf %78, %82 : vector<53x32xf32>
    %84 = vector.extract_strided_slice %12 {offsets = [14, 0], sizes = [53, 16], strides = [1, 1]} : vector<68x16xf32> to vector<53x16xf32>
    %c14 = arith.constant 14 : index
    %c0_57 = arith.constant 0 : index
    %c0_58 = arith.constant 0 : index
    %85 = vector.load %arg4[%c14, %c0_57, %c0_58] : memref<16x16x32xf32, #tpu.memory_space<vmem>>, vector<1x16x32xf32>
    %86 = vector.shape_cast %85 : vector<1x16x32xf32> to vector<16x32xf32>
    %cst_59 = arith.constant dense<0.000000e+00> : vector<53x32xf32>
    %87 = tpu.matmul %84, %86, %cst_59 {dimension_numbers = #tpu.dot_dimension_numbers<[1], [0], [0], [1], [0, 0, 1, 1], [], []>} : vector<53x16xf32>, vector<16x32xf32>, vector<53x32xf32> -> vector<53x32xf32>
    %88 = arith.addf %83, %87 : vector<53x32xf32>
    %89 = vector.extract_strided_slice %12 {offsets = [15, 0], sizes = [53, 16], strides = [1, 1]} : vector<68x16xf32> to vector<53x16xf32>
    %c15 = arith.constant 15 : index
    %c0_60 = arith.constant 0 : index
    %c0_61 = arith.constant 0 : index
    %90 = vector.load %arg4[%c15, %c0_60, %c0_61] : memref<16x16x32xf32, #tpu.memory_space<vmem>>, vector<1x16x32xf32>
    %91 = vector.shape_cast %90 : vector<1x16x32xf32> to vector<16x32xf32>
    %cst_62 = arith.constant dense<0.000000e+00> : vector<53x32xf32>
    %92 = tpu.matmul %89, %91, %cst_62 {dimension_numbers = #tpu.dot_dimension_numbers<[1], [0], [0], [1], [0, 0, 1, 1], [], []>} : vector<53x16xf32>, vector<16x32xf32>, vector<53x32xf32> -> vector<53x32xf32>
    %93 = arith.addf %88, %92 : vector<53x32xf32>
    %c0_63 = arith.constant 0 : index
    %c0_64 = arith.constant 0 : index
    %94 = vector.load %arg5[%c0_63, %c0_64] : memref<1x32xf32, #tpu.memory_space<vmem>>, vector<1x32xf32>
    %95 = vector.broadcast %94 : vector<1x32xf32> to vector<53x32xf32>
    %96 = arith.addf %93, %95 : vector<53x32xf32>
    %cst_65 = arith.constant 0.000000e+00 : f32
    %97 = vector.broadcast %cst_65 : f32 to vector<53x32xf32>
    %98 = arith.maximumf %96, %97 : vector<53x32xf32>
    %c0_66 = arith.constant 0 : index
    %c0_67 = arith.constant 0 : index
    %99 = vector.load %arg12[%c0_66, %c0_67] : memref<53x32xf32, #tpu.memory_space<vmem>>, vector<53x32xf32>
    tpu.vector_store %arg12[%c0_66, %c0_67], %98 {strides = array<i32>} : memref<53x32xf32, #tpu.memory_space<vmem>>, vector<53x32xf32>,
    %c0_68 = arith.constant 0 : index
    %c0_69 = arith.constant 0 : index
    %100 = tpu.strided_load %arg12[%c0_68, %c0_69] {strides = array<i32: 2, 1>} : memref<53x32xf32, #tpu.memory_space<vmem>>, vector<26x32xf32>
    %c1_70 = arith.constant 1 : index
    %c0_71 = arith.constant 0 : index
    %101 = tpu.strided_load %arg12[%c1_70, %c0_71] {strides = array<i32: 2, 1>} : memref<53x32xf32, #tpu.memory_space<vmem>>, vector<26x32xf32>
    %102 = arith.maximumf %100, %101 : vector<26x32xf32>
    %cst_72 = arith.constant 0.000000e+00 : f32
    %103 = vector.broadcast %cst_72 : f32 to vector<22x64xf32>
    %104 = vector.extract_strided_slice %102 {offsets = [0, 0], sizes = [22, 32], strides = [1, 1]} : vector<26x32xf32> to vector<22x32xf32>
    %c0_73 = arith.constant 0 : index
    %c0_74 = arith.constant 0 : index
    %c0_75 = arith.constant 0 : index
    %105 = vector.load %arg6[%c0_73, %c0_74, %c0_75] : memref<5x32x64xf32, #tpu.memory_space<vmem>>, vector<1x32x64xf32>
    %106 = vector.shape_cast %105 : vector<1x32x64xf32> to vector<32x64xf32>
    %cst_76 = arith.constant dense<0.000000e+00> : vector<22x64xf32>
    %107 = tpu.matmul %104, %106, %cst_76 {dimension_numbers = #tpu.dot_dimension_numbers<[1], [0], [0], [1], [0, 0, 1, 1], [], []>} : vector<22x32xf32>, vector<32x64xf32>, vector<22x64xf32> -> vector<22x64xf32>
    %108 = arith.addf %103, %107 : vector<22x64xf32>
    %109 = vector.extract_strided_slice %102 {offsets = [1, 0], sizes = [22, 32], strides = [1, 1]} : vector<26x32xf32> to vector<22x32xf32>
    %c1_77 = arith.constant 1 : index
    %c0_78 = arith.constant 0 : index
    %c0_79 = arith.constant 0 : index
    %110 = vector.load %arg6[%c1_77, %c0_78, %c0_79] : memref<5x32x64xf32, #tpu.memory_space<vmem>>, vector<1x32x64xf32>
    %111 = vector.shape_cast %110 : vector<1x32x64xf32> to vector<32x64xf32>
    %cst_80 = arith.constant dense<0.000000e+00> : vector<22x64xf32>
    %112 = tpu.matmul %109, %111, %cst_80 {dimension_numbers = #tpu.dot_dimension_numbers<[1], [0], [0], [1], [0, 0, 1, 1], [], []>} : vector<22x32xf32>, vector<32x64xf32>, vector<22x64xf32> -> vector<22x64xf32>
    %113 = arith.addf %108, %112 : vector<22x64xf32>
    %114 = vector.extract_strided_slice %102 {offsets = [2, 0], sizes = [22, 32], strides = [1, 1]} : vector<26x32xf32> to vector<22x32xf32>
    %c2_81 = arith.constant 2 : index
    %c0_82 = arith.constant 0 : index
    %c0_83 = arith.constant 0 : index
    %115 = vector.load %arg6[%c2_81, %c0_82, %c0_83] : memref<5x32x64xf32, #tpu.memory_space<vmem>>, vector<1x32x64xf32>
    %116 = vector.shape_cast %115 : vector<1x32x64xf32> to vector<32x64xf32>
    %cst_84 = arith.constant dense<0.000000e+00> : vector<22x64xf32>
    %117 = tpu.matmul %114, %116, %cst_84 {dimension_numbers = #tpu.dot_dimension_numbers<[1], [0], [0], [1], [0, 0, 1, 1], [], []>} : vector<22x32xf32>, vector<32x64xf32>, vector<22x64xf32> -> vector<22x64xf32>
    %118 = arith.addf %113, %117 : vector<22x64xf32>
    %119 = vector.extract_strided_slice %102 {offsets = [3, 0], sizes = [22, 32], strides = [1, 1]} : vector<26x32xf32> to vector<22x32xf32>
    %c3_85 = arith.constant 3 : index
    %c0_86 = arith.constant 0 : index
    %c0_87 = arith.constant 0 : index
    %120 = vector.load %arg6[%c3_85, %c0_86, %c0_87] : memref<5x32x64xf32, #tpu.memory_space<vmem>>, vector<1x32x64xf32>
    %121 = vector.shape_cast %120 : vector<1x32x64xf32> to vector<32x64xf32>
    %cst_88 = arith.constant dense<0.000000e+00> : vector<22x64xf32>
    %122 = tpu.matmul %119, %121, %cst_88 {dimension_numbers = #tpu.dot_dimension_numbers<[1], [0], [0], [1], [0, 0, 1, 1], [], []>} : vector<22x32xf32>, vector<32x64xf32>, vector<22x64xf32> -> vector<22x64xf32>
    %123 = arith.addf %118, %122 : vector<22x64xf32>
    %124 = vector.extract_strided_slice %102 {offsets = [4, 0], sizes = [22, 32], strides = [1, 1]} : vector<26x32xf32> to vector<22x32xf32>
    %c4_89 = arith.constant 4 : index
    %c0_90 = arith.constant 0 : index
    %c0_91 = arith.constant 0 : index
    %125 = vector.load %arg6[%c4_89, %c0_90, %c0_91] : memref<5x32x64xf32, #tpu.memory_space<vmem>>, vector<1x32x64xf32>
    %126 = vector.shape_cast %125 : vector<1x32x64xf32> to vector<32x64xf32>
    %cst_92 = arith.constant dense<0.000000e+00> : vector<22x64xf32>
    %127 = tpu.matmul %124, %126, %cst_92 {dimension_numbers = #tpu.dot_dimension_numbers<[1], [0], [0], [1], [0, 0, 1, 1], [], []>} : vector<22x32xf32>, vector<32x64xf32>, vector<22x64xf32> -> vector<22x64xf32>
    %128 = arith.addf %123, %127 : vector<22x64xf32>
    %c0_93 = arith.constant 0 : index
    %c0_94 = arith.constant 0 : index
    %129 = vector.load %arg7[%c0_93, %c0_94] : memref<1x64xf32, #tpu.memory_space<vmem>>, vector<1x64xf32>
    %130 = vector.broadcast %129 : vector<1x64xf32> to vector<22x64xf32>
    %131 = arith.addf %128, %130 : vector<22x64xf32>
    %cst_95 = arith.constant 0.000000e+00 : f32
    %132 = vector.broadcast %cst_95 : f32 to vector<22x64xf32>
    %133 = arith.maximumf %131, %132 : vector<22x64xf32>
    %c0_96 = arith.constant 0 : index
    %c0_97 = arith.constant 0 : index
    %134 = vector.load %arg13[%c0_96, %c0_97] : memref<22x64xf32, #tpu.memory_space<vmem>>, vector<22x64xf32>
    tpu.vector_store %arg13[%c0_96, %c0_97], %133 {strides = array<i32>} : memref<22x64xf32, #tpu.memory_space<vmem>>, vector<22x64xf32>,
    %c0_98 = arith.constant 0 : index
    %c0_99 = arith.constant 0 : index
    %135 = tpu.strided_load %arg13[%c0_98, %c0_99] {strides = array<i32: 2, 1>} : memref<22x64xf32, #tpu.memory_space<vmem>>, vector<11x64xf32>
    %c1_100 = arith.constant 1 : index
    %c0_101 = arith.constant 0 : index
    %136 = tpu.strided_load %arg13[%c1_100, %c0_101] {strides = array<i32: 2, 1>} : memref<22x64xf32, #tpu.memory_space<vmem>>, vector<11x64xf32>
    %137 = arith.maximumf %135, %136 : vector<11x64xf32>
    %cst_102 = arith.constant 0.000000e+00 : f32
    %138 = vector.broadcast %cst_102 : f32 to vector<7x64xf32>
    %139 = vector.extract_strided_slice %137 {offsets = [0, 0], sizes = [7, 64], strides = [1, 1]} : vector<11x64xf32> to vector<7x64xf32>
    %c0_103 = arith.constant 0 : index
    %c0_104 = arith.constant 0 : index
    %c0_105 = arith.constant 0 : index
    %140 = vector.load %arg8[%c0_103, %c0_104, %c0_105] : memref<5x64x64xf32, #tpu.memory_space<vmem>>, vector<1x64x64xf32>
    %141 = vector.shape_cast %140 : vector<1x64x64xf32> to vector<64x64xf32>
    %cst_106 = arith.constant dense<0.000000e+00> : vector<7x64xf32>
    %142 = tpu.matmul %139, %141, %cst_106 {dimension_numbers = #tpu.dot_dimension_numbers<[1], [0], [0], [1], [0, 0, 1, 1], [], []>} : vector<7x64xf32>, vector<64x64xf32>, vector<7x64xf32> -> vector<7x64xf32>
    %143 = arith.addf %138, %142 : vector<7x64xf32>
    %144 = vector.extract_strided_slice %137 {offsets = [1, 0], sizes = [7, 64], strides = [1, 1]} : vector<11x64xf32> to vector<7x64xf32>
    %c1_107 = arith.constant 1 : index
    %c0_108 = arith.constant 0 : index
    %c0_109 = arith.constant 0 : index
    %145 = vector.load %arg8[%c1_107, %c0_108, %c0_109] : memref<5x64x64xf32, #tpu.memory_space<vmem>>, vector<1x64x64xf32>
    %146 = vector.shape_cast %145 : vector<1x64x64xf32> to vector<64x64xf32>
    %cst_110 = arith.constant dense<0.000000e+00> : vector<7x64xf32>
    %147 = tpu.matmul %144, %146, %cst_110 {dimension_numbers = #tpu.dot_dimension_numbers<[1], [0], [0], [1], [0, 0, 1, 1], [], []>} : vector<7x64xf32>, vector<64x64xf32>, vector<7x64xf32> -> vector<7x64xf32>
    %148 = arith.addf %143, %147 : vector<7x64xf32>
    %149 = vector.extract_strided_slice %137 {offsets = [2, 0], sizes = [7, 64], strides = [1, 1]} : vector<11x64xf32> to vector<7x64xf32>
    %c2_111 = arith.constant 2 : index
    %c0_112 = arith.constant 0 : index
    %c0_113 = arith.constant 0 : index
    %150 = vector.load %arg8[%c2_111, %c0_112, %c0_113] : memref<5x64x64xf32, #tpu.memory_space<vmem>>, vector<1x64x64xf32>
    %151 = vector.shape_cast %150 : vector<1x64x64xf32> to vector<64x64xf32>
    %cst_114 = arith.constant dense<0.000000e+00> : vector<7x64xf32>
    %152 = tpu.matmul %149, %151, %cst_114 {dimension_numbers = #tpu.dot_dimension_numbers<[1], [0], [0], [1], [0, 0, 1, 1], [], []>} : vector<7x64xf32>, vector<64x64xf32>, vector<7x64xf32> -> vector<7x64xf32>
    %153 = arith.addf %148, %152 : vector<7x64xf32>
    %154 = vector.extract_strided_slice %137 {offsets = [3, 0], sizes = [7, 64], strides = [1, 1]} : vector<11x64xf32> to vector<7x64xf32>
    %c3_115 = arith.constant 3 : index
    %c0_116 = arith.constant 0 : index
    %c0_117 = arith.constant 0 : index
    %155 = vector.load %arg8[%c3_115, %c0_116, %c0_117] : memref<5x64x64xf32, #tpu.memory_space<vmem>>, vector<1x64x64xf32>
    %156 = vector.shape_cast %155 : vector<1x64x64xf32> to vector<64x64xf32>
    %cst_118 = arith.constant dense<0.000000e+00> : vector<7x64xf32>
    %157 = tpu.matmul %154, %156, %cst_118 {dimension_numbers = #tpu.dot_dimension_numbers<[1], [0], [0], [1], [0, 0, 1, 1], [], []>} : vector<7x64xf32>, vector<64x64xf32>, vector<7x64xf32> -> vector<7x64xf32>
    %158 = arith.addf %153, %157 : vector<7x64xf32>
    %159 = vector.extract_strided_slice %137 {offsets = [4, 0], sizes = [7, 64], strides = [1, 1]} : vector<11x64xf32> to vector<7x64xf32>
    %c4_119 = arith.constant 4 : index
    %c0_120 = arith.constant 0 : index
    %c0_121 = arith.constant 0 : index
    %160 = vector.load %arg8[%c4_119, %c0_120, %c0_121] : memref<5x64x64xf32, #tpu.memory_space<vmem>>, vector<1x64x64xf32>
    %161 = vector.shape_cast %160 : vector<1x64x64xf32> to vector<64x64xf32>
    %cst_122 = arith.constant dense<0.000000e+00> : vector<7x64xf32>
    %162 = tpu.matmul %159, %161, %cst_122 {dimension_numbers = #tpu.dot_dimension_numbers<[1], [0], [0], [1], [0, 0, 1, 1], [], []>} : vector<7x64xf32>, vector<64x64xf32>, vector<7x64xf32> -> vector<7x64xf32>
    %163 = arith.addf %158, %162 : vector<7x64xf32>
    %c0_123 = arith.constant 0 : index
    %c0_124 = arith.constant 0 : index
    %164 = vector.load %arg9[%c0_123, %c0_124] : memref<1x64xf32, #tpu.memory_space<vmem>>, vector<1x64xf32>
    %165 = vector.broadcast %164 : vector<1x64xf32> to vector<7x64xf32>
    %166 = arith.addf %163, %165 : vector<7x64xf32>
    %cst_125 = arith.constant 0.000000e+00 : f32
    %167 = vector.broadcast %cst_125 : f32 to vector<7x64xf32>
    %168 = arith.maximumf %166, %167 : vector<7x64xf32>
    %169 = vector.extract_strided_slice %168 {offsets = [0, 0], sizes = [2, 64], strides = [1, 1]} : vector<7x64xf32> to vector<2x64xf32>
    %cst_126 = arith.constant dense<0xFF800000> : vector<64xf32>
    %170 = vector.multi_reduction <maximumf>, %169, %cst_126 [0] : vector<2x64xf32> to vector<64xf32>
    %171 = vector.shape_cast %170 : vector<64xf32> to vector<1x64xf32>
    %172 = vector.extract_strided_slice %168 {offsets = [1, 0], sizes = [3, 64], strides = [1, 1]} : vector<7x64xf32> to vector<3x64xf32>
    %cst_127 = arith.constant dense<0xFF800000> : vector<64xf32>
    %173 = vector.multi_reduction <maximumf>, %172, %cst_127 [0] : vector<3x64xf32> to vector<64xf32>
    %174 = vector.shape_cast %173 : vector<64xf32> to vector<1x64xf32>
    %175 = vector.extract_strided_slice %168 {offsets = [3, 0], sizes = [3, 64], strides = [1, 1]} : vector<7x64xf32> to vector<3x64xf32>
    %cst_128 = arith.constant dense<0xFF800000> : vector<64xf32>
    %176 = vector.multi_reduction <maximumf>, %175, %cst_128 [0] : vector<3x64xf32> to vector<64xf32>
    %177 = vector.shape_cast %176 : vector<64xf32> to vector<1x64xf32>
    %178 = vector.extract_strided_slice %168 {offsets = [5, 0], sizes = [2, 64], strides = [1, 1]} : vector<7x64xf32> to vector<2x64xf32>
    %cst_129 = arith.constant dense<0xFF800000> : vector<64xf32>
    %179 = vector.multi_reduction <maximumf>, %178, %cst_129 [0] : vector<2x64xf32> to vector<64xf32>
    %180 = vector.shape_cast %179 : vector<64xf32> to vector<1x64xf32>
    %181 = tpu.concatenate %171, %174, %177, %180 in 0 : vector<1x64xf32>, vector<1x64xf32>, vector<1x64xf32>, vector<1x64xf32> -> vector<4x64xf32>
    %c0_130 = arith.constant 0 : index
    %c0_131 = arith.constant 0 : index
    %c0_132 = arith.constant 0 : index
    %c0_133 = arith.constant 0 : index
    %182 = vector.load %arg10[%c0_130, %c0_131, %c0_132, %c0_133] : memref<1x2x4x64xf32, #tpu.memory_space<vmem>>, vector<1x1x4x64xf32>
    %183 = vector.shape_cast %182 : vector<1x1x4x64xf32> to vector<4x64xf32>
    %184 = vector.shape_cast %181 : vector<4x64xf32> to vector<1x1x4x64xf32>
    tpu.vector_store %arg10[%c0_130, %c0_131, %c0_132, %c0_133], %184 {strides = array<i32>} : memref<1x2x4x64xf32, #tpu.memory_space<vmem>>, vector<1x1x4x64xf32>,
    %c137 = arith.constant 137 : index
    %c0_134 = arith.constant 0 : index
    %185 = tpu.strided_load %arg11[%c137, %c0_134] {strides = array<i32: 2, 1>} : memref<274x16xf32, #tpu.memory_space<vmem>>, vector<68x16xf32>
    %c138 = arith.constant 138 : index
    %c0_135 = arith.constant 0 : index
    %186 = tpu.strided_load %arg11[%c138, %c0_135] {strides = array<i32: 2, 1>} : memref<274x16xf32, #tpu.memory_space<vmem>>, vector<68x16xf32>
    %187 = arith.maximumf %185, %186 : vector<68x16xf32>
    %cst_136 = arith.constant 0.000000e+00 : f32
    %188 = vector.broadcast %cst_136 : f32 to vector<53x32xf32>
    %189 = vector.extract_strided_slice %187 {offsets = [0, 0], sizes = [53, 16], strides = [1, 1]} : vector<68x16xf32> to vector<53x16xf32>
    %c0_137 = arith.constant 0 : index
    %c0_138 = arith.constant 0 : index
    %c0_139 = arith.constant 0 : index
    %190 = vector.load %arg4[%c0_137, %c0_138, %c0_139] : memref<16x16x32xf32, #tpu.memory_space<vmem>>, vector<1x16x32xf32>
    %191 = vector.shape_cast %190 : vector<1x16x32xf32> to vector<16x32xf32>
    %cst_140 = arith.constant dense<0.000000e+00> : vector<53x32xf32>
    %192 = tpu.matmul %189, %191, %cst_140 {dimension_numbers = #tpu.dot_dimension_numbers<[1], [0], [0], [1], [0, 0, 1, 1], [], []>} : vector<53x16xf32>, vector<16x32xf32>, vector<53x32xf32> -> vector<53x32xf32>
    %193 = arith.addf %188, %192 : vector<53x32xf32>
    %194 = vector.extract_strided_slice %187 {offsets = [1, 0], sizes = [53, 16], strides = [1, 1]} : vector<68x16xf32> to vector<53x16xf32>
    %c1_141 = arith.constant 1 : index
    %c0_142 = arith.constant 0 : index
    %c0_143 = arith.constant 0 : index
    %195 = vector.load %arg4[%c1_141, %c0_142, %c0_143] : memref<16x16x32xf32, #tpu.memory_space<vmem>>, vector<1x16x32xf32>
    %196 = vector.shape_cast %195 : vector<1x16x32xf32> to vector<16x32xf32>
    %cst_144 = arith.constant dense<0.000000e+00> : vector<53x32xf32>
    %197 = tpu.matmul %194, %196, %cst_144 {dimension_numbers = #tpu.dot_dimension_numbers<[1], [0], [0], [1], [0, 0, 1, 1], [], []>} : vector<53x16xf32>, vector<16x32xf32>, vector<53x32xf32> -> vector<53x32xf32>
    %198 = arith.addf %193, %197 : vector<53x32xf32>
    %199 = vector.extract_strided_slice %187 {offsets = [2, 0], sizes = [53, 16], strides = [1, 1]} : vector<68x16xf32> to vector<53x16xf32>
    %c2_145 = arith.constant 2 : index
    %c0_146 = arith.constant 0 : index
    %c0_147 = arith.constant 0 : index
    %200 = vector.load %arg4[%c2_145, %c0_146, %c0_147] : memref<16x16x32xf32, #tpu.memory_space<vmem>>, vector<1x16x32xf32>
    %201 = vector.shape_cast %200 : vector<1x16x32xf32> to vector<16x32xf32>
    %cst_148 = arith.constant dense<0.000000e+00> : vector<53x32xf32>
    %202 = tpu.matmul %199, %201, %cst_148 {dimension_numbers = #tpu.dot_dimension_numbers<[1], [0], [0], [1], [0, 0, 1, 1], [], []>} : vector<53x16xf32>, vector<16x32xf32>, vector<53x32xf32> -> vector<53x32xf32>
    %203 = arith.addf %198, %202 : vector<53x32xf32>
    %204 = vector.extract_strided_slice %187 {offsets = [3, 0], sizes = [53, 16], strides = [1, 1]} : vector<68x16xf32> to vector<53x16xf32>
    %c3_149 = arith.constant 3 : index
    %c0_150 = arith.constant 0 : index
    %c0_151 = arith.constant 0 : index
    %205 = vector.load %arg4[%c3_149, %c0_150, %c0_151] : memref<16x16x32xf32, #tpu.memory_space<vmem>>, vector<1x16x32xf32>
    %206 = vector.shape_cast %205 : vector<1x16x32xf32> to vector<16x32xf32>
    %cst_152 = arith.constant dense<0.000000e+00> : vector<53x32xf32>
    %207 = tpu.matmul %204, %206, %cst_152 {dimension_numbers = #tpu.dot_dimension_numbers<[1], [0], [0], [1], [0, 0, 1, 1], [], []>} : vector<53x16xf32>, vector<16x32xf32>, vector<53x32xf32> -> vector<53x32xf32>
    %208 = arith.addf %203, %207 : vector<53x32xf32>
    %209 = vector.extract_strided_slice %187 {offsets = [4, 0], sizes = [53, 16], strides = [1, 1]} : vector<68x16xf32> to vector<53x16xf32>
    %c4_153 = arith.constant 4 : index
    %c0_154 = arith.constant 0 : index
    %c0_155 = arith.constant 0 : index
    %210 = vector.load %arg4[%c4_153, %c0_154, %c0_155] : memref<16x16x32xf32, #tpu.memory_space<vmem>>, vector<1x16x32xf32>
    %211 = vector.shape_cast %210 : vector<1x16x32xf32> to vector<16x32xf32>
    %cst_156 = arith.constant dense<0.000000e+00> : vector<53x32xf32>
    %212 = tpu.matmul %209, %211, %cst_156 {dimension_numbers = #tpu.dot_dimension_numbers<[1], [0], [0], [1], [0, 0, 1, 1], [], []>} : vector<53x16xf32>, vector<16x32xf32>, vector<53x32xf32> -> vector<53x32xf32>
    %213 = arith.addf %208, %212 : vector<53x32xf32>
    %214 = vector.extract_strided_slice %187 {offsets = [5, 0], sizes = [53, 16], strides = [1, 1]} : vector<68x16xf32> to vector<53x16xf32>
    %c5_157 = arith.constant 5 : index
    %c0_158 = arith.constant 0 : index
    %c0_159 = arith.constant 0 : index
    %215 = vector.load %arg4[%c5_157, %c0_158, %c0_159] : memref<16x16x32xf32, #tpu.memory_space<vmem>>, vector<1x16x32xf32>
    %216 = vector.shape_cast %215 : vector<1x16x32xf32> to vector<16x32xf32>
    %cst_160 = arith.constant dense<0.000000e+00> : vector<53x32xf32>
    %217 = tpu.matmul %214, %216, %cst_160 {dimension_numbers = #tpu.dot_dimension_numbers<[1], [0], [0], [1], [0, 0, 1, 1], [], []>} : vector<53x16xf32>, vector<16x32xf32>, vector<53x32xf32> -> vector<53x32xf32>
    %218 = arith.addf %213, %217 : vector<53x32xf32>
    %219 = vector.extract_strided_slice %187 {offsets = [6, 0], sizes = [53, 16], strides = [1, 1]} : vector<68x16xf32> to vector<53x16xf32>
    %c6_161 = arith.constant 6 : index
    %c0_162 = arith.constant 0 : index
    %c0_163 = arith.constant 0 : index
    %220 = vector.load %arg4[%c6_161, %c0_162, %c0_163] : memref<16x16x32xf32, #tpu.memory_space<vmem>>, vector<1x16x32xf32>
    %221 = vector.shape_cast %220 : vector<1x16x32xf32> to vector<16x32xf32>
    %cst_164 = arith.constant dense<0.000000e+00> : vector<53x32xf32>
    %222 = tpu.matmul %219, %221, %cst_164 {dimension_numbers = #tpu.dot_dimension_numbers<[1], [0], [0], [1], [0, 0, 1, 1], [], []>} : vector<53x16xf32>, vector<16x32xf32>, vector<53x32xf32> -> vector<53x32xf32>
    %223 = arith.addf %218, %222 : vector<53x32xf32>
    %224 = vector.extract_strided_slice %187 {offsets = [7, 0], sizes = [53, 16], strides = [1, 1]} : vector<68x16xf32> to vector<53x16xf32>
    %c7_165 = arith.constant 7 : index
    %c0_166 = arith.constant 0 : index
    %c0_167 = arith.constant 0 : index
    %225 = vector.load %arg4[%c7_165, %c0_166, %c0_167] : memref<16x16x32xf32, #tpu.memory_space<vmem>>, vector<1x16x32xf32>
    %226 = vector.shape_cast %225 : vector<1x16x32xf32> to vector<16x32xf32>
    %cst_168 = arith.constant dense<0.000000e+00> : vector<53x32xf32>
    %227 = tpu.matmul %224, %226, %cst_168 {dimension_numbers = #tpu.dot_dimension_numbers<[1], [0], [0], [1], [0, 0, 1, 1], [], []>} : vector<53x16xf32>, vector<16x32xf32>, vector<53x32xf32> -> vector<53x32xf32>
    %228 = arith.addf %223, %227 : vector<53x32xf32>
    %229 = vector.extract_strided_slice %187 {offsets = [8, 0], sizes = [53, 16], strides = [1, 1]} : vector<68x16xf32> to vector<53x16xf32>
    %c8_169 = arith.constant 8 : index
    %c0_170 = arith.constant 0 : index
    %c0_171 = arith.constant 0 : index
    %230 = vector.load %arg4[%c8_169, %c0_170, %c0_171] : memref<16x16x32xf32, #tpu.memory_space<vmem>>, vector<1x16x32xf32>
    %231 = vector.shape_cast %230 : vector<1x16x32xf32> to vector<16x32xf32>
    %cst_172 = arith.constant dense<0.000000e+00> : vector<53x32xf32>
    %232 = tpu.matmul %229, %231, %cst_172 {dimension_numbers = #tpu.dot_dimension_numbers<[1], [0], [0], [1], [0, 0, 1, 1], [], []>} : vector<53x16xf32>, vector<16x32xf32>, vector<53x32xf32> -> vector<53x32xf32>
    %233 = arith.addf %228, %232 : vector<53x32xf32>
    %234 = vector.extract_strided_slice %187 {offsets = [9, 0], sizes = [53, 16], strides = [1, 1]} : vector<68x16xf32> to vector<53x16xf32>
    %c9_173 = arith.constant 9 : index
    %c0_174 = arith.constant 0 : index
    %c0_175 = arith.constant 0 : index
    %235 = vector.load %arg4[%c9_173, %c0_174, %c0_175] : memref<16x16x32xf32, #tpu.memory_space<vmem>>, vector<1x16x32xf32>
    %236 = vector.shape_cast %235 : vector<1x16x32xf32> to vector<16x32xf32>
    %cst_176 = arith.constant dense<0.000000e+00> : vector<53x32xf32>
    %237 = tpu.matmul %234, %236, %cst_176 {dimension_numbers = #tpu.dot_dimension_numbers<[1], [0], [0], [1], [0, 0, 1, 1], [], []>} : vector<53x16xf32>, vector<16x32xf32>, vector<53x32xf32> -> vector<53x32xf32>
    %238 = arith.addf %233, %237 : vector<53x32xf32>
    %239 = vector.extract_strided_slice %187 {offsets = [10, 0], sizes = [53, 16], strides = [1, 1]} : vector<68x16xf32> to vector<53x16xf32>
    %c10_177 = arith.constant 10 : index
    %c0_178 = arith.constant 0 : index
    %c0_179 = arith.constant 0 : index
    %240 = vector.load %arg4[%c10_177, %c0_178, %c0_179] : memref<16x16x32xf32, #tpu.memory_space<vmem>>, vector<1x16x32xf32>
    %241 = vector.shape_cast %240 : vector<1x16x32xf32> to vector<16x32xf32>
    %cst_180 = arith.constant dense<0.000000e+00> : vector<53x32xf32>
    %242 = tpu.matmul %239, %241, %cst_180 {dimension_numbers = #tpu.dot_dimension_numbers<[1], [0], [0], [1], [0, 0, 1, 1], [], []>} : vector<53x16xf32>, vector<16x32xf32>, vector<53x32xf32> -> vector<53x32xf32>
    %243 = arith.addf %238, %242 : vector<53x32xf32>
    %244 = vector.extract_strided_slice %187 {offsets = [11, 0], sizes = [53, 16], strides = [1, 1]} : vector<68x16xf32> to vector<53x16xf32>
    %c11_181 = arith.constant 11 : index
    %c0_182 = arith.constant 0 : index
    %c0_183 = arith.constant 0 : index
    %245 = vector.load %arg4[%c11_181, %c0_182, %c0_183] : memref<16x16x32xf32, #tpu.memory_space<vmem>>, vector<1x16x32xf32>
    %246 = vector.shape_cast %245 : vector<1x16x32xf32> to vector<16x32xf32>
    %cst_184 = arith.constant dense<0.000000e+00> : vector<53x32xf32>
    %247 = tpu.matmul %244, %246, %cst_184 {dimension_numbers = #tpu.dot_dimension_numbers<[1], [0], [0], [1], [0, 0, 1, 1], [], []>} : vector<53x16xf32>, vector<16x32xf32>, vector<53x32xf32> -> vector<53x32xf32>
    %248 = arith.addf %243, %247 : vector<53x32xf32>
    %249 = vector.extract_strided_slice %187 {offsets = [12, 0], sizes = [53, 16], strides = [1, 1]} : vector<68x16xf32> to vector<53x16xf32>
    %c12_185 = arith.constant 12 : index
    %c0_186 = arith.constant 0 : index
    %c0_187 = arith.constant 0 : index
    %250 = vector.load %arg4[%c12_185, %c0_186, %c0_187] : memref<16x16x32xf32, #tpu.memory_space<vmem>>, vector<1x16x32xf32>
    %251 = vector.shape_cast %250 : vector<1x16x32xf32> to vector<16x32xf32>
    %cst_188 = arith.constant dense<0.000000e+00> : vector<53x32xf32>
    %252 = tpu.matmul %249, %251, %cst_188 {dimension_numbers = #tpu.dot_dimension_numbers<[1], [0], [0], [1], [0, 0, 1, 1], [], []>} : vector<53x16xf32>, vector<16x32xf32>, vector<53x32xf32> -> vector<53x32xf32>
    %253 = arith.addf %248, %252 : vector<53x32xf32>
    %254 = vector.extract_strided_slice %187 {offsets = [13, 0], sizes = [53, 16], strides = [1, 1]} : vector<68x16xf32> to vector<53x16xf32>
    %c13_189 = arith.constant 13 : index
    %c0_190 = arith.constant 0 : index
    %c0_191 = arith.constant 0 : index
    %255 = vector.load %arg4[%c13_189, %c0_190, %c0_191] : memref<16x16x32xf32, #tpu.memory_space<vmem>>, vector<1x16x32xf32>
    %256 = vector.shape_cast %255 : vector<1x16x32xf32> to vector<16x32xf32>
    %cst_192 = arith.constant dense<0.000000e+00> : vector<53x32xf32>
    %257 = tpu.matmul %254, %256, %cst_192 {dimension_numbers = #tpu.dot_dimension_numbers<[1], [0], [0], [1], [0, 0, 1, 1], [], []>} : vector<53x16xf32>, vector<16x32xf32>, vector<53x32xf32> -> vector<53x32xf32>
    %258 = arith.addf %253, %257 : vector<53x32xf32>
    %259 = vector.extract_strided_slice %187 {offsets = [14, 0], sizes = [53, 16], strides = [1, 1]} : vector<68x16xf32> to vector<53x16xf32>
    %c14_193 = arith.constant 14 : index
    %c0_194 = arith.constant 0 : index
    %c0_195 = arith.constant 0 : index
    %260 = vector.load %arg4[%c14_193, %c0_194, %c0_195] : memref<16x16x32xf32, #tpu.memory_space<vmem>>, vector<1x16x32xf32>
    %261 = vector.shape_cast %260 : vector<1x16x32xf32> to vector<16x32xf32>
    %cst_196 = arith.constant dense<0.000000e+00> : vector<53x32xf32>
    %262 = tpu.matmul %259, %261, %cst_196 {dimension_numbers = #tpu.dot_dimension_numbers<[1], [0], [0], [1], [0, 0, 1, 1], [], []>} : vector<53x16xf32>, vector<16x32xf32>, vector<53x32xf32> -> vector<53x32xf32>
    %263 = arith.addf %258, %262 : vector<53x32xf32>
    %264 = vector.extract_strided_slice %187 {offsets = [15, 0], sizes = [53, 16], strides = [1, 1]} : vector<68x16xf32> to vector<53x16xf32>
    %c15_197 = arith.constant 15 : index
    %c0_198 = arith.constant 0 : index
    %c0_199 = arith.constant 0 : index
    %265 = vector.load %arg4[%c15_197, %c0_198, %c0_199] : memref<16x16x32xf32, #tpu.memory_space<vmem>>, vector<1x16x32xf32>
    %266 = vector.shape_cast %265 : vector<1x16x32xf32> to vector<16x32xf32>
    %cst_200 = arith.constant dense<0.000000e+00> : vector<53x32xf32>
    %267 = tpu.matmul %264, %266, %cst_200 {dimension_numbers = #tpu.dot_dimension_numbers<[1], [0], [0], [1], [0, 0, 1, 1], [], []>} : vector<53x16xf32>, vector<16x32xf32>, vector<53x32xf32> -> vector<53x32xf32>
    %268 = arith.addf %263, %267 : vector<53x32xf32>
    %c0_201 = arith.constant 0 : index
    %c0_202 = arith.constant 0 : index
    %269 = vector.load %arg5[%c0_201, %c0_202] : memref<1x32xf32, #tpu.memory_space<vmem>>, vector<1x32xf32>
    %270 = vector.broadcast %269 : vector<1x32xf32> to vector<53x32xf32>
    %271 = arith.addf %268, %270 : vector<53x32xf32>
    %cst_203 = arith.constant 0.000000e+00 : f32
    %272 = vector.broadcast %cst_203 : f32 to vector<53x32xf32>
    %273 = arith.maximumf %271, %272 : vector<53x32xf32>
    %c0_204 = arith.constant 0 : index
    %c0_205 = arith.constant 0 : index
    %274 = vector.load %arg12[%c0_204, %c0_205] : memref<53x32xf32, #tpu.memory_space<vmem>>, vector<53x32xf32>
    tpu.vector_store %arg12[%c0_204, %c0_205], %273 {strides = array<i32>} : memref<53x32xf32, #tpu.memory_space<vmem>>, vector<53x32xf32>,
    %c0_206 = arith.constant 0 : index
    %c0_207 = arith.constant 0 : index
    %275 = tpu.strided_load %arg12[%c0_206, %c0_207] {strides = array<i32: 2, 1>} : memref<53x32xf32, #tpu.memory_space<vmem>>, vector<26x32xf32>
    %c1_208 = arith.constant 1 : index
    %c0_209 = arith.constant 0 : index
    %276 = tpu.strided_load %arg12[%c1_208, %c0_209] {strides = array<i32: 2, 1>} : memref<53x32xf32, #tpu.memory_space<vmem>>, vector<26x32xf32>
    %277 = arith.maximumf %275, %276 : vector<26x32xf32>
    %cst_210 = arith.constant 0.000000e+00 : f32
    %278 = vector.broadcast %cst_210 : f32 to vector<22x64xf32>
    %279 = vector.extract_strided_slice %277 {offsets = [0, 0], sizes = [22, 32], strides = [1, 1]} : vector<26x32xf32> to vector<22x32xf32>
    %c0_211 = arith.constant 0 : index
    %c0_212 = arith.constant 0 : index
    %c0_213 = arith.constant 0 : index
    %280 = vector.load %arg6[%c0_211, %c0_212, %c0_213] : memref<5x32x64xf32, #tpu.memory_space<vmem>>, vector<1x32x64xf32>
    %281 = vector.shape_cast %280 : vector<1x32x64xf32> to vector<32x64xf32>
    %cst_214 = arith.constant dense<0.000000e+00> : vector<22x64xf32>
    %282 = tpu.matmul %279, %281, %cst_214 {dimension_numbers = #tpu.dot_dimension_numbers<[1], [0], [0], [1], [0, 0, 1, 1], [], []>} : vector<22x32xf32>, vector<32x64xf32>, vector<22x64xf32> -> vector<22x64xf32>
    %283 = arith.addf %278, %282 : vector<22x64xf32>
    %284 = vector.extract_strided_slice %277 {offsets = [1, 0], sizes = [22, 32], strides = [1, 1]} : vector<26x32xf32> to vector<22x32xf32>
    %c1_215 = arith.constant 1 : index
    %c0_216 = arith.constant 0 : index
    %c0_217 = arith.constant 0 : index
    %285 = vector.load %arg6[%c1_215, %c0_216, %c0_217] : memref<5x32x64xf32, #tpu.memory_space<vmem>>, vector<1x32x64xf32>
    %286 = vector.shape_cast %285 : vector<1x32x64xf32> to vector<32x64xf32>
    %cst_218 = arith.constant dense<0.000000e+00> : vector<22x64xf32>
    %287 = tpu.matmul %284, %286, %cst_218 {dimension_numbers = #tpu.dot_dimension_numbers<[1], [0], [0], [1], [0, 0, 1, 1], [], []>} : vector<22x32xf32>, vector<32x64xf32>, vector<22x64xf32> -> vector<22x64xf32>
    %288 = arith.addf %283, %287 : vector<22x64xf32>
    %289 = vector.extract_strided_slice %277 {offsets = [2, 0], sizes = [22, 32], strides = [1, 1]} : vector<26x32xf32> to vector<22x32xf32>
    %c2_219 = arith.constant 2 : index
    %c0_220 = arith.constant 0 : index
    %c0_221 = arith.constant 0 : index
    %290 = vector.load %arg6[%c2_219, %c0_220, %c0_221] : memref<5x32x64xf32, #tpu.memory_space<vmem>>, vector<1x32x64xf32>
    %291 = vector.shape_cast %290 : vector<1x32x64xf32> to vector<32x64xf32>
    %cst_222 = arith.constant dense<0.000000e+00> : vector<22x64xf32>
    %292 = tpu.matmul %289, %291, %cst_222 {dimension_numbers = #tpu.dot_dimension_numbers<[1], [0], [0], [1], [0, 0, 1, 1], [], []>} : vector<22x32xf32>, vector<32x64xf32>, vector<22x64xf32> -> vector<22x64xf32>
    %293 = arith.addf %288, %292 : vector<22x64xf32>
    %294 = vector.extract_strided_slice %277 {offsets = [3, 0], sizes = [22, 32], strides = [1, 1]} : vector<26x32xf32> to vector<22x32xf32>
    %c3_223 = arith.constant 3 : index
    %c0_224 = arith.constant 0 : index
    %c0_225 = arith.constant 0 : index
    %295 = vector.load %arg6[%c3_223, %c0_224, %c0_225] : memref<5x32x64xf32, #tpu.memory_space<vmem>>, vector<1x32x64xf32>
    %296 = vector.shape_cast %295 : vector<1x32x64xf32> to vector<32x64xf32>
    %cst_226 = arith.constant dense<0.000000e+00> : vector<22x64xf32>
    %297 = tpu.matmul %294, %296, %cst_226 {dimension_numbers = #tpu.dot_dimension_numbers<[1], [0], [0], [1], [0, 0, 1, 1], [], []>} : vector<22x32xf32>, vector<32x64xf32>, vector<22x64xf32> -> vector<22x64xf32>
    %298 = arith.addf %293, %297 : vector<22x64xf32>
    %299 = vector.extract_strided_slice %277 {offsets = [4, 0], sizes = [22, 32], strides = [1, 1]} : vector<26x32xf32> to vector<22x32xf32>
    %c4_227 = arith.constant 4 : index
    %c0_228 = arith.constant 0 : index
    %c0_229 = arith.constant 0 : index
    %300 = vector.load %arg6[%c4_227, %c0_228, %c0_229] : memref<5x32x64xf32, #tpu.memory_space<vmem>>, vector<1x32x64xf32>
    %301 = vector.shape_cast %300 : vector<1x32x64xf32> to vector<32x64xf32>
    %cst_230 = arith.constant dense<0.000000e+00> : vector<22x64xf32>
    %302 = tpu.matmul %299, %301, %cst_230 {dimension_numbers = #tpu.dot_dimension_numbers<[1], [0], [0], [1], [0, 0, 1, 1], [], []>} : vector<22x32xf32>, vector<32x64xf32>, vector<22x64xf32> -> vector<22x64xf32>
    %303 = arith.addf %298, %302 : vector<22x64xf32>
    %c0_231 = arith.constant 0 : index
    %c0_232 = arith.constant 0 : index
    %304 = vector.load %arg7[%c0_231, %c0_232] : memref<1x64xf32, #tpu.memory_space<vmem>>, vector<1x64xf32>
    %305 = vector.broadcast %304 : vector<1x64xf32> to vector<22x64xf32>
    %306 = arith.addf %303, %305 : vector<22x64xf32>
    %cst_233 = arith.constant 0.000000e+00 : f32
    %307 = vector.broadcast %cst_233 : f32 to vector<22x64xf32>
    %308 = arith.maximumf %306, %307 : vector<22x64xf32>
    %c0_234 = arith.constant 0 : index
    %c0_235 = arith.constant 0 : index
    %309 = vector.load %arg13[%c0_234, %c0_235] : memref<22x64xf32, #tpu.memory_space<vmem>>, vector<22x64xf32>
    tpu.vector_store %arg13[%c0_234, %c0_235], %308 {strides = array<i32>} : memref<22x64xf32, #tpu.memory_space<vmem>>, vector<22x64xf32>,
    %c0_236 = arith.constant 0 : index
    %c0_237 = arith.constant 0 : index
    %310 = tpu.strided_load %arg13[%c0_236, %c0_237] {strides = array<i32: 2, 1>} : memref<22x64xf32, #tpu.memory_space<vmem>>, vector<11x64xf32>
    %c1_238 = arith.constant 1 : index
    %c0_239 = arith.constant 0 : index
    %311 = tpu.strided_load %arg13[%c1_238, %c0_239] {strides = array<i32: 2, 1>} : memref<22x64xf32, #tpu.memory_space<vmem>>, vector<11x64xf32>
    %312 = arith.maximumf %310, %311 : vector<11x64xf32>
    %cst_240 = arith.constant 0.000000e+00 : f32
    %313 = vector.broadcast %cst_240 : f32 to vector<7x64xf32>
    %314 = vector.extract_strided_slice %312 {offsets = [0, 0], sizes = [7, 64], strides = [1, 1]} : vector<11x64xf32> to vector<7x64xf32>
    %c0_241 = arith.constant 0 : index
    %c0_242 = arith.constant 0 : index
    %c0_243 = arith.constant 0 : index
    %315 = vector.load %arg8[%c0_241, %c0_242, %c0_243] : memref<5x64x64xf32, #tpu.memory_space<vmem>>, vector<1x64x64xf32>
    %316 = vector.shape_cast %315 : vector<1x64x64xf32> to vector<64x64xf32>
    %cst_244 = arith.constant dense<0.000000e+00> : vector<7x64xf32>
    %317 = tpu.matmul %314, %316, %cst_244 {dimension_numbers = #tpu.dot_dimension_numbers<[1], [0], [0], [1], [0, 0, 1, 1], [], []>} : vector<7x64xf32>, vector<64x64xf32>, vector<7x64xf32> -> vector<7x64xf32>
    %318 = arith.addf %313, %317 : vector<7x64xf32>
    %319 = vector.extract_strided_slice %312 {offsets = [1, 0], sizes = [7, 64], strides = [1, 1]} : vector<11x64xf32> to vector<7x64xf32>
    %c1_245 = arith.constant 1 : index
    %c0_246 = arith.constant 0 : index
    %c0_247 = arith.constant 0 : index
    %320 = vector.load %arg8[%c1_245, %c0_246, %c0_247] : memref<5x64x64xf32, #tpu.memory_space<vmem>>, vector<1x64x64xf32>
    %321 = vector.shape_cast %320 : vector<1x64x64xf32> to vector<64x64xf32>
    %cst_248 = arith.constant dense<0.000000e+00> : vector<7x64xf32>
    %322 = tpu.matmul %319, %321, %cst_248 {dimension_numbers = #tpu.dot_dimension_numbers<[1], [0], [0], [1], [0, 0, 1, 1], [], []>} : vector<7x64xf32>, vector<64x64xf32>, vector<7x64xf32> -> vector<7x64xf32>
    %323 = arith.addf %318, %322 : vector<7x64xf32>
    %324 = vector.extract_strided_slice %312 {offsets = [2, 0], sizes = [7, 64], strides = [1, 1]} : vector<11x64xf32> to vector<7x64xf32>
    %c2_249 = arith.constant 2 : index
    %c0_250 = arith.constant 0 : index
    %c0_251 = arith.constant 0 : index
    %325 = vector.load %arg8[%c2_249, %c0_250, %c0_251] : memref<5x64x64xf32, #tpu.memory_space<vmem>>, vector<1x64x64xf32>
    %326 = vector.shape_cast %325 : vector<1x64x64xf32> to vector<64x64xf32>
    %cst_252 = arith.constant dense<0.000000e+00> : vector<7x64xf32>
    %327 = tpu.matmul %324, %326, %cst_252 {dimension_numbers = #tpu.dot_dimension_numbers<[1], [0], [0], [1], [0, 0, 1, 1], [], []>} : vector<7x64xf32>, vector<64x64xf32>, vector<7x64xf32> -> vector<7x64xf32>
    %328 = arith.addf %323, %327 : vector<7x64xf32>
    %329 = vector.extract_strided_slice %312 {offsets = [3, 0], sizes = [7, 64], strides = [1, 1]} : vector<11x64xf32> to vector<7x64xf32>
    %c3_253 = arith.constant 3 : index
    %c0_254 = arith.constant 0 : index
    %c0_255 = arith.constant 0 : index
    %330 = vector.load %arg8[%c3_253, %c0_254, %c0_255] : memref<5x64x64xf32, #tpu.memory_space<vmem>>, vector<1x64x64xf32>
    %331 = vector.shape_cast %330 : vector<1x64x64xf32> to vector<64x64xf32>
    %cst_256 = arith.constant dense<0.000000e+00> : vector<7x64xf32>
    %332 = tpu.matmul %329, %331, %cst_256 {dimension_numbers = #tpu.dot_dimension_numbers<[1], [0], [0], [1], [0, 0, 1, 1], [], []>} : vector<7x64xf32>, vector<64x64xf32>, vector<7x64xf32> -> vector<7x64xf32>
    %333 = arith.addf %328, %332 : vector<7x64xf32>
    %334 = vector.extract_strided_slice %312 {offsets = [4, 0], sizes = [7, 64], strides = [1, 1]} : vector<11x64xf32> to vector<7x64xf32>
    %c4_257 = arith.constant 4 : index
    %c0_258 = arith.constant 0 : index
    %c0_259 = arith.constant 0 : index
    %335 = vector.load %arg8[%c4_257, %c0_258, %c0_259] : memref<5x64x64xf32, #tpu.memory_space<vmem>>, vector<1x64x64xf32>
    %336 = vector.shape_cast %335 : vector<1x64x64xf32> to vector<64x64xf32>
    %cst_260 = arith.constant dense<0.000000e+00> : vector<7x64xf32>
    %337 = tpu.matmul %334, %336, %cst_260 {dimension_numbers = #tpu.dot_dimension_numbers<[1], [0], [0], [1], [0, 0, 1, 1], [], []>} : vector<7x64xf32>, vector<64x64xf32>, vector<7x64xf32> -> vector<7x64xf32>
    %338 = arith.addf %333, %337 : vector<7x64xf32>
    %c0_261 = arith.constant 0 : index
    %c0_262 = arith.constant 0 : index
    %339 = vector.load %arg9[%c0_261, %c0_262] : memref<1x64xf32, #tpu.memory_space<vmem>>, vector<1x64xf32>
    %340 = vector.broadcast %339 : vector<1x64xf32> to vector<7x64xf32>
    %341 = arith.addf %338, %340 : vector<7x64xf32>
    %cst_263 = arith.constant 0.000000e+00 : f32
    %342 = vector.broadcast %cst_263 : f32 to vector<7x64xf32>
    %343 = arith.maximumf %341, %342 : vector<7x64xf32>
    %344 = vector.extract_strided_slice %343 {offsets = [0, 0], sizes = [2, 64], strides = [1, 1]} : vector<7x64xf32> to vector<2x64xf32>
    %cst_264 = arith.constant dense<0xFF800000> : vector<64xf32>
    %345 = vector.multi_reduction <maximumf>, %344, %cst_264 [0] : vector<2x64xf32> to vector<64xf32>
    %346 = vector.shape_cast %345 : vector<64xf32> to vector<1x64xf32>
    %347 = vector.extract_strided_slice %343 {offsets = [1, 0], sizes = [3, 64], strides = [1, 1]} : vector<7x64xf32> to vector<3x64xf32>
    %cst_265 = arith.constant dense<0xFF800000> : vector<64xf32>
    %348 = vector.multi_reduction <maximumf>, %347, %cst_265 [0] : vector<3x64xf32> to vector<64xf32>
    %349 = vector.shape_cast %348 : vector<64xf32> to vector<1x64xf32>
    %350 = vector.extract_strided_slice %343 {offsets = [3, 0], sizes = [3, 64], strides = [1, 1]} : vector<7x64xf32> to vector<3x64xf32>
    %cst_266 = arith.constant dense<0xFF800000> : vector<64xf32>
    %351 = vector.multi_reduction <maximumf>, %350, %cst_266 [0] : vector<3x64xf32> to vector<64xf32>
    %352 = vector.shape_cast %351 : vector<64xf32> to vector<1x64xf32>
    %353 = vector.extract_strided_slice %343 {offsets = [5, 0], sizes = [2, 64], strides = [1, 1]} : vector<7x64xf32> to vector<2x64xf32>
    %cst_267 = arith.constant dense<0xFF800000> : vector<64xf32>
    %354 = vector.multi_reduction <maximumf>, %353, %cst_267 [0] : vector<2x64xf32> to vector<64xf32>
    %355 = vector.shape_cast %354 : vector<64xf32> to vector<1x64xf32>
    %356 = tpu.concatenate %346, %349, %352, %355 in 0 : vector<1x64xf32>, vector<1x64xf32>, vector<1x64xf32>, vector<1x64xf32> -> vector<4x64xf32>
    %c0_268 = arith.constant 0 : index
    %c1_269 = arith.constant 1 : index
    %c0_270 = arith.constant 0 : index
    %c0_271 = arith.constant 0 : index
    %357 = vector.load %arg10[%c0_268, %c1_269, %c0_270, %c0_271] : memref<1x2x4x64xf32, #tpu.memory_space<vmem>>, vector<1x1x4x64xf32>
    %358 = vector.shape_cast %357 : vector<1x1x4x64xf32> to vector<4x64xf32>
    %359 = vector.shape_cast %356 : vector<4x64xf32> to vector<1x1x4x64xf32>
    tpu.vector_store %arg10[%c0_268, %c1_269, %c0_270, %c0_271], %359 {strides = array<i32>} : memref<1x2x4x64xf32, #tpu.memory_space<vmem>>, vector<1x1x4x64xf32>,
    return
  }
  func.func @transform_0(%arg0: i32) -> (i32, i32, i32) {
    %c0_i32 = arith.constant 0 : i32
    %c0_i32_0 = arith.constant 0 : i32
    %c0_i32_1 = arith.constant 0 : i32
    return %arg0, %c0_i32, %c0_i32_0 : i32, i32, i32
  }
  func.func @transform_1(%arg0: i32) -> (i32, i32) {
    %c0_i32 = arith.constant 0 : i32
    %c0_i32_0 = arith.constant 0 : i32
    %c0_i32_1 = arith.constant 0 : i32
    return %c0_i32, %c0_i32_0 : i32, i32
  }
  func.func @transform_2(%arg0: i32) -> (i32, i32) {
    %c0_i32 = arith.constant 0 : i32
    %c0_i32_0 = arith.constant 0 : i32
    %c0_i32_1 = arith.constant 0 : i32
    return %c0_i32, %c0_i32_0 : i32, i32
  }
  func.func @transform_3(%arg0: i32) -> (i32, i32, i32) {
    %c0_i32 = arith.constant 0 : i32
    %c0_i32_0 = arith.constant 0 : i32
    %c0_i32_1 = arith.constant 0 : i32
    %c0_i32_2 = arith.constant 0 : i32
    return %c0_i32, %c0_i32_0, %c0_i32_1 : i32, i32, i32
  }
  func.func @transform_4(%arg0: i32) -> (i32, i32) {
    %c0_i32 = arith.constant 0 : i32
    %c0_i32_0 = arith.constant 0 : i32
    %c0_i32_1 = arith.constant 0 : i32
    return %c0_i32, %c0_i32_0 : i32, i32
  }
  func.func @transform_5(%arg0: i32) -> (i32, i32, i32) {
    %c0_i32 = arith.constant 0 : i32
    %c0_i32_0 = arith.constant 0 : i32
    %c0_i32_1 = arith.constant 0 : i32
    %c0_i32_2 = arith.constant 0 : i32
    return %c0_i32, %c0_i32_0, %c0_i32_1 : i32, i32, i32
  }
  func.func @transform_6(%arg0: i32) -> (i32, i32) {
    %c0_i32 = arith.constant 0 : i32
    %c0_i32_0 = arith.constant 0 : i32
    %c0_i32_1 = arith.constant 0 : i32
    return %c0_i32, %c0_i32_0 : i32, i32
  }
  func.func @transform_7(%arg0: i32) -> (i32, i32, i32) {
    %c0_i32 = arith.constant 0 : i32
    %c0_i32_0 = arith.constant 0 : i32
    %c0_i32_1 = arith.constant 0 : i32
    %c0_i32_2 = arith.constant 0 : i32
    return %c0_i32, %c0_i32_0, %c0_i32_1 : i32, i32, i32
  }
  func.func @transform_8(%arg0: i32) -> (i32, i32) {
    %c0_i32 = arith.constant 0 : i32
    %c0_i32_0 = arith.constant 0 : i32
    %c0_i32_1 = arith.constant 0 : i32
    return %c0_i32, %c0_i32_0 : i32, i32
  }
  func.func @transform_9(%arg0: i32) -> (i32, i32, i32, i32) {
    %c0_i32 = arith.constant 0 : i32
    %c0_i32_0 = arith.constant 0 : i32
    %c0_i32_1 = arith.constant 0 : i32
    %c0_i32_2 = arith.constant 0 : i32
    return %arg0, %c0_i32, %c0_i32_0, %c0_i32_1 : i32, i32, i32, i32
  }
}

module attributes {stable_mosaic.version = 11 : i64} {
  func.func @heads_kernel(%arg0: memref<4x256xf32, #tpu.memory_space<vmem>>, %arg1: memref<256x159xf32, #tpu.memory_space<vmem>>, %arg2: memref<1x159xf32, #tpu.memory_space<vmem>>, %arg3: memref<128x2xf32, #tpu.memory_space<vmem>>, %arg4: memref<1x2xf32, #tpu.memory_space<vmem>>, %arg5: memref<4x33xf32, #tpu.memory_space<vmem>>) attributes {dimension_semantics = [], scalar_prefetch = 0 : i64, scratch_operands = 0 : i64, tpu.core_type = #tpu.core_type<tc>} {
    %c0 = arith.constant 0 : index
    %c0_0 = arith.constant 0 : index
    %0 = vector.load %arg0[%c0, %c0_0] : memref<4x256xf32, #tpu.memory_space<vmem>>, vector<4x256xf32>
    %c0_1 = arith.constant 0 : index
    %c0_2 = arith.constant 0 : index
    %1 = vector.load %arg1[%c0_1, %c0_2] : memref<256x159xf32, #tpu.memory_space<vmem>>, vector<256x159xf32>
    %cst = arith.constant dense<0.000000e+00> : vector<4x159xf32>
    %2 = tpu.matmul %0, %1, %cst {dimension_numbers = #tpu.dot_dimension_numbers<[1], [0], [0], [1], [0, 0, 1, 1], [], []>} : vector<4x256xf32>, vector<256x159xf32>, vector<4x159xf32> -> vector<4x159xf32>
    %c0_3 = arith.constant 0 : index
    %c0_4 = arith.constant 0 : index
    %3 = vector.load %arg2[%c0_3, %c0_4] : memref<1x159xf32, #tpu.memory_space<vmem>>, vector<1x159xf32>
    %4 = vector.broadcast %3 : vector<1x159xf32> to vector<4x159xf32>
    %5 = arith.addf %2, %4 : vector<4x159xf32>
    %6 = vector.extract_strided_slice %5 {offsets = [0, 0], sizes = [4, 31], strides = [1, 1]} : vector<4x159xf32> to vector<4x31xf32>
    %7 = vector.extract_strided_slice %5 {offsets = [0, 31], sizes = [4, 128], strides = [1, 1]} : vector<4x159xf32> to vector<4x128xf32>
    %cst_5 = arith.constant 0.000000e+00 : f32
    %8 = vector.broadcast %cst_5 : f32 to vector<4x128xf32>
    %9 = arith.maximumf %7, %8 : vector<4x128xf32>
    %c0_6 = arith.constant 0 : index
    %c0_7 = arith.constant 0 : index
    %10 = vector.load %arg3[%c0_6, %c0_7] : memref<128x2xf32, #tpu.memory_space<vmem>>, vector<128x2xf32>
    %cst_8 = arith.constant dense<0.000000e+00> : vector<4x2xf32>
    %11 = tpu.matmul %9, %10, %cst_8 {dimension_numbers = #tpu.dot_dimension_numbers<[1], [0], [0], [1], [0, 0, 1, 1], [], []>} : vector<4x128xf32>, vector<128x2xf32>, vector<4x2xf32> -> vector<4x2xf32>
    %c0_9 = arith.constant 0 : index
    %c0_10 = arith.constant 0 : index
    %12 = vector.load %arg4[%c0_9, %c0_10] : memref<1x2xf32, #tpu.memory_space<vmem>>, vector<1x2xf32>
    %13 = vector.broadcast %12 : vector<1x2xf32> to vector<4x2xf32>
    %14 = arith.addf %11, %13 : vector<4x2xf32>
    %15 = tpu.concatenate %6, %14 in 1 : vector<4x31xf32>, vector<4x2xf32> -> vector<4x33xf32>
    %c0_11 = arith.constant 0 : index
    %c0_12 = arith.constant 0 : index
    %16 = vector.load %arg5[%c0_11, %c0_12] : memref<4x33xf32, #tpu.memory_space<vmem>>, vector<4x33xf32>
    tpu.vector_store %arg5[%c0_11, %c0_12], %15 {strides = array<i32>} : memref<4x33xf32, #tpu.memory_space<vmem>>, vector<4x33xf32>,
    return
  }
}

</mosaic_0001>

<llo_original>
// kernel: _lambda_.3
$region0: #{_lambda_.3}
  #allocation0 [shape = 'u32[]', space=smem, size = 0x4, offset = 0x4, fixed_abs, tag = 'smem constant byte address 0x4 - core index']
  #allocation1 [shape = 'u32[144,128]{1,0:T(1,128)}', space=vmem, size = 0x12000, scoped, tag = 'internal scratch']
  %s0 = inlined_call_operand.vmem [shape: f32[4,256], index: 0, kind: input, shape index: {}]
  %s1 = inlined_call_operand.vmem [shape: f32[256,159], index: 1, kind: input, shape index: {}]
  %s2 = inlined_call_operand.vmem [shape: f32[1,159], index: 2, kind: input, shape index: {}]
  %s3 = inlined_call_operand.vmem [shape: f32[128,2], index: 3, kind: input, shape index: {}]
  %s4 = inlined_call_operand.vmem [shape: f32[1,2], index: 4, kind: input, shape index: {}]
  %s5 = inlined_call_operand.vmem [shape: f32[4,33], index: 5, kind: output, shape index: {}]
  %s6 = sld [smem:[#allocation0]]
  $region30: #{_lambda_.3} parent=0
    _
  %s8 = ssub.s32 1, %s6
  %s9 = scalar_select 0, %s8, %s6
  // Predicated region
  $region2: #{_lambda_.3} parent=0 // pred_check
    _
  $region3: #{_lambda_.3} parent=0 // pred_check_branch
    %11 = sbr.rel (0) target = $region5
  $region4: #{_lambda_.3} parent=0 // pred_region
    _
  $region5: #{_lambda_.3} parent=0 // pred_fallthru
    _
  // Predicated region
  $region6: #{_lambda_.3} parent=0 // pred_check
    _
  $region7: #{_lambda_.3} parent=0 // pred_check_branch
    %13 = sbr.rel (0) target = $region9
  $region8: #{_lambda_.3} parent=0 // pred_region
    _
  $region9: #{_lambda_.3} parent=0 // pred_fallthru
    _
  // Predicated region
  $region10: #{_lambda_.3} parent=0 // pred_check
    _
  $region11: #{_lambda_.3} parent=0 // pred_check_branch
    %15 = sbr.rel (0) target = $region13
  $region12: #{_lambda_.3} parent=0 // pred_region
    _
  $region13: #{_lambda_.3} parent=0 // pred_fallthru
    _
  // Predicated region
  $region14: #{_lambda_.3} parent=0 // pred_check
    _
  $region15: #{_lambda_.3} parent=0 // pred_check_branch
    %17 = sbr.rel (0) target = $region17
  $region16: #{_lambda_.3} parent=0 // pred_region
    _
  $region17: #{_lambda_.3} parent=0 // pred_fallthru
    _
  // Predicated region
  $region18: #{_lambda_.3} parent=0 // pred_check
    _
  $region19: #{_lambda_.3} parent=0 // pred_check_branch
    %19 = sbr.rel (0) target = $region21
  $region20: #{_lambda_.3} parent=0 // pred_region
    _
  $region21: #{_lambda_.3} parent=0 // pred_fallthru
    _
  %v20 = vld [vmem:[%s0] sm:$0xff]
  %v21 = vld [vmem:[%s1] sm:$0xff]
  %v22 = vld [vmem:[%s1 + $0x8] sm:$0xff]
  %v23 = vld [vmem:[%s1 + $0x10] sm:$0xff]
  %v24 = vld [vmem:[%s1 + $0x18] sm:$0xff]
  %v25 = vld [vmem:[%s1 + $0x20] sm:$0xff]
  %v26 = vld [vmem:[%s1 + $0x28] sm:$0xff]
  %v27 = vld [vmem:[%s1 + $0x30] sm:$0xff]
  %v28 = vld [vmem:[%s1 + $0x38] sm:$0xff]
  %v29 = vld [vmem:[%s1 + $0x40] sm:$0xff]
  %v30 = vld [vmem:[%s1 + $0x48] sm:$0xff]
  %v31 = vld [vmem:[%s1 + $0x50] sm:$0xff]
  %v32 = vld [vmem:[%s1 + $0x58] sm:$0xff]
  %v33 = vld [vmem:[%s1 + $0x60] sm:$0xff]
  %v34 = vld [vmem:[%s1 + $0x68] sm:$0xff]
  %v35 = vld [vmem:[%s1 + $0x70] sm:$0xff]
  %v36 = vld [vmem:[%s1 + $0x78] sm:$0xff]
  %v37 = vld [vmem:[%s1 + $0x80] sm:$0xff]
  %v38 = vld [vmem:[%s1 + $0x88] sm:$0xff]
  %v39 = vld [vmem:[%s1 + $0x90] sm:$0xff]
  %v40 = vld [vmem:[%s1 + $0x98] sm:$0xff]
  %v41 = vld [vmem:[%s1 + $0xa0] sm:$0xff]
  %v42 = vld [vmem:[%s1 + $0xa8] sm:$0xff]
  %v43 = vld [vmem:[%s1 + $0xb0] sm:$0xff]
  %v44 = vld [vmem:[%s1 + $0xb8] sm:$0xff]
  %v45 = vld [vmem:[%s1 + $0xc0] sm:$0xff]
  %v46 = vld [vmem:[%s1 + $0xc8] sm:$0xff]
  %v47 = vld [vmem:[%s1 + $0xd0] sm:$0xff]
  %v48 = vld [vmem:[%s1 + $0xd8] sm:$0xff]
  %v49 = vld [vmem:[%s1 + $0xe0] sm:$0xff]
  %v50 = vld [vmem:[%s1 + $0xe8] sm:$0xff]
  %v51 = vld [vmem:[%s1 + $0xf0] sm:$0xff]
  %v52 = vld [vmem:[%s1 + $0xf8] sm:$0xff]
  %v53 = vld [vmem:[%s1 + $0x100] sm:$0xff]
  %v54 = vld [vmem:[%s1 + $0x108] sm:$0xff]
  %v55 = vld [vmem:[%s1 + $0x110] sm:$0xff]
  %v56 = vld [vmem:[%s1 + $0x118] sm:$0xff]
  %v57 = vld [vmem:[%s1 + $0x120] sm:$0xff]
  %v58 = vld [vmem:[%s1 + $0x128] sm:$0xff]
  %v59 = vld [vmem:[%s1 + $0x130] sm:$0xff]
  %v60 = vld [vmem:[%s1 + $0x138] sm:$0xff]
  %v61 = vld [vmem:[%s1 + $0x140] sm:$0xff]
  %v62 = vld [vmem:[%s1 + $0x148] sm:$0xff]
  %v63 = vld [vmem:[%s1 + $0x150] sm:$0xff]
  %v64 = vld [vmem:[%s1 + $0x158] sm:$0xff]
  %v65 = vld [vmem:[%s1 + $0x160] sm:$0xff]
  %v66 = vld [vmem:[%s1 + $0x168] sm:$0xff]
  %v67 = vld [vmem:[%s1 + $0x170] sm:$0xff]
  %v68 = vld [vmem:[%s1 + $0x178] sm:$0xff]
  %v69 = vld [vmem:[%s1 + $0x180] sm:$0xff]
  %v70 = vld [vmem:[%s1 + $0x188] sm:$0xff]
  %v71 = vld [vmem:[%s1 + $0x190] sm:$0xff]
  %v72 = vld [vmem:[%s1 + $0x198] sm:$0xff]
  %v73 = vld [vmem:[%s1 + $0x1a0] sm:$0xff]
  %v74 = vld [vmem:[%s1 + $0x1a8] sm:$0xff]
  %v75 = vld [vmem:[%s1 + $0x1b0] sm:$0xff]
  %v76 = vld [vmem:[%s1 + $0x1b8] sm:$0xff]
  %v77 = vld [vmem:[%s1 + $0x1c0] sm:$0xff]
  %v78 = vld [vmem:[%s1 + $0x1c8] sm:$0xff]
  %v79 = vld [vmem:[%s1 + $0x1d0] sm:$0xff]
  %v80 = vld [vmem:[%s1 + $0x1d8] sm:$0xff]
  %v81 = vld [vmem:[%s1 + $0x1e0] sm:$0xff]
  %v82 = vld [vmem:[%s1 + $0x1e8] sm:$0xff]
  %v83 = vld [vmem:[%s1 + $0x1f0] sm:$0xff]
  %v84 = vld [vmem:[%s1 + $0x1f8] sm:$0xff]
  %v85 = vld [vmem:[%s2] sm:$0x3]
  %v87 = vlaneseq
  %v88 = vshrl.u32 %v87, 7
  %v89 = vsub.s32 0, %v88
  %v90 = vrot.slane %v85, %v89
  %v91 = vlaneseq
  %v92 = vshrl.u32 %v91, 7
  %v93 = vsub.s32 1, %v92
  %v94 = vrot.slane %v85, %v93
  %v98 = vcombine.high %v20, %v20
  %100 = vmatprep.subr.mxu0 %v52
  %101 = vmatpush1.msra.mxu0 %v51
  %102 = vmatprep.subr.mxu0 %v50
  %103 = vmatpush1.msra.mxu0 %v49
  %104 = vmatprep.subr.mxu0 %v48
  %105 = vmatpush1.msra.mxu0 %v47
  %106 = vmatprep.subr.mxu0 %v46
  %107 = vmatpush1.msra.mxu0 %v45
  %108 = vmatprep.subr.mxu0 %v44
  %109 = vmatpush1.msra.mxu0 %v43
  %110 = vmatprep.subr.mxu0 %v42
  %111 = vmatpush1.msra.mxu0 %v41
  %112 = vmatprep.subr.mxu0 %v40
  %113 = vmatpush1.msra.mxu0 %v39
  %114 = vmatprep.subr.mxu0 %v38
  %115 = vmatpush1.msra.mxu0 %v37
  %116 = vmatprep.subr.mxu0 %v36
  %117 = vmatpush1.msra.mxu0 %v35
  %118 = vmatprep.subr.mxu0 %v34
  %119 = vmatpush1.msra.mxu0 %v33
  %120 = vmatprep.subr.mxu0 %v32
  %121 = vmatpush1.msra.mxu0 %v31
  %122 = vmatprep.subr.mxu0 %v30
  %123 = vmatpush1.msra.mxu0 %v29
  %124 = vmatprep.subr.mxu0 %v28
  %125 = vmatpush1.msra.mxu0 %v27
  %126 = vmatprep.subr.mxu0 %v26
  %127 = vmatpush1.msra.mxu0 %v25
  %128 = vmatprep.subr.mxu0 %v24
  %129 = vmatpush1.msra.mxu0 %v23
  %130 = vmatprep.subr.mxu0 %v22
  %131 = vmatpush1.msra.mxu0 %v21
  %132 = vmatprep.subr.mxu0 %v84
  %133 = vmatpush2.msra.mxu0 %v83
  %134 = vmatprep.subr.mxu0 %v82
  %135 = vmatpush2.msra.mxu0 %v81
  %136 = vmatprep.subr.mxu0 %v80
  %137 = vmatpush2.msra.mxu0 %v79
  %138 = vmatprep.subr.mxu0 %v78
  %139 = vmatpush2.msra.mxu0 %v77
  %140 = vmatprep.subr.mxu0 %v76
  %141 = vmatpush2.msra.mxu0 %v75
  %142 = vmatprep.subr.mxu0 %v74
  %143 = vmatpush2.msra.mxu0 %v73
  %144 = vmatprep.subr.mxu0 %v72
  %145 = vmatpush2.msra.mxu0 %v71
  %146 = vmatprep.subr.mxu0 %v70
  %147 = vmatpush2.msra.mxu0 %v69
  %148 = vmatprep.subr.mxu0 %v68
  %149 = vmatpush2.msra.mxu0 %v67
  %150 = vmatprep.subr.mxu0 %v66
  %151 = vmatpush2.msra.mxu0 %v65
  %152 = vmatprep.subr.mxu0 %v64
  %153 = vmatpush2.msra.mxu0 %v63
  %154 = vmatprep.subr.mxu0 %v62
  %155 = vmatpush2.msra.mxu0 %v61
  %156 = vmatprep.subr.mxu0 %v60
  %157 = vmatpush2.msra.mxu0 %v59
  %158 = vmatprep.subr.mxu0 %v58
  %159 = vmatpush2.msra.mxu0 %v57
  %160 = vmatprep.subr.mxu0 %v56
  %161 = vmatpush2.msra.mxu0 %v55
  %162 = vmatprep.subr.mxu0 %v54
  %163 = vmatpush2.msra.mxu0 %v53
  %164 = vmatprep.mubr.f32.mxu0 %v98
  %165 = vmatmul.mubr.f32.gmra.mxu0 %v20
  %v166 = vpop.f32.mrf.mxu0
  %v167 = vadd.f32 %v90, %v166
  %v168 = vpop.f32.mrf.mxu0
  %v169 = vadd.f32 %v94, %v168
  %170 = vdwg.mxu0
  %v171 = vmax.f32 %v167, 0.0
  %v172 = vmax.f32 %v169, 0.0
  %v173 = vld [vmem:[%s3] sm:$0xff]
  %v174 = vld [vmem:[%s3 + $0x8] sm:$0xff]
  %v175 = vld [vmem:[%s3 + $0x10] sm:$0xff]
  %v176 = vld [vmem:[%s3 + $0x18] sm:$0xff]
  %v177 = vld [vmem:[%s3 + $0x20] sm:$0xff]
  %v178 = vld [vmem:[%s3 + $0x28] sm:$0xff]
  %v179 = vld [vmem:[%s3 + $0x30] sm:$0xff]
  %v180 = vld [vmem:[%s3 + $0x38] sm:$0xff]
  %v181 = vld [vmem:[%s3 + $0x40] sm:$0xff]
  %v182 = vld [vmem:[%s3 + $0x48] sm:$0xff]
  %v183 = vld [vmem:[%s3 + $0x50] sm:$0xff]
  %v184 = vld [vmem:[%s3 + $0x58] sm:$0xff]
  %v185 = vld [vmem:[%s3 + $0x60] sm:$0xff]
  %v186 = vld [vmem:[%s3 + $0x68] sm:$0xff]
  %v187 = vld [vmem:[%s3 + $0x70] sm:$0xff]
  %v188 = vld [vmem:[%s3 + $0x78] sm:$0xff]
  %v189 = vld [vmem:[%s4] sm:$0x1]
  %v191 = vlaneseq
  %v192 = vshrl.u32 %v191, 7
  %v193 = vsub.s32 0, %v192
  %v194 = vrot.slane %v189, %v193
  %198 = vrot.lane.b32.xlu0 %v171, 97
  %v199 = vpop.permute.xlu0 %198
  %200 = vrot.lane.b32.xlu0 %v172, 97
  %v201 = vpop.permute.xlu0 %200
  %vm202 = vcmask 793600
  %v203 = vsel %vm202, %v199, %v201
  %205 = vmatprep.subr.mxu0 0.0
  %206 = vmatpush1.msra.mxu0 %v188
  %207 = vmatprep.subr.mxu0 0.0
  %208 = vmatpush1.msra.mxu0 %v187
  %209 = vmatprep.subr.mxu0 0.0
  %210 = vmatpush1.msra.mxu0 %v186
  %211 = vmatprep.subr.mxu0 0.0
  %212 = vmatpush1.msra.mxu0 %v185
  %213 = vmatprep.subr.mxu0 0.0
  %214 = vmatpush1.msra.mxu0 %v184
  %215 = vmatprep.subr.mxu0 0.0
  %216 = vmatpush1.msra.mxu0 %v183
  %217 = vmatprep.subr.mxu0 0.0
  %218 = vmatpush1.msra.mxu0 %v182
  %219 = vmatprep.subr.mxu0 0.0
  %220 = vmatpush1.msra.mxu0 %v181
  %221 = vmatprep.subr.mxu0 0.0
  %222 = vmatpush1.msra.mxu0 %v180
  %223 = vmatprep.subr.mxu0 0.0
  %224 = vmatpush1.msra.mxu0 %v179
  %225 = vmatprep.subr.mxu0 0.0
  %226 = vmatpush1.msra.mxu0 %v178
  %227 = vmatprep.subr.mxu0 0.0
  %228 = vmatpush1.msra.mxu0 %v177
  %229 = vmatprep.subr.mxu0 0.0
  %230 = vmatpush1.msra.mxu0 %v176
  %231 = vmatprep.subr.mxu0 0.0
  %232 = vmatpush1.msra.mxu0 %v175
  %233 = vmatprep.subr.mxu0 0.0
  %234 = vmatpush1.msra.mxu0 %v174
  %235 = vmatprep.subr.mxu0 0.0
  %236 = vmatpush1.msra.mxu0 %v173
  %237 = vmatprep.subr.mxu0 0.0
  %238 = vmatpush2.msra.mxu0 0.0
  %239 = vmatprep.subr.mxu0 0.0
  %240 = vmatpush2.msra.mxu0 0.0
  %241 = vmatprep.subr.mxu0 0.0
  %242 = vmatpush2.msra.mxu0 0.0
  %243 = vmatprep.subr.mxu0 0.0
  %244 = vmatpush2.msra.mxu0 0.0
  %245 = vmatprep.subr.mxu0 0.0
  %246 = vmatpush2.msra.mxu0 0.0
  %247 = vmatprep.subr.mxu0 0.0
  %248 = vmatpush2.msra.mxu0 0.0
  %249 = vmatprep.subr.mxu0 0.0
  %250 = vmatpush2.msra.mxu0 0.0
  %251 = vmatprep.subr.mxu0 0.0
  %252 = vmatpush2.msra.mxu0 0.0
  %253 = vmatprep.subr.mxu0 0.0
  %254 = vmatpush2.msra.mxu0 0.0
  %255 = vmatprep.subr.mxu0 0.0
  %256 = vmatpush2.msra.mxu0 0.0
  %257 = vmatprep.subr.mxu0 0.0
  %258 = vmatpush2.msra.mxu0 0.0
  %259 = vmatprep.subr.mxu0 0.0
  %260 = vmatpush2.msra.mxu0 0.0
  %261 = vmatprep.subr.mxu0 0.0
  %262 = vmatpush2.msra.mxu0 0.0
  %263 = vmatprep.subr.mxu0 0.0
  %264 = vmatpush2.msra.mxu0 0.0
  %265 = vmatprep.subr.mxu0 0.0
  %266 = vmatpush2.msra.mxu0 0.0
  %267 = vmatprep.subr.mxu0 0.0
  %268 = vmatpush2.msra.mxu0 0.0
  %269 = vmatprep.mubr.f32.mxu0 0.0
  %270 = vmatmul.mubr.f32.gmra.mxu0 %v203
  %v271 = vpop.f32.mrf.mxu0
  %v272 = vadd.f32 %v194, %v271
  %v273 = vpop.f32.mrf.mxu0
  %274 = vdwg.mxu0
  %276 = vrot.lane.b32.xlu0 %v272, 31
  %v277 = vpop.permute.xlu0 %276
  %vm279 = vcmask 252928
  %v280 = vsel %vm279, %v167, %v277
  %vm281 = vcmask 265216
  %282 = vst.msk [vmem:[%s5] sm:$0xf] %vm281, %v280
  // Predicated region
  $region22: #{_lambda_.3} parent=0 // pred_check
    _
  $region23: #{_lambda_.3} parent=0 // pred_check_branch
    %284 = sbr.rel (0) target = $region25
  $region24: #{_lambda_.3} parent=0 // pred_region
    _
  $region25: #{_lambda_.3} parent=0 // pred_fallthru
    _
  // Predicated region
  $region26: #{_lambda_.3} parent=0 // pred_check
    _
  $region27: #{_lambda_.3} parent=0 // pred_check_branch
    %286 = sbr.rel (0) target = $region29
  $region28: #{_lambda_.3} parent=0 // pred_region
    _
  $region29: #{_lambda_.3} parent=0 // pred_fallthru
    _

// kernel: _lambda_.2
$region0: #{_lambda_.2}
  #allocation0 [shape = 'u32[]', space=smem, size = 0x4, offset = 0x4, fixed_abs, tag = 'smem constant byte address 0x4 - core index']
  #allocation1 [shape = 'u32[144,128]{1,0:T(1,128)}', space=vmem, size = 0x12000, scoped, tag = 'internal scratch']
  #allocation2 [shape = 'f32[274,16]{1,0:T(8,128)}', space=vmem, size = 0x23000, scoped, tag = 'scratch operand']
  #allocation3 [shape = 'f32[53,32]{1,0:T(8,128)}', space=vmem, size = 0x7000, scoped, tag = 'scratch operand']
  #allocation4 [shape = 'f32[22,64]{1,0:T(8,128)}', space=vmem, size = 0x3000, scoped, tag = 'scratch operand']
  %s0 = inlined_call_operand.vmem [shape: f32[2,274,64], index: 0, kind: input, shape index: {}]
  %s1 = inlined_call_operand.vmem [shape: f32[64,16], index: 1, kind: input, shape index: {}]
  %s2 = inlined_call_operand.vmem [shape: f32[1,16], index: 2, kind: input, shape index: {}]
  %s3 = inlined_call_operand.vmem [shape: f32[16,16,32], index: 3, kind: input, shape index: {}]
  %s4 = inlined_call_operand.vmem [shape: f32[1,32], index: 4, kind: input, shape index: {}]
  %s5 = inlined_call_operand.vmem [shape: f32[5,32,64], index: 5, kind: input, shape index: {}]
  %s6 = inlined_call_operand.vmem [shape: f32[1,64], index: 6, kind: input, shape index: {}]
  %s7 = inlined_call_operand.vmem [shape: f32[5,64,64], index: 7, kind: input, shape index: {}]
  %s8 = inlined_call_operand.vmem [shape: f32[1,64], index: 8, kind: input, shape index: {}]
  %s9 = inlined_call_operand.vmem [shape: f32[2,2,4,64], index: 9, kind: output, shape index: {}]
  %s10 = sld [smem:[#allocation0]]
  $region69: #{_lambda_.2} parent=0
    _
  %s12 = ssub.s32 1, %s10
  %s13 = scalar_select 0, %s12, %s10
  loop: start=0, step=1, limit=4
  $region2: #{_lambda_.2} parent=0 // loop_pre_header
    _
  $region3: #{_lambda_.2} parent=0 // loop_header
    %s15 = sphi 0, %s19
    %p16 = scmp.ge.s32.totalorder %s15, 4
    %s25 = sphi 0, %s27
    %s28 = sphi 0, %s25
    %s29 = sphi 0, %s28
    %s45 = sphi 0, %s29
    %s49 = sphi 0, %s49
    %s51 = sphi 0, %s49
    %s52 = sphi 0, %s51
    %s66 = sphi 0, %s52
    %s70 = sphi 0, %s70
    %s72 = sphi 0, %s70
    %s73 = sphi 0, %s72
    %s87 = sphi 0, %s73
    %s91 = sphi 0, %s91
    %s93 = sphi 0, %s91
    %s94 = sphi 0, %s93
    %s108 = sphi 0, %s94
    %s112 = sphi 0, %s112
    %s114 = sphi 0, %s112
    %s115 = sphi 0, %s114
    %s129 = sphi 0, %s115
    %s133 = sphi 0, %s133
    %s135 = sphi 0, %s133
    %s136 = sphi 0, %s135
    %s150 = sphi 0, %s136
    %s154 = sphi 0, %s154
    %s156 = sphi 0, %s154
    %s157 = sphi 0, %s156
    %s171 = sphi 0, %s157
    %s175 = sphi 0, %s175
    %s177 = sphi 0, %s175
    %s178 = sphi 0, %s177
    %s192 = sphi 0, %s178
    %s196 = sphi 0, %s196
    %s198 = sphi 0, %s196
    %s199 = sphi 0, %s198
    %s213 = sphi 0, %s199
    %s219 = sphi 0, %s221
    %s222 = sphi 0, %s219
    %s223 = sphi 0, %s222
    %s239 = sphi 0, %s223
  $region4: #{_lambda_.2} parent=0 // loop_header_branch
    %18 = sbr.rel (%p16) target = $region8
  $region5: #{_lambda_.2} parent=0 // loop_body
    %s20 = ssub.s32 %s15, 1
    %s21 = ssub.s32 %s15, 2
    %s22 = sadd.s32 %s15, 1
    %s23 = ssub.s32 %s15, %s22
    %p24 = scmp.eq.s32.totalorder %s23, 0
    %s26 = sadd.s32 %s25, 1
    %s27 = scalar_select %p24, %s25, %s26
    %p30 = pneg %p24
    %p31 = scmp.eq.s32.totalorder %s15, 1
    %p32 = por %p30, %p31
    %p33 = scmp.ne.s32.totalorder %s25, %s28
    %p34 = scmp.eq.s32.totalorder %s15, 0
    %p35 = por %p33, %p34
    %p36 = scmp.ne.s32.totalorder %s25, %s28
    %p37 = scmp.eq.s32.totalorder %s20, 1
    %p38 = por %p36, %p37
    %p39 = scmp.ne.s32.totalorder %s28, %s29
    %p40 = scmp.eq.s32.totalorder %s20, 0
    %p41 = por %p39, %p40
    %p42 = scmp.ne.s32.totalorder %s28, %s29
    %p43 = scmp.eq.s32.totalorder %s21, 1
    %p44 = por %p42, %p43
    %p46 = scmp.ne.s32.totalorder %s29, %s45
    %p47 = scmp.eq.s32.totalorder %s21, 0
    %p48 = por %p46, %p47
    %s50 = sadd.s32 %s49, 1
    %p53 = scmp.eq.s32.totalorder %s15, 1
    %p54 = scmp.ne.s32.totalorder %s49, %s51
    %p55 = scmp.eq.s32.totalorder %s15, 0
    %p56 = por %p54, %p55
    %p57 = scmp.ne.s32.totalorder %s49, %s51
    %p58 = scmp.eq.s32.totalorder %s20, 1
    %p59 = por %p57, %p58
    %p60 = scmp.ne.s32.totalorder %s51, %s52
    %p61 = scmp.eq.s32.totalorder %s20, 0
    %p62 = por %p60, %p61
    %p63 = scmp.ne.s32.totalorder %s51, %s52
    %p64 = scmp.eq.s32.totalorder %s21, 1
    %p65 = por %p63, %p64
    %p67 = scmp.ne.s32.totalorder %s52, %s66
    %p68 = scmp.eq.s32.totalorder %s21, 0
    %p69 = por %p67, %p68
    %s71 = sadd.s32 %s70, 1
    %p74 = scmp.eq.s32.totalorder %s15, 1
    %p75 = scmp.ne.s32.totalorder %s70, %s72
    %p76 = scmp.eq.s32.totalorder %s15, 0
    %p77 = por %p75, %p76
    %p78 = scmp.ne.s32.totalorder %s70, %s72
    %p79 = scmp.eq.s32.totalorder %s20, 1
    %p80 = por %p78, %p79
    %p81 = scmp.ne.s32.totalorder %s72, %s73
    %p82 = scmp.eq.s32.totalorder %s20, 0
    %p83 = por %p81, %p82
    %p84 = scmp.ne.s32.totalorder %s72, %s73
    %p85 = scmp.eq.s32.totalorder %s21, 1
    %p86 = por %p84, %p85
    %p88 = scmp.ne.s32.totalorder %s73, %s87
    %p89 = scmp.eq.s32.totalorder %s21, 0
    %p90 = por %p88, %p89
    %s92 = sadd.s32 %s91, 1
    %p95 = scmp.eq.s32.totalorder %s15, 1
    %p96 = scmp.ne.s32.totalorder %s91, %s93
    %p97 = scmp.eq.s32.totalorder %s15, 0
    %p98 = por %p96, %p97
    %p99 = scmp.ne.s32.totalorder %s91, %s93
    %p100 = scmp.eq.s32.totalorder %s20, 1
    %p101 = por %p99, %p100
    %p102 = scmp.ne.s32.totalorder %s93, %s94
    %p103 = scmp.eq.s32.totalorder %s20, 0
    %p104 = por %p102, %p103
    %p105 = scmp.ne.s32.totalorder %s93, %s94
    %p106 = scmp.eq.s32.totalorder %s21, 1
    %p107 = por %p105, %p106
    %p109 = scmp.ne.s32.totalorder %s94, %s108
    %p110 = scmp.eq.s32.totalorder %s21, 0
    %p111 = por %p109, %p110
    %s113 = sadd.s32 %s112, 1
    %p116 = scmp.eq.s32.totalorder %s15, 1
    %p117 = scmp.ne.s32.totalorder %s112, %s114
    %p118 = scmp.eq.s32.totalorder %s15, 0
    %p119 = por %p117, %p118
    %p120 = scmp.ne.s32.totalorder %s112, %s114
    %p121 = scmp.eq.s32.totalorder %s20, 1
    %p122 = por %p120, %p121
    %p123 = scmp.ne.s32.totalorder %s114, %s115
    %p124 = scmp.eq.s32.totalorder %s20, 0
    %p125 = por %p123, %p124
    %p126 = scmp.ne.s32.totalorder %s114, %s115
    %p127 = scmp.eq.s32.totalorder %s21, 1
    %p128 = por %p126, %p127
    %p130 = scmp.ne.s32.totalorder %s115, %s129
    %p131 = scmp.eq.s32.totalorder %s21, 0
    %p132 = por %p130, %p131
    %s134 = sadd.s32 %s133, 1
    %p137 = scmp.eq.s32.totalorder %s15, 1
    %p138 = scmp.ne.s32.totalorder %s133, %s135
    %p139 = scmp.eq.s32.totalorder %s15, 0
    %p140 = por %p138, %p139
    %p141 = scmp.ne.s32.totalorder %s133, %s135
    %p142 = scmp.eq.s32.totalorder %s20, 1
    %p143 = por %p141, %p142
    %p144 = scmp.ne.s32.totalorder %s135, %s136
    %p145 = scmp.eq.s32.totalorder %s20, 0
    %p146 = por %p144, %p145
    %p147 = scmp.ne.s32.totalorder %s135, %s136
    %p148 = scmp.eq.s32.totalorder %s21, 1
    %p149 = por %p147, %p148
    %p151 = scmp.ne.s32.totalorder %s136, %s150
    %p152 = scmp.eq.s32.totalorder %s21, 0
    %p153 = por %p151, %p152
    %s155 = sadd.s32 %s154, 1
    %p158 = scmp.eq.s32.totalorder %s15, 1
    %p159 = scmp.ne.s32.totalorder %s154, %s156
    %p160 = scmp.eq.s32.totalorder %s15, 0
    %p161 = por %p159, %p160
    %p162 = scmp.ne.s32.totalorder %s154, %s156
    %p163 = scmp.eq.s32.totalorder %s20, 1
    %p164 = por %p162, %p163
    %p165 = scmp.ne.s32.totalorder %s156, %s157
    %p166 = scmp.eq.s32.totalorder %s20, 0
    %p167 = por %p165, %p166
    %p168 = scmp.ne.s32.totalorder %s156, %s157
    %p169 = scmp.eq.s32.totalorder %s21, 1
    %p170 = por %p168, %p169
    %p172 = scmp.ne.s32.totalorder %s157, %s171
    %p173 = scmp.eq.s32.totalorder %s21, 0
    %p174 = por %p172, %p173
    %s176 = sadd.s32 %s175, 1
    %p179 = scmp.eq.s32.totalorder %s15, 1
    %p180 = scmp.ne.s32.totalorder %s175, %s177
    %p181 = scmp.eq.s32.totalorder %s15, 0
    %p182 = por %p180, %p181
    %p183 = scmp.ne.s32.totalorder %s175, %s177
    %p184 = scmp.eq.s32.totalorder %s20, 1
    %p185 = por %p183, %p184
    %p186 = scmp.ne.s32.totalorder %s177, %s178
    %p187 = scmp.eq.s32.totalorder %s20, 0
    %p188 = por %p186, %p187
    %p189 = scmp.ne.s32.totalorder %s177, %s178
    %p190 = scmp.eq.s32.totalorder %s21, 1
    %p191 = por %p189, %p190
    %p193 = scmp.ne.s32.totalorder %s178, %s192
    %p194 = scmp.eq.s32.totalorder %s21, 0
    %p195 = por %p193, %p194
    %s197 = sadd.s32 %s196, 1
    %p200 = scmp.eq.s32.totalorder %s15, 1
    %p201 = scmp.ne.s32.totalorder %s196, %s198
    %p202 = scmp.eq.s32.totalorder %s15, 0
    %p203 = por %p201, %p202
    %p204 = scmp.ne.s32.totalorder %s196, %s198
    %p205 = scmp.eq.s32.totalorder %s20, 1
    %p206 = por %p204, %p205
    %p207 = scmp.ne.s32.totalorder %s198, %s199
    %p208 = scmp.eq.s32.totalorder %s20, 0
    %p209 = por %p207, %p208
    %p210 = scmp.ne.s32.totalorder %s198, %s199
    %p211 = scmp.eq.s32.totalorder %s21, 1
    %p212 = por %p210, %p211
    %p214 = scmp.ne.s32.totalorder %s199, %s213
    %p215 = scmp.eq.s32.totalorder %s21, 0
    %p216 = por %p214, %p215
    %s217 = ssub.s32 %s15, %s22
    %p218 = scmp.eq.s32.totalorder %s217, 0
    %s220 = sadd.s32 %s219, 1
    %s221 = scalar_select %p218, %s219, %s220
    %p224 = pneg %p218
    %p225 = scmp.eq.s32.totalorder %s15, 1
    %p226 = por %p224, %p225
    %p227 = scmp.ne.s32.totalorder %s219, %s222
    %p228 = scmp.eq.s32.totalorder %s15, 0
    %p229 = por %p227, %p228
    %p230 = scmp.ne.s32.totalorder %s219, %s222
    %p231 = scmp.eq.s32.totalorder %s20, 1
    %p232 = por %p230, %p231
    %p233 = scmp.ne.s32.totalorder %s222, %s223
    %p234 = scmp.eq.s32.totalorder %s20, 0
    %p235 = por %p233, %p234
    %p236 = scmp.ne.s32.totalorder %s222, %s223
    %p237 = scmp.eq.s32.totalorder %s21, 1
    %p238 = por %p236, %p237
    %p240 = scmp.ne.s32.totalorder %s223, %s239
    %p241 = scmp.eq.s32.totalorder %s21, 0
    %p242 = por %p240, %p241
    %p243 = scmp.le.s32.totalorder 1, %s15
    %p244 = scmp.lt.s32.totalorder %s15, 3
    %p245 = pnand %p243, %p244
    %p246 = pneg %p245
    // Predicated region
    $region9: #{_lambda_.2} parent=5 // pred_check
      _
    $region10: #{_lambda_.2} parent=5 // pred_check_branch
      %248 = sbr.rel (%p245) target = $region12
    $region11: #{_lambda_.2} parent=5 // pred_region
      %s249 = ssub.s32 %s15, 1
      // Predicated region
      $region13: #{_lambda_.2} parent=11 // pred_check
        %p250 = pneg %p62
      $region14: #{_lambda_.2} parent=11 // pred_check_branch
        %252 = sbr.rel (%p250) target = $region16
      $region15: #{_lambda_.2} parent=11 // pred_region
        _
      $region16: #{_lambda_.2} parent=11 // pred_fallthru
        _
      // Predicated region
      $region17: #{_lambda_.2} parent=11 // pred_check
        %p253 = pneg %p83
      $region18: #{_lambda_.2} parent=11 // pred_check_branch
        %255 = sbr.rel (%p253) target = $region20
      $region19: #{_lambda_.2} parent=11 // pred_region
        _
      $region20: #{_lambda_.2} parent=11 // pred_fallthru
        _
      // Predicated region
      $region21: #{_lambda_.2} parent=11 // pred_check
        %p256 = pneg %p104
      $region22: #{_lambda_.2} parent=11 // pred_check_branch
        %258 = sbr.rel (%p256) target = $region24
      $region23: #{_lambda_.2} parent=11 // pred_region
        _
      $region24: #{_lambda_.2} parent=11 // pred_fallthru
        _
      // Predicated region
      $region25: #{_lambda_.2} parent=11 // pred_check
        %p259 = pneg %p125
      $region26: #{_lambda_.2} parent=11 // pred_check_branch
        %261 = sbr.rel (%p259) target = $region28
      $region27: #{_lambda_.2} parent=11 // pred_region
        _
      $region28: #{_lambda_.2} parent=11 // pred_fallthru
        _
      // Predicated region
      $region29: #{_lambda_.2} parent=11 // pred_check
        %p262 = pneg %p146
      $region30: #{_lambda_.2} parent=11 // pred_check_branch
        %264 = sbr.rel (%p262) target = $region32
      $region31: #{_lambda_.2} parent=11 // pred_region
        _
      $region32: #{_lambda_.2} parent=11 // pred_fallthru
        _
      // Predicated region
      $region33: #{_lambda_.2} parent=11 // pred_check
        %p265 = pneg %p167
      $region34: #{_lambda_.2} parent=11 // pred_check_branch
        %267 = sbr.rel (%p265) target = $region36
      $region35: #{_lambda_.2} parent=11 // pred_region
        _
      $region36: #{_lambda_.2} parent=11 // pred_fallthru
        _
      // Predicated region
      $region37: #{_lambda_.2} parent=11 // pred_check
        %p268 = pneg %p188
      $region38: #{_lambda_.2} parent=11 // pred_check_branch
        %270 = sbr.rel (%p268) target = $region40
      $region39: #{_lambda_.2} parent=11 // pred_region
        _
      $region40: #{_lambda_.2} parent=11 // pred_fallthru
        _
      // Predicated region
      $region41: #{_lambda_.2} parent=11 // pred_check
        %p271 = pneg %p209
      $region42: #{_lambda_.2} parent=11 // pred_check_branch
        %273 = sbr.rel (%p271) target = $region44
      $region43: #{_lambda_.2} parent=11 // pred_region
        _
      $region44: #{_lambda_.2} parent=11 // pred_fallthru
        _
    $region12: #{_lambda_.2} parent=5 // pred_fallthru
      _
    %p274 = scmp.lt.s32.totalorder %s15, 2
    // Predicated region
    $region45: #{_lambda_.2} parent=5 // pred_check
      %p275 = pneg %p274
    $region46: #{_lambda_.2} parent=5 // pred_check_branch
      %277 = sbr.rel (%p275) target = $region48
    $region47: #{_lambda_.2} parent=5 // pred_region
      // Predicated region
      $region49: #{_lambda_.2} parent=47 // pred_check
        %p278 = pneg %p35
      $region50: #{_lambda_.2} parent=47 // pred_check_branch
        %280 = sbr.rel (%p278) target = $region52
      $region51: #{_lambda_.2} parent=47 // pred_region
        %p281 = scmp.lt.s32.totalorder %s15, 1
        %s282 = scalar_select %p281, %s15, 1
        %s283 = smul.addr %s282, 35
        %s284 = smul.addr %s283, 8
        %s285 = scalar_lea.vmem %s0, %s284
      $region52: #{_lambda_.2} parent=47 // pred_fallthru
        _
    $region48: #{_lambda_.2} parent=5 // pred_fallthru
      _
    %p286 = scmp.le.s32.totalorder 1, %s15
    %p287 = scmp.lt.s32.totalorder %s15, 3
    %p288 = pnand %p286, %p287
    %p289 = pneg %p288
    // Predicated region
    $region53: #{_lambda_.2} parent=5 // pred_check
      _
    $region54: #{_lambda_.2} parent=5 // pred_check_branch
      %291 = sbr.rel (%p288) target = $region56
    $region55: #{_lambda_.2} parent=5 // pred_region
      %s292 = ssub.s32 %s15, 1
      %p293 = scmp.lt.s32.totalorder %s20, 1
      %s294 = scalar_select %p293, %s20, 1
      %s295 = smul.addr %s294, 35
      %s296 = smul.addr %s295, 8
      %s297 = scalar_lea.vmem %s0, %s296
      %p298 = pneg %p41
      %p299 = pneg %p38
      %p300 = pneg %p62
      %p301 = pneg %p59
      %p302 = pneg %p83
      %p303 = pneg %p80
      %p304 = pneg %p104
      %p305 = pneg %p101
      %p306 = pneg %p125
      %p307 = pneg %p122
      %p308 = pneg %p146
      %p309 = pneg %p143
      %p310 = pneg %p167
      %p311 = pneg %p164
      %p312 = pneg %p188
      %p313 = pneg %p185
      %p314 = pneg %p209
      %p315 = pneg %p206
      %p316 = pneg %p235
      %p317 = pneg %p232
      %p318 = scmp.lt.s32.totalorder %s20, 1
      %s319 = scalar_select %p318, %s20, 1
      %s320 = smul.addr %s319, 2
      %s321 = smul.addr %s320, 4
      %s322 = scalar_lea.vmem %s9, %s321
      %p323 = scmp.lt.s32.totalorder %s20, 1
      %s324 = scalar_select %p323, %s20, 1
      %s325 = smul.addr %s324, 35
      %s326 = smul.addr %s325, 8
      %s327 = scalar_lea.vmem %s0, %s326
      %p328 = scmp.lt.s32.totalorder %s20, 1
      %s329 = scalar_select %p328, %s20, 1
      %s330 = smul.addr %s329, 2
      %s331 = smul.addr %s330, 4
      %s332 = scalar_lea.vmem %s9, %s331
      %v333 = vld [vmem:[%s327] sm:$0xff]
      %v334 = vld [vmem:[%s327 + $0x8] sm:$0xff]
      %v335 = vld [vmem:[%s327 + $0x10] sm:$0xff]
      %v336 = vld [vmem:[%s327 + $0x18] sm:$0xff]
      %v337 = vld [vmem:[%s327 + $0x20] sm:$0xff]
      %v338 = vld [vmem:[%s327 + $0x28] sm:$0xff]
      %v339 = vld [vmem:[%s327 + $0x30] sm:$0xff]
      %v340 = vld [vmem:[%s327 + $0x38] sm:$0xff]
      %v341 = vld [vmem:[%s327 + $0x40] sm:$0xff]
      %v342 = vld [vmem:[%s327 + $0x48] sm:$0xff]
      %v343 = vld [vmem:[%s327 + $0x50] sm:$0xff]
      %v344 = vld [vmem:[%s327 + $0x58] sm:$0xff]
      %v345 = vld [vmem:[%s327 + $0x60] sm:$0xff]
      %v346 = vld [vmem:[%s327 + $0x68] sm:$0xff]
      %v347 = vld [vmem:[%s327 + $0x70] sm:$0xff]
      %v348 = vld [vmem:[%s327 + $0x78] sm:$0xff]
      %v349 = vld [vmem:[%s327 + $0x80] sm:$0xff]
      %v350 = vld [vmem:[%s327 + $0x88] sm:$0xff]
      %v351 = vld [vmem:[%s327 + $0x90] sm:$0xff]
      %v352 = vld [vmem:[%s327 + $0x98] sm:$0xff]
      %v353 = vld [vmem:[%s327 + $0xa0] sm:$0xff]
      %v354 = vld [vmem:[%s327 + $0xa8] sm:$0xff]
      %v355 = vld [vmem:[%s327 + $0xb0] sm:$0xff]
      %v356 = vld [vmem:[%s327 + $0xb8] sm:$0xff]
      %v357 = vld [vmem:[%s327 + $0xc0] sm:$0xff]
      %v358 = vld [vmem:[%s327 + $0xc8] sm:$0xff]
      %v359 = vld [vmem:[%s327 + $0xd0] sm:$0xff]
      %v360 = vld [vmem:[%s327 + $0xd8] sm:$0xff]
      %v361 = vld [vmem:[%s327 + $0xe0] sm:$0xff]
      %v362 = vld [vmem:[%s327 + $0xe8] sm:$0xff]
      %v363 = vld [vmem:[%s327 + $0xf0] sm:$0xff]
      %v364 = vld [vmem:[%s327 + $0xf8] sm:$0xff]
      %v365 = vld [vmem:[%s327 + $0x100] sm:$0xff]
      %v366 = vld [vmem:[%s327 + $0x108] sm:$0xff]
      %v367 = vld [vmem:[%s327 + $0x110] sm:$0x3]
      %v368 = vld [vmem:[%s1] sm:$0xff]
      %v369 = vld [vmem:[%s1 + $0x8] sm:$0xff]
      %v370 = vld [vmem:[%s1 + $0x10] sm:$0xff]
      %v371 = vld [vmem:[%s1 + $0x18] sm:$0xff]
      %v372 = vld [vmem:[%s1 + $0x20] sm:$0xff]
      %v373 = vld [vmem:[%s1 + $0x28] sm:$0xff]
      %v374 = vld [vmem:[%s1 + $0x30] sm:$0xff]
      %v375 = vld [vmem:[%s1 + $0x38] sm:$0xff]
      %v376 = vld [vmem:[%s2] sm:$0x1]
      %v378 = vlaneseq
      %v379 = vshrl.u32 %v378, 7
      %v380 = vsub.s32 0, %v379
      %v381 = vrot.slane %v376, %v380
      %vm383 = vcmask 523264
      %v385 = vsel %vm383, %v333, 0
      %v388 = vsel %vm383, %v334, 0
      %v391 = vsel %vm383, %v335, 0
      %v394 = vsel %vm383, %v336, 0
      %v397 = vsel %vm383, %v337, 0
      %v400 = vsel %vm383, %v338, 0
      %v403 = vsel %vm383, %v339, 0
      %v406 = vsel %vm383, %v340, 0
      %v409 = vsel %vm383, %v341, 0
      %v412 = vsel %vm383, %v342, 0
      %v415 = vsel %vm383, %v343, 0
      %v418 = vsel %vm383, %v344, 0
      %v421 = vsel %vm383, %v345, 0
      %v424 = vsel %vm383, %v346, 0
      %v427 = vsel %vm383, %v347, 0
      %v430 = vsel %vm383, %v348, 0
      %v433 = vsel %vm383, %v349, 0
      %v436 = vsel %vm383, %v350, 0
      %v439 = vsel %vm383, %v351, 0
      %v442 = vsel %vm383, %v352, 0
      %v445 = vsel %vm383, %v353, 0
      %v448 = vsel %vm383, %v354, 0
      %v451 = vsel %vm383, %v355, 0
      %v454 = vsel %vm383, %v356, 0
      %v457 = vsel %vm383, %v357, 0
      %v460 = vsel %vm383, %v358, 0
      %v463 = vsel %vm383, %v359, 0
      %v466 = vsel %vm383, %v360, 0
      %v469 = vsel %vm383, %v361, 0
      %v472 = vsel %vm383, %v362, 0
      %v475 = vsel %vm383, %v363, 0
      %v478 = vsel %vm383, %v364, 0
      %v481 = vsel %vm383, %v365, 0
      %v484 = vsel %vm383, %v366, 0
      %v487 = vsel %vm383, %v367, 0
      %489 = vmatprep.subr.mxu0 0.0
      %490 = vmatpush1.msra.mxu0 0.0
      %491 = vmatprep.subr.mxu0 0.0
      %492 = vmatpush1.msra.mxu0 0.0
      %493 = vmatprep.subr.mxu0 0.0
      %494 = vmatpush1.msra.mxu0 0.0
      %495 = vmatprep.subr.mxu0 0.0
      %496 = vmatpush1.msra.mxu0 0.0
      %497 = vmatprep.subr.mxu0 0.0
      %498 = vmatpush1.msra.mxu0 0.0
      %499 = vmatprep.subr.mxu0 0.0
      %500 = vmatpush1.msra.mxu0 0.0
      %501 = vmatprep.subr.mxu0 0.0
      %502 = vmatpush1.msra.mxu0 0.0
      %503 = vmatprep.subr.mxu0 0.0
      %504 = vmatpush1.msra.mxu0 0.0
      %505 = vmatprep.subr.mxu0 0.0
      %506 = vmatpush1.msra.mxu0 %v375
      %507 = vmatprep.subr.mxu0 0.0
      %508 = vmatpush1.msra.mxu0 %v374
      %509 = vmatprep.subr.mxu0 0.0
      %510 = vmatpush1.msra.mxu0 %v373
      %511 = vmatprep.subr.mxu0 0.0
      %512 = vmatpush1.msra.mxu0 %v372
      %513 = vmatprep.subr.mxu0 0.0
      %514 = vmatpush1.msra.mxu0 %v371
      %515 = vmatprep.subr.mxu0 0.0
      %516 = vmatpush1.msra.mxu0 %v370
      %517 = vmatprep.subr.mxu0 0.0
      %518 = vmatpush1.msra.mxu0 %v369
      %519 = vmatprep.subr.mxu0 0.0
      %520 = vmatpush1.msra.mxu0 %v368
      %521 = vmatprep.subr.mxu0 0.0
      %522 = vmatpush2.msra.mxu0 0.0
      %523 = vmatprep.subr.mxu0 0.0
      %524 = vmatpush2.msra.mxu0 0.0
      %525 = vmatprep.subr.mxu0 0.0
      %526 = vmatpush2.msra.mxu0 0.0
      %527 = vmatprep.subr.mxu0 0.0
      %528 = vmatpush2.msra.mxu0 0.0
      %529 = vmatprep.subr.mxu0 0.0
      %530 = vmatpush2.msra.mxu0 0.0
      %531 = vmatprep.subr.mxu0 0.0
      %532 = vmatpush2.msra.mxu0 0.0
      %533 = vmatprep.subr.mxu0 0.0
      %534 = vmatpush2.msra.mxu0 0.0
      %535 = vmatprep.subr.mxu0 0.0
      %536 = vmatpush2.msra.mxu0 0.0
      %537 = vmatprep.subr.mxu0 0.0
      %538 = vmatpush2.msra.mxu0 0.0
      %539 = vmatprep.subr.mxu0 0.0
      %540 = vmatpush2.msra.mxu0 0.0
      %541 = vmatprep.subr.mxu0 0.0
      %542 = vmatpush2.msra.mxu0 0.0
      %543 = vmatprep.subr.mxu0 0.0
      %544 = vmatpush2.msra.mxu0 0.0
      %545 = vmatprep.subr.mxu0 0.0
      %546 = vmatpush2.msra.mxu0 0.0
      %547 = vmatprep.subr.mxu0 0.0
      %548 = vmatpush2.msra.mxu0 0.0
      %549 = vmatprep.subr.mxu0 0.0
      %550 = vmatpush2.msra.mxu0 0.0
      %551 = vmatprep.subr.mxu0 0.0
      %552 = vmatpush2.msra.mxu0 0.0
      %553 = vmatprep.mubr.f32.mxu0 0.0
      %554 = vmatmul.mubr.f32.gmra.mxu0 %v385
      %v555 = vpop.f32.mrf.mxu0
      %v556 = vadd.f32 %v381, %v555
      %v557 = vpop.f32.mrf.mxu0
      %558 = vmatprep.mubr.f32.mxu0 0.0
      %559 = vmatmul.mubr.f32.gmra.mxu0 %v388
      %v560 = vpop.f32.mrf.mxu0
      %v561 = vadd.f32 %v381, %v560
      %v562 = vpop.f32.mrf.mxu0
      %563 = vmatprep.mubr.f32.mxu0 0.0
      %564 = vmatmul.mubr.f32.gmra.mxu0 %v391
      %v565 = vpop.f32.mrf.mxu0
      %v566 = vadd.f32 %v381, %v565
      %v567 = vpop.f32.mrf.mxu0
      %568 = vmatprep.mubr.f32.mxu0 0.0
      %569 = vmatmul.mubr.f32.gmra.mxu0 %v394
      %v570 = vpop.f32.mrf.mxu0
      %v571 = vadd.f32 %v381, %v570
      %v572 = vpop.f32.mrf.mxu0
      %573 = vmatprep.mubr.f32.mxu0 0.0
      %574 = vmatmul.mubr.f32.gmra.mxu0 %v397
      %v575 = vpop.f32.mrf.mxu0
      %v576 = vadd.f32 %v381, %v575
      %v577 = vpop.f32.mrf.mxu0
      %578 = vmatprep.mubr.f32.mxu0 0.0
      %579 = vmatmul.mubr.f32.gmra.mxu0 %v400
      %v580 = vpop.f32.mrf.mxu0
      %v581 = vadd.f32 %v381, %v580
      %v582 = vpop.f32.mrf.mxu0
      %583 = vmatprep.mubr.f32.mxu0 0.0
      %584 = vmatmul.mubr.f32.gmra.mxu0 %v403
      %v585 = vpop.f32.mrf.mxu0
      %v586 = vadd.f32 %v381, %v585
      %v587 = vpop.f32.mrf.mxu0
      %588 = vmatprep.mubr.f32.mxu0 0.0
      %589 = vmatmul.mubr.f32.gmra.mxu0 %v406
      %v590 = vpop.f32.mrf.mxu0
      %v591 = vadd.f32 %v381, %v590
      %v592 = vpop.f32.mrf.mxu0
      %593 = vmatprep.mubr.f32.mxu0 0.0
      %594 = vmatmul.mubr.f32.gmra.mxu0 %v409
      %v595 = vpop.f32.mrf.mxu0
      %v596 = vadd.f32 %v381, %v595
      %v597 = vpop.f32.mrf.mxu0
      %598 = vmatprep.mubr.f32.mxu0 0.0
      %599 = vmatmul.mubr.f32.gmra.mxu0 %v412
      %v600 = vpop.f32.mrf.mxu0
      %v601 = vadd.f32 %v381, %v600
      %v602 = vpop.f32.mrf.mxu0
      %603 = vmatprep.mubr.f32.mxu0 0.0
      %604 = vmatmul.mubr.f32.gmra.mxu0 %v415
      %v605 = vpop.f32.mrf.mxu0
      %v606 = vadd.f32 %v381, %v605
      %v607 = vpop.f32.mrf.mxu0
      %608 = vmatprep.mubr.f32.mxu0 0.0
      %609 = vmatmul.mubr.f32.gmra.mxu0 %v418
      %v610 = vpop.f32.mrf.mxu0
      %v611 = vadd.f32 %v381, %v610
      %v612 = vpop.f32.mrf.mxu0
      %613 = vmatprep.mubr.f32.mxu0 0.0
      %614 = vmatmul.mubr.f32.gmra.mxu0 %v421
      %v615 = vpop.f32.mrf.mxu0
      %v616 = vadd.f32 %v381, %v615
      %v617 = vpop.f32.mrf.mxu0
      %618 = vmatprep.mubr.f32.mxu0 0.0
      %619 = vmatmul.mubr.f32.gmra.mxu0 %v424
      %v620 = vpop.f32.mrf.mxu0
      %v621 = vadd.f32 %v381, %v620
      %v622 = vpop.f32.mrf.mxu0
      %623 = vmatprep.mubr.f32.mxu0 0.0
      %624 = vmatmul.mubr.f32.gmra.mxu0 %v427
      %v625 = vpop.f32.mrf.mxu0
      %v626 = vadd.f32 %v381, %v625
      %v627 = vpop.f32.mrf.mxu0
      %628 = vmatprep.mubr.f32.mxu0 0.0
      %629 = vmatmul.mubr.f32.gmra.mxu0 %v430
      %v630 = vpop.f32.mrf.mxu0
      %v631 = vadd.f32 %v381, %v630
      %v632 = vpop.f32.mrf.mxu0
      %633 = vmatprep.mubr.f32.mxu0 0.0
      %634 = vmatmul.mubr.f32.gmra.mxu0 %v433
      %v635 = vpop.f32.mrf.mxu0
      %v636 = vadd.f32 %v381, %v635
      %v637 = vpop.f32.mrf.mxu0
      %638 = vmatprep.mubr.f32.mxu0 0.0
      %639 = vmatmul.mubr.f32.gmra.mxu0 %v436
      %v640 = vpop.f32.mrf.mxu0
      %v641 = vadd.f32 %v381, %v640
      %v642 = vpop.f32.mrf.mxu0
      %643 = vmatprep.mubr.f32.mxu0 0.0
      %644 = vmatmul.mubr.f32.gmra.mxu0 %v439
      %v645 = vpop.f32.mrf.mxu0
      %v646 = vadd.f32 %v381, %v645
      %v647 = vpop.f32.mrf.mxu0
      %648 = vmatprep.mubr.f32.mxu0 0.0
      %649 = vmatmul.mubr.f32.gmra.mxu0 %v442
      %v650 = vpop.f32.mrf.mxu0
      %v651 = vadd.f32 %v381, %v650
      %v652 = vpop.f32.mrf.mxu0
      %653 = vmatprep.mubr.f32.mxu0 0.0
      %654 = vmatmul.mubr.f32.gmra.mxu0 %v445
      %v655 = vpop.f32.mrf.mxu0
      %v656 = vadd.f32 %v381, %v655
      %v657 = vpop.f32.mrf.mxu0
      %658 = vmatprep.mubr.f32.mxu0 0.0
      %659 = vmatmul.mubr.f32.gmra.mxu0 %v448
      %v660 = vpop.f32.mrf.mxu0
      %v661 = vadd.f32 %v381, %v660
      %v662 = vpop.f32.mrf.mxu0
      %663 = vmatprep.mubr.f32.mxu0 0.0
      %664 = vmatmul.mubr.f32.gmra.mxu0 %v451
      %v665 = vpop.f32.mrf.mxu0
      %v666 = vadd.f32 %v381, %v665
      %v667 = vpop.f32.mrf.mxu0
      %668 = vmatprep.mubr.f32.mxu0 0.0
      %669 = vmatmul.mubr.f32.gmra.mxu0 %v454
      %v670 = vpop.f32.mrf.mxu0
      %v671 = vadd.f32 %v381, %v670
      %v672 = vpop.f32.mrf.mxu0
      %673 = vmatprep.mubr.f32.mxu0 0.0
      %674 = vmatmul.mubr.f32.gmra.mxu0 %v457
      %v675 = vpop.f32.mrf.mxu0
      %v676 = vadd.f32 %v381, %v675
      %v677 = vpop.f32.mrf.mxu0
      %678 = vmatprep.mubr.f32.mxu0 0.0
      %679 = vmatmul.mubr.f32.gmra.mxu0 %v460
      %v680 = vpop.f32.mrf.mxu0
      %v681 = vadd.f32 %v381, %v680
      %v682 = vpop.f32.mrf.mxu0
      %683 = vmatprep.mubr.f32.mxu0 0.0
      %684 = vmatmul.mubr.f32.gmra.mxu0 %v463
      %v685 = vpop.f32.mrf.mxu0
      %v686 = vadd.f32 %v381, %v685
      %v687 = vpop.f32.mrf.mxu0
      %688 = vmatprep.mubr.f32.mxu0 0.0
      %689 = vmatmul.mubr.f32.gmra.mxu0 %v466
      %v690 = vpop.f32.mrf.mxu0
      %v691 = vadd.f32 %v381, %v690
      %v692 = vpop.f32.mrf.mxu0
      %693 = vmatprep.mubr.f32.mxu0 0.0
      %694 = vmatmul.mubr.f32.gmra.mxu0 %v469
      %v695 = vpop.f32.mrf.mxu0
      %v696 = vadd.f32 %v381, %v695
      %v697 = vpop.f32.mrf.mxu0
      %698 = vmatprep.mubr.f32.mxu0 0.0
      %699 = vmatmul.mubr.f32.gmra.mxu0 %v472
      %v700 = vpop.f32.mrf.mxu0
      %v701 = vadd.f32 %v381, %v700
      %v702 = vpop.f32.mrf.mxu0
      %703 = vmatprep.mubr.f32.mxu0 0.0
      %704 = vmatmul.mubr.f32.gmra.mxu0 %v475
      %v705 = vpop.f32.mrf.mxu0
      %v706 = vadd.f32 %v381, %v705
      %v707 = vpop.f32.mrf.mxu0
      %708 = vmatprep.mubr.f32.mxu0 0.0
      %709 = vmatmul.mubr.f32.gmra.mxu0 %v478
      %v710 = vpop.f32.mrf.mxu0
      %v711 = vadd.f32 %v381, %v710
      %v712 = vpop.f32.mrf.mxu0
      %713 = vmatprep.mubr.f32.mxu0 0.0
      %714 = vmatmul.mubr.f32.gmra.mxu0 %v481
      %v715 = vpop.f32.mrf.mxu0
      %v716 = vadd.f32 %v381, %v715
      %v717 = vpop.f32.mrf.mxu0
      %718 = vmatprep.mubr.f32.mxu0 0.0
      %719 = vmatmul.mubr.f32.gmra.mxu0 %v484
      %v720 = vpop.f32.mrf.mxu0
      %v721 = vadd.f32 %v381, %v720
      %v722 = vpop.f32.mrf.mxu0
      %723 = vmatprep.mubr.f32.mxu0 0.0
      %724 = vmatmul.mubr.f32.gmra.mxu0 %v487
      %v725 = vpop.f32.mrf.mxu0
      %v726 = vadd.f32 %v381, %v725
      %v727 = vpop.f32.mrf.mxu0
      %728 = vdwg.mxu0
      %v729 = vmax.f32 %v556, 0.0
      %v730 = vmax.f32 %v561, 0.0
      %v731 = vmax.f32 %v566, 0.0
      %v732 = vmax.f32 %v571, 0.0
      %v733 = vmax.f32 %v576, 0.0
      %v734 = vmax.f32 %v581, 0.0
      %v735 = vmax.f32 %v586, 0.0
      %v736 = vmax.f32 %v591, 0.0
      %v737 = vmax.f32 %v596, 0.0
      %v738 = vmax.f32 %v601, 0.0
      %v739 = vmax.f32 %v606, 0.0
      %v740 = vmax.f32 %v611, 0.0
      %v741 = vmax.f32 %v616, 0.0
      %v742 = vmax.f32 %v621, 0.0
      %v743 = vmax.f32 %v626, 0.0
      %v744 = vmax.f32 %v631, 0.0
      %v745 = vmax.f32 %v636, 0.0
      %v746 = vmax.f32 %v641, 0.0
      %v747 = vmax.f32 %v646, 0.0
      %v748 = vmax.f32 %v651, 0.0
      %v749 = vmax.f32 %v656, 0.0
      %v750 = vmax.f32 %v661, 0.0
      %v751 = vmax.f32 %v666, 0.0
      %v752 = vmax.f32 %v671, 0.0
      %v753 = vmax.f32 %v676, 0.0
      %v754 = vmax.f32 %v681, 0.0
      %v755 = vmax.f32 %v686, 0.0
      %v756 = vmax.f32 %v691, 0.0
      %v757 = vmax.f32 %v696, 0.0
      %v758 = vmax.f32 %v701, 0.0
      %v759 = vmax.f32 %v706, 0.0
      %v760 = vmax.f32 %v711, 0.0
      %v761 = vmax.f32 %v716, 0.0
      %v762 = vmax.f32 %v721, 0.0
      %v763 = vmax.f32 %v726, 0.0
      %vm764 = vcmask 130048
      %765 = vst.msk [vmem:[#allocation2] sm:$0xff] %vm764, %v729
      %766 = vst.msk [vmem:[#allocation2 + $0x8] sm:$0xff] %vm764, %v730
      %767 = vst.msk [vmem:[#allocation2 + $0x10] sm:$0xff] %vm764, %v731
      %768 = vst.msk [vmem:[#allocation2 + $0x18] sm:$0xff] %vm764, %v732
      %769 = vst.msk [vmem:[#allocation2 + $0x20] sm:$0xff] %vm764, %v733
      %770 = vst.msk [vmem:[#allocation2 + $0x28] sm:$0xff] %vm764, %v734
      %771 = vst.msk [vmem:[#allocation2 + $0x30] sm:$0xff] %vm764, %v735
      %772 = vst.msk [vmem:[#allocation2 + $0x38] sm:$0xff] %vm764, %v736
      %773 = vst.msk [vmem:[#allocation2 + $0x40] sm:$0xff] %vm764, %v737
      %774 = vst.msk [vmem:[#allocation2 + $0x48] sm:$0xff] %vm764, %v738
      %775 = vst.msk [vmem:[#allocation2 + $0x50] sm:$0xff] %vm764, %v739
      %776 = vst.msk [vmem:[#allocation2 + $0x58] sm:$0xff] %vm764, %v740
      %777 = vst.msk [vmem:[#allocation2 + $0x60] sm:$0xff] %vm764, %v741
      %778 = vst.msk [vmem:[#allocation2 + $0x68] sm:$0xff] %vm764, %v742
      %779 = vst.msk [vmem:[#allocation2 + $0x70] sm:$0xff] %vm764, %v743
      %780 = vst.msk [vmem:[#allocation2 + $0x78] sm:$0xff] %vm764, %v744
      %781 = vst.msk [vmem:[#allocation2 + $0x80] sm:$0xff] %vm764, %v745
      %782 = vst.msk [vmem:[#allocation2 + $0x88] sm:$0xff] %vm764, %v746
      %783 = vst.msk [vmem:[#allocation2 + $0x90] sm:$0xff] %vm764, %v747
      %784 = vst.msk [vmem:[#allocation2 + $0x98] sm:$0xff] %vm764, %v748
      %785 = vst.msk [vmem:[#allocation2 + $0xa0] sm:$0xff] %vm764, %v749
      %786 = vst.msk [vmem:[#allocation2 + $0xa8] sm:$0xff] %vm764, %v750
      %787 = vst.msk [vmem:[#allocation2 + $0xb0] sm:$0xff] %vm764, %v751
      %788 = vst.msk [vmem:[#allocation2 + $0xb8] sm:$0xff] %vm764, %v752
      %789 = vst.msk [vmem:[#allocation2 + $0xc0] sm:$0xff] %vm764, %v753
      %790 = vst.msk [vmem:[#allocation2 + $0xc8] sm:$0xff] %vm764, %v754
      %791 = vst.msk [vmem:[#allocation2 + $0xd0] sm:$0xff] %vm764, %v755
      %792 = vst.msk [vmem:[#allocation2 + $0xd8] sm:$0xff] %vm764, %v756
      %793 = vst.msk [vmem:[#allocation2 + $0xe0] sm:$0xff] %vm764, %v757
      %794 = vst.msk [vmem:[#allocation2 + $0xe8] sm:$0xff] %vm764, %v758
      %795 = vst.msk [vmem:[#allocation2 + $0xf0] sm:$0xff] %vm764, %v759
      %796 = vst.msk [vmem:[#allocation2 + $0xf8] sm:$0xff] %vm764, %v760
      %797 = vst.msk [vmem:[#allocation2 + $0x100] sm:$0xff] %vm764, %v761
      %798 = vst.msk [vmem:[#allocation2 + $0x108] sm:$0xff] %vm764, %v762
      %vm799 = vcmask 123904
      %800 = vst.msk [vmem:[#allocation2 + $0x110] sm:$0x3] %vm799, %v763
      %v801 = vld [vmem:[#allocation2] ss:$2 sm:$0xff]
      %s802 = scalar_lea.vmem [#allocation2], 16
      %v803 = vld [vmem:[%s802] ss:$2 sm:$0xff]
      %s804 = scalar_lea.vmem [#allocation2], 32
      %v805 = vld [vmem:[%s804] ss:$2 sm:$0xff]
      %s806 = scalar_lea.vmem [#allocation2], 48
      %v807 = vld [vmem:[%s806] ss:$2 sm:$0xff]
      %s808 = scalar_lea.vmem [#allocation2], 64
      %v809 = vld [vmem:[%s808] ss:$2 sm:$0xff]
      %s810 = scalar_lea.vmem [#allocation2], 80
      %v811 = vld [vmem:[%s810] ss:$2 sm:$0xff]
      %s812 = scalar_lea.vmem [#allocation2], 96
      %v813 = vld [vmem:[%s812] ss:$2 sm:$0xff]
      %s814 = scalar_lea.vmem [#allocation2], 112
      %v815 = vld [vmem:[%s814] ss:$2 sm:$0xff]
      %s816 = scalar_lea.vmem [#allocation2], 128
      %v817 = vld [vmem:[%s816] ss:$2 sm:$0xf]
      %s818 = scalar_lea.vmem [#allocation2], 1
      %v819 = vld [vmem:[%s818] ss:$2 sm:$0xff]
      %s820 = scalar_lea.vmem [#allocation2], 17
      %v821 = vld [vmem:[%s820] ss:$2 sm:$0xff]
      %s822 = scalar_lea.vmem [#allocation2], 33
      %v823 = vld [vmem:[%s822] ss:$2 sm:$0xff]
      %s824 = scalar_lea.vmem [#allocation2], 49
      %v825 = vld [vmem:[%s824] ss:$2 sm:$0xff]
      %s826 = scalar_lea.vmem [#allocation2], 65
      %v827 = vld [vmem:[%s826] ss:$2 sm:$0xff]
      %s828 = scalar_lea.vmem [#allocation2], 81
      %v829 = vld [vmem:[%s828] ss:$2 sm:$0xff]
      %s830 = scalar_lea.vmem [#allocation2], 97
      %v831 = vld [vmem:[%s830] ss:$2 sm:$0xff]
      %s832 = scalar_lea.vmem [#allocation2], 113
      %v833 = vld [vmem:[%s832] ss:$2 sm:$0xff]
      %s834 = scalar_lea.vmem [#allocation2], 129
      %v835 = vld [vmem:[%s834] ss:$2 sm:$0xf]
      %v836 = vmax.f32 %v801, %v819
      %v837 = vmax.f32 %v803, %v821
      %v838 = vmax.f32 %v805, %v823
      %v839 = vmax.f32 %v807, %v825
      %v840 = vmax.f32 %v809, %v827
      %v841 = vmax.f32 %v811, %v829
      %v842 = vmax.f32 %v813, %v831
      %v843 = vmax.f32 %v815, %v833
      %v844 = vmax.f32 %v817, %v835
      %v845 = vld [vmem:[%s3] sm:$0xff]
      %v846 = vld [vmem:[%s3 + $0x8] sm:$0xff]
      %s847 = scalar_lea.vmem %s3, 16
      %v848 = vld [vmem:[%s847] sm:$0xff]
      %v849 = vld [vmem:[%s847 + $0x8] sm:$0xff]
      %vm857 = vcmask 1046528
      %v858 = vrot.slane %v836, 1
      %v859 = vrot.slane %v837, 1
      %v860 = vsel %vm857, %v858, %v859
      %v861 = vrot.slane %v838, 1
      %v862 = vsel %vm857, %v859, %v861
      %v863 = vrot.slane %v839, 1
      %v864 = vsel %vm857, %v861, %v863
      %v865 = vrot.slane %v840, 1
      %v866 = vsel %vm857, %v863, %v865
      %v867 = vrot.slane %v841, 1
      %v868 = vsel %vm857, %v865, %v867
      %v869 = vrot.slane %v842, 1
      %v870 = vsel %vm857, %v867, %v869
      %v871 = vsel %vm764, %v860, 0
      %v873 = vsel %vm764, %v862, 0
      %v875 = vsel %vm764, %v864, 0
      %v877 = vsel %vm764, %v866, 0
      %v879 = vsel %vm764, %v868, 0
      %v881 = vsel %vm764, %v870, 0
      %v883 = vsel %vm764, %v869, 0
      %885 = vmatprep.subr.mxu0 0.0
      %886 = vmatpush1.msra.mxu0 0.0
      %887 = vmatprep.subr.mxu0 0.0
      %888 = vmatpush1.msra.mxu0 0.0
      %889 = vmatprep.subr.mxu0 0.0
      %890 = vmatpush1.msra.mxu0 0.0
      %891 = vmatprep.subr.mxu0 0.0
      %892 = vmatpush1.msra.mxu0 0.0
      %893 = vmatprep.subr.mxu0 0.0
      %894 = vmatpush1.msra.mxu0 0.0
      %895 = vmatprep.subr.mxu0 0.0
      %896 = vmatpush1.msra.mxu0 0.0
      %897 = vmatprep.subr.mxu0 0.0
      %898 = vmatpush1.msra.mxu0 0.0
      %899 = vmatprep.subr.mxu0 0.0
      %900 = vmatpush1.msra.mxu0 0.0
      %901 = vmatprep.subr.mxu0 0.0
      %902 = vmatpush1.msra.mxu0 0.0
      %903 = vmatprep.subr.mxu0 0.0
      %904 = vmatpush1.msra.mxu0 0.0
      %905 = vmatprep.subr.mxu0 0.0
      %906 = vmatpush1.msra.mxu0 0.0
      %907 = vmatprep.subr.mxu0 0.0
      %908 = vmatpush1.msra.mxu0 0.0
      %909 = vmatprep.subr.mxu0 0.0
      %910 = vmatpush1.msra.mxu0 0.0
      %911 = vmatprep.subr.mxu0 0.0
      %912 = vmatpush1.msra.mxu0 0.0
      %913 = vmatprep.subr.mxu0 0.0
      %914 = vmatpush1.msra.mxu0 %v849
      %915 = vmatprep.subr.mxu0 0.0
      %916 = vmatpush1.msra.mxu0 %v848
      %917 = vmatprep.subr.mxu0 0.0
      %918 = vmatpush2.msra.mxu0 0.0
      %919 = vmatprep.subr.mxu0 0.0
      %920 = vmatpush2.msra.mxu0 0.0
      %921 = vmatprep.subr.mxu0 0.0
      %922 = vmatpush2.msra.mxu0 0.0
      %923 = vmatprep.subr.mxu0 0.0
      %924 = vmatpush2.msra.mxu0 0.0
      %925 = vmatprep.subr.mxu0 0.0
      %926 = vmatpush2.msra.mxu0 0.0
      %927 = vmatprep.subr.mxu0 0.0
      %928 = vmatpush2.msra.mxu0 0.0
      %929 = vmatprep.subr.mxu0 0.0
      %930 = vmatpush2.msra.mxu0 0.0
      %931 = vmatprep.subr.mxu0 0.0
      %932 = vmatpush2.msra.mxu0 0.0
      %933 = vmatprep.subr.mxu0 0.0
      %934 = vmatpush2.msra.mxu0 0.0
      %935 = vmatprep.subr.mxu0 0.0
      %936 = vmatpush2.msra.mxu0 0.0
      %937 = vmatprep.subr.mxu0 0.0
      %938 = vmatpush2.msra.mxu0 0.0
      %939 = vmatprep.subr.mxu0 0.0
      %940 = vmatpush2.msra.mxu0 0.0
      %941 = vmatprep.subr.mxu0 0.0
      %942 = vmatpush2.msra.mxu0 0.0
      %943 = vmatprep.subr.mxu0 0.0
      %944 = vmatpush2.msra.mxu0 0.0
      %945 = vmatprep.subr.mxu0 0.0
      %946 = vmatpush2.msra.mxu0 0.0
      %947 = vmatprep.subr.mxu0 0.0
      %948 = vmatpush2.msra.mxu0 0.0
      %949 = vmatprep.mubr.f32.mxu0 0.0
      %950 = vmatmul.mubr.f32.gmra.mxu0 %v871
      %v951 = vpop.f32.mrf.mxu0
      %v952 = vadd.f32 0.0, %v951
      %v953 = vpop.f32.mrf.mxu0
      %954 = vmatprep.mubr.f32.mxu0 0.0
      %955 = vmatmul.mubr.f32.gmra.mxu0 %v873
      %v956 = vpop.f32.mrf.mxu0
      %v957 = vadd.f32 0.0, %v956
      %v958 = vpop.f32.mrf.mxu0
      %959 = vmatprep.mubr.f32.mxu0 0.0
      %960 = vmatmul.mubr.f32.gmra.mxu0 %v875
      %v961 = vpop.f32.mrf.mxu0
      %v962 = vadd.f32 0.0, %v961
      %v963 = vpop.f32.mrf.mxu0
      %964 = vmatprep.mubr.f32.mxu0 0.0
      %965 = vmatmul.mubr.f32.gmra.mxu0 %v877
      %v966 = vpop.f32.mrf.mxu0
      %v967 = vadd.f32 0.0, %v966
      %v968 = vpop.f32.mrf.mxu0
      %969 = vmatprep.mubr.f32.mxu0 0.0
      %970 = vmatmul.mubr.f32.gmra.mxu0 %v879
      %v971 = vpop.f32.mrf.mxu0
      %v972 = vadd.f32 0.0, %v971
      %v973 = vpop.f32.mrf.mxu0
      %974 = vmatprep.mubr.f32.mxu0 0.0
      %975 = vmatmul.mubr.f32.gmra.mxu0 %v881
      %v976 = vpop.f32.mrf.mxu0
      %v977 = vadd.f32 0.0, %v976
      %v978 = vpop.f32.mrf.mxu0
      %979 = vmatprep.mubr.f32.mxu0 0.0
      %980 = vmatmul.mubr.f32.gmra.mxu0 %v883
      %v981 = vpop.f32.mrf.mxu0
      %v982 = vadd.f32 0.0, %v981
      %v983 = vpop.f32.mrf.mxu0
      %984 = vdwg.mxu0
      %v985 = vsel %vm764, %v836, 0
      %v987 = vsel %vm764, %v837, 0
      %v989 = vsel %vm764, %v838, 0
      %v991 = vsel %vm764, %v839, 0
      %v993 = vsel %vm764, %v840, 0
      %v995 = vsel %vm764, %v841, 0
      %v997 = vsel %vm764, %v842, 0
      %999 = vmatprep.subr.mxu0 0.0
      %1000 = vmatpush1.msra.mxu0 0.0
      %1001 = vmatprep.subr.mxu0 0.0
      %1002 = vmatpush1.msra.mxu0 0.0
      %1003 = vmatprep.subr.mxu0 0.0
      %1004 = vmatpush1.msra.mxu0 0.0
      %1005 = vmatprep.subr.mxu0 0.0
      %1006 = vmatpush1.msra.mxu0 0.0
      %1007 = vmatprep.subr.mxu0 0.0
      %1008 = vmatpush1.msra.mxu0 0.0
      %1009 = vmatprep.subr.mxu0 0.0
      %1010 = vmatpush1.msra.mxu0 0.0
      %1011 = vmatprep.subr.mxu0 0.0
      %1012 = vmatpush1.msra.mxu0 0.0
      %1013 = vmatprep.subr.mxu0 0.0
      %1014 = vmatpush1.msra.mxu0 0.0
      %1015 = vmatprep.subr.mxu0 0.0
      %1016 = vmatpush1.msra.mxu0 0.0
      %1017 = vmatprep.subr.mxu0 0.0
      %1018 = vmatpush1.msra.mxu0 0.0
      %1019 = vmatprep.subr.mxu0 0.0
      %1020 = vmatpush1.msra.mxu0 0.0
      %1021 = vmatprep.subr.mxu0 0.0
      %1022 = vmatpush1.msra.mxu0 0.0
      %1023 = vmatprep.subr.mxu0 0.0
      %1024 = vmatpush1.msra.mxu0 0.0
      %1025 = vmatprep.subr.mxu0 0.0
      %1026 = vmatpush1.msra.mxu0 0.0
      %1027 = vmatprep.subr.mxu0 0.0
      %1028 = vmatpush1.msra.mxu0 %v846
      %1029 = vmatprep.subr.mxu0 0.0
      %1030 = vmatpush1.msra.mxu0 %v845
      %1031 = vmatprep.subr.mxu0 0.0
      %1032 = vmatpush2.msra.mxu0 0.0
      %1033 = vmatprep.subr.mxu0 0.0
      %1034 = vmatpush2.msra.mxu0 0.0
      %1035 = vmatprep.subr.mxu0 0.0
      %1036 = vmatpush2.msra.mxu0 0.0
      %1037 = vmatprep.subr.mxu0 0.0
      %1038 = vmatpush2.msra.mxu0 0.0
      %1039 = vmatprep.subr.mxu0 0.0
      %1040 = vmatpush2.msra.mxu0 0.0
      %1041 = vmatprep.subr.mxu0 0.0
      %1042 = vmatpush2.msra.mxu0 0.0
      %1043 = vmatprep.subr.mxu0 0.0
      %1044 = vmatpush2.msra.mxu0 0.0
      %1045 = vmatprep.subr.mxu0 0.0
      %1046 = vmatpush2.msra.mxu0 0.0
      %1047 = vmatprep.subr.mxu0 0.0
      %1048 = vmatpush2.msra.mxu0 0.0
      %1049 = vmatprep.subr.mxu0 0.0
      %1050 = vmatpush2.msra.mxu0 0.0
      %1051 = vmatprep.subr.mxu0 0.0
      %1052 = vmatpush2.msra.mxu0 0.0
      %1053 = vmatprep.subr.mxu0 0.0
      %1054 = vmatpush2.msra.mxu0 0.0
      %1055 = vmatprep.subr.mxu0 0.0
      %1056 = vmatpush2.msra.mxu0 0.0
      %1057 = vmatprep.subr.mxu0 0.0
      %1058 = vmatpush2.msra.mxu0 0.0
      %1059 = vmatprep.subr.mxu0 0.0
      %1060 = vmatpush2.msra.mxu0 0.0
      %1061 = vmatprep.subr.mxu0 0.0
      %1062 = vmatpush2.msra.mxu0 0.0
      %1063 = vmatprep.mubr.f32.mxu0 0.0
      %1064 = vmatmul.mubr.f32.gmra.mxu0 %v985
      %v1065 = vpop.f32.mrf.mxu0
      %v1066 = vadd.f32 %v952, %v1065
      %v1067 = vpop.f32.mrf.mxu0
      %1068 = vmatprep.mubr.f32.mxu0 0.0
      %1069 = vmatmul.mubr.f32.gmra.mxu0 %v987
      %v1070 = vpop.f32.mrf.mxu0
      %v1071 = vadd.f32 %v957, %v1070
      %v1072 = vpop.f32.mrf.mxu0
      %1073 = vmatprep.mubr.f32.mxu0 0.0
      %1074 = vmatmul.mubr.f32.gmra.mxu0 %v989
      %v1075 = vpop.f32.mrf.mxu0
      %v1076 = vadd.f32 %v962, %v1075
      %v1077 = vpop.f32.mrf.mxu0
      %1078 = vmatprep.mubr.f32.mxu0 0.0
      %1079 = vmatmul.mubr.f32.gmra.mxu0 %v991
      %v1080 = vpop.f32.mrf.mxu0
      %v1081 = vadd.f32 %v967, %v1080
      %v1082 = vpop.f32.mrf.mxu0
      %1083 = vmatprep.mubr.f32.mxu0 0.0
      %1084 = vmatmul.mubr.f32.gmra.mxu0 %v993
      %v1085 = vpop.f32.mrf.mxu0
      %v1086 = vadd.f32 %v972, %v1085
      %v1087 = vpop.f32.mrf.mxu0
      %1088 = vmatprep.mubr.f32.mxu0 0.0
      %1089 = vmatmul.mubr.f32.gmra.mxu0 %v995
      %v1090 = vpop.f32.mrf.mxu0
      %v1091 = vadd.f32 %v977, %v1090
      %v1092 = vpop.f32.mrf.mxu0
      %1093 = vmatprep.mubr.f32.mxu0 0.0
      %1094 = vmatmul.mubr.f32.gmra.mxu0 %v997
      %v1095 = vpop.f32.mrf.mxu0
      %v1096 = vadd.f32 %v982, %v1095
      %v1097 = vpop.f32.mrf.mxu0
      %1098 = vdwg.mxu0
      %s1099 = scalar_lea.vmem %s3, 32
      %v1100 = vld [vmem:[%s1099] sm:$0xff]
      %v1101 = vld [vmem:[%s1099 + $0x8] sm:$0xff]
      %vm1102 = vcmask 1045504
      %v1103 = vrot.slane %v836, 2
      %v1104 = vrot.slane %v837, 2
      %v1105 = vsel %vm1102, %v1103, %v1104
      %v1106 = vrot.slane %v838, 2
      %v1107 = vsel %vm1102, %v1104, %v1106
      %v1108 = vrot.slane %v839, 2
      %v1109 = vsel %vm1102, %v1106, %v1108
      %v1110 = vrot.slane %v840, 2
      %v1111 = vsel %vm1102, %v1108, %v1110
      %v1112 = vrot.slane %v841, 2
      %v1113 = vsel %vm1102, %v1110, %v1112
      %v1114 = vrot.slane %v842, 2
      %v1115 = vsel %vm1102, %v1112, %v1114
      %v1116 = vsel %vm764, %v1105, 0
      %v1118 = vsel %vm764, %v1107, 0
      %v1120 = vsel %vm764, %v1109, 0
      %v1122 = vsel %vm764, %v1111, 0
      %v1124 = vsel %vm764, %v1113, 0
      %v1126 = vsel %vm764, %v1115, 0
      %v1128 = vsel %vm764, %v1114, 0
      %1130 = vmatprep.subr.mxu0 0.0
      %1131 = vmatpush1.msra.mxu0 0.0
      %1132 = vmatprep.subr.mxu0 0.0
      %1133 = vmatpush1.msra.mxu0 0.0
      %1134 = vmatprep.subr.mxu0 0.0
      %1135 = vmatpush1.msra.mxu0 0.0
      %1136 = vmatprep.subr.mxu0 0.0
      %1137 = vmatpush1.msra.mxu0 0.0
      %1138 = vmatprep.subr.mxu0 0.0
      %1139 = vmatpush1.msra.mxu0 0.0
      %1140 = vmatprep.subr.mxu0 0.0
      %1141 = vmatpush1.msra.mxu0 0.0
      %1142 = vmatprep.subr.mxu0 0.0
      %1143 = vmatpush1.msra.mxu0 0.0
      %1144 = vmatprep.subr.mxu0 0.0
      %1145 = vmatpush1.msra.mxu0 0.0
      %1146 = vmatprep.subr.mxu0 0.0
      %1147 = vmatpush1.msra.mxu0 0.0
      %1148 = vmatprep.subr.mxu0 0.0
      %1149 = vmatpush1.msra.mxu0 0.0
      %1150 = vmatprep.subr.mxu0 0.0
      %1151 = vmatpush1.msra.mxu0 0.0
      %1152 = vmatprep.subr.mxu0 0.0
      %1153 = vmatpush1.msra.mxu0 0.0
      %1154 = vmatprep.subr.mxu0 0.0
      %1155 = vmatpush1.msra.mxu0 0.0
      %1156 = vmatprep.subr.mxu0 0.0
      %1157 = vmatpush1.msra.mxu0 0.0
      %1158 = vmatprep.subr.mxu0 0.0
      %1159 = vmatpush1.msra.mxu0 %v1101
      %1160 = vmatprep.subr.mxu0 0.0
      %1161 = vmatpush1.msra.mxu0 %v1100
      %1162 = vmatprep.subr.mxu0 0.0
      %1163 = vmatpush2.msra.mxu0 0.0
      %1164 = vmatprep.subr.mxu0 0.0
      %1165 = vmatpush2.msra.mxu0 0.0
      %1166 = vmatprep.subr.mxu0 0.0
      %1167 = vmatpush2.msra.mxu0 0.0
      %1168 = vmatprep.subr.mxu0 0.0
      %1169 = vmatpush2.msra.mxu0 0.0
      %1170 = vmatprep.subr.mxu0 0.0
      %1171 = vmatpush2.msra.mxu0 0.0
      %1172 = vmatprep.subr.mxu0 0.0
      %1173 = vmatpush2.msra.mxu0 0.0
      %1174 = vmatprep.subr.mxu0 0.0
      %1175 = vmatpush2.msra.mxu0 0.0
      %1176 = vmatprep.subr.mxu0 0.0
      %1177 = vmatpush2.msra.mxu0 0.0
      %1178 = vmatprep.subr.mxu0 0.0
      %1179 = vmatpush2.msra.mxu0 0.0
      %1180 = vmatprep.subr.mxu0 0.0
      %1181 = vmatpush2.msra.mxu0 0.0
      %1182 = vmatprep.subr.mxu0 0.0
      %1183 = vmatpush2.msra.mxu0 0.0
      %1184 = vmatprep.subr.mxu0 0.0
      %1185 = vmatpush2.msra.mxu0 0.0
      %1186 = vmatprep.subr.mxu0 0.0
      %1187 = vmatpush2.msra.mxu0 0.0
      %1188 = vmatprep.subr.mxu0 0.0
      %1189 = vmatpush2.msra.mxu0 0.0
      %1190 = vmatprep.subr.mxu0 0.0
      %1191 = vmatpush2.msra.mxu0 0.0
      %1192 = vmatprep.subr.mxu0 0.0
      %1193 = vmatpush2.msra.mxu0 0.0
      %1194 = vmatprep.mubr.f32.mxu0 0.0
      %1195 = vmatmul.mubr.f32.gmra.mxu0 %v1116
      %v1196 = vpop.f32.mrf.mxu0
      %v1197 = vadd.f32 0.0, %v1196
      %v1198 = vpop.f32.mrf.mxu0
      %1199 = vmatprep.mubr.f32.mxu0 0.0
      %1200 = vmatmul.mubr.f32.gmra.mxu0 %v1118
      %v1201 = vpop.f32.mrf.mxu0
      %v1202 = vadd.f32 0.0, %v1201
      %v1203 = vpop.f32.mrf.mxu0
      %1204 = vmatprep.mubr.f32.mxu0 0.0
      %1205 = vmatmul.mubr.f32.gmra.mxu0 %v1120
      %v1206 = vpop.f32.mrf.mxu0
      %v1207 = vadd.f32 0.0, %v1206
      %v1208 = vpop.f32.mrf.mxu0
      %1209 = vmatprep.mubr.f32.mxu0 0.0
      %1210 = vmatmul.mubr.f32.gmra.mxu0 %v1122
      %v1211 = vpop.f32.mrf.mxu0
      %v1212 = vadd.f32 0.0, %v1211
      %v1213 = vpop.f32.mrf.mxu0
      %1214 = vmatprep.mubr.f32.mxu0 0.0
      %1215 = vmatmul.mubr.f32.gmra.mxu0 %v1124
      %v1216 = vpop.f32.mrf.mxu0
      %v1217 = vadd.f32 0.0, %v1216
      %v1218 = vpop.f32.mrf.mxu0
      %1219 = vmatprep.mubr.f32.mxu0 0.0
      %1220 = vmatmul.mubr.f32.gmra.mxu0 %v1126
      %v1221 = vpop.f32.mrf.mxu0
      %v1222 = vadd.f32 0.0, %v1221
      %v1223 = vpop.f32.mrf.mxu0
      %1224 = vmatprep.mubr.f32.mxu0 0.0
      %1225 = vmatmul.mubr.f32.gmra.mxu0 %v1128
      %v1226 = vpop.f32.mrf.mxu0
      %v1227 = vadd.f32 0.0, %v1226
      %v1228 = vpop.f32.mrf.mxu0
      %1229 = vdwg.mxu0
      %v1230 = vadd.f32 %v1066, %v1197
      %v1231 = vadd.f32 %v1071, %v1202
      %v1232 = vadd.f32 %v1076, %v1207
      %v1233 = vadd.f32 %v1081, %v1212
      %v1234 = vadd.f32 %v1086, %v1217
      %v1235 = vadd.f32 %v1091, %v1222
      %v1236 = vadd.f32 %v1096, %v1227
      %s1237 = scalar_lea.vmem %s3, 48
      %v1238 = vld [vmem:[%s1237] sm:$0xff]
      %v1239 = vld [vmem:[%s1237 + $0x8] sm:$0xff]
      %vm1240 = vcmask 1044480
      %v1241 = vrot.slane %v836, 3
      %v1242 = vrot.slane %v837, 3
      %v1243 = vsel %vm1240, %v1241, %v1242
      %v1244 = vrot.slane %v838, 3
      %v1245 = vsel %vm1240, %v1242, %v1244
      %v1246 = vrot.slane %v839, 3
      %v1247 = vsel %vm1240, %v1244, %v1246
      %v1248 = vrot.slane %v840, 3
      %v1249 = vsel %vm1240, %v1246, %v1248
      %v1250 = vrot.slane %v841, 3
      %v1251 = vsel %vm1240, %v1248, %v1250
      %v1252 = vrot.slane %v842, 3
      %v1253 = vsel %vm1240, %v1250, %v1252
      %v1254 = vsel %vm764, %v1243, 0
      %v1256 = vsel %vm764, %v1245, 0
      %v1258 = vsel %vm764, %v1247, 0
      %v1260 = vsel %vm764, %v1249, 0
      %v1262 = vsel %vm764, %v1251, 0
      %v1264 = vsel %vm764, %v1253, 0
      %v1266 = vsel %vm764, %v1252, 0
      %1268 = vmatprep.subr.mxu0 0.0
      %1269 = vmatpush1.msra.mxu0 0.0
      %1270 = vmatprep.subr.mxu0 0.0
      %1271 = vmatpush1.msra.mxu0 0.0
      %1272 = vmatprep.subr.mxu0 0.0
      %1273 = vmatpush1.msra.mxu0 0.0
      %1274 = vmatprep.subr.mxu0 0.0
      %1275 = vmatpush1.msra.mxu0 0.0
      %1276 = vmatprep.subr.mxu0 0.0
      %1277 = vmatpush1.msra.mxu0 0.0
      %1278 = vmatprep.subr.mxu0 0.0
      %1279 = vmatpush1.msra.mxu0 0.0
      %1280 = vmatprep.subr.mxu0 0.0
      %1281 = vmatpush1.msra.mxu0 0.0
      %1282 = vmatprep.subr.mxu0 0.0
      %1283 = vmatpush1.msra.mxu0 0.0
      %1284 = vmatprep.subr.mxu0 0.0
      %1285 = vmatpush1.msra.mxu0 0.0
      %1286 = vmatprep.subr.mxu0 0.0
      %1287 = vmatpush1.msra.mxu0 0.0
      %1288 = vmatprep.subr.mxu0 0.0
      %1289 = vmatpush1.msra.mxu0 0.0
      %1290 = vmatprep.subr.mxu0 0.0
      %1291 = vmatpush1.msra.mxu0 0.0
      %1292 = vmatprep.subr.mxu0 0.0
      %1293 = vmatpush1.msra.mxu0 0.0
      %1294 = vmatprep.subr.mxu0 0.0
      %1295 = vmatpush1.msra.mxu0 0.0
      %1296 = vmatprep.subr.mxu0 0.0
      %1297 = vmatpush1.msra.mxu0 %v1239
      %1298 = vmatprep.subr.mxu0 0.0
      %1299 = vmatpush1.msra.mxu0 %v1238
      %1300 = vmatprep.subr.mxu0 0.0
      %1301 = vmatpush2.msra.mxu0 0.0
      %1302 = vmatprep.subr.mxu0 0.0
      %1303 = vmatpush2.msra.mxu0 0.0
      %1304 = vmatprep.subr.mxu0 0.0
      %1305 = vmatpush2.msra.mxu0 0.0
      %1306 = vmatprep.subr.mxu0 0.0
      %1307 = vmatpush2.msra.mxu0 0.0
      %1308 = vmatprep.subr.mxu0 0.0
      %1309 = vmatpush2.msra.mxu0 0.0
      %1310 = vmatprep.subr.mxu0 0.0
      %1311 = vmatpush2.msra.mxu0 0.0
      %1312 = vmatprep.subr.mxu0 0.0
      %1313 = vmatpush2.msra.mxu0 0.0
      %1314 = vmatprep.subr.mxu0 0.0
      %1315 = vmatpush2.msra.mxu0 0.0
      %1316 = vmatprep.subr.mxu0 0.0
      %1317 = vmatpush2.msra.mxu0 0.0
      %1318 = vmatprep.subr.mxu0 0.0
      %1319 = vmatpush2.msra.mxu0 0.0
      %1320 = vmatprep.subr.mxu0 0.0
      %1321 = vmatpush2.msra.mxu0 0.0
      %1322 = vmatprep.subr.mxu0 0.0
      %1323 = vmatpush2.msra.mxu0 0.0
      %1324 = vmatprep.subr.mxu0 0.0
      %1325 = vmatpush2.msra.mxu0 0.0
      %1326 = vmatprep.subr.mxu0 0.0
      %1327 = vmatpush2.msra.mxu0 0.0
      %1328 = vmatprep.subr.mxu0 0.0
      %1329 = vmatpush2.msra.mxu0 0.0
      %1330 = vmatprep.subr.mxu0 0.0
      %1331 = vmatpush2.msra.mxu0 0.0
      %1332 = vmatprep.mubr.f32.mxu0 0.0
      %1333 = vmatmul.mubr.f32.gmra.mxu0 %v1254
      %v1334 = vpop.f32.mrf.mxu0
      %v1335 = vadd.f32 0.0, %v1334
      %v1336 = vpop.f32.mrf.mxu0
      %1337 = vmatprep.mubr.f32.mxu0 0.0
      %1338 = vmatmul.mubr.f32.gmra.mxu0 %v1256
      %v1339 = vpop.f32.mrf.mxu0
      %v1340 = vadd.f32 0.0, %v1339
      %v1341 = vpop.f32.mrf.mxu0
      %1342 = vmatprep.mubr.f32.mxu0 0.0
      %1343 = vmatmul.mubr.f32.gmra.mxu0 %v1258
      %v1344 = vpop.f32.mrf.mxu0
      %v1345 = vadd.f32 0.0, %v1344
      %v1346 = vpop.f32.mrf.mxu0
      %1347 = vmatprep.mubr.f32.mxu0 0.0
      %1348 = vmatmul.mubr.f32.gmra.mxu0 %v1260
      %v1349 = vpop.f32.mrf.mxu0
      %v1350 = vadd.f32 0.0, %v1349
      %v1351 = vpop.f32.mrf.mxu0
      %1352 = vmatprep.mubr.f32.mxu0 0.0
      %1353 = vmatmul.mubr.f32.gmra.mxu0 %v1262
      %v1354 = vpop.f32.mrf.mxu0
      %v1355 = vadd.f32 0.0, %v1354
      %v1356 = vpop.f32.mrf.mxu0
      %1357 = vmatprep.mubr.f32.mxu0 0.0
      %1358 = vmatmul.mubr.f32.gmra.mxu0 %v1264
      %v1359 = vpop.f32.mrf.mxu0
      %v1360 = vadd.f32 0.0, %v1359
      %v1361 = vpop.f32.mrf.mxu0
      %1362 = vmatprep.mubr.f32.mxu0 0.0
      %1363 = vmatmul.mubr.f32.gmra.mxu0 %v1266
      %v1364 = vpop.f32.mrf.mxu0
      %v1365 = vadd.f32 0.0, %v1364
      %v1366 = vpop.f32.mrf.mxu0
      %1367 = vdwg.mxu0
      %v1368 = vadd.f32 %v1230, %v1335
      %v1369 = vadd.f32 %v1231, %v1340
      %v1370 = vadd.f32 %v1232, %v1345
      %v1371 = vadd.f32 %v1233, %v1350
      %v1372 = vadd.f32 %v1234, %v1355
      %v1373 = vadd.f32 %v1235, %v1360
      %v1374 = vadd.f32 %v1236, %v1365
      %s1375 = scalar_lea.vmem %s3, 64
      %v1376 = vld [vmem:[%s1375] sm:$0xff]
      %v1377 = vld [vmem:[%s1375 + $0x8] sm:$0xff]
      %vm1379 = vcmask 1043456
      %v1380 = vrot.slane %v836, 4
      %v1381 = vrot.slane %v837, 4
      %v1382 = vsel %vm1379, %v1380, %v1381
      %v1383 = vrot.slane %v838, 4
      %v1384 = vsel %vm1379, %v1381, %v1383
      %v1385 = vrot.slane %v839, 4
      %v1386 = vsel %vm1379, %v1383, %v1385
      %v1387 = vrot.slane %v840, 4
      %v1388 = vsel %vm1379, %v1385, %v1387
      %v1389 = vrot.slane %v841, 4
      %v1390 = vsel %vm1379, %v1387, %v1389
      %v1391 = vrot.slane %v842, 4
      %v1392 = vsel %vm1379, %v1389, %v1391
      %v1393 = vrot.slane %v843, 4
      %v1394 = vsel %vm1379, %v1391, %v1393
      %v1395 = vsel %vm764, %v1382, 0
      %v1397 = vsel %vm764, %v1384, 0
      %v1399 = vsel %vm764, %v1386, 0
      %v1401 = vsel %vm764, %v1388, 0
      %v1403 = vsel %vm764, %v1390, 0
      %v1405 = vsel %vm764, %v1392, 0
      %v1407 = vsel %vm764, %v1394, 0
      %1409 = vmatprep.subr.mxu0 0.0
      %1410 = vmatpush1.msra.mxu0 0.0
      %1411 = vmatprep.subr.mxu0 0.0
      %1412 = vmatpush1.msra.mxu0 0.0
      %1413 = vmatprep.subr.mxu0 0.0
      %1414 = vmatpush1.msra.mxu0 0.0
      %1415 = vmatprep.subr.mxu0 0.0
      %1416 = vmatpush1.msra.mxu0 0.0
      %1417 = vmatprep.subr.mxu0 0.0
      %1418 = vmatpush1.msra.mxu0 0.0
      %1419 = vmatprep.subr.mxu0 0.0
      %1420 = vmatpush1.msra.mxu0 0.0
      %1421 = vmatprep.subr.mxu0 0.0
      %1422 = vmatpush1.msra.mxu0 0.0
      %1423 = vmatprep.subr.mxu0 0.0
      %1424 = vmatpush1.msra.mxu0 0.0
      %1425 = vmatprep.subr.mxu0 0.0
      %1426 = vmatpush1.msra.mxu0 0.0
      %1427 = vmatprep.subr.mxu0 0.0
      %1428 = vmatpush1.msra.mxu0 0.0
      %1429 = vmatprep.subr.mxu0 0.0
      %1430 = vmatpush1.msra.mxu0 0.0
      %1431 = vmatprep.subr.mxu0 0.0
      %1432 = vmatpush1.msra.mxu0 0.0
      %1433 = vmatprep.subr.mxu0 0.0
      %1434 = vmatpush1.msra.mxu0 0.0
      %1435 = vmatprep.subr.mxu0 0.0
      %1436 = vmatpush1.msra.mxu0 0.0
      %1437 = vmatprep.subr.mxu0 0.0
      %1438 = vmatpush1.msra.mxu0 %v1377
      %1439 = vmatprep.subr.mxu0 0.0
      %1440 = vmatpush1.msra.mxu0 %v1376
      %1441 = vmatprep.subr.mxu0 0.0
      %1442 = vmatpush2.msra.mxu0 0.0
      %1443 = vmatprep.subr.mxu0 0.0
      %1444 = vmatpush2.msra.mxu0 0.0
      %1445 = vmatprep.subr.mxu0 0.0
      %1446 = vmatpush2.msra.mxu0 0.0
      %1447 = vmatprep.subr.mxu0 0.0
      %1448 = vmatpush2.msra.mxu0 0.0
      %1449 = vmatprep.subr.mxu0 0.0
      %1450 = vmatpush2.msra.mxu0 0.0
      %1451 = vmatprep.subr.mxu0 0.0
      %1452 = vmatpush2.msra.mxu0 0.0
      %1453 = vmatprep.subr.mxu0 0.0
      %1454 = vmatpush2.msra.mxu0 0.0
      %1455 = vmatprep.subr.mxu0 0.0
      %1456 = vmatpush2.msra.mxu0 0.0
      %1457 = vmatprep.subr.mxu0 0.0
      %1458 = vmatpush2.msra.mxu0 0.0
      %1459 = vmatprep.subr.mxu0 0.0
      %1460 = vmatpush2.msra.mxu0 0.0
      %1461 = vmatprep.subr.mxu0 0.0
      %1462 = vmatpush2.msra.mxu0 0.0
      %1463 = vmatprep.subr.mxu0 0.0
      %1464 = vmatpush2.msra.mxu0 0.0
      %1465 = vmatprep.subr.mxu0 0.0
      %1466 = vmatpush2.msra.mxu0 0.0
      %1467 = vmatprep.subr.mxu0 0.0
      %1468 = vmatpush2.msra.mxu0 0.0
      %1469 = vmatprep.subr.mxu0 0.0
      %1470 = vmatpush2.msra.mxu0 0.0
      %1471 = vmatprep.subr.mxu0 0.0
      %1472 = vmatpush2.msra.mxu0 0.0
      %1473 = vmatprep.mubr.f32.mxu0 0.0
      %1474 = vmatmul.mubr.f32.gmra.mxu0 %v1395
      %v1475 = vpop.f32.mrf.mxu0
      %v1476 = vadd.f32 0.0, %v1475
      %v1477 = vpop.f32.mrf.mxu0
      %1478 = vmatprep.mubr.f32.mxu0 0.0
      %1479 = vmatmul.mubr.f32.gmra.mxu0 %v1397
      %v1480 = vpop.f32.mrf.mxu0
      %v1481 = vadd.f32 0.0, %v1480
      %v1482 = vpop.f32.mrf.mxu0
      %1483 = vmatprep.mubr.f32.mxu0 0.0
      %1484 = vmatmul.mubr.f32.gmra.mxu0 %v1399
      %v1485 = vpop.f32.mrf.mxu0
      %v1486 = vadd.f32 0.0, %v1485
      %v1487 = vpop.f32.mrf.mxu0
      %1488 = vmatprep.mubr.f32.mxu0 0.0
      %1489 = vmatmul.mubr.f32.gmra.mxu0 %v1401
      %v1490 = vpop.f32.mrf.mxu0
      %v1491 = vadd.f32 0.0, %v1490
      %v1492 = vpop.f32.mrf.mxu0
      %1493 = vmatprep.mubr.f32.mxu0 0.0
      %1494 = vmatmul.mubr.f32.gmra.mxu0 %v1403
      %v1495 = vpop.f32.mrf.mxu0
      %v1496 = vadd.f32 0.0, %v1495
      %v1497 = vpop.f32.mrf.mxu0
      %1498 = vmatprep.mubr.f32.mxu0 0.0
      %1499 = vmatmul.mubr.f32.gmra.mxu0 %v1405
      %v1500 = vpop.f32.mrf.mxu0
      %v1501 = vadd.f32 0.0, %v1500
      %v1502 = vpop.f32.mrf.mxu0
      %1503 = vmatprep.mubr.f32.mxu0 0.0
      %1504 = vmatmul.mubr.f32.gmra.mxu0 %v1407
      %v1505 = vpop.f32.mrf.mxu0
      %v1506 = vadd.f32 0.0, %v1505
      %v1507 = vpop.f32.mrf.mxu0
      %1508 = vdwg.mxu0
      %v1509 = vadd.f32 %v1368, %v1476
      %v1510 = vadd.f32 %v1369, %v1481
      %v1511 = vadd.f32 %v1370, %v1486
      %v1512 = vadd.f32 %v1371, %v1491
      %v1513 = vadd.f32 %v1372, %v1496
      %v1514 = vadd.f32 %v1373, %v1501
      %v1515 = vadd.f32 %v1374, %v1506
      %s1516 = scalar_lea.vmem %s3, 80
      %v1517 = vld [vmem:[%s1516] sm:$0xff]
      %v1518 = vld [vmem:[%s1516 + $0x8] sm:$0xff]
      %vm1519 = vcmask 1042432
      %v1520 = vrot.slane %v836, 5
      %v1521 = vrot.slane %v837, 5
      %v1522 = vsel %vm1519, %v1520, %v1521
      %v1523 = vrot.slane %v838, 5
      %v1524 = vsel %vm1519, %v1521, %v1523
      %v1525 = vrot.slane %v839, 5
      %v1526 = vsel %vm1519, %v1523, %v1525
      %v1527 = vrot.slane %v840, 5
      %v1528 = vsel %vm1519, %v1525, %v1527
      %v1529 = vrot.slane %v841, 5
      %v1530 = vsel %vm1519, %v1527, %v1529
      %v1531 = vrot.slane %v842, 5
      %v1532 = vsel %vm1519, %v1529, %v1531
      %v1533 = vrot.slane %v843, 5
      %v1534 = vsel %vm1519, %v1531, %v1533
      %v1535 = vsel %vm764, %v1522, 0
      %v1537 = vsel %vm764, %v1524, 0
      %v1539 = vsel %vm764, %v1526, 0
      %v1541 = vsel %vm764, %v1528, 0
      %v1543 = vsel %vm764, %v1530, 0
      %v1545 = vsel %vm764, %v1532, 0
      %v1547 = vsel %vm764, %v1534, 0
      %1549 = vmatprep.subr.mxu0 0.0
      %1550 = vmatpush1.msra.mxu0 0.0
      %1551 = vmatprep.subr.mxu0 0.0
      %1552 = vmatpush1.msra.mxu0 0.0
      %1553 = vmatprep.subr.mxu0 0.0
      %1554 = vmatpush1.msra.mxu0 0.0
      %1555 = vmatprep.subr.mxu0 0.0
      %1556 = vmatpush1.msra.mxu0 0.0
      %1557 = vmatprep.subr.mxu0 0.0
      %1558 = vmatpush1.msra.mxu0 0.0
      %1559 = vmatprep.subr.mxu0 0.0
      %1560 = vmatpush1.msra.mxu0 0.0
      %1561 = vmatprep.subr.mxu0 0.0
      %1562 = vmatpush1.msra.mxu0 0.0
      %1563 = vmatprep.subr.mxu0 0.0
      %1564 = vmatpush1.msra.mxu0 0.0
      %1565 = vmatprep.subr.mxu0 0.0
      %1566 = vmatpush1.msra.mxu0 0.0
      %1567 = vmatprep.subr.mxu0 0.0
      %1568 = vmatpush1.msra.mxu0 0.0
      %1569 = vmatprep.subr.mxu0 0.0
      %1570 = vmatpush1.msra.mxu0 0.0
      %1571 = vmatprep.subr.mxu0 0.0
      %1572 = vmatpush1.msra.mxu0 0.0
      %1573 = vmatprep.subr.mxu0 0.0
      %1574 = vmatpush1.msra.mxu0 0.0
      %1575 = vmatprep.subr.mxu0 0.0
      %1576 = vmatpush1.msra.mxu0 0.0
      %1577 = vmatprep.subr.mxu0 0.0
      %1578 = vmatpush1.msra.mxu0 %v1518
      %1579 = vmatprep.subr.mxu0 0.0
      %1580 = vmatpush1.msra.mxu0 %v1517
      %1581 = vmatprep.subr.mxu0 0.0
      %1582 = vmatpush2.msra.mxu0 0.0
      %1583 = vmatprep.subr.mxu0 0.0
      %1584 = vmatpush2.msra.mxu0 0.0
      %1585 = vmatprep.subr.mxu0 0.0
      %1586 = vmatpush2.msra.mxu0 0.0
      %1587 = vmatprep.subr.mxu0 0.0
      %1588 = vmatpush2.msra.mxu0 0.0
      %1589 = vmatprep.subr.mxu0 0.0
      %1590 = vmatpush2.msra.mxu0 0.0
      %1591 = vmatprep.subr.mxu0 0.0
      %1592 = vmatpush2.msra.mxu0 0.0
      %1593 = vmatprep.subr.mxu0 0.0
      %1594 = vmatpush2.msra.mxu0 0.0
      %1595 = vmatprep.subr.mxu0 0.0
      %1596 = vmatpush2.msra.mxu0 0.0
      %1597 = vmatprep.subr.mxu0 0.0
      %1598 = vmatpush2.msra.mxu0 0.0
      %1599 = vmatprep.subr.mxu0 0.0
      %1600 = vmatpush2.msra.mxu0 0.0
      %1601 = vmatprep.subr.mxu0 0.0
      %1602 = vmatpush2.msra.mxu0 0.0
      %1603 = vmatprep.subr.mxu0 0.0
      %1604 = vmatpush2.msra.mxu0 0.0
      %1605 = vmatprep.subr.mxu0 0.0
      %1606 = vmatpush2.msra.mxu0 0.0
      %1607 = vmatprep.subr.mxu0 0.0
      %1608 = vmatpush2.msra.mxu0 0.0
      %1609 = vmatprep.subr.mxu0 0.0
      %1610 = vmatpush2.msra.mxu0 0.0
      %1611 = vmatprep.subr.mxu0 0.0
      %1612 = vmatpush2.msra.mxu0 0.0
      %1613 = vmatprep.mubr.f32.mxu0 0.0
      %1614 = vmatmul.mubr.f32.gmra.mxu0 %v1535
      %v1615 = vpop.f32.mrf.mxu0
      %v1616 = vadd.f32 0.0, %v1615
      %v1617 = vpop.f32.mrf.mxu0
      %1618 = vmatprep.mubr.f32.mxu0 0.0
      %1619 = vmatmul.mubr.f32.gmra.mxu0 %v1537
      %v1620 = vpop.f32.mrf.mxu0
      %v1621 = vadd.f32 0.0, %v1620
      %v1622 = vpop.f32.mrf.mxu0
      %1623 = vmatprep.mubr.f32.mxu0 0.0
      %1624 = vmatmul.mubr.f32.gmra.mxu0 %v1539
      %v1625 = vpop.f32.mrf.mxu0
      %v1626 = vadd.f32 0.0, %v1625
      %v1627 = vpop.f32.mrf.mxu0
      %1628 = vmatprep.mubr.f32.mxu0 0.0
      %1629 = vmatmul.mubr.f32.gmra.mxu0 %v1541
      %v1630 = vpop.f32.mrf.mxu0
      %v1631 = vadd.f32 0.0, %v1630
      %v1632 = vpop.f32.mrf.mxu0
      %1633 = vmatprep.mubr.f32.mxu0 0.0
      %1634 = vmatmul.mubr.f32.gmra.mxu0 %v1543
      %v1635 = vpop.f32.mrf.mxu0
      %v1636 = vadd.f32 0.0, %v1635
      %v1637 = vpop.f32.mrf.mxu0
      %1638 = vmatprep.mubr.f32.mxu0 0.0
      %1639 = vmatmul.mubr.f32.gmra.mxu0 %v1545
      %v1640 = vpop.f32.mrf.mxu0
      %v1641 = vadd.f32 0.0, %v1640
      %v1642 = vpop.f32.mrf.mxu0
      %1643 = vmatprep.mubr.f32.mxu0 0.0
      %1644 = vmatmul.mubr.f32.gmra.mxu0 %v1547
      %v1645 = vpop.f32.mrf.mxu0
      %v1646 = vadd.f32 0.0, %v1645
      %v1647 = vpop.f32.mrf.mxu0
      %1648 = vdwg.mxu0
      %v1649 = vadd.f32 %v1509, %v1616
      %v1650 = vadd.f32 %v1510, %v1621
      %v1651 = vadd.f32 %v1511, %v1626
      %v1652 = vadd.f32 %v1512, %v1631
      %v1653 = vadd.f32 %v1513, %v1636
      %v1654 = vadd.f32 %v1514, %v1641
      %v1655 = vadd.f32 %v1515, %v1646
      %s1656 = scalar_lea.vmem %s3, 96
      %v1657 = vld [vmem:[%s1656] sm:$0xff]
      %v1658 = vld [vmem:[%s1656 + $0x8] sm:$0xff]
      %vm1659 = vcmask 1041408
      %v1660 = vrot.slane %v836, 6
      %v1661 = vrot.slane %v837, 6
      %v1662 = vsel %vm1659, %v1660, %v1661
      %v1663 = vrot.slane %v838, 6
      %v1664 = vsel %vm1659, %v1661, %v1663
      %v1665 = vrot.slane %v839, 6
      %v1666 = vsel %vm1659, %v1663, %v1665
      %v1667 = vrot.slane %v840, 6
      %v1668 = vsel %vm1659, %v1665, %v1667
      %v1669 = vrot.slane %v841, 6
      %v1670 = vsel %vm1659, %v1667, %v1669
      %v1671 = vrot.slane %v842, 6
      %v1672 = vsel %vm1659, %v1669, %v1671
      %v1673 = vrot.slane %v843, 6
      %v1674 = vsel %vm1659, %v1671, %v1673
      %v1675 = vsel %vm764, %v1662, 0
      %v1677 = vsel %vm764, %v1664, 0
      %v1679 = vsel %vm764, %v1666, 0
      %v1681 = vsel %vm764, %v1668, 0
      %v1683 = vsel %vm764, %v1670, 0
      %v1685 = vsel %vm764, %v1672, 0
      %v1687 = vsel %vm764, %v1674, 0
      %1689 = vmatprep.subr.mxu0 0.0
      %1690 = vmatpush1.msra.mxu0 0.0
      %1691 = vmatprep.subr.mxu0 0.0
      %1692 = vmatpush1.msra.mxu0 0.0
      %1693 = vmatprep.subr.mxu0 0.0
      %1694 = vmatpush1.msra.mxu0 0.0
      %1695 = vmatprep.subr.mxu0 0.0
      %1696 = vmatpush1.msra.mxu0 0.0
      %1697 = vmatprep.subr.mxu0 0.0
      %1698 = vmatpush1.msra.mxu0 0.0
      %1699 = vmatprep.subr.mxu0 0.0
      %1700 = vmatpush1.msra.mxu0 0.0
      %1701 = vmatprep.subr.mxu0 0.0
      %1702 = vmatpush1.msra.mxu0 0.0
      %1703 = vmatprep.subr.mxu0 0.0
      %1704 = vmatpush1.msra.mxu0 0.0
      %1705 = vmatprep.subr.mxu0 0.0
      %1706 = vmatpush1.msra.mxu0 0.0
      %1707 = vmatprep.subr.mxu0 0.0
      %1708 = vmatpush1.msra.mxu0 0.0
      %1709 = vmatprep.subr.mxu0 0.0
      %1710 = vmatpush1.msra.mxu0 0.0
      %1711 = vmatprep.subr.mxu0 0.0
      %1712 = vmatpush1.msra.mxu0 0.0
      %1713 = vmatprep.subr.mxu0 0.0
      %1714 = vmatpush1.msra.mxu0 0.0
      %1715 = vmatprep.subr.mxu0 0.0
      %1716 = vmatpush1.msra.mxu0 0.0
      %1717 = vmatprep.subr.mxu0 0.0
      %1718 = vmatpush1.msra.mxu0 %v1658
      %1719 = vmatprep.subr.mxu0 0.0
      %1720 = vmatpush1.msra.mxu0 %v1657
      %1721 = vmatprep.subr.mxu0 0.0
      %1722 = vmatpush2.msra.mxu0 0.0
      %1723 = vmatprep.subr.mxu0 0.0
      %1724 = vmatpush2.msra.mxu0 0.0
      %1725 = vmatprep.subr.mxu0 0.0
      %1726 = vmatpush2.msra.mxu0 0.0
      %1727 = vmatprep.subr.mxu0 0.0
      %1728 = vmatpush2.msra.mxu0 0.0
      %1729 = vmatprep.subr.mxu0 0.0
      %1730 = vmatpush2.msra.mxu0 0.0
      %1731 = vmatprep.subr.mxu0 0.0
      %1732 = vmatpush2.msra.mxu0 0.0
      %1733 = vmatprep.subr.mxu0 0.0
      %1734 = vmatpush2.msra.mxu0 0.0
      %1735 = vmatprep.subr.mxu0 0.0
      %1736 = vmatpush2.msra.mxu0 0.0
      %1737 = vmatprep.subr.mxu0 0.0
      %1738 = vmatpush2.msra.mxu0 0.0
      %1739 = vmatprep.subr.mxu0 0.0
      %1740 = vmatpush2.msra.mxu0 0.0
      %1741 = vmatprep.subr.mxu0 0.0
      %1742 = vmatpush2.msra.mxu0 0.0
      %1743 = vmatprep.subr.mxu0 0.0
      %1744 = vmatpush2.msra.mxu0 0.0
      %1745 = vmatprep.subr.mxu0 0.0
      %1746 = vmatpush2.msra.mxu0 0.0
      %1747 = vmatprep.subr.mxu0 0.0
      %1748 = vmatpush2.msra.mxu0 0.0
      %1749 = vmatprep.subr.mxu0 0.0
      %1750 = vmatpush2.msra.mxu0 0.0
      %1751 = vmatprep.subr.mxu0 0.0
      %1752 = vmatpush2.msra.mxu0 0.0
      %1753 = vmatprep.mubr.f32.mxu0 0.0
      %1754 = vmatmul.mubr.f32.gmra.mxu0 %v1675
      %v1755 = vpop.f32.mrf.mxu0
      %v1756 = vadd.f32 0.0, %v1755
      %v1757 = vpop.f32.mrf.mxu0
      %1758 = vmatprep.mubr.f32.mxu0 0.0
      %1759 = vmatmul.mubr.f32.gmra.mxu0 %v1677
      %v1760 = vpop.f32.mrf.mxu0
      %v1761 = vadd.f32 0.0, %v1760
      %v1762 = vpop.f32.mrf.mxu0
      %1763 = vmatprep.mubr.f32.mxu0 0.0
      %1764 = vmatmul.mubr.f32.gmra.mxu0 %v1679
      %v1765 = vpop.f32.mrf.mxu0
      %v1766 = vadd.f32 0.0, %v1765
      %v1767 = vpop.f32.mrf.mxu0
      %1768 = vmatprep.mubr.f32.mxu0 0.0
      %1769 = vmatmul.mubr.f32.gmra.mxu0 %v1681
      %v1770 = vpop.f32.mrf.mxu0
      %v1771 = vadd.f32 0.0, %v1770
      %v1772 = vpop.f32.mrf.mxu0
      %1773 = vmatprep.mubr.f32.mxu0 0.0
      %1774 = vmatmul.mubr.f32.gmra.mxu0 %v1683
      %v1775 = vpop.f32.mrf.mxu0
      %v1776 = vadd.f32 0.0, %v1775
      %v1777 = vpop.f32.mrf.mxu0
      %1778 = vmatprep.mubr.f32.mxu0 0.0
      %1779 = vmatmul.mubr.f32.gmra.mxu0 %v1685
      %v1780 = vpop.f32.mrf.mxu0
      %v1781 = vadd.f32 0.0, %v1780
      %v1782 = vpop.f32.mrf.mxu0
      %1783 = vmatprep.mubr.f32.mxu0 0.0
      %1784 = vmatmul.mubr.f32.gmra.mxu0 %v1687
      %v1785 = vpop.f32.mrf.mxu0
      %v1786 = vadd.f32 0.0, %v1785
      %v1787 = vpop.f32.mrf.mxu0
      %1788 = vdwg.mxu0
      %v1789 = vadd.f32 %v1649, %v1756
      %v1790 = vadd.f32 %v1650, %v1761
      %v1791 = vadd.f32 %v1651, %v1766
      %v1792 = vadd.f32 %v1652, %v1771
      %v1793 = vadd.f32 %v1653, %v1776
      %v1794 = vadd.f32 %v1654, %v1781
      %v1795 = vadd.f32 %v1655, %v1786
      %s1796 = scalar_lea.vmem %s3, 112
      %v1797 = vld [vmem:[%s1796] sm:$0xff]
      %v1798 = vld [vmem:[%s1796 + $0x8] sm:$0xff]
      %vm1799 = vcmask 1040384
      %v1800 = vrot.slane %v836, 7
      %v1801 = vrot.slane %v837, 7
      %v1802 = vsel %vm1799, %v1800, %v1801
      %v1803 = vrot.slane %v838, 7
      %v1804 = vsel %vm1799, %v1801, %v1803
      %v1805 = vrot.slane %v839, 7
      %v1806 = vsel %vm1799, %v1803, %v1805
      %v1807 = vrot.slane %v840, 7
      %v1808 = vsel %vm1799, %v1805, %v1807
      %v1809 = vrot.slane %v841, 7
      %v1810 = vsel %vm1799, %v1807, %v1809
      %v1811 = vrot.slane %v842, 7
      %v1812 = vsel %vm1799, %v1809, %v1811
      %v1813 = vrot.slane %v843, 7
      %v1814 = vsel %vm1799, %v1811, %v1813
      %v1815 = vsel %vm764, %v1802, 0
      %v1817 = vsel %vm764, %v1804, 0
      %v1819 = vsel %vm764, %v1806, 0
      %v1821 = vsel %vm764, %v1808, 0
      %v1823 = vsel %vm764, %v1810, 0
      %v1825 = vsel %vm764, %v1812, 0
      %v1827 = vsel %vm764, %v1814, 0
      %1829 = vmatprep.subr.mxu0 0.0
      %1830 = vmatpush1.msra.mxu0 0.0
      %1831 = vmatprep.subr.mxu0 0.0
      %1832 = vmatpush1.msra.mxu0 0.0
      %1833 = vmatprep.subr.mxu0 0.0
      %1834 = vmatpush1.msra.mxu0 0.0
      %1835 = vmatprep.subr.mxu0 0.0
      %1836 = vmatpush1.msra.mxu0 0.0
      %1837 = vmatprep.subr.mxu0 0.0
      %1838 = vmatpush1.msra.mxu0 0.0
      %1839 = vmatprep.subr.mxu0 0.0
      %1840 = vmatpush1.msra.mxu0 0.0
      %1841 = vmatprep.subr.mxu0 0.0
      %1842 = vmatpush1.msra.mxu0 0.0
      %1843 = vmatprep.subr.mxu0 0.0
      %1844 = vmatpush1.msra.mxu0 0.0
      %1845 = vmatprep.subr.mxu0 0.0
      %1846 = vmatpush1.msra.mxu0 0.0
      %1847 = vmatprep.subr.mxu0 0.0
      %1848 = vmatpush1.msra.mxu0 0.0
      %1849 = vmatprep.subr.mxu0 0.0
      %1850 = vmatpush1.msra.mxu0 0.0
      %1851 = vmatprep.subr.mxu0 0.0
      %1852 = vmatpush1.msra.mxu0 0.0
      %1853 = vmatprep.subr.mxu0 0.0
      %1854 = vmatpush1.msra.mxu0 0.0
      %1855 = vmatprep.subr.mxu0 0.0
      %1856 = vmatpush1.msra.mxu0 0.0
      %1857 = vmatprep.subr.mxu0 0.0
      %1858 = vmatpush1.msra.mxu0 %v1798
      %1859 = vmatprep.subr.mxu0 0.0
      %1860 = vmatpush1.msra.mxu0 %v1797
      %1861 = vmatprep.subr.mxu0 0.0
      %1862 = vmatpush2.msra.mxu0 0.0
      %1863 = vmatprep.subr.mxu0 0.0
      %1864 = vmatpush2.msra.mxu0 0.0
      %1865 = vmatprep.subr.mxu0 0.0
      %1866 = vmatpush2.msra.mxu0 0.0
      %1867 = vmatprep.subr.mxu0 0.0
      %1868 = vmatpush2.msra.mxu0 0.0
      %1869 = vmatprep.subr.mxu0 0.0
      %1870 = vmatpush2.msra.mxu0 0.0
      %1871 = vmatprep.subr.mxu0 0.0
      %1872 = vmatpush2.msra.mxu0 0.0
      %1873 = vmatprep.subr.mxu0 0.0
      %1874 = vmatpush2.msra.mxu0 0.0
      %1875 = vmatprep.subr.mxu0 0.0
      %1876 = vmatpush2.msra.mxu0 0.0
      %1877 = vmatprep.subr.mxu0 0.0
      %1878 = vmatpush2.msra.mxu0 0.0
      %1879 = vmatprep.subr.mxu0 0.0
      %1880 = vmatpush2.msra.mxu0 0.0
      %1881 = vmatprep.subr.mxu0 0.0
      %1882 = vmatpush2.msra.mxu0 0.0
      %1883 = vmatprep.subr.mxu0 0.0
      %1884 = vmatpush2.msra.mxu0 0.0
      %1885 = vmatprep.subr.mxu0 0.0
      %1886 = vmatpush2.msra.mxu0 0.0
      %1887 = vmatprep.subr.mxu0 0.0
      %1888 = vmatpush2.msra.mxu0 0.0
      %1889 = vmatprep.subr.mxu0 0.0
      %1890 = vmatpush2.msra.mxu0 0.0
      %1891 = vmatprep.subr.mxu0 0.0
      %1892 = vmatpush2.msra.mxu0 0.0
      %1893 = vmatprep.mubr.f32.mxu0 0.0
      %1894 = vmatmul.mubr.f32.gmra.mxu0 %v1815
      %v1895 = vpop.f32.mrf.mxu0
      %v1896 = vadd.f32 0.0, %v1895
      %v1897 = vpop.f32.mrf.mxu0
      %1898 = vmatprep.mubr.f32.mxu0 0.0
      %1899 = vmatmul.mubr.f32.gmra.mxu0 %v1817
      %v1900 = vpop.f32.mrf.mxu0
      %v1901 = vadd.f32 0.0, %v1900
      %v1902 = vpop.f32.mrf.mxu0
      %1903 = vmatprep.mubr.f32.mxu0 0.0
      %1904 = vmatmul.mubr.f32.gmra.mxu0 %v1819
      %v1905 = vpop.f32.mrf.mxu0
      %v1906 = vadd.f32 0.0, %v1905
      %v1907 = vpop.f32.mrf.mxu0
      %1908 = vmatprep.mubr.f32.mxu0 0.0
      %1909 = vmatmul.mubr.f32.gmra.mxu0 %v1821
      %v1910 = vpop.f32.mrf.mxu0
      %v1911 = vadd.f32 0.0, %v1910
      %v1912 = vpop.f32.mrf.mxu0
      %1913 = vmatprep.mubr.f32.mxu0 0.0
      %1914 = vmatmul.mubr.f32.gmra.mxu0 %v1823
      %v1915 = vpop.f32.mrf.mxu0
      %v1916 = vadd.f32 0.0, %v1915
      %v1917 = vpop.f32.mrf.mxu0
      %1918 = vmatprep.mubr.f32.mxu0 0.0
      %1919 = vmatmul.mubr.f32.gmra.mxu0 %v1825
      %v1920 = vpop.f32.mrf.mxu0
      %v1921 = vadd.f32 0.0, %v1920
      %v1922 = vpop.f32.mrf.mxu0
      %1923 = vmatprep.mubr.f32.mxu0 0.0
      %1924 = vmatmul.mubr.f32.gmra.mxu0 %v1827
      %v1925 = vpop.f32.mrf.mxu0
      %v1926 = vadd.f32 0.0, %v1925
      %v1927 = vpop.f32.mrf.mxu0
      %1928 = vdwg.mxu0
      %v1929 = vadd.f32 %v1789, %v1896
      %v1930 = vadd.f32 %v1790, %v1901
      %v1931 = vadd.f32 %v1791, %v1906
      %v1932 = vadd.f32 %v1792, %v1911
      %v1933 = vadd.f32 %v1793, %v1916
      %v1934 = vadd.f32 %v1794, %v1921
      %v1935 = vadd.f32 %v1795, %v1926
      %s1936 = scalar_lea.vmem %s3, 128
      %v1937 = vld [vmem:[%s1936] sm:$0xff]
      %v1938 = vld [vmem:[%s1936 + $0x8] sm:$0xff]
      %v1939 = vsel %vm764, %v843, 0
      %1941 = vmatprep.subr.mxu0 0.0
      %1942 = vmatpush1.msra.mxu0 0.0
      %1943 = vmatprep.subr.mxu0 0.0
      %1944 = vmatpush1.msra.mxu0 0.0
      %1945 = vmatprep.subr.mxu0 0.0
      %1946 = vmatpush1.msra.mxu0 0.0
      %1947 = vmatprep.subr.mxu0 0.0
      %1948 = vmatpush1.msra.mxu0 0.0
      %1949 = vmatprep.subr.mxu0 0.0
      %1950 = vmatpush1.msra.mxu0 0.0
      %1951 = vmatprep.subr.mxu0 0.0
      %1952 = vmatpush1.msra.mxu0 0.0
      %1953 = vmatprep.subr.mxu0 0.0
      %1954 = vmatpush1.msra.mxu0 0.0
      %1955 = vmatprep.subr.mxu0 0.0
      %1956 = vmatpush1.msra.mxu0 0.0
      %1957 = vmatprep.subr.mxu0 0.0
      %1958 = vmatpush1.msra.mxu0 0.0
      %1959 = vmatprep.subr.mxu0 0.0
      %1960 = vmatpush1.msra.mxu0 0.0
      %1961 = vmatprep.subr.mxu0 0.0
      %1962 = vmatpush1.msra.mxu0 0.0
      %1963 = vmatprep.subr.mxu0 0.0
      %1964 = vmatpush1.msra.mxu0 0.0
      %1965 = vmatprep.subr.mxu0 0.0
      %1966 = vmatpush1.msra.mxu0 0.0
      %1967 = vmatprep.subr.mxu0 0.0
      %1968 = vmatpush1.msra.mxu0 0.0
      %1969 = vmatprep.subr.mxu0 0.0
      %1970 = vmatpush1.msra.mxu0 %v1938
      %1971 = vmatprep.subr.mxu0 0.0
      %1972 = vmatpush1.msra.mxu0 %v1937
      %1973 = vmatprep.subr.mxu0 0.0
      %1974 = vmatpush2.msra.mxu0 0.0
      %1975 = vmatprep.subr.mxu0 0.0
      %1976 = vmatpush2.msra.mxu0 0.0
      %1977 = vmatprep.subr.mxu0 0.0
      %1978 = vmatpush2.msra.mxu0 0.0
      %1979 = vmatprep.subr.mxu0 0.0
      %1980 = vmatpush2.msra.mxu0 0.0
      %1981 = vmatprep.subr.mxu0 0.0
      %1982 = vmatpush2.msra.mxu0 0.0
      %1983 = vmatprep.subr.mxu0 0.0
      %1984 = vmatpush2.msra.mxu0 0.0
      %1985 = vmatprep.subr.mxu0 0.0
      %1986 = vmatpush2.msra.mxu0 0.0
      %1987 = vmatprep.subr.mxu0 0.0
      %1988 = vmatpush2.msra.mxu0 0.0
      %1989 = vmatprep.subr.mxu0 0.0
      %1990 = vmatpush2.msra.mxu0 0.0
      %1991 = vmatprep.subr.mxu0 0.0
      %1992 = vmatpush2.msra.mxu0 0.0
      %1993 = vmatprep.subr.mxu0 0.0
      %1994 = vmatpush2.msra.mxu0 0.0
      %1995 = vmatprep.subr.mxu0 0.0
      %1996 = vmatpush2.msra.mxu0 0.0
      %1997 = vmatprep.subr.mxu0 0.0
      %1998 = vmatpush2.msra.mxu0 0.0
      %1999 = vmatprep.subr.mxu0 0.0
      %2000 = vmatpush2.msra.mxu0 0.0
      %2001 = vmatprep.subr.mxu0 0.0
      %2002 = vmatpush2.msra.mxu0 0.0
      %2003 = vmatprep.subr.mxu0 0.0
      %2004 = vmatpush2.msra.mxu0 0.0
      %2005 = vmatprep.mubr.f32.mxu0 0.0
      %2006 = vmatmul.mubr.f32.gmra.mxu0 %v987
      %v2007 = vpop.f32.mrf.mxu0
      %v2008 = vadd.f32 0.0, %v2007
      %v2009 = vpop.f32.mrf.mxu0
      %2010 = vmatprep.mubr.f32.mxu0 0.0
      %2011 = vmatmul.mubr.f32.gmra.mxu0 %v989
      %v2012 = vpop.f32.mrf.mxu0
      %v2013 = vadd.f32 0.0, %v2012
      %v2014 = vpop.f32.mrf.mxu0
      %2015 = vmatprep.mubr.f32.mxu0 0.0
      %2016 = vmatmul.mubr.f32.gmra.mxu0 %v991
      %v2017 = vpop.f32.mrf.mxu0
      %v2018 = vadd.f32 0.0, %v2017
      %v2019 = vpop.f32.mrf.mxu0
      %2020 = vmatprep.mubr.f32.mxu0 0.0
      %2021 = vmatmul.mubr.f32.gmra.mxu0 %v993
      %v2022 = vpop.f32.mrf.mxu0
      %v2023 = vadd.f32 0.0, %v2022
      %v2024 = vpop.f32.mrf.mxu0
      %2025 = vmatprep.mubr.f32.mxu0 0.0
      %2026 = vmatmul.mubr.f32.gmra.mxu0 %v995
      %v2027 = vpop.f32.mrf.mxu0
      %v2028 = vadd.f32 0.0, %v2027
      %v2029 = vpop.f32.mrf.mxu0
      %2030 = vmatprep.mubr.f32.mxu0 0.0
      %2031 = vmatmul.mubr.f32.gmra.mxu0 %v997
      %v2032 = vpop.f32.mrf.mxu0
      %v2033 = vadd.f32 0.0, %v2032
      %v2034 = vpop.f32.mrf.mxu0
      %2035 = vmatprep.mubr.f32.mxu0 0.0
      %2036 = vmatmul.mubr.f32.gmra.mxu0 %v1939
      %v2037 = vpop.f32.mrf.mxu0
      %v2038 = vadd.f32 0.0, %v2037
      %v2039 = vpop.f32.mrf.mxu0
      %2040 = vdwg.mxu0
      %v2041 = vadd.f32 %v1929, %v2008
      %v2042 = vadd.f32 %v1930, %v2013
      %v2043 = vadd.f32 %v1931, %v2018
      %v2044 = vadd.f32 %v1932, %v2023
      %v2045 = vadd.f32 %v1933, %v2028
      %v2046 = vadd.f32 %v1934, %v2033
      %v2047 = vadd.f32 %v1935, %v2038
      %s2048 = scalar_lea.vmem %s3, 144
      %v2049 = vld [vmem:[%s2048] sm:$0xff]
      %v2050 = vld [vmem:[%s2048 + $0x8] sm:$0xff]
      %v2051 = vrot.slane %v843, 1
      %v2052 = vsel %vm857, %v869, %v2051
      %v2053 = vsel %vm764, %v2052, 0
      %v2055 = vsel %vm764, %v2051, 0
      %2057 = vmatprep.subr.mxu0 0.0
      %2058 = vmatpush1.msra.mxu0 0.0
      %2059 = vmatprep.subr.mxu0 0.0
      %2060 = vmatpush1.msra.mxu0 0.0
      %2061 = vmatprep.subr.mxu0 0.0
      %2062 = vmatpush1.msra.mxu0 0.0
      %2063 = vmatprep.subr.mxu0 0.0
      %2064 = vmatpush1.msra.mxu0 0.0
      %2065 = vmatprep.subr.mxu0 0.0
      %2066 = vmatpush1.msra.mxu0 0.0
      %2067 = vmatprep.subr.mxu0 0.0
      %2068 = vmatpush1.msra.mxu0 0.0
      %2069 = vmatprep.subr.mxu0 0.0
      %2070 = vmatpush1.msra.mxu0 0.0
      %2071 = vmatprep.subr.mxu0 0.0
      %2072 = vmatpush1.msra.mxu0 0.0
      %2073 = vmatprep.subr.mxu0 0.0
      %2074 = vmatpush1.msra.mxu0 0.0
      %2075 = vmatprep.subr.mxu0 0.0
      %2076 = vmatpush1.msra.mxu0 0.0
      %2077 = vmatprep.subr.mxu0 0.0
      %2078 = vmatpush1.msra.mxu0 0.0
      %2079 = vmatprep.subr.mxu0 0.0
      %2080 = vmatpush1.msra.mxu0 0.0
      %2081 = vmatprep.subr.mxu0 0.0
      %2082 = vmatpush1.msra.mxu0 0.0
      %2083 = vmatprep.subr.mxu0 0.0
      %2084 = vmatpush1.msra.mxu0 0.0
      %2085 = vmatprep.subr.mxu0 0.0
      %2086 = vmatpush1.msra.mxu0 %v2050
      %2087 = vmatprep.subr.mxu0 0.0
      %2088 = vmatpush1.msra.mxu0 %v2049
      %2089 = vmatprep.subr.mxu0 0.0
      %2090 = vmatpush2.msra.mxu0 0.0
      %2091 = vmatprep.subr.mxu0 0.0
      %2092 = vmatpush2.msra.mxu0 0.0
      %2093 = vmatprep.subr.mxu0 0.0
      %2094 = vmatpush2.msra.mxu0 0.0
      %2095 = vmatprep.subr.mxu0 0.0
      %2096 = vmatpush2.msra.mxu0 0.0
      %2097 = vmatprep.subr.mxu0 0.0
      %2098 = vmatpush2.msra.mxu0 0.0
      %2099 = vmatprep.subr.mxu0 0.0
      %2100 = vmatpush2.msra.mxu0 0.0
      %2101 = vmatprep.subr.mxu0 0.0
      %2102 = vmatpush2.msra.mxu0 0.0
      %2103 = vmatprep.subr.mxu0 0.0
      %2104 = vmatpush2.msra.mxu0 0.0
      %2105 = vmatprep.subr.mxu0 0.0
      %2106 = vmatpush2.msra.mxu0 0.0
      %2107 = vmatprep.subr.mxu0 0.0
      %2108 = vmatpush2.msra.mxu0 0.0
      %2109 = vmatprep.subr.mxu0 0.0
      %2110 = vmatpush2.msra.mxu0 0.0
      %2111 = vmatprep.subr.mxu0 0.0
      %2112 = vmatpush2.msra.mxu0 0.0
      %2113 = vmatprep.subr.mxu0 0.0
      %2114 = vmatpush2.msra.mxu0 0.0
      %2115 = vmatprep.subr.mxu0 0.0
      %2116 = vmatpush2.msra.mxu0 0.0
      %2117 = vmatprep.subr.mxu0 0.0
      %2118 = vmatpush2.msra.mxu0 0.0
      %2119 = vmatprep.subr.mxu0 0.0
      %2120 = vmatpush2.msra.mxu0 0.0
      %2121 = vmatprep.mubr.f32.mxu0 0.0
      %2122 = vmatmul.mubr.f32.gmra.mxu0 %v873
      %v2123 = vpop.f32.mrf.mxu0
      %v2124 = vadd.f32 0.0, %v2123
      %v2125 = vpop.f32.mrf.mxu0
      %2126 = vmatprep.mubr.f32.mxu0 0.0
      %2127 = vmatmul.mubr.f32.gmra.mxu0 %v875
      %v2128 = vpop.f32.mrf.mxu0
      %v2129 = vadd.f32 0.0, %v2128
      %v2130 = vpop.f32.mrf.mxu0
      %2131 = vmatprep.mubr.f32.mxu0 0.0
      %2132 = vmatmul.mubr.f32.gmra.mxu0 %v877
      %v2133 = vpop.f32.mrf.mxu0
      %v2134 = vadd.f32 0.0, %v2133
      %v2135 = vpop.f32.mrf.mxu0
      %2136 = vmatprep.mubr.f32.mxu0 0.0
      %2137 = vmatmul.mubr.f32.gmra.mxu0 %v879
      %v2138 = vpop.f32.mrf.mxu0
      %v2139 = vadd.f32 0.0, %v2138
      %v2140 = vpop.f32.mrf.mxu0
      %2141 = vmatprep.mubr.f32.mxu0 0.0
      %2142 = vmatmul.mubr.f32.gmra.mxu0 %v881
      %v2143 = vpop.f32.mrf.mxu0
      %v2144 = vadd.f32 0.0, %v2143
      %v2145 = vpop.f32.mrf.mxu0
      %2146 = vmatprep.mubr.f32.mxu0 0.0
      %2147 = vmatmul.mubr.f32.gmra.mxu0 %v2053
      %v2148 = vpop.f32.mrf.mxu0
      %v2149 = vadd.f32 0.0, %v2148
      %v2150 = vpop.f32.mrf.mxu0
      %2151 = vmatprep.mubr.f32.mxu0 0.0
      %2152 = vmatmul.mubr.f32.gmra.mxu0 %v2055
      %v2153 = vpop.f32.mrf.mxu0
      %v2154 = vadd.f32 0.0, %v2153
      %v2155 = vpop.f32.mrf.mxu0
      %2156 = vdwg.mxu0
      %v2157 = vadd.f32 %v2041, %v2124
      %v2158 = vadd.f32 %v2042, %v2129
      %v2159 = vadd.f32 %v2043, %v2134
      %v2160 = vadd.f32 %v2044, %v2139
      %v2161 = vadd.f32 %v2045, %v2144
      %v2162 = vadd.f32 %v2046, %v2149
      %v2163 = vadd.f32 %v2047, %v2154
      %s2164 = scalar_lea.vmem %s3, 160
      %v2165 = vld [vmem:[%s2164] sm:$0xff]
      %v2166 = vld [vmem:[%s2164 + $0x8] sm:$0xff]
      %v2167 = vrot.slane %v843, 2
      %v2168 = vsel %vm1102, %v1114, %v2167
      %v2169 = vsel %vm764, %v2168, 0
      %v2171 = vsel %vm764, %v2167, 0
      %2173 = vmatprep.subr.mxu0 0.0
      %2174 = vmatpush1.msra.mxu0 0.0
      %2175 = vmatprep.subr.mxu0 0.0
      %2176 = vmatpush1.msra.mxu0 0.0
      %2177 = vmatprep.subr.mxu0 0.0
      %2178 = vmatpush1.msra.mxu0 0.0
      %2179 = vmatprep.subr.mxu0 0.0
      %2180 = vmatpush1.msra.mxu0 0.0
      %2181 = vmatprep.subr.mxu0 0.0
      %2182 = vmatpush1.msra.mxu0 0.0
      %2183 = vmatprep.subr.mxu0 0.0
      %2184 = vmatpush1.msra.mxu0 0.0
      %2185 = vmatprep.subr.mxu0 0.0
      %2186 = vmatpush1.msra.mxu0 0.0
      %2187 = vmatprep.subr.mxu0 0.0
      %2188 = vmatpush1.msra.mxu0 0.0
      %2189 = vmatprep.subr.mxu0 0.0
      %2190 = vmatpush1.msra.mxu0 0.0
      %2191 = vmatprep.subr.mxu0 0.0
      %2192 = vmatpush1.msra.mxu0 0.0
      %2193 = vmatprep.subr.mxu0 0.0
      %2194 = vmatpush1.msra.mxu0 0.0
      %2195 = vmatprep.subr.mxu0 0.0
      %2196 = vmatpush1.msra.mxu0 0.0
      %2197 = vmatprep.subr.mxu0 0.0
      %2198 = vmatpush1.msra.mxu0 0.0
      %2199 = vmatprep.subr.mxu0 0.0
      %2200 = vmatpush1.msra.mxu0 0.0
      %2201 = vmatprep.subr.mxu0 0.0
      %2202 = vmatpush1.msra.mxu0 %v2166
      %2203 = vmatprep.subr.mxu0 0.0
      %2204 = vmatpush1.msra.mxu0 %v2165
      %2205 = vmatprep.subr.mxu0 0.0
      %2206 = vmatpush2.msra.mxu0 0.0
      %2207 = vmatprep.subr.mxu0 0.0
      %2208 = vmatpush2.msra.mxu0 0.0
      %2209 = vmatprep.subr.mxu0 0.0
      %2210 = vmatpush2.msra.mxu0 0.0
      %2211 = vmatprep.subr.mxu0 0.0
      %2212 = vmatpush2.msra.mxu0 0.0
      %2213 = vmatprep.subr.mxu0 0.0
      %2214 = vmatpush2.msra.mxu0 0.0
      %2215 = vmatprep.subr.mxu0 0.0
      %2216 = vmatpush2.msra.mxu0 0.0
      %2217 = vmatprep.subr.mxu0 0.0
      %2218 = vmatpush2.msra.mxu0 0.0
      %2219 = vmatprep.subr.mxu0 0.0
      %2220 = vmatpush2.msra.mxu0 0.0
      %2221 = vmatprep.subr.mxu0 0.0
      %2222 = vmatpush2.msra.mxu0 0.0
      %2223 = vmatprep.subr.mxu0 0.0
      %2224 = vmatpush2.msra.mxu0 0.0
      %2225 = vmatprep.subr.mxu0 0.0
      %2226 = vmatpush2.msra.mxu0 0.0
      %2227 = vmatprep.subr.mxu0 0.0
      %2228 = vmatpush2.msra.mxu0 0.0
      %2229 = vmatprep.subr.mxu0 0.0
      %2230 = vmatpush2.msra.mxu0 0.0
      %2231 = vmatprep.subr.mxu0 0.0
      %2232 = vmatpush2.msra.mxu0 0.0
      %2233 = vmatprep.subr.mxu0 0.0
      %2234 = vmatpush2.msra.mxu0 0.0
      %2235 = vmatprep.subr.mxu0 0.0
      %2236 = vmatpush2.msra.mxu0 0.0
      %2237 = vmatprep.mubr.f32.mxu0 0.0
      %2238 = vmatmul.mubr.f32.gmra.mxu0 %v1118
      %v2239 = vpop.f32.mrf.mxu0
      %v2240 = vadd.f32 0.0, %v2239
      %v2241 = vpop.f32.mrf.mxu0
      %2242 = vmatprep.mubr.f32.mxu0 0.0
      %2243 = vmatmul.mubr.f32.gmra.mxu0 %v1120
      %v2244 = vpop.f32.mrf.mxu0
      %v2245 = vadd.f32 0.0, %v2244
      %v2246 = vpop.f32.mrf.mxu0
      %2247 = vmatprep.mubr.f32.mxu0 0.0
      %2248 = vmatmul.mubr.f32.gmra.mxu0 %v1122
      %v2249 = vpop.f32.mrf.mxu0
      %v2250 = vadd.f32 0.0, %v2249
      %v2251 = vpop.f32.mrf.mxu0
      %2252 = vmatprep.mubr.f32.mxu0 0.0
      %2253 = vmatmul.mubr.f32.gmra.mxu0 %v1124
      %v2254 = vpop.f32.mrf.mxu0
      %v2255 = vadd.f32 0.0, %v2254
      %v2256 = vpop.f32.mrf.mxu0
      %2257 = vmatprep.mubr.f32.mxu0 0.0
      %2258 = vmatmul.mubr.f32.gmra.mxu0 %v1126
      %v2259 = vpop.f32.mrf.mxu0
      %v2260 = vadd.f32 0.0, %v2259
      %v2261 = vpop.f32.mrf.mxu0
      %2262 = vmatprep.mubr.f32.mxu0 0.0
      %2263 = vmatmul.mubr.f32.gmra.mxu0 %v2169
      %v2264 = vpop.f32.mrf.mxu0
      %v2265 = vadd.f32 0.0, %v2264
      %v2266 = vpop.f32.mrf.mxu0
      %2267 = vmatprep.mubr.f32.mxu0 0.0
      %2268 = vmatmul.mubr.f32.gmra.mxu0 %v2171
      %v2269 = vpop.f32.mrf.mxu0
      %v2270 = vadd.f32 0.0, %v2269
      %v2271 = vpop.f32.mrf.mxu0
      %2272 = vdwg.mxu0
      %v2273 = vadd.f32 %v2157, %v2240
      %v2274 = vadd.f32 %v2158, %v2245
      %v2275 = vadd.f32 %v2159, %v2250
      %v2276 = vadd.f32 %v2160, %v2255
      %v2277 = vadd.f32 %v2161, %v2260
      %v2278 = vadd.f32 %v2162, %v2265
      %v2279 = vadd.f32 %v2163, %v2270
      %s2280 = scalar_lea.vmem %s3, 176
      %v2281 = vld [vmem:[%s2280] sm:$0xff]
      %v2282 = vld [vmem:[%s2280 + $0x8] sm:$0xff]
      %v2283 = vrot.slane %v843, 3
      %v2284 = vsel %vm1240, %v1252, %v2283
      %v2285 = vsel %vm764, %v2284, 0
      %v2287 = vsel %vm764, %v2283, 0
      %2289 = vmatprep.subr.mxu0 0.0
      %2290 = vmatpush1.msra.mxu0 0.0
      %2291 = vmatprep.subr.mxu0 0.0
      %2292 = vmatpush1.msra.mxu0 0.0
      %2293 = vmatprep.subr.mxu0 0.0
      %2294 = vmatpush1.msra.mxu0 0.0
      %2295 = vmatprep.subr.mxu0 0.0
      %2296 = vmatpush1.msra.mxu0 0.0
      %2297 = vmatprep.subr.mxu0 0.0
      %2298 = vmatpush1.msra.mxu0 0.0
      %2299 = vmatprep.subr.mxu0 0.0
      %2300 = vmatpush1.msra.mxu0 0.0
      %2301 = vmatprep.subr.mxu0 0.0
      %2302 = vmatpush1.msra.mxu0 0.0
      %2303 = vmatprep.subr.mxu0 0.0
      %2304 = vmatpush1.msra.mxu0 0.0
      %2305 = vmatprep.subr.mxu0 0.0
      %2306 = vmatpush1.msra.mxu0 0.0
      %2307 = vmatprep.subr.mxu0 0.0
      %2308 = vmatpush1.msra.mxu0 0.0
      %2309 = vmatprep.subr.mxu0 0.0
      %2310 = vmatpush1.msra.mxu0 0.0
      %2311 = vmatprep.subr.mxu0 0.0
      %2312 = vmatpush1.msra.mxu0 0.0
      %2313 = vmatprep.subr.mxu0 0.0
      %2314 = vmatpush1.msra.mxu0 0.0
      %2315 = vmatprep.subr.mxu0 0.0
      %2316 = vmatpush1.msra.mxu0 0.0
      %2317 = vmatprep.subr.mxu0 0.0
      %2318 = vmatpush1.msra.mxu0 %v2282
      %2319 = vmatprep.subr.mxu0 0.0
      %2320 = vmatpush1.msra.mxu0 %v2281
      %2321 = vmatprep.subr.mxu0 0.0
      %2322 = vmatpush2.msra.mxu0 0.0
      %2323 = vmatprep.subr.mxu0 0.0
      %2324 = vmatpush2.msra.mxu0 0.0
      %2325 = vmatprep.subr.mxu0 0.0
      %2326 = vmatpush2.msra.mxu0 0.0
      %2327 = vmatprep.subr.mxu0 0.0
      %2328 = vmatpush2.msra.mxu0 0.0
      %2329 = vmatprep.subr.mxu0 0.0
      %2330 = vmatpush2.msra.mxu0 0.0
      %2331 = vmatprep.subr.mxu0 0.0
      %2332 = vmatpush2.msra.mxu0 0.0
      %2333 = vmatprep.subr.mxu0 0.0
      %2334 = vmatpush2.msra.mxu0 0.0
      %2335 = vmatprep.subr.mxu0 0.0
      %2336 = vmatpush2.msra.mxu0 0.0
      %2337 = vmatprep.subr.mxu0 0.0
      %2338 = vmatpush2.msra.mxu0 0.0
      %2339 = vmatprep.subr.mxu0 0.0
      %2340 = vmatpush2.msra.mxu0 0.0
      %2341 = vmatprep.subr.mxu0 0.0
      %2342 = vmatpush2.msra.mxu0 0.0
      %2343 = vmatprep.subr.mxu0 0.0
      %2344 = vmatpush2.msra.mxu0 0.0
      %2345 = vmatprep.subr.mxu0 0.0
      %2346 = vmatpush2.msra.mxu0 0.0
      %2347 = vmatprep.subr.mxu0 0.0
      %2348 = vmatpush2.msra.mxu0 0.0
      %2349 = vmatprep.subr.mxu0 0.0
      %2350 = vmatpush2.msra.mxu0 0.0
      %2351 = vmatprep.subr.mxu0 0.0
      %2352 = vmatpush2.msra.mxu0 0.0
      %2353 = vmatprep.mubr.f32.mxu0 0.0
      %2354 = vmatmul.mubr.f32.gmra.mxu0 %v1256
      %v2355 = vpop.f32.mrf.mxu0
      %v2356 = vadd.f32 0.0, %v2355
      %v2357 = vpop.f32.mrf.mxu0
      %2358 = vmatprep.mubr.f32.mxu0 0.0
      %2359 = vmatmul.mubr.f32.gmra.mxu0 %v1258
      %v2360 = vpop.f32.mrf.mxu0
      %v2361 = vadd.f32 0.0, %v2360
      %v2362 = vpop.f32.mrf.mxu0
      %2363 = vmatprep.mubr.f32.mxu0 0.0
      %2364 = vmatmul.mubr.f32.gmra.mxu0 %v1260
      %v2365 = vpop.f32.mrf.mxu0
      %v2366 = vadd.f32 0.0, %v2365
      %v2367 = vpop.f32.mrf.mxu0
      %2368 = vmatprep.mubr.f32.mxu0 0.0
      %2369 = vmatmul.mubr.f32.gmra.mxu0 %v1262
      %v2370 = vpop.f32.mrf.mxu0
      %v2371 = vadd.f32 0.0, %v2370
      %v2372 = vpop.f32.mrf.mxu0
      %2373 = vmatprep.mubr.f32.mxu0 0.0
      %2374 = vmatmul.mubr.f32.gmra.mxu0 %v1264
      %v2375 = vpop.f32.mrf.mxu0
      %v2376 = vadd.f32 0.0, %v2375
      %v2377 = vpop.f32.mrf.mxu0
      %2378 = vmatprep.mubr.f32.mxu0 0.0
      %2379 = vmatmul.mubr.f32.gmra.mxu0 %v2285
      %v2380 = vpop.f32.mrf.mxu0
      %v2381 = vadd.f32 0.0, %v2380
      %v2382 = vpop.f32.mrf.mxu0
      %2383 = vmatprep.mubr.f32.mxu0 0.0
      %2384 = vmatmul.mubr.f32.gmra.mxu0 %v2287
      %v2385 = vpop.f32.mrf.mxu0
      %v2386 = vadd.f32 0.0, %v2385
      %v2387 = vpop.f32.mrf.mxu0
      %2388 = vdwg.mxu0
      %v2389 = vadd.f32 %v2273, %v2356
      %v2390 = vadd.f32 %v2274, %v2361
      %v2391 = vadd.f32 %v2275, %v2366
      %v2392 = vadd.f32 %v2276, %v2371
      %v2393 = vadd.f32 %v2277, %v2376
      %v2394 = vadd.f32 %v2278, %v2381
      %v2395 = vadd.f32 %v2279, %v2386
      %s2396 = scalar_lea.vmem %s3, 192
      %v2397 = vld [vmem:[%s2396] sm:$0xff]
      %v2398 = vld [vmem:[%s2396 + $0x8] sm:$0xff]
      %v2400 = vrot.slane %v844, 4
      %v2401 = vsel %vm1379, %v1393, %v2400
      %v2402 = vsel %vm764, %v2401, 0
      %2404 = vmatprep.subr.mxu0 0.0
      %2405 = vmatpush1.msra.mxu0 0.0
      %2406 = vmatprep.subr.mxu0 0.0
      %2407 = vmatpush1.msra.mxu0 0.0
      %2408 = vmatprep.subr.mxu0 0.0
      %2409 = vmatpush1.msra.mxu0 0.0
      %2410 = vmatprep.subr.mxu0 0.0
      %2411 = vmatpush1.msra.mxu0 0.0
      %2412 = vmatprep.subr.mxu0 0.0
      %2413 = vmatpush1.msra.mxu0 0.0
      %2414 = vmatprep.subr.mxu0 0.0
      %2415 = vmatpush1.msra.mxu0 0.0
      %2416 = vmatprep.subr.mxu0 0.0
      %2417 = vmatpush1.msra.mxu0 0.0
      %2418 = vmatprep.subr.mxu0 0.0
      %2419 = vmatpush1.msra.mxu0 0.0
      %2420 = vmatprep.subr.mxu0 0.0
      %2421 = vmatpush1.msra.mxu0 0.0
      %2422 = vmatprep.subr.mxu0 0.0
      %2423 = vmatpush1.msra.mxu0 0.0
      %2424 = vmatprep.subr.mxu0 0.0
      %2425 = vmatpush1.msra.mxu0 0.0
      %2426 = vmatprep.subr.mxu0 0.0
      %2427 = vmatpush1.msra.mxu0 0.0
      %2428 = vmatprep.subr.mxu0 0.0
      %2429 = vmatpush1.msra.mxu0 0.0
      %2430 = vmatprep.subr.mxu0 0.0
      %2431 = vmatpush1.msra.mxu0 0.0
      %2432 = vmatprep.subr.mxu0 0.0
      %2433 = vmatpush1.msra.mxu0 %v2398
      %2434 = vmatprep.subr.mxu0 0.0
      %2435 = vmatpush1.msra.mxu0 %v2397
      %2436 = vmatprep.subr.mxu0 0.0
      %2437 = vmatpush2.msra.mxu0 0.0
      %2438 = vmatprep.subr.mxu0 0.0
      %2439 = vmatpush2.msra.mxu0 0.0
      %2440 = vmatprep.subr.mxu0 0.0
      %2441 = vmatpush2.msra.mxu0 0.0
      %2442 = vmatprep.subr.mxu0 0.0
      %2443 = vmatpush2.msra.mxu0 0.0
      %2444 = vmatprep.subr.mxu0 0.0
      %2445 = vmatpush2.msra.mxu0 0.0
      %2446 = vmatprep.subr.mxu0 0.0
      %2447 = vmatpush2.msra.mxu0 0.0
      %2448 = vmatprep.subr.mxu0 0.0
      %2449 = vmatpush2.msra.mxu0 0.0
      %2450 = vmatprep.subr.mxu0 0.0
      %2451 = vmatpush2.msra.mxu0 0.0
      %2452 = vmatprep.subr.mxu0 0.0
      %2453 = vmatpush2.msra.mxu0 0.0
      %2454 = vmatprep.subr.mxu0 0.0
      %2455 = vmatpush2.msra.mxu0 0.0
      %2456 = vmatprep.subr.mxu0 0.0
      %2457 = vmatpush2.msra.mxu0 0.0
      %2458 = vmatprep.subr.mxu0 0.0
      %2459 = vmatpush2.msra.mxu0 0.0
      %2460 = vmatprep.subr.mxu0 0.0
      %2461 = vmatpush2.msra.mxu0 0.0
      %2462 = vmatprep.subr.mxu0 0.0
      %2463 = vmatpush2.msra.mxu0 0.0
      %2464 = vmatprep.subr.mxu0 0.0
      %2465 = vmatpush2.msra.mxu0 0.0
      %2466 = vmatprep.subr.mxu0 0.0
      %2467 = vmatpush2.msra.mxu0 0.0
      %2468 = vmatprep.mubr.f32.mxu0 0.0
      %2469 = vmatmul.mubr.f32.gmra.mxu0 %v1397
      %v2470 = vpop.f32.mrf.mxu0
      %v2471 = vadd.f32 0.0, %v2470
      %v2472 = vpop.f32.mrf.mxu0
      %2473 = vmatprep.mubr.f32.mxu0 0.0
      %2474 = vmatmul.mubr.f32.gmra.mxu0 %v1399
      %v2475 = vpop.f32.mrf.mxu0
      %v2476 = vadd.f32 0.0, %v2475
      %v2477 = vpop.f32.mrf.mxu0
      %2478 = vmatprep.mubr.f32.mxu0 0.0
      %2479 = vmatmul.mubr.f32.gmra.mxu0 %v1401
      %v2480 = vpop.f32.mrf.mxu0
      %v2481 = vadd.f32 0.0, %v2480
      %v2482 = vpop.f32.mrf.mxu0
      %2483 = vmatprep.mubr.f32.mxu0 0.0
      %2484 = vmatmul.mubr.f32.gmra.mxu0 %v1403
      %v2485 = vpop.f32.mrf.mxu0
      %v2486 = vadd.f32 0.0, %v2485
      %v2487 = vpop.f32.mrf.mxu0
      %2488 = vmatprep.mubr.f32.mxu0 0.0
      %2489 = vmatmul.mubr.f32.gmra.mxu0 %v1405
      %v2490 = vpop.f32.mrf.mxu0
      %v2491 = vadd.f32 0.0, %v2490
      %v2492 = vpop.f32.mrf.mxu0
      %2493 = vmatprep.mubr.f32.mxu0 0.0
      %2494 = vmatmul.mubr.f32.gmra.mxu0 %v1407
      %v2495 = vpop.f32.mrf.mxu0
      %v2496 = vadd.f32 0.0, %v2495
      %v2497 = vpop.f32.mrf.mxu0
      %2498 = vmatprep.mubr.f32.mxu0 0.0
      %2499 = vmatmul.mubr.f32.gmra.mxu0 %v2402
      %v2500 = vpop.f32.mrf.mxu0
      %v2501 = vadd.f32 0.0, %v2500
      %v2502 = vpop.f32.mrf.mxu0
      %2503 = vdwg.mxu0
      %v2504 = vadd.f32 %v2389, %v2471
      %v2505 = vadd.f32 %v2390, %v2476
      %v2506 = vadd.f32 %v2391, %v2481
      %v2507 = vadd.f32 %v2392, %v2486
      %v2508 = vadd.f32 %v2393, %v2491
      %v2509 = vadd.f32 %v2394, %v2496
      %v2510 = vadd.f32 %v2395, %v2501
      %s2511 = scalar_lea.vmem %s3, 208
      %v2512 = vld [vmem:[%s2511] sm:$0xff]
      %v2513 = vld [vmem:[%s2511 + $0x8] sm:$0xff]
      %v2514 = vrot.slane %v844, 5
      %v2515 = vsel %vm1519, %v1533, %v2514
      %v2516 = vsel %vm764, %v2515, 0
      %2518 = vmatprep.subr.mxu0 0.0
      %2519 = vmatpush1.msra.mxu0 0.0
      %2520 = vmatprep.subr.mxu0 0.0
      %2521 = vmatpush1.msra.mxu0 0.0
      %2522 = vmatprep.subr.mxu0 0.0
      %2523 = vmatpush1.msra.mxu0 0.0
      %2524 = vmatprep.subr.mxu0 0.0
      %2525 = vmatpush1.msra.mxu0 0.0
      %2526 = vmatprep.subr.mxu0 0.0
      %2527 = vmatpush1.msra.mxu0 0.0
      %2528 = vmatprep.subr.mxu0 0.0
      %2529 = vmatpush1.msra.mxu0 0.0
      %2530 = vmatprep.subr.mxu0 0.0
      %2531 = vmatpush1.msra.mxu0 0.0
      %2532 = vmatprep.subr.mxu0 0.0
      %2533 = vmatpush1.msra.mxu0 0.0
      %2534 = vmatprep.subr.mxu0 0.0
      %2535 = vmatpush1.msra.mxu0 0.0
      %2536 = vmatprep.subr.mxu0 0.0
      %2537 = vmatpush1.msra.mxu0 0.0
      %2538 = vmatprep.subr.mxu0 0.0
      %2539 = vmatpush1.msra.mxu0 0.0
      %2540 = vmatprep.subr.mxu0 0.0
      %2541 = vmatpush1.msra.mxu0 0.0
      %2542 = vmatprep.subr.mxu0 0.0
      %2543 = vmatpush1.msra.mxu0 0.0
      %2544 = vmatprep.subr.mxu0 0.0
      %2545 = vmatpush1.msra.mxu0 0.0
      %2546 = vmatprep.subr.mxu0 0.0
      %2547 = vmatpush1.msra.mxu0 %v2513
      %2548 = vmatprep.subr.mxu0 0.0
      %2549 = vmatpush1.msra.mxu0 %v2512
      %2550 = vmatprep.subr.mxu0 0.0
      %2551 = vmatpush2.msra.mxu0 0.0
      %2552 = vmatprep.subr.mxu0 0.0
      %2553 = vmatpush2.msra.mxu0 0.0
      %2554 = vmatprep.subr.mxu0 0.0
      %2555 = vmatpush2.msra.mxu0 0.0
      %2556 = vmatprep.subr.mxu0 0.0
      %2557 = vmatpush2.msra.mxu0 0.0
      %2558 = vmatprep.subr.mxu0 0.0
      %2559 = vmatpush2.msra.mxu0 0.0
      %2560 = vmatprep.subr.mxu0 0.0
      %2561 = vmatpush2.msra.mxu0 0.0
      %2562 = vmatprep.subr.mxu0 0.0
      %2563 = vmatpush2.msra.mxu0 0.0
      %2564 = vmatprep.subr.mxu0 0.0
      %2565 = vmatpush2.msra.mxu0 0.0
      %2566 = vmatprep.subr.mxu0 0.0
      %2567 = vmatpush2.msra.mxu0 0.0
      %2568 = vmatprep.subr.mxu0 0.0
      %2569 = vmatpush2.msra.mxu0 0.0
      %2570 = vmatprep.subr.mxu0 0.0
      %2571 = vmatpush2.msra.mxu0 0.0
      %2572 = vmatprep.subr.mxu0 0.0
      %2573 = vmatpush2.msra.mxu0 0.0
      %2574 = vmatprep.subr.mxu0 0.0
      %2575 = vmatpush2.msra.mxu0 0.0
      %2576 = vmatprep.subr.mxu0 0.0
      %2577 = vmatpush2.msra.mxu0 0.0
      %2578 = vmatprep.subr.mxu0 0.0
      %2579 = vmatpush2.msra.mxu0 0.0
      %2580 = vmatprep.subr.mxu0 0.0
      %2581 = vmatpush2.msra.mxu0 0.0
      %2582 = vmatprep.mubr.f32.mxu0 0.0
      %2583 = vmatmul.mubr.f32.gmra.mxu0 %v1537
      %v2584 = vpop.f32.mrf.mxu0
      %v2585 = vadd.f32 0.0, %v2584
      %v2586 = vpop.f32.mrf.mxu0
      %2587 = vmatprep.mubr.f32.mxu0 0.0
      %2588 = vmatmul.mubr.f32.gmra.mxu0 %v1539
      %v2589 = vpop.f32.mrf.mxu0
      %v2590 = vadd.f32 0.0, %v2589
      %v2591 = vpop.f32.mrf.mxu0
      %2592 = vmatprep.mubr.f32.mxu0 0.0
      %2593 = vmatmul.mubr.f32.gmra.mxu0 %v1541
      %v2594 = vpop.f32.mrf.mxu0
      %v2595 = vadd.f32 0.0, %v2594
      %v2596 = vpop.f32.mrf.mxu0
      %2597 = vmatprep.mubr.f32.mxu0 0.0
      %2598 = vmatmul.mubr.f32.gmra.mxu0 %v1543
      %v2599 = vpop.f32.mrf.mxu0
      %v2600 = vadd.f32 0.0, %v2599
      %v2601 = vpop.f32.mrf.mxu0
      %2602 = vmatprep.mubr.f32.mxu0 0.0
      %2603 = vmatmul.mubr.f32.gmra.mxu0 %v1545
      %v2604 = vpop.f32.mrf.mxu0
      %v2605 = vadd.f32 0.0, %v2604
      %v2606 = vpop.f32.mrf.mxu0
      %2607 = vmatprep.mubr.f32.mxu0 0.0
      %2608 = vmatmul.mubr.f32.gmra.mxu0 %v1547
      %v2609 = vpop.f32.mrf.mxu0
      %v2610 = vadd.f32 0.0, %v2609
      %v2611 = vpop.f32.mrf.mxu0
      %2612 = vmatprep.mubr.f32.mxu0 0.0
      %2613 = vmatmul.mubr.f32.gmra.mxu0 %v2516
      %v2614 = vpop.f32.mrf.mxu0
      %v2615 = vadd.f32 0.0, %v2614
      %v2616 = vpop.f32.mrf.mxu0
      %2617 = vdwg.mxu0
      %v2618 = vadd.f32 %v2504, %v2585
      %v2619 = vadd.f32 %v2505, %v2590
      %v2620 = vadd.f32 %v2506, %v2595
      %v2621 = vadd.f32 %v2507, %v2600
      %v2622 = vadd.f32 %v2508, %v2605
      %v2623 = vadd.f32 %v2509, %v2610
      %v2624 = vadd.f32 %v2510, %v2615
      %s2625 = scalar_lea.vmem %s3, 224
      %v2626 = vld [vmem:[%s2625] sm:$0xff]
      %v2627 = vld [vmem:[%s2625 + $0x8] sm:$0xff]
      %v2628 = vrot.slane %v844, 6
      %v2629 = vsel %vm1659, %v1673, %v2628
      %v2630 = vsel %vm764, %v2629, 0
      %2632 = vmatprep.subr.mxu0 0.0
      %2633 = vmatpush1.msra.mxu0 0.0
      %2634 = vmatprep.subr.mxu0 0.0
      %2635 = vmatpush1.msra.mxu0 0.0
      %2636 = vmatprep.subr.mxu0 0.0
      %2637 = vmatpush1.msra.mxu0 0.0
      %2638 = vmatprep.subr.mxu0 0.0
      %2639 = vmatpush1.msra.mxu0 0.0
      %2640 = vmatprep.subr.mxu0 0.0
      %2641 = vmatpush1.msra.mxu0 0.0
      %2642 = vmatprep.subr.mxu0 0.0
      %2643 = vmatpush1.msra.mxu0 0.0
      %2644 = vmatprep.subr.mxu0 0.0
      %2645 = vmatpush1.msra.mxu0 0.0
      %2646 = vmatprep.subr.mxu0 0.0
      %2647 = vmatpush1.msra.mxu0 0.0
      %2648 = vmatprep.subr.mxu0 0.0
      %2649 = vmatpush1.msra.mxu0 0.0
      %2650 = vmatprep.subr.mxu0 0.0
      %2651 = vmatpush1.msra.mxu0 0.0
      %2652 = vmatprep.subr.mxu0 0.0
      %2653 = vmatpush1.msra.mxu0 0.0
      %2654 = vmatprep.subr.mxu0 0.0
      %2655 = vmatpush1.msra.mxu0 0.0
      %2656 = vmatprep.subr.mxu0 0.0
      %2657 = vmatpush1.msra.mxu0 0.0
      %2658 = vmatprep.subr.mxu0 0.0
      %2659 = vmatpush1.msra.mxu0 0.0
      %2660 = vmatprep.subr.mxu0 0.0
      %2661 = vmatpush1.msra.mxu0 %v2627
      %2662 = vmatprep.subr.mxu0 0.0
      %2663 = vmatpush1.msra.mxu0 %v2626
      %2664 = vmatprep.subr.mxu0 0.0
      %2665 = vmatpush2.msra.mxu0 0.0
      %2666 = vmatprep.subr.mxu0 0.0
      %2667 = vmatpush2.msra.mxu0 0.0
      %2668 = vmatprep.subr.mxu0 0.0
      %2669 = vmatpush2.msra.mxu0 0.0
      %2670 = vmatprep.subr.mxu0 0.0
      %2671 = vmatpush2.msra.mxu0 0.0
      %2672 = vmatprep.subr.mxu0 0.0
      %2673 = vmatpush2.msra.mxu0 0.0
      %2674 = vmatprep.subr.mxu0 0.0
      %2675 = vmatpush2.msra.mxu0 0.0
      %2676 = vmatprep.subr.mxu0 0.0
      %2677 = vmatpush2.msra.mxu0 0.0
      %2678 = vmatprep.subr.mxu0 0.0
      %2679 = vmatpush2.msra.mxu0 0.0
      %2680 = vmatprep.subr.mxu0 0.0
      %2681 = vmatpush2.msra.mxu0 0.0
      %2682 = vmatprep.subr.mxu0 0.0
      %2683 = vmatpush2.msra.mxu0 0.0
      %2684 = vmatprep.subr.mxu0 0.0
      %2685 = vmatpush2.msra.mxu0 0.0
      %2686 = vmatprep.subr.mxu0 0.0
      %2687 = vmatpush2.msra.mxu0 0.0
      %2688 = vmatprep.subr.mxu0 0.0
      %2689 = vmatpush2.msra.mxu0 0.0
      %2690 = vmatprep.subr.mxu0 0.0
      %2691 = vmatpush2.msra.mxu0 0.0
      %2692 = vmatprep.subr.mxu0 0.0
      %2693 = vmatpush2.msra.mxu0 0.0
      %2694 = vmatprep.subr.mxu0 0.0
      %2695 = vmatpush2.msra.mxu0 0.0
      %2696 = vmatprep.mubr.f32.mxu0 0.0
      %2697 = vmatmul.mubr.f32.gmra.mxu0 %v1677
      %v2698 = vpop.f32.mrf.mxu0
      %v2699 = vadd.f32 0.0, %v2698
      %v2700 = vpop.f32.mrf.mxu0
      %2701 = vmatprep.mubr.f32.mxu0 0.0
      %2702 = vmatmul.mubr.f32.gmra.mxu0 %v1679
      %v2703 = vpop.f32.mrf.mxu0
      %v2704 = vadd.f32 0.0, %v2703
      %v2705 = vpop.f32.mrf.mxu0
      %2706 = vmatprep.mubr.f32.mxu0 0.0
      %2707 = vmatmul.mubr.f32.gmra.mxu0 %v1681
      %v2708 = vpop.f32.mrf.mxu0
      %v2709 = vadd.f32 0.0, %v2708
      %v2710 = vpop.f32.mrf.mxu0
      %2711 = vmatprep.mubr.f32.mxu0 0.0
      %2712 = vmatmul.mubr.f32.gmra.mxu0 %v1683
      %v2713 = vpop.f32.mrf.mxu0
      %v2714 = vadd.f32 0.0, %v2713
      %v2715 = vpop.f32.mrf.mxu0
      %2716 = vmatprep.mubr.f32.mxu0 0.0
      %2717 = vmatmul.mubr.f32.gmra.mxu0 %v1685
      %v2718 = vpop.f32.mrf.mxu0
      %v2719 = vadd.f32 0.0, %v2718
      %v2720 = vpop.f32.mrf.mxu0
      %2721 = vmatprep.mubr.f32.mxu0 0.0
      %2722 = vmatmul.mubr.f32.gmra.mxu0 %v1687
      %v2723 = vpop.f32.mrf.mxu0
      %v2724 = vadd.f32 0.0, %v2723
      %v2725 = vpop.f32.mrf.mxu0
      %2726 = vmatprep.mubr.f32.mxu0 0.0
      %2727 = vmatmul.mubr.f32.gmra.mxu0 %v2630
      %v2728 = vpop.f32.mrf.mxu0
      %v2729 = vadd.f32 0.0, %v2728
      %v2730 = vpop.f32.mrf.mxu0
      %2731 = vdwg.mxu0
      %v2732 = vadd.f32 %v2618, %v2699
      %v2733 = vadd.f32 %v2619, %v2704
      %v2734 = vadd.f32 %v2620, %v2709
      %v2735 = vadd.f32 %v2621, %v2714
      %v2736 = vadd.f32 %v2622, %v2719
      %v2737 = vadd.f32 %v2623, %v2724
      %v2738 = vadd.f32 %v2624, %v2729
      %s2739 = scalar_lea.vmem %s3, 240
      %v2740 = vld [vmem:[%s2739] sm:$0xff]
      %v2741 = vld [vmem:[%s2739 + $0x8] sm:$0xff]
      %v2742 = vrot.slane %v844, 7
      %v2743 = vsel %vm1799, %v1813, %v2742
      %v2744 = vsel %vm764, %v2743, 0
      %2746 = vmatprep.subr.mxu0 0.0
      %2747 = vmatpush1.msra.mxu0 0.0
      %2748 = vmatprep.subr.mxu0 0.0
      %2749 = vmatpush1.msra.mxu0 0.0
      %2750 = vmatprep.subr.mxu0 0.0
      %2751 = vmatpush1.msra.mxu0 0.0
      %2752 = vmatprep.subr.mxu0 0.0
      %2753 = vmatpush1.msra.mxu0 0.0
      %2754 = vmatprep.subr.mxu0 0.0
      %2755 = vmatpush1.msra.mxu0 0.0
      %2756 = vmatprep.subr.mxu0 0.0
      %2757 = vmatpush1.msra.mxu0 0.0
      %2758 = vmatprep.subr.mxu0 0.0
      %2759 = vmatpush1.msra.mxu0 0.0
      %2760 = vmatprep.subr.mxu0 0.0
      %2761 = vmatpush1.msra.mxu0 0.0
      %2762 = vmatprep.subr.mxu0 0.0
      %2763 = vmatpush1.msra.mxu0 0.0
      %2764 = vmatprep.subr.mxu0 0.0
      %2765 = vmatpush1.msra.mxu0 0.0
      %2766 = vmatprep.subr.mxu0 0.0
      %2767 = vmatpush1.msra.mxu0 0.0
      %2768 = vmatprep.subr.mxu0 0.0
      %2769 = vmatpush1.msra.mxu0 0.0
      %2770 = vmatprep.subr.mxu0 0.0
      %2771 = vmatpush1.msra.mxu0 0.0
      %2772 = vmatprep.subr.mxu0 0.0
      %2773 = vmatpush1.msra.mxu0 0.0
      %2774 = vmatprep.subr.mxu0 0.0
      %2775 = vmatpush1.msra.mxu0 %v2741
      %2776 = vmatprep.subr.mxu0 0.0
      %2777 = vmatpush1.msra.mxu0 %v2740
      %2778 = vmatprep.subr.mxu0 0.0
      %2779 = vmatpush2.msra.mxu0 0.0
      %2780 = vmatprep.subr.mxu0 0.0
      %2781 = vmatpush2.msra.mxu0 0.0
      %2782 = vmatprep.subr.mxu0 0.0
      %2783 = vmatpush2.msra.mxu0 0.0
      %2784 = vmatprep.subr.mxu0 0.0
      %2785 = vmatpush2.msra.mxu0 0.0
      %2786 = vmatprep.subr.mxu0 0.0
      %2787 = vmatpush2.msra.mxu0 0.0
      %2788 = vmatprep.subr.mxu0 0.0
      %2789 = vmatpush2.msra.mxu0 0.0
      %2790 = vmatprep.subr.mxu0 0.0
      %2791 = vmatpush2.msra.mxu0 0.0
      %2792 = vmatprep.subr.mxu0 0.0
      %2793 = vmatpush2.msra.mxu0 0.0
      %2794 = vmatprep.subr.mxu0 0.0
      %2795 = vmatpush2.msra.mxu0 0.0
      %2796 = vmatprep.subr.mxu0 0.0
      %2797 = vmatpush2.msra.mxu0 0.0
      %2798 = vmatprep.subr.mxu0 0.0
      %2799 = vmatpush2.msra.mxu0 0.0
      %2800 = vmatprep.subr.mxu0 0.0
      %2801 = vmatpush2.msra.mxu0 0.0
      %2802 = vmatprep.subr.mxu0 0.0
      %2803 = vmatpush2.msra.mxu0 0.0
      %2804 = vmatprep.subr.mxu0 0.0
      %2805 = vmatpush2.msra.mxu0 0.0
      %2806 = vmatprep.subr.mxu0 0.0
      %2807 = vmatpush2.msra.mxu0 0.0
      %2808 = vmatprep.subr.mxu0 0.0
      %2809 = vmatpush2.msra.mxu0 0.0
      %2810 = vmatprep.mubr.f32.mxu0 0.0
      %2811 = vmatmul.mubr.f32.gmra.mxu0 %v1817
      %v2812 = vpop.f32.mrf.mxu0
      %v2813 = vadd.f32 0.0, %v2812
      %v2814 = vpop.f32.mrf.mxu0
      %2815 = vmatprep.mubr.f32.mxu0 0.0
      %2816 = vmatmul.mubr.f32.gmra.mxu0 %v1819
      %v2817 = vpop.f32.mrf.mxu0
      %v2818 = vadd.f32 0.0, %v2817
      %v2819 = vpop.f32.mrf.mxu0
      %2820 = vmatprep.mubr.f32.mxu0 0.0
      %2821 = vmatmul.mubr.f32.gmra.mxu0 %v1821
      %v2822 = vpop.f32.mrf.mxu0
      %v2823 = vadd.f32 0.0, %v2822
      %v2824 = vpop.f32.mrf.mxu0
      %2825 = vmatprep.mubr.f32.mxu0 0.0
      %2826 = vmatmul.mubr.f32.gmra.mxu0 %v1823
      %v2827 = vpop.f32.mrf.mxu0
      %v2828 = vadd.f32 0.0, %v2827
      %v2829 = vpop.f32.mrf.mxu0
      %2830 = vmatprep.mubr.f32.mxu0 0.0
      %2831 = vmatmul.mubr.f32.gmra.mxu0 %v1825
      %v2832 = vpop.f32.mrf.mxu0
      %v2833 = vadd.f32 0.0, %v2832
      %v2834 = vpop.f32.mrf.mxu0
      %2835 = vmatprep.mubr.f32.mxu0 0.0
      %2836 = vmatmul.mubr.f32.gmra.mxu0 %v1827
      %v2837 = vpop.f32.mrf.mxu0
      %v2838 = vadd.f32 0.0, %v2837
      %v2839 = vpop.f32.mrf.mxu0
      %2840 = vmatprep.mubr.f32.mxu0 0.0
      %2841 = vmatmul.mubr.f32.gmra.mxu0 %v2744
      %v2842 = vpop.f32.mrf.mxu0
      %v2843 = vadd.f32 0.0, %v2842
      %v2844 = vpop.f32.mrf.mxu0
      %2845 = vdwg.mxu0
      %v2846 = vadd.f32 %v2732, %v2813
      %v2847 = vadd.f32 %v2733, %v2818
      %v2848 = vadd.f32 %v2734, %v2823
      %v2849 = vadd.f32 %v2735, %v2828
      %v2850 = vadd.f32 %v2736, %v2833
      %v2851 = vadd.f32 %v2737, %v2838
      %v2852 = vadd.f32 %v2738, %v2843
      %v2853 = vld [vmem:[%s4] sm:$0x1]
      %v2855 = vlaneseq
      %v2856 = vshrl.u32 %v2855, 7
      %v2857 = vsub.s32 0, %v2856
      %v2858 = vrot.slane %v2853, %v2857
      %v2860 = vadd.f32 %v2846, %v2858
      %v2861 = vadd.f32 %v2847, %v2858
      %v2862 = vadd.f32 %v2848, %v2858
      %v2863 = vadd.f32 %v2849, %v2858
      %v2864 = vadd.f32 %v2850, %v2858
      %v2865 = vadd.f32 %v2851, %v2858
      %v2866 = vadd.f32 %v2852, %v2858
      %v2867 = vmax.f32 %v2860, 0.0
      %v2868 = vmax.f32 %v2861, 0.0
      %v2869 = vmax.f32 %v2862, 0.0
      %v2870 = vmax.f32 %v2863, 0.0
      %v2871 = vmax.f32 %v2864, 0.0
      %v2872 = vmax.f32 %v2865, 0.0
      %v2873 = vmax.f32 %v2866, 0.0
      %vm2874 = vcmask 261120
      %2875 = vst.msk [vmem:[#allocation3] sm:$0xff] %vm2874, %v2867
      %2876 = vst.msk [vmem:[#allocation3 + $0x8] sm:$0xff] %vm2874, %v2868
      %2877 = vst.msk [vmem:[#allocation3 + $0x10] sm:$0xff] %vm2874, %v2869
      %2878 = vst.msk [vmem:[#allocation3 + $0x18] sm:$0xff] %vm2874, %v2870
      %2879 = vst.msk [vmem:[#allocation3 + $0x20] sm:$0xff] %vm2874, %v2871
      %2880 = vst.msk [vmem:[#allocation3 + $0x28] sm:$0xff] %vm2874, %v2872
      %vm2881 = vcmask 258048
      %2882 = vst.msk [vmem:[#allocation3 + $0x30] sm:$0x1f] %vm2881, %v2873
      %v2883 = vld [vmem:[#allocation3] ss:$2 sm:$0xff]
      %s2884 = scalar_lea.vmem [#allocation3], 16
      %v2885 = vld [vmem:[%s2884] ss:$2 sm:$0xff]
      %s2886 = scalar_lea.vmem [#allocation3], 32
      %v2887 = vld [vmem:[%s2886] ss:$2 sm:$0xff]
      %s2888 = scalar_lea.vmem [#allocation3], 48
      %v2889 = vld [vmem:[%s2888] ss:$2 sm:$0x3]
      %s2890 = scalar_lea.vmem [#allocation3], 1
      %v2891 = vld [vmem:[%s2890] ss:$2 sm:$0xff]
      %s2892 = scalar_lea.vmem [#allocation3], 17
      %v2893 = vld [vmem:[%s2892] ss:$2 sm:$0xff]
      %s2894 = scalar_lea.vmem [#allocation3], 33
      %v2895 = vld [vmem:[%s2894] ss:$2 sm:$0xff]
      %s2896 = scalar_lea.vmem [#allocation3], 49
      %v2897 = vld [vmem:[%s2896] ss:$2 sm:$0x3]
      %v2898 = vmax.f32 %v2883, %v2891
      %v2899 = vmax.f32 %v2885, %v2893
      %v2900 = vmax.f32 %v2887, %v2895
      %v2901 = vmax.f32 %v2889, %v2897
      %v2902 = vld [vmem:[%s5] sm:$0xff]
      %v2903 = vld [vmem:[%s5 + $0x8] sm:$0xff]
      %v2904 = vld [vmem:[%s5 + $0x10] sm:$0xff]
      %v2905 = vld [vmem:[%s5 + $0x18] sm:$0xff]
      %s2906 = scalar_lea.vmem %s5, 32
      %v2907 = vld [vmem:[%s2906] sm:$0xff]
      %v2908 = vld [vmem:[%s2906 + $0x8] sm:$0xff]
      %v2909 = vld [vmem:[%s2906 + $0x10] sm:$0xff]
      %v2910 = vld [vmem:[%s2906 + $0x18] sm:$0xff]
      %v2914 = vrot.slane %v2898, 1
      %v2915 = vrot.slane %v2899, 1
      %v2916 = vsel %vm857, %v2914, %v2915
      %v2917 = vrot.slane %v2900, 1
      %v2918 = vsel %vm857, %v2915, %v2917
      %v2919 = vsel %vm2874, %v2916, 0
      %v2921 = vsel %vm2874, %v2918, 0
      %v2923 = vsel %vm2874, %v2917, 0
      %2925 = vmatprep.subr.mxu0 0.0
      %2926 = vmatpush1.msra.mxu0 0.0
      %2927 = vmatprep.subr.mxu0 0.0
      %2928 = vmatpush1.msra.mxu0 0.0
      %2929 = vmatprep.subr.mxu0 0.0
      %2930 = vmatpush1.msra.mxu0 0.0
      %2931 = vmatprep.subr.mxu0 0.0
      %2932 = vmatpush1.msra.mxu0 0.0
      %2933 = vmatprep.subr.mxu0 0.0
      %2934 = vmatpush1.msra.mxu0 0.0
      %2935 = vmatprep.subr.mxu0 0.0
      %2936 = vmatpush1.msra.mxu0 0.0
      %2937 = vmatprep.subr.mxu0 0.0
      %2938 = vmatpush1.msra.mxu0 0.0
      %2939 = vmatprep.subr.mxu0 0.0
      %2940 = vmatpush1.msra.mxu0 0.0
      %2941 = vmatprep.subr.mxu0 0.0
      %2942 = vmatpush1.msra.mxu0 0.0
      %2943 = vmatprep.subr.mxu0 0.0
      %2944 = vmatpush1.msra.mxu0 0.0
      %2945 = vmatprep.subr.mxu0 0.0
      %2946 = vmatpush1.msra.mxu0 0.0
      %2947 = vmatprep.subr.mxu0 0.0
      %2948 = vmatpush1.msra.mxu0 0.0
      %2949 = vmatprep.subr.mxu0 0.0
      %2950 = vmatpush1.msra.mxu0 %v2910
      %2951 = vmatprep.subr.mxu0 0.0
      %2952 = vmatpush1.msra.mxu0 %v2909
      %2953 = vmatprep.subr.mxu0 0.0
      %2954 = vmatpush1.msra.mxu0 %v2908
      %2955 = vmatprep.subr.mxu0 0.0
      %2956 = vmatpush1.msra.mxu0 %v2907
      %2957 = vmatprep.subr.mxu0 0.0
      %2958 = vmatpush2.msra.mxu0 0.0
      %2959 = vmatprep.subr.mxu0 0.0
      %2960 = vmatpush2.msra.mxu0 0.0
      %2961 = vmatprep.subr.mxu0 0.0
      %2962 = vmatpush2.msra.mxu0 0.0
      %2963 = vmatprep.subr.mxu0 0.0
      %2964 = vmatpush2.msra.mxu0 0.0
      %2965 = vmatprep.subr.mxu0 0.0
      %2966 = vmatpush2.msra.mxu0 0.0
      %2967 = vmatprep.subr.mxu0 0.0
      %2968 = vmatpush2.msra.mxu0 0.0
      %2969 = vmatprep.subr.mxu0 0.0
      %2970 = vmatpush2.msra.mxu0 0.0
      %2971 = vmatprep.subr.mxu0 0.0
      %2972 = vmatpush2.msra.mxu0 0.0
      %2973 = vmatprep.subr.mxu0 0.0
      %2974 = vmatpush2.msra.mxu0 0.0
      %2975 = vmatprep.subr.mxu0 0.0
      %2976 = vmatpush2.msra.mxu0 0.0
      %2977 = vmatprep.subr.mxu0 0.0
      %2978 = vmatpush2.msra.mxu0 0.0
      %2979 = vmatprep.subr.mxu0 0.0
      %2980 = vmatpush2.msra.mxu0 0.0
      %2981 = vmatprep.subr.mxu0 0.0
      %2982 = vmatpush2.msra.mxu0 0.0
      %2983 = vmatprep.subr.mxu0 0.0
      %2984 = vmatpush2.msra.mxu0 0.0
      %2985 = vmatprep.subr.mxu0 0.0
      %2986 = vmatpush2.msra.mxu0 0.0
      %2987 = vmatprep.subr.mxu0 0.0
      %2988 = vmatpush2.msra.mxu0 0.0
      %2989 = vmatprep.mubr.f32.mxu0 0.0
      %2990 = vmatmul.mubr.f32.gmra.mxu0 %v2919
      %v2991 = vpop.f32.mrf.mxu0
      %v2992 = vadd.f32 0.0, %v2991
      %v2993 = vpop.f32.mrf.mxu0
      %2994 = vmatprep.mubr.f32.mxu0 0.0
      %2995 = vmatmul.mubr.f32.gmra.mxu0 %v2921
      %v2996 = vpop.f32.mrf.mxu0
      %v2997 = vadd.f32 0.0, %v2996
      %v2998 = vpop.f32.mrf.mxu0
      %2999 = vmatprep.mubr.f32.mxu0 0.0
      %3000 = vmatmul.mubr.f32.gmra.mxu0 %v2923
      %v3001 = vpop.f32.mrf.mxu0
      %v3002 = vadd.f32 0.0, %v3001
      %v3003 = vpop.f32.mrf.mxu0
      %3004 = vdwg.mxu0
      %v3005 = vsel %vm2874, %v2898, 0
      %v3007 = vsel %vm2874, %v2899, 0
      %v3009 = vsel %vm2874, %v2900, 0
      %3011 = vmatprep.subr.mxu0 0.0
      %3012 = vmatpush1.msra.mxu0 0.0
      %3013 = vmatprep.subr.mxu0 0.0
      %3014 = vmatpush1.msra.mxu0 0.0
      %3015 = vmatprep.subr.mxu0 0.0
      %3016 = vmatpush1.msra.mxu0 0.0
      %3017 = vmatprep.subr.mxu0 0.0
      %3018 = vmatpush1.msra.mxu0 0.0
      %3019 = vmatprep.subr.mxu0 0.0
      %3020 = vmatpush1.msra.mxu0 0.0
      %3021 = vmatprep.subr.mxu0 0.0
      %3022 = vmatpush1.msra.mxu0 0.0
      %3023 = vmatprep.subr.mxu0 0.0
      %3024 = vmatpush1.msra.mxu0 0.0
      %3025 = vmatprep.subr.mxu0 0.0
      %3026 = vmatpush1.msra.mxu0 0.0
      %3027 = vmatprep.subr.mxu0 0.0
      %3028 = vmatpush1.msra.mxu0 0.0
      %3029 = vmatprep.subr.mxu0 0.0
      %3030 = vmatpush1.msra.mxu0 0.0
      %3031 = vmatprep.subr.mxu0 0.0
      %3032 = vmatpush1.msra.mxu0 0.0
      %3033 = vmatprep.subr.mxu0 0.0
      %3034 = vmatpush1.msra.mxu0 0.0
      %3035 = vmatprep.subr.mxu0 0.0
      %3036 = vmatpush1.msra.mxu0 %v2905
      %3037 = vmatprep.subr.mxu0 0.0
      %3038 = vmatpush1.msra.mxu0 %v2904
      %3039 = vmatprep.subr.mxu0 0.0
      %3040 = vmatpush1.msra.mxu0 %v2903
      %3041 = vmatprep.subr.mxu0 0.0
      %3042 = vmatpush1.msra.mxu0 %v2902
      %3043 = vmatprep.subr.mxu0 0.0
      %3044 = vmatpush2.msra.mxu0 0.0
      %3045 = vmatprep.subr.mxu0 0.0
      %3046 = vmatpush2.msra.mxu0 0.0
      %3047 = vmatprep.subr.mxu0 0.0
      %3048 = vmatpush2.msra.mxu0 0.0
      %3049 = vmatprep.subr.mxu0 0.0
      %3050 = vmatpush2.msra.mxu0 0.0
      %3051 = vmatprep.subr.mxu0 0.0
      %3052 = vmatpush2.msra.mxu0 0.0
      %3053 = vmatprep.subr.mxu0 0.0
      %3054 = vmatpush2.msra.mxu0 0.0
      %3055 = vmatprep.subr.mxu0 0.0
      %3056 = vmatpush2.msra.mxu0 0.0
      %3057 = vmatprep.subr.mxu0 0.0
      %3058 = vmatpush2.msra.mxu0 0.0
      %3059 = vmatprep.subr.mxu0 0.0
      %3060 = vmatpush2.msra.mxu0 0.0
      %3061 = vmatprep.subr.mxu0 0.0
      %3062 = vmatpush2.msra.mxu0 0.0
      %3063 = vmatprep.subr.mxu0 0.0
      %3064 = vmatpush2.msra.mxu0 0.0
      %3065 = vmatprep.subr.mxu0 0.0
      %3066 = vmatpush2.msra.mxu0 0.0
      %3067 = vmatprep.subr.mxu0 0.0
      %3068 = vmatpush2.msra.mxu0 0.0
      %3069 = vmatprep.subr.mxu0 0.0
      %3070 = vmatpush2.msra.mxu0 0.0
      %3071 = vmatprep.subr.mxu0 0.0
      %3072 = vmatpush2.msra.mxu0 0.0
      %3073 = vmatprep.subr.mxu0 0.0
      %3074 = vmatpush2.msra.mxu0 0.0
      %3075 = vmatprep.mubr.f32.mxu0 0.0
      %3076 = vmatmul.mubr.f32.gmra.mxu0 %v3005
      %v3077 = vpop.f32.mrf.mxu0
      %v3078 = vadd.f32 %v2992, %v3077
      %v3079 = vpop.f32.mrf.mxu0
      %3080 = vmatprep.mubr.f32.mxu0 0.0
      %3081 = vmatmul.mubr.f32.gmra.mxu0 %v3007
      %v3082 = vpop.f32.mrf.mxu0
      %v3083 = vadd.f32 %v2997, %v3082
      %v3084 = vpop.f32.mrf.mxu0
      %3085 = vmatprep.mubr.f32.mxu0 0.0
      %3086 = vmatmul.mubr.f32.gmra.mxu0 %v3009
      %v3087 = vpop.f32.mrf.mxu0
      %v3088 = vadd.f32 %v3002, %v3087
      %v3089 = vpop.f32.mrf.mxu0
      %3090 = vdwg.mxu0
      %s3091 = scalar_lea.vmem %s5, 64
      %v3092 = vld [vmem:[%s3091] sm:$0xff]
      %v3093 = vld [vmem:[%s3091 + $0x8] sm:$0xff]
      %v3094 = vld [vmem:[%s3091 + $0x10] sm:$0xff]
      %v3095 = vld [vmem:[%s3091 + $0x18] sm:$0xff]
      %v3096 = vrot.slane %v2898, 2
      %v3097 = vrot.slane %v2899, 2
      %v3098 = vsel %vm1102, %v3096, %v3097
      %v3099 = vrot.slane %v2900, 2
      %v3100 = vsel %vm1102, %v3097, %v3099
      %v3101 = vsel %vm2874, %v3098, 0
      %v3103 = vsel %vm2874, %v3100, 0
      %v3105 = vsel %vm2874, %v3099, 0
      %3107 = vmatprep.subr.mxu0 0.0
      %3108 = vmatpush1.msra.mxu0 0.0
      %3109 = vmatprep.subr.mxu0 0.0
      %3110 = vmatpush1.msra.mxu0 0.0
      %3111 = vmatprep.subr.mxu0 0.0
      %3112 = vmatpush1.msra.mxu0 0.0
      %3113 = vmatprep.subr.mxu0 0.0
      %3114 = vmatpush1.msra.mxu0 0.0
      %3115 = vmatprep.subr.mxu0 0.0
      %3116 = vmatpush1.msra.mxu0 0.0
      %3117 = vmatprep.subr.mxu0 0.0
      %3118 = vmatpush1.msra.mxu0 0.0
      %3119 = vmatprep.subr.mxu0 0.0
      %3120 = vmatpush1.msra.mxu0 0.0
      %3121 = vmatprep.subr.mxu0 0.0
      %3122 = vmatpush1.msra.mxu0 0.0
      %3123 = vmatprep.subr.mxu0 0.0
      %3124 = vmatpush1.msra.mxu0 0.0
      %3125 = vmatprep.subr.mxu0 0.0
      %3126 = vmatpush1.msra.mxu0 0.0
      %3127 = vmatprep.subr.mxu0 0.0
      %3128 = vmatpush1.msra.mxu0 0.0
      %3129 = vmatprep.subr.mxu0 0.0
      %3130 = vmatpush1.msra.mxu0 0.0
      %3131 = vmatprep.subr.mxu0 0.0
      %3132 = vmatpush1.msra.mxu0 %v3095
      %3133 = vmatprep.subr.mxu0 0.0
      %3134 = vmatpush1.msra.mxu0 %v3094
      %3135 = vmatprep.subr.mxu0 0.0
      %3136 = vmatpush1.msra.mxu0 %v3093
      %3137 = vmatprep.subr.mxu0 0.0
      %3138 = vmatpush1.msra.mxu0 %v3092
      %3139 = vmatprep.subr.mxu0 0.0
      %3140 = vmatpush2.msra.mxu0 0.0
      %3141 = vmatprep.subr.mxu0 0.0
      %3142 = vmatpush2.msra.mxu0 0.0
      %3143 = vmatprep.subr.mxu0 0.0
      %3144 = vmatpush2.msra.mxu0 0.0
      %3145 = vmatprep.subr.mxu0 0.0
      %3146 = vmatpush2.msra.mxu0 0.0
      %3147 = vmatprep.subr.mxu0 0.0
      %3148 = vmatpush2.msra.mxu0 0.0
      %3149 = vmatprep.subr.mxu0 0.0
      %3150 = vmatpush2.msra.mxu0 0.0
      %3151 = vmatprep.subr.mxu0 0.0
      %3152 = vmatpush2.msra.mxu0 0.0
      %3153 = vmatprep.subr.mxu0 0.0
      %3154 = vmatpush2.msra.mxu0 0.0
      %3155 = vmatprep.subr.mxu0 0.0
      %3156 = vmatpush2.msra.mxu0 0.0
      %3157 = vmatprep.subr.mxu0 0.0
      %3158 = vmatpush2.msra.mxu0 0.0
      %3159 = vmatprep.subr.mxu0 0.0
      %3160 = vmatpush2.msra.mxu0 0.0
      %3161 = vmatprep.subr.mxu0 0.0
      %3162 = vmatpush2.msra.mxu0 0.0
      %3163 = vmatprep.subr.mxu0 0.0
      %3164 = vmatpush2.msra.mxu0 0.0
      %3165 = vmatprep.subr.mxu0 0.0
      %3166 = vmatpush2.msra.mxu0 0.0
      %3167 = vmatprep.subr.mxu0 0.0
      %3168 = vmatpush2.msra.mxu0 0.0
      %3169 = vmatprep.subr.mxu0 0.0
      %3170 = vmatpush2.msra.mxu0 0.0
      %3171 = vmatprep.mubr.f32.mxu0 0.0
      %3172 = vmatmul.mubr.f32.gmra.mxu0 %v3101
      %v3173 = vpop.f32.mrf.mxu0
      %v3174 = vadd.f32 0.0, %v3173
      %v3175 = vpop.f32.mrf.mxu0
      %3176 = vmatprep.mubr.f32.mxu0 0.0
      %3177 = vmatmul.mubr.f32.gmra.mxu0 %v3103
      %v3178 = vpop.f32.mrf.mxu0
      %v3179 = vadd.f32 0.0, %v3178
      %v3180 = vpop.f32.mrf.mxu0
      %3181 = vmatprep.mubr.f32.mxu0 0.0
      %3182 = vmatmul.mubr.f32.gmra.mxu0 %v3105
      %v3183 = vpop.f32.mrf.mxu0
      %v3184 = vadd.f32 0.0, %v3183
      %v3185 = vpop.f32.mrf.mxu0
      %3186 = vdwg.mxu0
      %v3187 = vadd.f32 %v3078, %v3174
      %v3188 = vadd.f32 %v3083, %v3179
      %v3189 = vadd.f32 %v3088, %v3184
      %s3190 = scalar_lea.vmem %s5, 96
      %v3191 = vld [vmem:[%s3190] sm:$0xff]
      %v3192 = vld [vmem:[%s3190 + $0x8] sm:$0xff]
      %v3193 = vld [vmem:[%s3190 + $0x10] sm:$0xff]
      %v3194 = vld [vmem:[%s3190 + $0x18] sm:$0xff]
      %v3196 = vrot.slane %v2898, 3
      %v3197 = vrot.slane %v2899, 3
      %v3198 = vsel %vm1240, %v3196, %v3197
      %v3199 = vrot.slane %v2900, 3
      %v3200 = vsel %vm1240, %v3197, %v3199
      %v3201 = vrot.slane %v2901, 3
      %v3202 = vsel %vm1240, %v3199, %v3201
      %v3203 = vsel %vm2874, %v3198, 0
      %v3205 = vsel %vm2874, %v3200, 0
      %v3207 = vsel %vm2874, %v3202, 0
      %3209 = vmatprep.subr.mxu0 0.0
      %3210 = vmatpush1.msra.mxu0 0.0
      %3211 = vmatprep.subr.mxu0 0.0
      %3212 = vmatpush1.msra.mxu0 0.0
      %3213 = vmatprep.subr.mxu0 0.0
      %3214 = vmatpush1.msra.mxu0 0.0
      %3215 = vmatprep.subr.mxu0 0.0
      %3216 = vmatpush1.msra.mxu0 0.0
      %3217 = vmatprep.subr.mxu0 0.0
      %3218 = vmatpush1.msra.mxu0 0.0
      %3219 = vmatprep.subr.mxu0 0.0
      %3220 = vmatpush1.msra.mxu0 0.0
      %3221 = vmatprep.subr.mxu0 0.0
      %3222 = vmatpush1.msra.mxu0 0.0
      %3223 = vmatprep.subr.mxu0 0.0
      %3224 = vmatpush1.msra.mxu0 0.0
      %3225 = vmatprep.subr.mxu0 0.0
      %3226 = vmatpush1.msra.mxu0 0.0
      %3227 = vmatprep.subr.mxu0 0.0
      %3228 = vmatpush1.msra.mxu0 0.0
      %3229 = vmatprep.subr.mxu0 0.0
      %3230 = vmatpush1.msra.mxu0 0.0
      %3231 = vmatprep.subr.mxu0 0.0
      %3232 = vmatpush1.msra.mxu0 0.0
      %3233 = vmatprep.subr.mxu0 0.0
      %3234 = vmatpush1.msra.mxu0 %v3194
      %3235 = vmatprep.subr.mxu0 0.0
      %3236 = vmatpush1.msra.mxu0 %v3193
      %3237 = vmatprep.subr.mxu0 0.0
      %3238 = vmatpush1.msra.mxu0 %v3192
      %3239 = vmatprep.subr.mxu0 0.0
      %3240 = vmatpush1.msra.mxu0 %v3191
      %3241 = vmatprep.subr.mxu0 0.0
      %3242 = vmatpush2.msra.mxu0 0.0
      %3243 = vmatprep.subr.mxu0 0.0
      %3244 = vmatpush2.msra.mxu0 0.0
      %3245 = vmatprep.subr.mxu0 0.0
      %3246 = vmatpush2.msra.mxu0 0.0
      %3247 = vmatprep.subr.mxu0 0.0
      %3248 = vmatpush2.msra.mxu0 0.0
      %3249 = vmatprep.subr.mxu0 0.0
      %3250 = vmatpush2.msra.mxu0 0.0
      %3251 = vmatprep.subr.mxu0 0.0
      %3252 = vmatpush2.msra.mxu0 0.0
      %3253 = vmatprep.subr.mxu0 0.0
      %3254 = vmatpush2.msra.mxu0 0.0
      %3255 = vmatprep.subr.mxu0 0.0
      %3256 = vmatpush2.msra.mxu0 0.0
      %3257 = vmatprep.subr.mxu0 0.0
      %3258 = vmatpush2.msra.mxu0 0.0
      %3259 = vmatprep.subr.mxu0 0.0
      %3260 = vmatpush2.msra.mxu0 0.0
      %3261 = vmatprep.subr.mxu0 0.0
      %3262 = vmatpush2.msra.mxu0 0.0
      %3263 = vmatprep.subr.mxu0 0.0
      %3264 = vmatpush2.msra.mxu0 0.0
      %3265 = vmatprep.subr.mxu0 0.0
      %3266 = vmatpush2.msra.mxu0 0.0
      %3267 = vmatprep.subr.mxu0 0.0
      %3268 = vmatpush2.msra.mxu0 0.0
      %3269 = vmatprep.subr.mxu0 0.0
      %3270 = vmatpush2.msra.mxu0 0.0
      %3271 = vmatprep.subr.mxu0 0.0
      %3272 = vmatpush2.msra.mxu0 0.0
      %3273 = vmatprep.mubr.f32.mxu0 0.0
      %3274 = vmatmul.mubr.f32.gmra.mxu0 %v3203
      %v3275 = vpop.f32.mrf.mxu0
      %v3276 = vadd.f32 0.0, %v3275
      %v3277 = vpop.f32.mrf.mxu0
      %3278 = vmatprep.mubr.f32.mxu0 0.0
      %3279 = vmatmul.mubr.f32.gmra.mxu0 %v3205
      %v3280 = vpop.f32.mrf.mxu0
      %v3281 = vadd.f32 0.0, %v3280
      %v3282 = vpop.f32.mrf.mxu0
      %3283 = vmatprep.mubr.f32.mxu0 0.0
      %3284 = vmatmul.mubr.f32.gmra.mxu0 %v3207
      %v3285 = vpop.f32.mrf.mxu0
      %v3286 = vadd.f32 0.0, %v3285
      %v3287 = vpop.f32.mrf.mxu0
      %3288 = vdwg.mxu0
      %v3289 = vadd.f32 %v3187, %v3276
      %v3290 = vadd.f32 %v3188, %v3281
      %v3291 = vadd.f32 %v3189, %v3286
      %s3292 = scalar_lea.vmem %s5, 128
      %v3293 = vld [vmem:[%s3292] sm:$0xff]
      %v3294 = vld [vmem:[%s3292 + $0x8] sm:$0xff]
      %v3295 = vld [vmem:[%s3292 + $0x10] sm:$0xff]
      %v3296 = vld [vmem:[%s3292 + $0x18] sm:$0xff]
      %v3297 = vrot.slane %v2898, 4
      %v3298 = vrot.slane %v2899, 4
      %v3299 = vsel %vm1379, %v3297, %v3298
      %v3300 = vrot.slane %v2900, 4
      %v3301 = vsel %vm1379, %v3298, %v3300
      %v3302 = vrot.slane %v2901, 4
      %v3303 = vsel %vm1379, %v3300, %v3302
      %v3304 = vsel %vm2874, %v3299, 0
      %v3306 = vsel %vm2874, %v3301, 0
      %v3308 = vsel %vm2874, %v3303, 0
      %3310 = vmatprep.subr.mxu0 0.0
      %3311 = vmatpush1.msra.mxu0 0.0
      %3312 = vmatprep.subr.mxu0 0.0
      %3313 = vmatpush1.msra.mxu0 0.0
      %3314 = vmatprep.subr.mxu0 0.0
      %3315 = vmatpush1.msra.mxu0 0.0
      %3316 = vmatprep.subr.mxu0 0.0
      %3317 = vmatpush1.msra.mxu0 0.0
      %3318 = vmatprep.subr.mxu0 0.0
      %3319 = vmatpush1.msra.mxu0 0.0
      %3320 = vmatprep.subr.mxu0 0.0
      %3321 = vmatpush1.msra.mxu0 0.0
      %3322 = vmatprep.subr.mxu0 0.0
      %3323 = vmatpush1.msra.mxu0 0.0
      %3324 = vmatprep.subr.mxu0 0.0
      %3325 = vmatpush1.msra.mxu0 0.0
      %3326 = vmatprep.subr.mxu0 0.0
      %3327 = vmatpush1.msra.mxu0 0.0
      %3328 = vmatprep.subr.mxu0 0.0
      %3329 = vmatpush1.msra.mxu0 0.0
      %3330 = vmatprep.subr.mxu0 0.0
      %3331 = vmatpush1.msra.mxu0 0.0
      %3332 = vmatprep.subr.mxu0 0.0
      %3333 = vmatpush1.msra.mxu0 0.0
      %3334 = vmatprep.subr.mxu0 0.0
      %3335 = vmatpush1.msra.mxu0 %v3296
      %3336 = vmatprep.subr.mxu0 0.0
      %3337 = vmatpush1.msra.mxu0 %v3295
      %3338 = vmatprep.subr.mxu0 0.0
      %3339 = vmatpush1.msra.mxu0 %v3294
      %3340 = vmatprep.subr.mxu0 0.0
      %3341 = vmatpush1.msra.mxu0 %v3293
      %3342 = vmatprep.subr.mxu0 0.0
      %3343 = vmatpush2.msra.mxu0 0.0
      %3344 = vmatprep.subr.mxu0 0.0
      %3345 = vmatpush2.msra.mxu0 0.0
      %3346 = vmatprep.subr.mxu0 0.0
      %3347 = vmatpush2.msra.mxu0 0.0
      %3348 = vmatprep.subr.mxu0 0.0
      %3349 = vmatpush2.msra.mxu0 0.0
      %3350 = vmatprep.subr.mxu0 0.0
      %3351 = vmatpush2.msra.mxu0 0.0
      %3352 = vmatprep.subr.mxu0 0.0
      %3353 = vmatpush2.msra.mxu0 0.0
      %3354 = vmatprep.subr.mxu0 0.0
      %3355 = vmatpush2.msra.mxu0 0.0
      %3356 = vmatprep.subr.mxu0 0.0
      %3357 = vmatpush2.msra.mxu0 0.0
      %3358 = vmatprep.subr.mxu0 0.0
      %3359 = vmatpush2.msra.mxu0 0.0
      %3360 = vmatprep.subr.mxu0 0.0
      %3361 = vmatpush2.msra.mxu0 0.0
      %3362 = vmatprep.subr.mxu0 0.0
      %3363 = vmatpush2.msra.mxu0 0.0
      %3364 = vmatprep.subr.mxu0 0.0
      %3365 = vmatpush2.msra.mxu0 0.0
      %3366 = vmatprep.subr.mxu0 0.0
      %3367 = vmatpush2.msra.mxu0 0.0
      %3368 = vmatprep.subr.mxu0 0.0
      %3369 = vmatpush2.msra.mxu0 0.0
      %3370 = vmatprep.subr.mxu0 0.0
      %3371 = vmatpush2.msra.mxu0 0.0
      %3372 = vmatprep.subr.mxu0 0.0
      %3373 = vmatpush2.msra.mxu0 0.0
      %3374 = vmatprep.mubr.f32.mxu0 0.0
      %3375 = vmatmul.mubr.f32.gmra.mxu0 %v3304
      %v3376 = vpop.f32.mrf.mxu0
      %v3377 = vadd.f32 0.0, %v3376
      %v3378 = vpop.f32.mrf.mxu0
      %3379 = vmatprep.mubr.f32.mxu0 0.0
      %3380 = vmatmul.mubr.f32.gmra.mxu0 %v3306
      %v3381 = vpop.f32.mrf.mxu0
      %v3382 = vadd.f32 0.0, %v3381
      %v3383 = vpop.f32.mrf.mxu0
      %3384 = vmatprep.mubr.f32.mxu0 0.0
      %3385 = vmatmul.mubr.f32.gmra.mxu0 %v3308
      %v3386 = vpop.f32.mrf.mxu0
      %v3387 = vadd.f32 0.0, %v3386
      %v3388 = vpop.f32.mrf.mxu0
      %3389 = vdwg.mxu0
      %v3390 = vadd.f32 %v3289, %v3377
      %v3391 = vadd.f32 %v3290, %v3382
      %v3392 = vadd.f32 %v3291, %v3387
      %v3393 = vld [vmem:[%s6] sm:$0x1]
      %v3395 = vlaneseq
      %v3396 = vshrl.u32 %v3395, 7
      %v3397 = vsub.s32 0, %v3396
      %v3398 = vrot.slane %v3393, %v3397
      %v3400 = vadd.f32 %v3390, %v3398
      %v3401 = vadd.f32 %v3391, %v3398
      %v3402 = vadd.f32 %v3392, %v3398
      %v3403 = vmax.f32 %v3400, 0.0
      %v3404 = vmax.f32 %v3401, 0.0
      %v3405 = vmax.f32 %v3402, 0.0
      %3406 = vst.msk [vmem:[#allocation4] sm:$0xff] %vm383, %v3403
      %3407 = vst.msk [vmem:[#allocation4 + $0x8] sm:$0xff] %vm383, %v3404
      %vm3408 = vcmask 521216
      %3409 = vst.msk [vmem:[#allocation4 + $0x10] sm:$0x3f] %vm3408, %v3405
      %v3410 = vld [vmem:[#allocation4] ss:$2 sm:$0xff]
      %s3411 = scalar_lea.vmem [#allocation4], 16
      %v3412 = vld [vmem:[%s3411] ss:$2 sm:$0x7]
      %s3413 = scalar_lea.vmem [#allocation4], 1
      %v3414 = vld [vmem:[%s3413] ss:$2 sm:$0xff]
      %s3415 = scalar_lea.vmem [#allocation4], 17
      %v3416 = vld [vmem:[%s3415] ss:$2 sm:$0x7]
      %v3417 = vmax.f32 %v3410, %v3414
      %v3418 = vmax.f32 %v3412, %v3416
      %v3419 = vld [vmem:[%s7] sm:$0xff]
      %v3420 = vld [vmem:[%s7 + $0x8] sm:$0xff]
      %v3421 = vld [vmem:[%s7 + $0x10] sm:$0xff]
      %v3422 = vld [vmem:[%s7 + $0x18] sm:$0xff]
      %v3423 = vld [vmem:[%s7 + $0x20] sm:$0xff]
      %v3424 = vld [vmem:[%s7 + $0x28] sm:$0xff]
      %v3425 = vld [vmem:[%s7 + $0x30] sm:$0xff]
      %v3426 = vld [vmem:[%s7 + $0x38] sm:$0xff]
      %s3427 = scalar_lea.vmem %s7, 64
      %v3428 = vld [vmem:[%s3427] sm:$0xff]
      %v3429 = vld [vmem:[%s3427 + $0x8] sm:$0xff]
      %v3430 = vld [vmem:[%s3427 + $0x10] sm:$0xff]
      %v3431 = vld [vmem:[%s3427 + $0x18] sm:$0xff]
      %v3432 = vld [vmem:[%s3427 + $0x20] sm:$0xff]
      %v3433 = vld [vmem:[%s3427 + $0x28] sm:$0xff]
      %v3434 = vld [vmem:[%s3427 + $0x30] sm:$0xff]
      %v3435 = vld [vmem:[%s3427 + $0x38] sm:$0xff]
      %v3437 = vrot.slane %v3417, 1
      %v3438 = vsel %vm383, %v3437, 0
      %3440 = vmatprep.subr.mxu0 0.0
      %3441 = vmatpush1.msra.mxu0 0.0
      %3442 = vmatprep.subr.mxu0 0.0
      %3443 = vmatpush1.msra.mxu0 0.0
      %3444 = vmatprep.subr.mxu0 0.0
      %3445 = vmatpush1.msra.mxu0 0.0
      %3446 = vmatprep.subr.mxu0 0.0
      %3447 = vmatpush1.msra.mxu0 0.0
      %3448 = vmatprep.subr.mxu0 0.0
      %3449 = vmatpush1.msra.mxu0 0.0
      %3450 = vmatprep.subr.mxu0 0.0
      %3451 = vmatpush1.msra.mxu0 0.0
      %3452 = vmatprep.subr.mxu0 0.0
      %3453 = vmatpush1.msra.mxu0 0.0
      %3454 = vmatprep.subr.mxu0 0.0
      %3455 = vmatpush1.msra.mxu0 0.0
      %3456 = vmatprep.subr.mxu0 0.0
      %3457 = vmatpush1.msra.mxu0 %v3435
      %3458 = vmatprep.subr.mxu0 0.0
      %3459 = vmatpush1.msra.mxu0 %v3434
      %3460 = vmatprep.subr.mxu0 0.0
      %3461 = vmatpush1.msra.mxu0 %v3433
      %3462 = vmatprep.subr.mxu0 0.0
      %3463 = vmatpush1.msra.mxu0 %v3432
      %3464 = vmatprep.subr.mxu0 0.0
      %3465 = vmatpush1.msra.mxu0 %v3431
      %3466 = vmatprep.subr.mxu0 0.0
      %3467 = vmatpush1.msra.mxu0 %v3430
      %3468 = vmatprep.subr.mxu0 0.0
      %3469 = vmatpush1.msra.mxu0 %v3429
      %3470 = vmatprep.subr.mxu0 0.0
      %3471 = vmatpush1.msra.mxu0 %v3428
      %3472 = vmatprep.subr.mxu0 0.0
      %3473 = vmatpush2.msra.mxu0 0.0
      %3474 = vmatprep.subr.mxu0 0.0
      %3475 = vmatpush2.msra.mxu0 0.0
      %3476 = vmatprep.subr.mxu0 0.0
      %3477 = vmatpush2.msra.mxu0 0.0
      %3478 = vmatprep.subr.mxu0 0.0
      %3479 = vmatpush2.msra.mxu0 0.0
      %3480 = vmatprep.subr.mxu0 0.0
      %3481 = vmatpush2.msra.mxu0 0.0
      %3482 = vmatprep.subr.mxu0 0.0
      %3483 = vmatpush2.msra.mxu0 0.0
      %3484 = vmatprep.subr.mxu0 0.0
      %3485 = vmatpush2.msra.mxu0 0.0
      %3486 = vmatprep.subr.mxu0 0.0
      %3487 = vmatpush2.msra.mxu0 0.0
      %3488 = vmatprep.subr.mxu0 0.0
      %3489 = vmatpush2.msra.mxu0 0.0
      %3490 = vmatprep.subr.mxu0 0.0
      %3491 = vmatpush2.msra.mxu0 0.0
      %3492 = vmatprep.subr.mxu0 0.0
      %3493 = vmatpush2.msra.mxu0 0.0
      %3494 = vmatprep.subr.mxu0 0.0
      %3495 = vmatpush2.msra.mxu0 0.0
      %3496 = vmatprep.subr.mxu0 0.0
      %3497 = vmatpush2.msra.mxu0 0.0
      %3498 = vmatprep.subr.mxu0 0.0
      %3499 = vmatpush2.msra.mxu0 0.0
      %3500 = vmatprep.subr.mxu0 0.0
      %3501 = vmatpush2.msra.mxu0 0.0
      %3502 = vmatprep.subr.mxu0 0.0
      %3503 = vmatpush2.msra.mxu0 0.0
      %3504 = vmatprep.mubr.f32.mxu0 0.0
      %3505 = vmatmul.mubr.f32.gmra.mxu0 %v3438
      %v3506 = vpop.f32.mrf.mxu0
      %v3507 = vadd.f32 0.0, %v3506
      %v3508 = vpop.f32.mrf.mxu0
      %3509 = vdwg.mxu0
      %v3510 = vsel %vm383, %v3417, 0
      %3512 = vmatprep.subr.mxu0 0.0
      %3513 = vmatpush1.msra.mxu0 0.0
      %3514 = vmatprep.subr.mxu0 0.0
      %3515 = vmatpush1.msra.mxu0 0.0
      %3516 = vmatprep.subr.mxu0 0.0
      %3517 = vmatpush1.msra.mxu0 0.0
      %3518 = vmatprep.subr.mxu0 0.0
      %3519 = vmatpush1.msra.mxu0 0.0
      %3520 = vmatprep.subr.mxu0 0.0
      %3521 = vmatpush1.msra.mxu0 0.0
      %3522 = vmatprep.subr.mxu0 0.0
      %3523 = vmatpush1.msra.mxu0 0.0
      %3524 = vmatprep.subr.mxu0 0.0
      %3525 = vmatpush1.msra.mxu0 0.0
      %3526 = vmatprep.subr.mxu0 0.0
      %3527 = vmatpush1.msra.mxu0 0.0
      %3528 = vmatprep.subr.mxu0 0.0
      %3529 = vmatpush1.msra.mxu0 %v3426
      %3530 = vmatprep.subr.mxu0 0.0
      %3531 = vmatpush1.msra.mxu0 %v3425
      %3532 = vmatprep.subr.mxu0 0.0
      %3533 = vmatpush1.msra.mxu0 %v3424
      %3534 = vmatprep.subr.mxu0 0.0
      %3535 = vmatpush1.msra.mxu0 %v3423
      %3536 = vmatprep.subr.mxu0 0.0
      %3537 = vmatpush1.msra.mxu0 %v3422
      %3538 = vmatprep.subr.mxu0 0.0
      %3539 = vmatpush1.msra.mxu0 %v3421
      %3540 = vmatprep.subr.mxu0 0.0
      %3541 = vmatpush1.msra.mxu0 %v3420
      %3542 = vmatprep.subr.mxu0 0.0
      %3543 = vmatpush1.msra.mxu0 %v3419
      %3544 = vmatprep.subr.mxu0 0.0
      %3545 = vmatpush2.msra.mxu0 0.0
      %3546 = vmatprep.subr.mxu0 0.0
      %3547 = vmatpush2.msra.mxu0 0.0
      %3548 = vmatprep.subr.mxu0 0.0
      %3549 = vmatpush2.msra.mxu0 0.0
      %3550 = vmatprep.subr.mxu0 0.0
      %3551 = vmatpush2.msra.mxu0 0.0
      %3552 = vmatprep.subr.mxu0 0.0
      %3553 = vmatpush2.msra.mxu0 0.0
      %3554 = vmatprep.subr.mxu0 0.0
      %3555 = vmatpush2.msra.mxu0 0.0
      %3556 = vmatprep.subr.mxu0 0.0
      %3557 = vmatpush2.msra.mxu0 0.0
      %3558 = vmatprep.subr.mxu0 0.0
      %3559 = vmatpush2.msra.mxu0 0.0
      %3560 = vmatprep.subr.mxu0 0.0
      %3561 = vmatpush2.msra.mxu0 0.0
      %3562 = vmatprep.subr.mxu0 0.0
      %3563 = vmatpush2.msra.mxu0 0.0
      %3564 = vmatprep.subr.mxu0 0.0
      %3565 = vmatpush2.msra.mxu0 0.0
      %3566 = vmatprep.subr.mxu0 0.0
      %3567 = vmatpush2.msra.mxu0 0.0
      %3568 = vmatprep.subr.mxu0 0.0
      %3569 = vmatpush2.msra.mxu0 0.0
      %3570 = vmatprep.subr.mxu0 0.0
      %3571 = vmatpush2.msra.mxu0 0.0
      %3572 = vmatprep.subr.mxu0 0.0
      %3573 = vmatpush2.msra.mxu0 0.0
      %3574 = vmatprep.subr.mxu0 0.0
      %3575 = vmatpush2.msra.mxu0 0.0
      %3576 = vmatprep.mubr.f32.mxu0 0.0
      %3577 = vmatmul.mubr.f32.gmra.mxu0 %v3510
      %v3578 = vpop.f32.mrf.mxu0
      %v3579 = vadd.f32 %v3507, %v3578
      %v3580 = vpop.f32.mrf.mxu0
      %3581 = vdwg.mxu0
      %s3582 = scalar_lea.vmem %s7, 128
      %v3583 = vld [vmem:[%s3582] sm:$0xff]
      %v3584 = vld [vmem:[%s3582 + $0x8] sm:$0xff]
      %v3585 = vld [vmem:[%s3582 + $0x10] sm:$0xff]
      %v3586 = vld [vmem:[%s3582 + $0x18] sm:$0xff]
      %v3587 = vld [vmem:[%s3582 + $0x20] sm:$0xff]
      %v3588 = vld [vmem:[%s3582 + $0x28] sm:$0xff]
      %v3589 = vld [vmem:[%s3582 + $0x30] sm:$0xff]
      %v3590 = vld [vmem:[%s3582 + $0x38] sm:$0xff]
      %v3592 = vrot.slane %v3417, 2
      %v3593 = vrot.slane %v3418, 2
      %v3594 = vsel %vm1102, %v3592, %v3593
      %v3595 = vsel %vm383, %v3594, 0
      %3597 = vmatprep.subr.mxu0 0.0
      %3598 = vmatpush1.msra.mxu0 0.0
      %3599 = vmatprep.subr.mxu0 0.0
      %3600 = vmatpush1.msra.mxu0 0.0
      %3601 = vmatprep.subr.mxu0 0.0
      %3602 = vmatpush1.msra.mxu0 0.0
      %3603 = vmatprep.subr.mxu0 0.0
      %3604 = vmatpush1.msra.mxu0 0.0
      %3605 = vmatprep.subr.mxu0 0.0
      %3606 = vmatpush1.msra.mxu0 0.0
      %3607 = vmatprep.subr.mxu0 0.0
      %3608 = vmatpush1.msra.mxu0 0.0
      %3609 = vmatprep.subr.mxu0 0.0
      %3610 = vmatpush1.msra.mxu0 0.0
      %3611 = vmatprep.subr.mxu0 0.0
      %3612 = vmatpush1.msra.mxu0 0.0
      %3613 = vmatprep.subr.mxu0 0.0
      %3614 = vmatpush1.msra.mxu0 %v3590
      %3615 = vmatprep.subr.mxu0 0.0
      %3616 = vmatpush1.msra.mxu0 %v3589
      %3617 = vmatprep.subr.mxu0 0.0
      %3618 = vmatpush1.msra.mxu0 %v3588
      %3619 = vmatprep.subr.mxu0 0.0
      %3620 = vmatpush1.msra.mxu0 %v3587
      %3621 = vmatprep.subr.mxu0 0.0
      %3622 = vmatpush1.msra.mxu0 %v3586
      %3623 = vmatprep.subr.mxu0 0.0
      %3624 = vmatpush1.msra.mxu0 %v3585
      %3625 = vmatprep.subr.mxu0 0.0
      %3626 = vmatpush1.msra.mxu0 %v3584
      %3627 = vmatprep.subr.mxu0 0.0
      %3628 = vmatpush1.msra.mxu0 %v3583
      %3629 = vmatprep.subr.mxu0 0.0
      %3630 = vmatpush2.msra.mxu0 0.0
      %3631 = vmatprep.subr.mxu0 0.0
      %3632 = vmatpush2.msra.mxu0 0.0
      %3633 = vmatprep.subr.mxu0 0.0
      %3634 = vmatpush2.msra.mxu0 0.0
      %3635 = vmatprep.subr.mxu0 0.0
      %3636 = vmatpush2.msra.mxu0 0.0
      %3637 = vmatprep.subr.mxu0 0.0
      %3638 = vmatpush2.msra.mxu0 0.0
      %3639 = vmatprep.subr.mxu0 0.0
      %3640 = vmatpush2.msra.mxu0 0.0
      %3641 = vmatprep.subr.mxu0 0.0
      %3642 = vmatpush2.msra.mxu0 0.0
      %3643 = vmatprep.subr.mxu0 0.0
      %3644 = vmatpush2.msra.mxu0 0.0
      %3645 = vmatprep.subr.mxu0 0.0
      %3646 = vmatpush2.msra.mxu0 0.0
      %3647 = vmatprep.subr.mxu0 0.0
      %3648 = vmatpush2.msra.mxu0 0.0
      %3649 = vmatprep.subr.mxu0 0.0
      %3650 = vmatpush2.msra.mxu0 0.0
      %3651 = vmatprep.subr.mxu0 0.0
      %3652 = vmatpush2.msra.mxu0 0.0
      %3653 = vmatprep.subr.mxu0 0.0
      %3654 = vmatpush2.msra.mxu0 0.0
      %3655 = vmatprep.subr.mxu0 0.0
      %3656 = vmatpush2.msra.mxu0 0.0
      %3657 = vmatprep.subr.mxu0 0.0
      %3658 = vmatpush2.msra.mxu0 0.0
      %3659 = vmatprep.subr.mxu0 0.0
      %3660 = vmatpush2.msra.mxu0 0.0
      %3661 = vmatprep.mubr.f32.mxu0 0.0
      %3662 = vmatmul.mubr.f32.gmra.mxu0 %v3595
      %v3663 = vpop.f32.mrf.mxu0
      %v3664 = vadd.f32 0.0, %v3663
      %v3665 = vpop.f32.mrf.mxu0
      %3666 = vdwg.mxu0
      %v3667 = vadd.f32 %v3579, %v3664
      %s3668 = scalar_lea.vmem %s7, 192
      %v3669 = vld [vmem:[%s3668] sm:$0xff]
      %v3670 = vld [vmem:[%s3668 + $0x8] sm:$0xff]
      %v3671 = vld [vmem:[%s3668 + $0x10] sm:$0xff]
      %v3672 = vld [vmem:[%s3668 + $0x18] sm:$0xff]
      %v3673 = vld [vmem:[%s3668 + $0x20] sm:$0xff]
      %v3674 = vld [vmem:[%s3668 + $0x28] sm:$0xff]
      %v3675 = vld [vmem:[%s3668 + $0x30] sm:$0xff]
      %v3676 = vld [vmem:[%s3668 + $0x38] sm:$0xff]
      %v3677 = vrot.slane %v3417, 3
      %v3678 = vrot.slane %v3418, 3
      %v3679 = vsel %vm1240, %v3677, %v3678
      %v3680 = vsel %vm383, %v3679, 0
      %3682 = vmatprep.subr.mxu0 0.0
      %3683 = vmatpush1.msra.mxu0 0.0
      %3684 = vmatprep.subr.mxu0 0.0
      %3685 = vmatpush1.msra.mxu0 0.0
      %3686 = vmatprep.subr.mxu0 0.0
      %3687 = vmatpush1.msra.mxu0 0.0
      %3688 = vmatprep.subr.mxu0 0.0
      %3689 = vmatpush1.msra.mxu0 0.0
      %3690 = vmatprep.subr.mxu0 0.0
      %3691 = vmatpush1.msra.mxu0 0.0
      %3692 = vmatprep.subr.mxu0 0.0
      %3693 = vmatpush1.msra.mxu0 0.0
      %3694 = vmatprep.subr.mxu0 0.0
      %3695 = vmatpush1.msra.mxu0 0.0
      %3696 = vmatprep.subr.mxu0 0.0
      %3697 = vmatpush1.msra.mxu0 0.0
      %3698 = vmatprep.subr.mxu0 0.0
      %3699 = vmatpush1.msra.mxu0 %v3676
      %3700 = vmatprep.subr.mxu0 0.0
      %3701 = vmatpush1.msra.mxu0 %v3675
      %3702 = vmatprep.subr.mxu0 0.0
      %3703 = vmatpush1.msra.mxu0 %v3674
      %3704 = vmatprep.subr.mxu0 0.0
      %3705 = vmatpush1.msra.mxu0 %v3673
      %3706 = vmatprep.subr.mxu0 0.0
      %3707 = vmatpush1.msra.mxu0 %v3672
      %3708 = vmatprep.subr.mxu0 0.0
      %3709 = vmatpush1.msra.mxu0 %v3671
      %3710 = vmatprep.subr.mxu0 0.0
      %3711 = vmatpush1.msra.mxu0 %v3670
      %3712 = vmatprep.subr.mxu0 0.0
      %3713 = vmatpush1.msra.mxu0 %v3669
      %3714 = vmatprep.subr.mxu0 0.0
      %3715 = vmatpush2.msra.mxu0 0.0
      %3716 = vmatprep.subr.mxu0 0.0
      %3717 = vmatpush2.msra.mxu0 0.0
      %3718 = vmatprep.subr.mxu0 0.0
      %3719 = vmatpush2.msra.mxu0 0.0
      %3720 = vmatprep.subr.mxu0 0.0
      %3721 = vmatpush2.msra.mxu0 0.0
      %3722 = vmatprep.subr.mxu0 0.0
      %3723 = vmatpush2.msra.mxu0 0.0
      %3724 = vmatprep.subr.mxu0 0.0
      %3725 = vmatpush2.msra.mxu0 0.0
      %3726 = vmatprep.subr.mxu0 0.0
      %3727 = vmatpush2.msra.mxu0 0.0
      %3728 = vmatprep.subr.mxu0 0.0
      %3729 = vmatpush2.msra.mxu0 0.0
      %3730 = vmatprep.subr.mxu0 0.0
      %3731 = vmatpush2.msra.mxu0 0.0
      %3732 = vmatprep.subr.mxu0 0.0
      %3733 = vmatpush2.msra.mxu0 0.0
      %3734 = vmatprep.subr.mxu0 0.0
      %3735 = vmatpush2.msra.mxu0 0.0
      %3736 = vmatprep.subr.mxu0 0.0
      %3737 = vmatpush2.msra.mxu0 0.0
      %3738 = vmatprep.subr.mxu0 0.0
      %3739 = vmatpush2.msra.mxu0 0.0
      %3740 = vmatprep.subr.mxu0 0.0
      %3741 = vmatpush2.msra.mxu0 0.0
      %3742 = vmatprep.subr.mxu0 0.0
      %3743 = vmatpush2.msra.mxu0 0.0
      %3744 = vmatprep.subr.mxu0 0.0
      %3745 = vmatpush2.msra.mxu0 0.0
      %3746 = vmatprep.mubr.f32.mxu0 0.0
      %3747 = vmatmul.mubr.f32.gmra.mxu0 %v3680
      %v3748 = vpop.f32.mrf.mxu0
      %v3749 = vadd.f32 0.0, %v3748
      %v3750 = vpop.f32.mrf.mxu0
      %3751 = vdwg.mxu0
      %v3752 = vadd.f32 %v3667, %v3749
      %s3753 = scalar_lea.vmem %s7, 256
      %v3754 = vld [vmem:[%s3753] sm:$0xff]
      %v3755 = vld [vmem:[%s3753 + $0x8] sm:$0xff]
      %v3756 = vld [vmem:[%s3753 + $0x10] sm:$0xff]
      %v3757 = vld [vmem:[%s3753 + $0x18] sm:$0xff]
      %v3758 = vld [vmem:[%s3753 + $0x20] sm:$0xff]
      %v3759 = vld [vmem:[%s3753 + $0x28] sm:$0xff]
      %v3760 = vld [vmem:[%s3753 + $0x30] sm:$0xff]
      %v3761 = vld [vmem:[%s3753 + $0x38] sm:$0xff]
      %v3762 = vrot.slane %v3417, 4
      %v3763 = vrot.slane %v3418, 4
      %v3764 = vsel %vm1379, %v3762, %v3763
      %v3765 = vsel %vm383, %v3764, 0
      %3767 = vmatprep.subr.mxu0 0.0
      %3768 = vmatpush1.msra.mxu0 0.0
      %3769 = vmatprep.subr.mxu0 0.0
      %3770 = vmatpush1.msra.mxu0 0.0
      %3771 = vmatprep.subr.mxu0 0.0
      %3772 = vmatpush1.msra.mxu0 0.0
      %3773 = vmatprep.subr.mxu0 0.0
      %3774 = vmatpush1.msra.mxu0 0.0
      %3775 = vmatprep.subr.mxu0 0.0
      %3776 = vmatpush1.msra.mxu0 0.0
      %3777 = vmatprep.subr.mxu0 0.0
      %3778 = vmatpush1.msra.mxu0 0.0
      %3779 = vmatprep.subr.mxu0 0.0
      %3780 = vmatpush1.msra.mxu0 0.0
      %3781 = vmatprep.subr.mxu0 0.0
      %3782 = vmatpush1.msra.mxu0 0.0
      %3783 = vmatprep.subr.mxu0 0.0
      %3784 = vmatpush1.msra.mxu0 %v3761
      %3785 = vmatprep.subr.mxu0 0.0
      %3786 = vmatpush1.msra.mxu0 %v3760
      %3787 = vmatprep.subr.mxu0 0.0
      %3788 = vmatpush1.msra.mxu0 %v3759
      %3789 = vmatprep.subr.mxu0 0.0
      %3790 = vmatpush1.msra.mxu0 %v3758
      %3791 = vmatprep.subr.mxu0 0.0
      %3792 = vmatpush1.msra.mxu0 %v3757
      %3793 = vmatprep.subr.mxu0 0.0
      %3794 = vmatpush1.msra.mxu0 %v3756
      %3795 = vmatprep.subr.mxu0 0.0
      %3796 = vmatpush1.msra.mxu0 %v3755
      %3797 = vmatprep.subr.mxu0 0.0
      %3798 = vmatpush1.msra.mxu0 %v3754
      %3799 = vmatprep.subr.mxu0 0.0
      %3800 = vmatpush2.msra.mxu0 0.0
      %3801 = vmatprep.subr.mxu0 0.0
      %3802 = vmatpush2.msra.mxu0 0.0
      %3803 = vmatprep.subr.mxu0 0.0
      %3804 = vmatpush2.msra.mxu0 0.0
      %3805 = vmatprep.subr.mxu0 0.0
      %3806 = vmatpush2.msra.mxu0 0.0
      %3807 = vmatprep.subr.mxu0 0.0
      %3808 = vmatpush2.msra.mxu0 0.0
      %3809 = vmatprep.subr.mxu0 0.0
      %3810 = vmatpush2.msra.mxu0 0.0
      %3811 = vmatprep.subr.mxu0 0.0
      %3812 = vmatpush2.msra.mxu0 0.0
      %3813 = vmatprep.subr.mxu0 0.0
      %3814 = vmatpush2.msra.mxu0 0.0
      %3815 = vmatprep.subr.mxu0 0.0
      %3816 = vmatpush2.msra.mxu0 0.0
      %3817 = vmatprep.subr.mxu0 0.0
      %3818 = vmatpush2.msra.mxu0 0.0
      %3819 = vmatprep.subr.mxu0 0.0
      %3820 = vmatpush2.msra.mxu0 0.0
      %3821 = vmatprep.subr.mxu0 0.0
      %3822 = vmatpush2.msra.mxu0 0.0
      %3823 = vmatprep.subr.mxu0 0.0
      %3824 = vmatpush2.msra.mxu0 0.0
      %3825 = vmatprep.subr.mxu0 0.0
      %3826 = vmatpush2.msra.mxu0 0.0
      %3827 = vmatprep.subr.mxu0 0.0
      %3828 = vmatpush2.msra.mxu0 0.0
      %3829 = vmatprep.subr.mxu0 0.0
      %3830 = vmatpush2.msra.mxu0 0.0
      %3831 = vmatprep.mubr.f32.mxu0 0.0
      %3832 = vmatmul.mubr.f32.gmra.mxu0 %v3765
      %v3833 = vpop.f32.mrf.mxu0
      %v3834 = vadd.f32 0.0, %v3833
      %v3835 = vpop.f32.mrf.mxu0
      %3836 = vdwg.mxu0
      %v3837 = vadd.f32 %v3752, %v3834
      %v3838 = vld [vmem:[%s8] sm:$0x1]
      %v3840 = vlaneseq
      %v3841 = vshrl.u32 %v3840, 7
      %v3842 = vsub.s32 0, %v3841
      %v3843 = vrot.slane %v3838, %v3842
      %v3845 = vadd.f32 %v3837, %v3843
      %v3846 = vmax.f32 %v3845, 0.0
      %vm3847 = vcmask 517120
      %v3848 = vsel %vm3847, %v3846, -inf
      %v3849 = vrot.slane %v3848, 4
      %v3850 = vmax.f32 %v3848, %v3849
      %v3851 = vrot.slane %v3850, 2
      %v3852 = vmax.f32 %v3850, %v3851
      %v3853 = vrot.slane %v3852, 1
      %v3854 = vmax.f32 %v3852, %v3853
      %vm3855 = vcmask 519169
      %v3856 = vsel %vm3855, %v3846, -inf
      %v3857 = vrot.slane %v3856, 4
      %v3858 = vmax.f32 %v3856, %v3857
      %v3859 = vrot.slane %v3858, 2
      %v3860 = vmax.f32 %v3858, %v3859
      %v3861 = vrot.slane %v3860, 1
      %v3862 = vmax.f32 %v3860, %v3861
      %vm3863 = vcmask 521219
      %v3864 = vsel %vm3863, %v3846, -inf
      %v3865 = vrot.slane %v3864, 4
      %v3866 = vmax.f32 %v3864, %v3865
      %v3867 = vrot.slane %v3866, 2
      %v3868 = vmax.f32 %v3866, %v3867
      %v3869 = vrot.slane %v3868, 1
      %v3870 = vmax.f32 %v3868, %v3869
      %vm3871 = vcmask 522245
      %v3872 = vsel %vm3871, %v3846, -inf
      %v3873 = vrot.slane %v3872, 4
      %v3874 = vmax.f32 %v3872, %v3873
      %v3875 = vrot.slane %v3874, 2
      %v3876 = vmax.f32 %v3874, %v3875
      %v3877 = vrot.slane %v3876, 1
      %v3878 = vmax.f32 %v3876, %v3877
      %v3879 = vsel %vm1799, %v3854, %v3862
      %v3880 = vsel %vm1659, %v3879, %v3870
      %v3881 = vsel %vm1519, %v3880, %v3878
      %vm3882 = vcmask 519168
      %3883 = vst.msk [vmem:[%s332] sm:$0xf] %vm3882, %v3881
      %s3884 = scalar_lea.vmem [#allocation2], 137
      %v3885 = vld [vmem:[%s3884] ss:$2 sm:$0xff]
      %s3886 = scalar_lea.vmem [#allocation2], 153
      %v3887 = vld [vmem:[%s3886] ss:$2 sm:$0xff]
      %s3888 = scalar_lea.vmem [#allocation2], 169
      %v3889 = vld [vmem:[%s3888] ss:$2 sm:$0xff]
      %s3890 = scalar_lea.vmem [#allocation2], 185
      %v3891 = vld [vmem:[%s3890] ss:$2 sm:$0xff]
      %s3892 = scalar_lea.vmem [#allocation2], 201
      %v3893 = vld [vmem:[%s3892] ss:$2 sm:$0xff]
      %s3894 = scalar_lea.vmem [#allocation2], 217
      %v3895 = vld [vmem:[%s3894] ss:$2 sm:$0xff]
      %s3896 = scalar_lea.vmem [#allocation2], 233
      %v3897 = vld [vmem:[%s3896] ss:$2 sm:$0xff]
      %s3898 = scalar_lea.vmem [#allocation2], 249
      %v3899 = vld [vmem:[%s3898] ss:$2 sm:$0xff]
      %s3900 = scalar_lea.vmem [#allocation2], 265
      %v3901 = vld [vmem:[%s3900] ss:$2 sm:$0xf]
      %s3902 = scalar_lea.vmem [#allocation2], 138
      %v3903 = vld [vmem:[%s3902] ss:$2 sm:$0xff]
      %s3904 = scalar_lea.vmem [#allocation2], 154
      %v3905 = vld [vmem:[%s3904] ss:$2 sm:$0xff]
      %s3906 = scalar_lea.vmem [#allocation2], 170
      %v3907 = vld [vmem:[%s3906] ss:$2 sm:$0xff]
      %s3908 = scalar_lea.vmem [#allocation2], 186
      %v3909 = vld [vmem:[%s3908] ss:$2 sm:$0xff]
      %s3910 = scalar_lea.vmem [#allocation2], 202
      %v3911 = vld [vmem:[%s3910] ss:$2 sm:$0xff]
      %s3912 = scalar_lea.vmem [#allocation2], 218
      %v3913 = vld [vmem:[%s3912] ss:$2 sm:$0xff]
      %s3914 = scalar_lea.vmem [#allocation2], 234
      %v3915 = vld [vmem:[%s3914] ss:$2 sm:$0xff]
      %s3916 = scalar_lea.vmem [#allocation2], 250
      %v3917 = vld [vmem:[%s3916] ss:$2 sm:$0xff]
      %s3918 = scalar_lea.vmem [#allocation2], 266
      %v3919 = vld [vmem:[%s3918] ss:$2 sm:$0xf]
      %v3920 = vmax.f32 %v3885, %v3903
      %v3921 = vmax.f32 %v3887, %v3905
      %v3922 = vmax.f32 %v3889, %v3907
      %v3923 = vmax.f32 %v3891, %v3909
      %v3924 = vmax.f32 %v3893, %v3911
      %v3925 = vmax.f32 %v3895, %v3913
      %v3926 = vmax.f32 %v3897, %v3915
      %v3927 = vmax.f32 %v3899, %v3917
      %v3928 = vmax.f32 %v3901, %v3919
      %v3929 = vld [vmem:[%s3] sm:$0xff]
      %v3930 = vld [vmem:[%s3 + $0x8] sm:$0xff]
      %v3931 = vld [vmem:[%s847] sm:$0xff]
      %v3932 = vld [vmem:[%s847 + $0x8] sm:$0xff]
      %v3940 = vrot.slane %v3920, 1
      %v3941 = vrot.slane %v3921, 1
      %v3942 = vsel %vm857, %v3940, %v3941
      %v3943 = vrot.slane %v3922, 1
      %v3944 = vsel %vm857, %v3941, %v3943
      %v3945 = vrot.slane %v3923, 1
      %v3946 = vsel %vm857, %v3943, %v3945
      %v3947 = vrot.slane %v3924, 1
      %v3948 = vsel %vm857, %v3945, %v3947
      %v3949 = vrot.slane %v3925, 1
      %v3950 = vsel %vm857, %v3947, %v3949
      %v3951 = vrot.slane %v3926, 1
      %v3952 = vsel %vm857, %v3949, %v3951
      %v3953 = vsel %vm764, %v3942, 0
      %v3955 = vsel %vm764, %v3944, 0
      %v3957 = vsel %vm764, %v3946, 0
      %v3959 = vsel %vm764, %v3948, 0
      %v3961 = vsel %vm764, %v3950, 0
      %v3963 = vsel %vm764, %v3952, 0
      %v3965 = vsel %vm764, %v3951, 0
      %3967 = vmatprep.subr.mxu0 0.0
      %3968 = vmatpush1.msra.mxu0 0.0
      %3969 = vmatprep.subr.mxu0 0.0
      %3970 = vmatpush1.msra.mxu0 0.0
      %3971 = vmatprep.subr.mxu0 0.0
      %3972 = vmatpush1.msra.mxu0 0.0
      %3973 = vmatprep.subr.mxu0 0.0
      %3974 = vmatpush1.msra.mxu0 0.0
      %3975 = vmatprep.subr.mxu0 0.0
      %3976 = vmatpush1.msra.mxu0 0.0
      %3977 = vmatprep.subr.mxu0 0.0
      %3978 = vmatpush1.msra.mxu0 0.0
      %3979 = vmatprep.subr.mxu0 0.0
      %3980 = vmatpush1.msra.mxu0 0.0
      %3981 = vmatprep.subr.mxu0 0.0
      %3982 = vmatpush1.msra.mxu0 0.0
      %3983 = vmatprep.subr.mxu0 0.0
      %3984 = vmatpush1.msra.mxu0 0.0
      %3985 = vmatprep.subr.mxu0 0.0
      %3986 = vmatpush1.msra.mxu0 0.0
      %3987 = vmatprep.subr.mxu0 0.0
      %3988 = vmatpush1.msra.mxu0 0.0
      %3989 = vmatprep.subr.mxu0 0.0
      %3990 = vmatpush1.msra.mxu0 0.0
      %3991 = vmatprep.subr.mxu0 0.0
      %3992 = vmatpush1.msra.mxu0 0.0
      %3993 = vmatprep.subr.mxu0 0.0
      %3994 = vmatpush1.msra.mxu0 0.0
      %3995 = vmatprep.subr.mxu0 0.0
      %3996 = vmatpush1.msra.mxu0 %v3932
      %3997 = vmatprep.subr.mxu0 0.0
      %3998 = vmatpush1.msra.mxu0 %v3931
      %3999 = vmatprep.subr.mxu0 0.0
      %4000 = vmatpush2.msra.mxu0 0.0
      %4001 = vmatprep.subr.mxu0 0.0
      %4002 = vmatpush2.msra.mxu0 0.0
      %4003 = vmatprep.subr.mxu0 0.0
      %4004 = vmatpush2.msra.mxu0 0.0
      %4005 = vmatprep.subr.mxu0 0.0
      %4006 = vmatpush2.msra.mxu0 0.0
      %4007 = vmatprep.subr.mxu0 0.0
      %4008 = vmatpush2.msra.mxu0 0.0
      %4009 = vmatprep.subr.mxu0 0.0
      %4010 = vmatpush2.msra.mxu0 0.0
      %4011 = vmatprep.subr.mxu0 0.0
      %4012 = vmatpush2.msra.mxu0 0.0
      %4013 = vmatprep.subr.mxu0 0.0
      %4014 = vmatpush2.msra.mxu0 0.0
      %4015 = vmatprep.subr.mxu0 0.0
      %4016 = vmatpush2.msra.mxu0 0.0
      %4017 = vmatprep.subr.mxu0 0.0
      %4018 = vmatpush2.msra.mxu0 0.0
      %4019 = vmatprep.subr.mxu0 0.0
      %4020 = vmatpush2.msra.mxu0 0.0
      %4021 = vmatprep.subr.mxu0 0.0
      %4022 = vmatpush2.msra.mxu0 0.0
      %4023 = vmatprep.subr.mxu0 0.0
      %4024 = vmatpush2.msra.mxu0 0.0
      %4025 = vmatprep.subr.mxu0 0.0
      %4026 = vmatpush2.msra.mxu0 0.0
      %4027 = vmatprep.subr.mxu0 0.0
      %4028 = vmatpush2.msra.mxu0 0.0
      %4029 = vmatprep.subr.mxu0 0.0
      %4030 = vmatpush2.msra.mxu0 0.0
      %4031 = vmatprep.mubr.f32.mxu0 0.0
      %4032 = vmatmul.mubr.f32.gmra.mxu0 %v3953
      %v4033 = vpop.f32.mrf.mxu0
      %v4034 = vadd.f32 0.0, %v4033
      %v4035 = vpop.f32.mrf.mxu0
      %4036 = vmatprep.mubr.f32.mxu0 0.0
      %4037 = vmatmul.mubr.f32.gmra.mxu0 %v3955
      %v4038 = vpop.f32.mrf.mxu0
      %v4039 = vadd.f32 0.0, %v4038
      %v4040 = vpop.f32.mrf.mxu0
      %4041 = vmatprep.mubr.f32.mxu0 0.0
      %4042 = vmatmul.mubr.f32.gmra.mxu0 %v3957
      %v4043 = vpop.f32.mrf.mxu0
      %v4044 = vadd.f32 0.0, %v4043
      %v4045 = vpop.f32.mrf.mxu0
      %4046 = vmatprep.mubr.f32.mxu0 0.0
      %4047 = vmatmul.mubr.f32.gmra.mxu0 %v3959
      %v4048 = vpop.f32.mrf.mxu0
      %v4049 = vadd.f32 0.0, %v4048
      %v4050 = vpop.f32.mrf.mxu0
      %4051 = vmatprep.mubr.f32.mxu0 0.0
      %4052 = vmatmul.mubr.f32.gmra.mxu0 %v3961
      %v4053 = vpop.f32.mrf.mxu0
      %v4054 = vadd.f32 0.0, %v4053
      %v4055 = vpop.f32.mrf.mxu0
      %4056 = vmatprep.mubr.f32.mxu0 0.0
      %4057 = vmatmul.mubr.f32.gmra.mxu0 %v3963
      %v4058 = vpop.f32.mrf.mxu0
      %v4059 = vadd.f32 0.0, %v4058
      %v4060 = vpop.f32.mrf.mxu0
      %4061 = vmatprep.mubr.f32.mxu0 0.0
      %4062 = vmatmul.mubr.f32.gmra.mxu0 %v3965
      %v4063 = vpop.f32.mrf.mxu0
      %v4064 = vadd.f32 0.0, %v4063
      %v4065 = vpop.f32.mrf.mxu0
      %4066 = vdwg.mxu0
      %v4067 = vsel %vm764, %v3920, 0
      %v4069 = vsel %vm764, %v3921, 0
      %v4071 = vsel %vm764, %v3922, 0
      %v4073 = vsel %vm764, %v3923, 0
      %v4075 = vsel %vm764, %v3924, 0
      %v4077 = vsel %vm764, %v3925, 0
      %v4079 = vsel %vm764, %v3926, 0
      %4081 = vmatprep.subr.mxu0 0.0
      %4082 = vmatpush1.msra.mxu0 0.0
      %4083 = vmatprep.subr.mxu0 0.0
      %4084 = vmatpush1.msra.mxu0 0.0
      %4085 = vmatprep.subr.mxu0 0.0
      %4086 = vmatpush1.msra.mxu0 0.0
      %4087 = vmatprep.subr.mxu0 0.0
      %4088 = vmatpush1.msra.mxu0 0.0
      %4089 = vmatprep.subr.mxu0 0.0
      %4090 = vmatpush1.msra.mxu0 0.0
      %4091 = vmatprep.subr.mxu0 0.0
      %4092 = vmatpush1.msra.mxu0 0.0
      %4093 = vmatprep.subr.mxu0 0.0
      %4094 = vmatpush1.msra.mxu0 0.0
      %4095 = vmatprep.subr.mxu0 0.0
      %4096 = vmatpush1.msra.mxu0 0.0
      %4097 = vmatprep.subr.mxu0 0.0
      %4098 = vmatpush1.msra.mxu0 0.0
      %4099 = vmatprep.subr.mxu0 0.0
      %4100 = vmatpush1.msra.mxu0 0.0
      %4101 = vmatprep.subr.mxu0 0.0
      %4102 = vmatpush1.msra.mxu0 0.0
      %4103 = vmatprep.subr.mxu0 0.0
      %4104 = vmatpush1.msra.mxu0 0.0
      %4105 = vmatprep.subr.mxu0 0.0
      %4106 = vmatpush1.msra.mxu0 0.0
      %4107 = vmatprep.subr.mxu0 0.0
      %4108 = vmatpush1.msra.mxu0 0.0
      %4109 = vmatprep.subr.mxu0 0.0
      %4110 = vmatpush1.msra.mxu0 %v3930
      %4111 = vmatprep.subr.mxu0 0.0
      %4112 = vmatpush1.msra.mxu0 %v3929
      %4113 = vmatprep.subr.mxu0 0.0
      %4114 = vmatpush2.msra.mxu0 0.0
      %4115 = vmatprep.subr.mxu0 0.0
      %4116 = vmatpush2.msra.mxu0 0.0
      %4117 = vmatprep.subr.mxu0 0.0
      %4118 = vmatpush2.msra.mxu0 0.0
      %4119 = vmatprep.subr.mxu0 0.0
      %4120 = vmatpush2.msra.mxu0 0.0
      %4121 = vmatprep.subr.mxu0 0.0
      %4122 = vmatpush2.msra.mxu0 0.0
      %4123 = vmatprep.subr.mxu0 0.0
      %4124 = vmatpush2.msra.mxu0 0.0
      %4125 = vmatprep.subr.mxu0 0.0
      %4126 = vmatpush2.msra.mxu0 0.0
      %4127 = vmatprep.subr.mxu0 0.0
      %4128 = vmatpush2.msra.mxu0 0.0
      %4129 = vmatprep.subr.mxu0 0.0
      %4130 = vmatpush2.msra.mxu0 0.0
      %4131 = vmatprep.subr.mxu0 0.0
      %4132 = vmatpush2.msra.mxu0 0.0
      %4133 = vmatprep.subr.mxu0 0.0
      %4134 = vmatpush2.msra.mxu0 0.0
      %4135 = vmatprep.subr.mxu0 0.0
      %4136 = vmatpush2.msra.mxu0 0.0
      %4137 = vmatprep.subr.mxu0 0.0
      %4138 = vmatpush2.msra.mxu0 0.0
      %4139 = vmatprep.subr.mxu0 0.0
      %4140 = vmatpush2.msra.mxu0 0.0
      %4141 = vmatprep.subr.mxu0 0.0
      %4142 = vmatpush2.msra.mxu0 0.0
      %4143 = vmatprep.subr.mxu0 0.0
      %4144 = vmatpush2.msra.mxu0 0.0
      %4145 = vmatprep.mubr.f32.mxu0 0.0
      %4146 = vmatmul.mubr.f32.gmra.mxu0 %v4067
      %v4147 = vpop.f32.mrf.mxu0
      %v4148 = vadd.f32 %v4034, %v4147
      %v4149 = vpop.f32.mrf.mxu0
      %4150 = vmatprep.mubr.f32.mxu0 0.0
      %4151 = vmatmul.mubr.f32.gmra.mxu0 %v4069
      %v4152 = vpop.f32.mrf.mxu0
      %v4153 = vadd.f32 %v4039, %v4152
      %v4154 = vpop.f32.mrf.mxu0
      %4155 = vmatprep.mubr.f32.mxu0 0.0
      %4156 = vmatmul.mubr.f32.gmra.mxu0 %v4071
      %v4157 = vpop.f32.mrf.mxu0
      %v4158 = vadd.f32 %v4044, %v4157
      %v4159 = vpop.f32.mrf.mxu0
      %4160 = vmatprep.mubr.f32.mxu0 0.0
      %4161 = vmatmul.mubr.f32.gmra.mxu0 %v4073
      %v4162 = vpop.f32.mrf.mxu0
      %v4163 = vadd.f32 %v4049, %v4162
      %v4164 = vpop.f32.mrf.mxu0
      %4165 = vmatprep.mubr.f32.mxu0 0.0
      %4166 = vmatmul.mubr.f32.gmra.mxu0 %v4075
      %v4167 = vpop.f32.mrf.mxu0
      %v4168 = vadd.f32 %v4054, %v4167
      %v4169 = vpop.f32.mrf.mxu0
      %4170 = vmatprep.mubr.f32.mxu0 0.0
      %4171 = vmatmul.mubr.f32.gmra.mxu0 %v4077
      %v4172 = vpop.f32.mrf.mxu0
      %v4173 = vadd.f32 %v4059, %v4172
      %v4174 = vpop.f32.mrf.mxu0
      %4175 = vmatprep.mubr.f32.mxu0 0.0
      %4176 = vmatmul.mubr.f32.gmra.mxu0 %v4079
      %v4177 = vpop.f32.mrf.mxu0
      %v4178 = vadd.f32 %v4064, %v4177
      %v4179 = vpop.f32.mrf.mxu0
      %4180 = vdwg.mxu0
      %v4181 = vld [vmem:[%s1099] sm:$0xff]
      %v4182 = vld [vmem:[%s1099 + $0x8] sm:$0xff]
      %v4183 = vrot.slane %v3920, 2
      %v4184 = vrot.slane %v3921, 2
      %v4185 = vsel %vm1102, %v4183, %v4184
      %v4186 = vrot.slane %v3922, 2
      %v4187 = vsel %vm1102, %v4184, %v4186
      %v4188 = vrot.slane %v3923, 2
      %v4189 = vsel %vm1102, %v4186, %v4188
      %v4190 = vrot.slane %v3924, 2
      %v4191 = vsel %vm1102, %v4188, %v4190
      %v4192 = vrot.slane %v3925, 2
      %v4193 = vsel %vm1102, %v4190, %v4192
      %v4194 = vrot.slane %v3926, 2
      %v4195 = vsel %vm1102, %v4192, %v4194
      %v4196 = vsel %vm764, %v4185, 0
      %v4198 = vsel %vm764, %v4187, 0
      %v4200 = vsel %vm764, %v4189, 0
      %v4202 = vsel %vm764, %v4191, 0
      %v4204 = vsel %vm764, %v4193, 0
      %v4206 = vsel %vm764, %v4195, 0
      %v4208 = vsel %vm764, %v4194, 0
      %4210 = vmatprep.subr.mxu0 0.0
      %4211 = vmatpush1.msra.mxu0 0.0
      %4212 = vmatprep.subr.mxu0 0.0
      %4213 = vmatpush1.msra.mxu0 0.0
      %4214 = vmatprep.subr.mxu0 0.0
      %4215 = vmatpush1.msra.mxu0 0.0
      %4216 = vmatprep.subr.mxu0 0.0
      %4217 = vmatpush1.msra.mxu0 0.0
      %4218 = vmatprep.subr.mxu0 0.0
      %4219 = vmatpush1.msra.mxu0 0.0
      %4220 = vmatprep.subr.mxu0 0.0
      %4221 = vmatpush1.msra.mxu0 0.0
      %4222 = vmatprep.subr.mxu0 0.0
      %4223 = vmatpush1.msra.mxu0 0.0
      %4224 = vmatprep.subr.mxu0 0.0
      %4225 = vmatpush1.msra.mxu0 0.0
      %4226 = vmatprep.subr.mxu0 0.0
      %4227 = vmatpush1.msra.mxu0 0.0
      %4228 = vmatprep.subr.mxu0 0.0
      %4229 = vmatpush1.msra.mxu0 0.0
      %4230 = vmatprep.subr.mxu0 0.0
      %4231 = vmatpush1.msra.mxu0 0.0
      %4232 = vmatprep.subr.mxu0 0.0
      %4233 = vmatpush1.msra.mxu0 0.0
      %4234 = vmatprep.subr.mxu0 0.0
      %4235 = vmatpush1.msra.mxu0 0.0
      %4236 = vmatprep.subr.mxu0 0.0
      %4237 = vmatpush1.msra.mxu0 0.0
      %4238 = vmatprep.subr.mxu0 0.0
      %4239 = vmatpush1.msra.mxu0 %v4182
      %4240 = vmatprep.subr.mxu0 0.0
      %4241 = vmatpush1.msra.mxu0 %v4181
      %4242 = vmatprep.subr.mxu0 0.0
      %4243 = vmatpush2.msra.mxu0 0.0
      %4244 = vmatprep.subr.mxu0 0.0
      %4245 = vmatpush2.msra.mxu0 0.0
      %4246 = vmatprep.subr.mxu0 0.0
      %4247 = vmatpush2.msra.mxu0 0.0
      %4248 = vmatprep.subr.mxu0 0.0
      %4249 = vmatpush2.msra.mxu0 0.0
      %4250 = vmatprep.subr.mxu0 0.0
      %4251 = vmatpush2.msra.mxu0 0.0
      %4252 = vmatprep.subr.mxu0 0.0
      %4253 = vmatpush2.msra.mxu0 0.0
      %4254 = vmatprep.subr.mxu0 0.0
      %4255 = vmatpush2.msra.mxu0 0.0
      %4256 = vmatprep.subr.mxu0 0.0
      %4257 = vmatpush2.msra.mxu0 0.0
      %4258 = vmatprep.subr.mxu0 0.0
      %4259 = vmatpush2.msra.mxu0 0.0
      %4260 = vmatprep.subr.mxu0 0.0
      %4261 = vmatpush2.msra.mxu0 0.0
      %4262 = vmatprep.subr.mxu0 0.0
      %4263 = vmatpush2.msra.mxu0 0.0
      %4264 = vmatprep.subr.mxu0 0.0
      %4265 = vmatpush2.msra.mxu0 0.0
      %4266 = vmatprep.subr.mxu0 0.0
      %4267 = vmatpush2.msra.mxu0 0.0
      %4268 = vmatprep.subr.mxu0 0.0
      %4269 = vmatpush2.msra.mxu0 0.0
      %4270 = vmatprep.subr.mxu0 0.0
      %4271 = vmatpush2.msra.mxu0 0.0
      %4272 = vmatprep.subr.mxu0 0.0
      %4273 = vmatpush2.msra.mxu0 0.0
      %4274 = vmatprep.mubr.f32.mxu0 0.0
      %4275 = vmatmul.mubr.f32.gmra.mxu0 %v4196
      %v4276 = vpop.f32.mrf.mxu0
      %v4277 = vadd.f32 0.0, %v4276
      %v4278 = vpop.f32.mrf.mxu0
      %4279 = vmatprep.mubr.f32.mxu0 0.0
      %4280 = vmatmul.mubr.f32.gmra.mxu0 %v4198
      %v4281 = vpop.f32.mrf.mxu0
      %v4282 = vadd.f32 0.0, %v4281
      %v4283 = vpop.f32.mrf.mxu0
      %4284 = vmatprep.mubr.f32.mxu0 0.0
      %4285 = vmatmul.mubr.f32.gmra.mxu0 %v4200
      %v4286 = vpop.f32.mrf.mxu0
      %v4287 = vadd.f32 0.0, %v4286
      %v4288 = vpop.f32.mrf.mxu0
      %4289 = vmatprep.mubr.f32.mxu0 0.0
      %4290 = vmatmul.mubr.f32.gmra.mxu0 %v4202
      %v4291 = vpop.f32.mrf.mxu0
      %v4292 = vadd.f32 0.0, %v4291
      %v4293 = vpop.f32.mrf.mxu0
      %4294 = vmatprep.mubr.f32.mxu0 0.0
      %4295 = vmatmul.mubr.f32.gmra.mxu0 %v4204
      %v4296 = vpop.f32.mrf.mxu0
      %v4297 = vadd.f32 0.0, %v4296
      %v4298 = vpop.f32.mrf.mxu0
      %4299 = vmatprep.mubr.f32.mxu0 0.0
      %4300 = vmatmul.mubr.f32.gmra.mxu0 %v4206
      %v4301 = vpop.f32.mrf.mxu0
      %v4302 = vadd.f32 0.0, %v4301
      %v4303 = vpop.f32.mrf.mxu0
      %4304 = vmatprep.mubr.f32.mxu0 0.0
      %4305 = vmatmul.mubr.f32.gmra.mxu0 %v4208
      %v4306 = vpop.f32.mrf.mxu0
      %v4307 = vadd.f32 0.0, %v4306
      %v4308 = vpop.f32.mrf.mxu0
      %4309 = vdwg.mxu0
      %v4310 = vadd.f32 %v4148, %v4277
      %v4311 = vadd.f32 %v4153, %v4282
      %v4312 = vadd.f32 %v4158, %v4287
      %v4313 = vadd.f32 %v4163, %v4292
      %v4314 = vadd.f32 %v4168, %v4297
      %v4315 = vadd.f32 %v4173, %v4302
      %v4316 = vadd.f32 %v4178, %v4307
      %v4317 = vld [vmem:[%s1237] sm:$0xff]
      %v4318 = vld [vmem:[%s1237 + $0x8] sm:$0xff]
      %v4319 = vrot.slane %v3920, 3
      %v4320 = vrot.slane %v3921, 3
      %v4321 = vsel %vm1240, %v4319, %v4320
      %v4322 = vrot.slane %v3922, 3
      %v4323 = vsel %vm1240, %v4320, %v4322
      %v4324 = vrot.slane %v3923, 3
      %v4325 = vsel %vm1240, %v4322, %v4324
      %v4326 = vrot.slane %v3924, 3
      %v4327 = vsel %vm1240, %v4324, %v4326
      %v4328 = vrot.slane %v3925, 3
      %v4329 = vsel %vm1240, %v4326, %v4328
      %v4330 = vrot.slane %v3926, 3
      %v4331 = vsel %vm1240, %v4328, %v4330
      %v4332 = vsel %vm764, %v4321, 0
      %v4334 = vsel %vm764, %v4323, 0
      %v4336 = vsel %vm764, %v4325, 0
      %v4338 = vsel %vm764, %v4327, 0
      %v4340 = vsel %vm764, %v4329, 0
      %v4342 = vsel %vm764, %v4331, 0
      %v4344 = vsel %vm764, %v4330, 0
      %4346 = vmatprep.subr.mxu0 0.0
      %4347 = vmatpush1.msra.mxu0 0.0
      %4348 = vmatprep.subr.mxu0 0.0
      %4349 = vmatpush1.msra.mxu0 0.0
      %4350 = vmatprep.subr.mxu0 0.0
      %4351 = vmatpush1.msra.mxu0 0.0
      %4352 = vmatprep.subr.mxu0 0.0
      %4353 = vmatpush1.msra.mxu0 0.0
      %4354 = vmatprep.subr.mxu0 0.0
      %4355 = vmatpush1.msra.mxu0 0.0
      %4356 = vmatprep.subr.mxu0 0.0
      %4357 = vmatpush1.msra.mxu0 0.0
      %4358 = vmatprep.subr.mxu0 0.0
      %4359 = vmatpush1.msra.mxu0 0.0
      %4360 = vmatprep.subr.mxu0 0.0
      %4361 = vmatpush1.msra.mxu0 0.0
      %4362 = vmatprep.subr.mxu0 0.0
      %4363 = vmatpush1.msra.mxu0 0.0
      %4364 = vmatprep.subr.mxu0 0.0
      %4365 = vmatpush1.msra.mxu0 0.0
      %4366 = vmatprep.subr.mxu0 0.0
      %4367 = vmatpush1.msra.mxu0 0.0
      %4368 = vmatprep.subr.mxu0 0.0
      %4369 = vmatpush1.msra.mxu0 0.0
      %4370 = vmatprep.subr.mxu0 0.0
      %4371 = vmatpush1.msra.mxu0 0.0
      %4372 = vmatprep.subr.mxu0 0.0
      %4373 = vmatpush1.msra.mxu0 0.0
      %4374 = vmatprep.subr.mxu0 0.0
      %4375 = vmatpush1.msra.mxu0 %v4318
      %4376 = vmatprep.subr.mxu0 0.0
      %4377 = vmatpush1.msra.mxu0 %v4317
      %4378 = vmatprep.subr.mxu0 0.0
      %4379 = vmatpush2.msra.mxu0 0.0
      %4380 = vmatprep.subr.mxu0 0.0
      %4381 = vmatpush2.msra.mxu0 0.0
      %4382 = vmatprep.subr.mxu0 0.0
      %4383 = vmatpush2.msra.mxu0 0.0
      %4384 = vmatprep.subr.mxu0 0.0
      %4385 = vmatpush2.msra.mxu0 0.0
      %4386 = vmatprep.subr.mxu0 0.0
      %4387 = vmatpush2.msra.mxu0 0.0
      %4388 = vmatprep.subr.mxu0 0.0
      %4389 = vmatpush2.msra.mxu0 0.0
      %4390 = vmatprep.subr.mxu0 0.0
      %4391 = vmatpush2.msra.mxu0 0.0
      %4392 = vmatprep.subr.mxu0 0.0
      %4393 = vmatpush2.msra.mxu0 0.0
      %4394 = vmatprep.subr.mxu0 0.0
      %4395 = vmatpush2.msra.mxu0 0.0
      %4396 = vmatprep.subr.mxu0 0.0
      %4397 = vmatpush2.msra.mxu0 0.0
      %4398 = vmatprep.subr.mxu0 0.0
      %4399 = vmatpush2.msra.mxu0 0.0
      %4400 = vmatprep.subr.mxu0 0.0
      %4401 = vmatpush2.msra.mxu0 0.0
      %4402 = vmatprep.subr.mxu0 0.0
      %4403 = vmatpush2.msra.mxu0 0.0
      %4404 = vmatprep.subr.mxu0 0.0
      %4405 = vmatpush2.msra.mxu0 0.0
      %4406 = vmatprep.subr.mxu0 0.0
      %4407 = vmatpush2.msra.mxu0 0.0
      %4408 = vmatprep.subr.mxu0 0.0
      %4409 = vmatpush2.msra.mxu0 0.0
      %4410 = vmatprep.mubr.f32.mxu0 0.0
      %4411 = vmatmul.mubr.f32.gmra.mxu0 %v4332
      %v4412 = vpop.f32.mrf.mxu0
      %v4413 = vadd.f32 0.0, %v4412
      %v4414 = vpop.f32.mrf.mxu0
      %4415 = vmatprep.mubr.f32.mxu0 0.0
      %4416 = vmatmul.mubr.f32.gmra.mxu0 %v4334
      %v4417 = vpop.f32.mrf.mxu0
      %v4418 = vadd.f32 0.0, %v4417
      %v4419 = vpop.f32.mrf.mxu0
      %4420 = vmatprep.mubr.f32.mxu0 0.0
      %4421 = vmatmul.mubr.f32.gmra.mxu0 %v4336
      %v4422 = vpop.f32.mrf.mxu0
      %v4423 = vadd.f32 0.0, %v4422
      %v4424 = vpop.f32.mrf.mxu0
      %4425 = vmatprep.mubr.f32.mxu0 0.0
      %4426 = vmatmul.mubr.f32.gmra.mxu0 %v4338
      %v4427 = vpop.f32.mrf.mxu0
      %v4428 = vadd.f32 0.0, %v4427
      %v4429 = vpop.f32.mrf.mxu0
      %4430 = vmatprep.mubr.f32.mxu0 0.0
      %4431 = vmatmul.mubr.f32.gmra.mxu0 %v4340
      %v4432 = vpop.f32.mrf.mxu0
      %v4433 = vadd.f32 0.0, %v4432
      %v4434 = vpop.f32.mrf.mxu0
      %4435 = vmatprep.mubr.f32.mxu0 0.0
      %4436 = vmatmul.mubr.f32.gmra.mxu0 %v4342
      %v4437 = vpop.f32.mrf.mxu0
      %v4438 = vadd.f32 0.0, %v4437
      %v4439 = vpop.f32.mrf.mxu0
      %4440 = vmatprep.mubr.f32.mxu0 0.0
      %4441 = vmatmul.mubr.f32.gmra.mxu0 %v4344
      %v4442 = vpop.f32.mrf.mxu0
      %v4443 = vadd.f32 0.0, %v4442
      %v4444 = vpop.f32.mrf.mxu0
      %4445 = vdwg.mxu0
      %v4446 = vadd.f32 %v4310, %v4413
      %v4447 = vadd.f32 %v4311, %v4418
      %v4448 = vadd.f32 %v4312, %v4423
      %v4449 = vadd.f32 %v4313, %v4428
      %v4450 = vadd.f32 %v4314, %v4433
      %v4451 = vadd.f32 %v4315, %v4438
      %v4452 = vadd.f32 %v4316, %v4443
      %v4453 = vld [vmem:[%s1375] sm:$0xff]
      %v4454 = vld [vmem:[%s1375 + $0x8] sm:$0xff]
      %v4456 = vrot.slane %v3920, 4
      %v4457 = vrot.slane %v3921, 4
      %v4458 = vsel %vm1379, %v4456, %v4457
      %v4459 = vrot.slane %v3922, 4
      %v4460 = vsel %vm1379, %v4457, %v4459
      %v4461 = vrot.slane %v3923, 4
      %v4462 = vsel %vm1379, %v4459, %v4461
      %v4463 = vrot.slane %v3924, 4
      %v4464 = vsel %vm1379, %v4461, %v4463
      %v4465 = vrot.slane %v3925, 4
      %v4466 = vsel %vm1379, %v4463, %v4465
      %v4467 = vrot.slane %v3926, 4
      %v4468 = vsel %vm1379, %v4465, %v4467
      %v4469 = vrot.slane %v3927, 4
      %v4470 = vsel %vm1379, %v4467, %v4469
      %v4471 = vsel %vm764, %v4458, 0
      %v4473 = vsel %vm764, %v4460, 0
      %v4475 = vsel %vm764, %v4462, 0
      %v4477 = vsel %vm764, %v4464, 0
      %v4479 = vsel %vm764, %v4466, 0
      %v4481 = vsel %vm764, %v4468, 0
      %v4483 = vsel %vm764, %v4470, 0
      %4485 = vmatprep.subr.mxu0 0.0
      %4486 = vmatpush1.msra.mxu0 0.0
      %4487 = vmatprep.subr.mxu0 0.0
      %4488 = vmatpush1.msra.mxu0 0.0
      %4489 = vmatprep.subr.mxu0 0.0
      %4490 = vmatpush1.msra.mxu0 0.0
      %4491 = vmatprep.subr.mxu0 0.0
      %4492 = vmatpush1.msra.mxu0 0.0
      %4493 = vmatprep.subr.mxu0 0.0
      %4494 = vmatpush1.msra.mxu0 0.0
      %4495 = vmatprep.subr.mxu0 0.0
      %4496 = vmatpush1.msra.mxu0 0.0
      %4497 = vmatprep.subr.mxu0 0.0
      %4498 = vmatpush1.msra.mxu0 0.0
      %4499 = vmatprep.subr.mxu0 0.0
      %4500 = vmatpush1.msra.mxu0 0.0
      %4501 = vmatprep.subr.mxu0 0.0
      %4502 = vmatpush1.msra.mxu0 0.0
      %4503 = vmatprep.subr.mxu0 0.0
      %4504 = vmatpush1.msra.mxu0 0.0
      %4505 = vmatprep.subr.mxu0 0.0
      %4506 = vmatpush1.msra.mxu0 0.0
      %4507 = vmatprep.subr.mxu0 0.0
      %4508 = vmatpush1.msra.mxu0 0.0
      %4509 = vmatprep.subr.mxu0 0.0
      %4510 = vmatpush1.msra.mxu0 0.0
      %4511 = vmatprep.subr.mxu0 0.0
      %4512 = vmatpush1.msra.mxu0 0.0
      %4513 = vmatprep.subr.mxu0 0.0
      %4514 = vmatpush1.msra.mxu0 %v4454
      %4515 = vmatprep.subr.mxu0 0.0
      %4516 = vmatpush1.msra.mxu0 %v4453
      %4517 = vmatprep.subr.mxu0 0.0
      %4518 = vmatpush2.msra.mxu0 0.0
      %4519 = vmatprep.subr.mxu0 0.0
      %4520 = vmatpush2.msra.mxu0 0.0
      %4521 = vmatprep.subr.mxu0 0.0
      %4522 = vmatpush2.msra.mxu0 0.0
      %4523 = vmatprep.subr.mxu0 0.0
      %4524 = vmatpush2.msra.mxu0 0.0
      %4525 = vmatprep.subr.mxu0 0.0
      %4526 = vmatpush2.msra.mxu0 0.0
      %4527 = vmatprep.subr.mxu0 0.0
      %4528 = vmatpush2.msra.mxu0 0.0
      %4529 = vmatprep.subr.mxu0 0.0
      %4530 = vmatpush2.msra.mxu0 0.0
      %4531 = vmatprep.subr.mxu0 0.0
      %4532 = vmatpush2.msra.mxu0 0.0
      %4533 = vmatprep.subr.mxu0 0.0
      %4534 = vmatpush2.msra.mxu0 0.0
      %4535 = vmatprep.subr.mxu0 0.0
      %4536 = vmatpush2.msra.mxu0 0.0
      %4537 = vmatprep.subr.mxu0 0.0
      %4538 = vmatpush2.msra.mxu0 0.0
      %4539 = vmatprep.subr.mxu0 0.0
      %4540 = vmatpush2.msra.mxu0 0.0
      %4541 = vmatprep.subr.mxu0 0.0
      %4542 = vmatpush2.msra.mxu0 0.0
      %4543 = vmatprep.subr.mxu0 0.0
      %4544 = vmatpush2.msra.mxu0 0.0
      %4545 = vmatprep.subr.mxu0 0.0
      %4546 = vmatpush2.msra.mxu0 0.0
      %4547 = vmatprep.subr.mxu0 0.0
      %4548 = vmatpush2.msra.mxu0 0.0
      %4549 = vmatprep.mubr.f32.mxu0 0.0
      %4550 = vmatmul.mubr.f32.gmra.mxu0 %v4471
      %v4551 = vpop.f32.mrf.mxu0
      %v4552 = vadd.f32 0.0, %v4551
      %v4553 = vpop.f32.mrf.mxu0
      %4554 = vmatprep.mubr.f32.mxu0 0.0
      %4555 = vmatmul.mubr.f32.gmra.mxu0 %v4473
      %v4556 = vpop.f32.mrf.mxu0
      %v4557 = vadd.f32 0.0, %v4556
      %v4558 = vpop.f32.mrf.mxu0
      %4559 = vmatprep.mubr.f32.mxu0 0.0
      %4560 = vmatmul.mubr.f32.gmra.mxu0 %v4475
      %v4561 = vpop.f32.mrf.mxu0
      %v4562 = vadd.f32 0.0, %v4561
      %v4563 = vpop.f32.mrf.mxu0
      %4564 = vmatprep.mubr.f32.mxu0 0.0
      %4565 = vmatmul.mubr.f32.gmra.mxu0 %v4477
      %v4566 = vpop.f32.mrf.mxu0
      %v4567 = vadd.f32 0.0, %v4566
      %v4568 = vpop.f32.mrf.mxu0
      %4569 = vmatprep.mubr.f32.mxu0 0.0
      %4570 = vmatmul.mubr.f32.gmra.mxu0 %v4479
      %v4571 = vpop.f32.mrf.mxu0
      %v4572 = vadd.f32 0.0, %v4571
      %v4573 = vpop.f32.mrf.mxu0
      %4574 = vmatprep.mubr.f32.mxu0 0.0
      %4575 = vmatmul.mubr.f32.gmra.mxu0 %v4481
      %v4576 = vpop.f32.mrf.mxu0
      %v4577 = vadd.f32 0.0, %v4576
      %v4578 = vpop.f32.mrf.mxu0
      %4579 = vmatprep.mubr.f32.mxu0 0.0
      %4580 = vmatmul.mubr.f32.gmra.mxu0 %v4483
      %v4581 = vpop.f32.mrf.mxu0
      %v4582 = vadd.f32 0.0, %v4581
      %v4583 = vpop.f32.mrf.mxu0
      %4584 = vdwg.mxu0
      %v4585 = vadd.f32 %v4446, %v4552
      %v4586 = vadd.f32 %v4447, %v4557
      %v4587 = vadd.f32 %v4448, %v4562
      %v4588 = vadd.f32 %v4449, %v4567
      %v4589 = vadd.f32 %v4450, %v4572
      %v4590 = vadd.f32 %v4451, %v4577
      %v4591 = vadd.f32 %v4452, %v4582
      %v4592 = vld [vmem:[%s1516] sm:$0xff]
      %v4593 = vld [vmem:[%s1516 + $0x8] sm:$0xff]
      %v4594 = vrot.slane %v3920, 5
      %v4595 = vrot.slane %v3921, 5
      %v4596 = vsel %vm1519, %v4594, %v4595
      %v4597 = vrot.slane %v3922, 5
      %v4598 = vsel %vm1519, %v4595, %v4597
      %v4599 = vrot.slane %v3923, 5
      %v4600 = vsel %vm1519, %v4597, %v4599
      %v4601 = vrot.slane %v3924, 5
      %v4602 = vsel %vm1519, %v4599, %v4601
      %v4603 = vrot.slane %v3925, 5
      %v4604 = vsel %vm1519, %v4601, %v4603
      %v4605 = vrot.slane %v3926, 5
      %v4606 = vsel %vm1519, %v4603, %v4605
      %v4607 = vrot.slane %v3927, 5
      %v4608 = vsel %vm1519, %v4605, %v4607
      %v4609 = vsel %vm764, %v4596, 0
      %v4611 = vsel %vm764, %v4598, 0
      %v4613 = vsel %vm764, %v4600, 0
      %v4615 = vsel %vm764, %v4602, 0
      %v4617 = vsel %vm764, %v4604, 0
      %v4619 = vsel %vm764, %v4606, 0
      %v4621 = vsel %vm764, %v4608, 0
      %4623 = vmatprep.subr.mxu0 0.0
      %4624 = vmatpush1.msra.mxu0 0.0
      %4625 = vmatprep.subr.mxu0 0.0
      %4626 = vmatpush1.msra.mxu0 0.0
      %4627 = vmatprep.subr.mxu0 0.0
      %4628 = vmatpush1.msra.mxu0 0.0
      %4629 = vmatprep.subr.mxu0 0.0
      %4630 = vmatpush1.msra.mxu0 0.0
      %4631 = vmatprep.subr.mxu0 0.0
      %4632 = vmatpush1.msra.mxu0 0.0
      %4633 = vmatprep.subr.mxu0 0.0
      %4634 = vmatpush1.msra.mxu0 0.0
      %4635 = vmatprep.subr.mxu0 0.0
      %4636 = vmatpush1.msra.mxu0 0.0
      %4637 = vmatprep.subr.mxu0 0.0
      %4638 = vmatpush1.msra.mxu0 0.0
      %4639 = vmatprep.subr.mxu0 0.0
      %4640 = vmatpush1.msra.mxu0 0.0
      %4641 = vmatprep.subr.mxu0 0.0
      %4642 = vmatpush1.msra.mxu0 0.0
      %4643 = vmatprep.subr.mxu0 0.0
      %4644 = vmatpush1.msra.mxu0 0.0
      %4645 = vmatprep.subr.mxu0 0.0
      %4646 = vmatpush1.msra.mxu0 0.0
      %4647 = vmatprep.subr.mxu0 0.0
      %4648 = vmatpush1.msra.mxu0 0.0
      %4649 = vmatprep.subr.mxu0 0.0
      %4650 = vmatpush1.msra.mxu0 0.0
      %4651 = vmatprep.subr.mxu0 0.0
      %4652 = vmatpush1.msra.mxu0 %v4593
      %4653 = vmatprep.subr.mxu0 0.0
      %4654 = vmatpush1.msra.mxu0 %v4592
      %4655 = vmatprep.subr.mxu0 0.0
      %4656 = vmatpush2.msra.mxu0 0.0
      %4657 = vmatprep.subr.mxu0 0.0
      %4658 = vmatpush2.msra.mxu0 0.0
      %4659 = vmatprep.subr.mxu0 0.0
      %4660 = vmatpush2.msra.mxu0 0.0
      %4661 = vmatprep.subr.mxu0 0.0
      %4662 = vmatpush2.msra.mxu0 0.0
      %4663 = vmatprep.subr.mxu0 0.0
      %4664 = vmatpush2.msra.mxu0 0.0
      %4665 = vmatprep.subr.mxu0 0.0
      %4666 = vmatpush2.msra.mxu0 0.0
      %4667 = vmatprep.subr.mxu0 0.0
      %4668 = vmatpush2.msra.mxu0 0.0
      %4669 = vmatprep.subr.mxu0 0.0
      %4670 = vmatpush2.msra.mxu0 0.0
      %4671 = vmatprep.subr.mxu0 0.0
      %4672 = vmatpush2.msra.mxu0 0.0
      %4673 = vmatprep.subr.mxu0 0.0
      %4674 = vmatpush2.msra.mxu0 0.0
      %4675 = vmatprep.subr.mxu0 0.0
      %4676 = vmatpush2.msra.mxu0 0.0
      %4677 = vmatprep.subr.mxu0 0.0
      %4678 = vmatpush2.msra.mxu0 0.0
      %4679 = vmatprep.subr.mxu0 0.0
      %4680 = vmatpush2.msra.mxu0 0.0
      %4681 = vmatprep.subr.mxu0 0.0
      %4682 = vmatpush2.msra.mxu0 0.0
      %4683 = vmatprep.subr.mxu0 0.0
      %4684 = vmatpush2.msra.mxu0 0.0
      %4685 = vmatprep.subr.mxu0 0.0
      %4686 = vmatpush2.msra.mxu0 0.0
      %4687 = vmatprep.mubr.f32.mxu0 0.0
      %4688 = vmatmul.mubr.f32.gmra.mxu0 %v4609
      %v4689 = vpop.f32.mrf.mxu0
      %v4690 = vadd.f32 0.0, %v4689
      %v4691 = vpop.f32.mrf.mxu0
      %4692 = vmatprep.mubr.f32.mxu0 0.0
      %4693 = vmatmul.mubr.f32.gmra.mxu0 %v4611
      %v4694 = vpop.f32.mrf.mxu0
      %v4695 = vadd.f32 0.0, %v4694
      %v4696 = vpop.f32.mrf.mxu0
      %4697 = vmatprep.mubr.f32.mxu0 0.0
      %4698 = vmatmul.mubr.f32.gmra.mxu0 %v4613
      %v4699 = vpop.f32.mrf.mxu0
      %v4700 = vadd.f32 0.0, %v4699
      %v4701 = vpop.f32.mrf.mxu0
      %4702 = vmatprep.mubr.f32.mxu0 0.0
      %4703 = vmatmul.mubr.f32.gmra.mxu0 %v4615
      %v4704 = vpop.f32.mrf.mxu0
      %v4705 = vadd.f32 0.0, %v4704
      %v4706 = vpop.f32.mrf.mxu0
      %4707 = vmatprep.mubr.f32.mxu0 0.0
      %4708 = vmatmul.mubr.f32.gmra.mxu0 %v4617
      %v4709 = vpop.f32.mrf.mxu0
      %v4710 = vadd.f32 0.0, %v4709
      %v4711 = vpop.f32.mrf.mxu0
      %4712 = vmatprep.mubr.f32.mxu0 0.0
      %4713 = vmatmul.mubr.f32.gmra.mxu0 %v4619
      %v4714 = vpop.f32.mrf.mxu0
      %v4715 = vadd.f32 0.0, %v4714
      %v4716 = vpop.f32.mrf.mxu0
      %4717 = vmatprep.mubr.f32.mxu0 0.0
      %4718 = vmatmul.mubr.f32.gmra.mxu0 %v4621
      %v4719 = vpop.f32.mrf.mxu0
      %v4720 = vadd.f32 0.0, %v4719
      %v4721 = vpop.f32.mrf.mxu0
      %4722 = vdwg.mxu0
      %v4723 = vadd.f32 %v4585, %v4690
      %v4724 = vadd.f32 %v4586, %v4695
      %v4725 = vadd.f32 %v4587, %v4700
      %v4726 = vadd.f32 %v4588, %v4705
      %v4727 = vadd.f32 %v4589, %v4710
      %v4728 = vadd.f32 %v4590, %v4715
      %v4729 = vadd.f32 %v4591, %v4720
      %v4730 = vld [vmem:[%s1656] sm:$0xff]
      %v4731 = vld [vmem:[%s1656 + $0x8] sm:$0xff]
      %v4732 = vrot.slane %v3920, 6
      %v4733 = vrot.slane %v3921, 6
      %v4734 = vsel %vm1659, %v4732, %v4733
      %v4735 = vrot.slane %v3922, 6
      %v4736 = vsel %vm1659, %v4733, %v4735
      %v4737 = vrot.slane %v3923, 6
      %v4738 = vsel %vm1659, %v4735, %v4737
      %v4739 = vrot.slane %v3924, 6
      %v4740 = vsel %vm1659, %v4737, %v4739
      %v4741 = vrot.slane %v3925, 6
      %v4742 = vsel %vm1659, %v4739, %v4741
      %v4743 = vrot.slane %v3926, 6
      %v4744 = vsel %vm1659, %v4741, %v4743
      %v4745 = vrot.slane %v3927, 6
      %v4746 = vsel %vm1659, %v4743, %v4745
      %v4747 = vsel %vm764, %v4734, 0
      %v4749 = vsel %vm764, %v4736, 0
      %v4751 = vsel %vm764, %v4738, 0
      %v4753 = vsel %vm764, %v4740, 0
      %v4755 = vsel %vm764, %v4742, 0
      %v4757 = vsel %vm764, %v4744, 0
      %v4759 = vsel %vm764, %v4746, 0
      %4761 = vmatprep.subr.mxu0 0.0
      %4762 = vmatpush1.msra.mxu0 0.0
      %4763 = vmatprep.subr.mxu0 0.0
      %4764 = vmatpush1.msra.mxu0 0.0
      %4765 = vmatprep.subr.mxu0 0.0
      %4766 = vmatpush1.msra.mxu0 0.0
      %4767 = vmatprep.subr.mxu0 0.0
      %4768 = vmatpush1.msra.mxu0 0.0
      %4769 = vmatprep.subr.mxu0 0.0
      %4770 = vmatpush1.msra.mxu0 0.0
      %4771 = vmatprep.subr.mxu0 0.0
      %4772 = vmatpush1.msra.mxu0 0.0
      %4773 = vmatprep.subr.mxu0 0.0
      %4774 = vmatpush1.msra.mxu0 0.0
      %4775 = vmatprep.subr.mxu0 0.0
      %4776 = vmatpush1.msra.mxu0 0.0
      %4777 = vmatprep.subr.mxu0 0.0
      %4778 = vmatpush1.msra.mxu0 0.0
      %4779 = vmatprep.subr.mxu0 0.0
      %4780 = vmatpush1.msra.mxu0 0.0
      %4781 = vmatprep.subr.mxu0 0.0
      %4782 = vmatpush1.msra.mxu0 0.0
      %4783 = vmatprep.subr.mxu0 0.0
      %4784 = vmatpush1.msra.mxu0 0.0
      %4785 = vmatprep.subr.mxu0 0.0
      %4786 = vmatpush1.msra.mxu0 0.0
      %4787 = vmatprep.subr.mxu0 0.0
      %4788 = vmatpush1.msra.mxu0 0.0
      %4789 = vmatprep.subr.mxu0 0.0
      %4790 = vmatpush1.msra.mxu0 %v4731
      %4791 = vmatprep.subr.mxu0 0.0
      %4792 = vmatpush1.msra.mxu0 %v4730
      %4793 = vmatprep.subr.mxu0 0.0
      %4794 = vmatpush2.msra.mxu0 0.0
      %4795 = vmatprep.subr.mxu0 0.0
      %4796 = vmatpush2.msra.mxu0 0.0
      %4797 = vmatprep.subr.mxu0 0.0
      %4798 = vmatpush2.msra.mxu0 0.0
      %4799 = vmatprep.subr.mxu0 0.0
      %4800 = vmatpush2.msra.mxu0 0.0
      %4801 = vmatprep.subr.mxu0 0.0
      %4802 = vmatpush2.msra.mxu0 0.0
      %4803 = vmatprep.subr.mxu0 0.0
      %4804 = vmatpush2.msra.mxu0 0.0
      %4805 = vmatprep.subr.mxu0 0.0
      %4806 = vmatpush2.msra.mxu0 0.0
      %4807 = vmatprep.subr.mxu0 0.0
      %4808 = vmatpush2.msra.mxu0 0.0
      %4809 = vmatprep.subr.mxu0 0.0
      %4810 = vmatpush2.msra.mxu0 0.0
      %4811 = vmatprep.subr.mxu0 0.0
      %4812 = vmatpush2.msra.mxu0 0.0
      %4813 = vmatprep.subr.mxu0 0.0
      %4814 = vmatpush2.msra.mxu0 0.0
      %4815 = vmatprep.subr.mxu0 0.0
      %4816 = vmatpush2.msra.mxu0 0.0
      %4817 = vmatprep.subr.mxu0 0.0
      %4818 = vmatpush2.msra.mxu0 0.0
      %4819 = vmatprep.subr.mxu0 0.0
      %4820 = vmatpush2.msra.mxu0 0.0
      %4821 = vmatprep.subr.mxu0 0.0
      %4822 = vmatpush2.msra.mxu0 0.0
      %4823 = vmatprep.subr.mxu0 0.0
      %4824 = vmatpush2.msra.mxu0 0.0
      %4825 = vmatprep.mubr.f32.mxu0 0.0
      %4826 = vmatmul.mubr.f32.gmra.mxu0 %v4747
      %v4827 = vpop.f32.mrf.mxu0
      %v4828 = vadd.f32 0.0, %v4827
      %v4829 = vpop.f32.mrf.mxu0
      %4830 = vmatprep.mubr.f32.mxu0 0.0
      %4831 = vmatmul.mubr.f32.gmra.mxu0 %v4749
      %v4832 = vpop.f32.mrf.mxu0
      %v4833 = vadd.f32 0.0, %v4832
      %v4834 = vpop.f32.mrf.mxu0
      %4835 = vmatprep.mubr.f32.mxu0 0.0
      %4836 = vmatmul.mubr.f32.gmra.mxu0 %v4751
      %v4837 = vpop.f32.mrf.mxu0
      %v4838 = vadd.f32 0.0, %v4837
      %v4839 = vpop.f32.mrf.mxu0
      %4840 = vmatprep.mubr.f32.mxu0 0.0
      %4841 = vmatmul.mubr.f32.gmra.mxu0 %v4753
      %v4842 = vpop.f32.mrf.mxu0
      %v4843 = vadd.f32 0.0, %v4842
      %v4844 = vpop.f32.mrf.mxu0
      %4845 = vmatprep.mubr.f32.mxu0 0.0
      %4846 = vmatmul.mubr.f32.gmra.mxu0 %v4755
      %v4847 = vpop.f32.mrf.mxu0
      %v4848 = vadd.f32 0.0, %v4847
      %v4849 = vpop.f32.mrf.mxu0
      %4850 = vmatprep.mubr.f32.mxu0 0.0
      %4851 = vmatmul.mubr.f32.gmra.mxu0 %v4757
      %v4852 = vpop.f32.mrf.mxu0
      %v4853 = vadd.f32 0.0, %v4852
      %v4854 = vpop.f32.mrf.mxu0
      %4855 = vmatprep.mubr.f32.mxu0 0.0
      %4856 = vmatmul.mubr.f32.gmra.mxu0 %v4759
      %v4857 = vpop.f32.mrf.mxu0
      %v4858 = vadd.f32 0.0, %v4857
      %v4859 = vpop.f32.mrf.mxu0
      %4860 = vdwg.mxu0
      %v4861 = vadd.f32 %v4723, %v4828
      %v4862 = vadd.f32 %v4724, %v4833
      %v4863 = vadd.f32 %v4725, %v4838
      %v4864 = vadd.f32 %v4726, %v4843
      %v4865 = vadd.f32 %v4727, %v4848
      %v4866 = vadd.f32 %v4728, %v4853
      %v4867 = vadd.f32 %v4729, %v4858
      %v4868 = vld [vmem:[%s1796] sm:$0xff]
      %v4869 = vld [vmem:[%s1796 + $0x8] sm:$0xff]
      %v4870 = vrot.slane %v3920, 7
      %v4871 = vrot.slane %v3921, 7
      %v4872 = vsel %vm1799, %v4870, %v4871
      %v4873 = vrot.slane %v3922, 7
      %v4874 = vsel %vm1799, %v4871, %v4873
      %v4875 = vrot.slane %v3923, 7
      %v4876 = vsel %vm1799, %v4873, %v4875
      %v4877 = vrot.slane %v3924, 7
      %v4878 = vsel %vm1799, %v4875, %v4877
      %v4879 = vrot.slane %v3925, 7
      %v4880 = vsel %vm1799, %v4877, %v4879
      %v4881 = vrot.slane %v3926, 7
      %v4882 = vsel %vm1799, %v4879, %v4881
      %v4883 = vrot.slane %v3927, 7
      %v4884 = vsel %vm1799, %v4881, %v4883
      %v4885 = vsel %vm764, %v4872, 0
      %v4887 = vsel %vm764, %v4874, 0
      %v4889 = vsel %vm764, %v4876, 0
      %v4891 = vsel %vm764, %v4878, 0
      %v4893 = vsel %vm764, %v4880, 0
      %v4895 = vsel %vm764, %v4882, 0
      %v4897 = vsel %vm764, %v4884, 0
      %4899 = vmatprep.subr.mxu0 0.0
      %4900 = vmatpush1.msra.mxu0 0.0
      %4901 = vmatprep.subr.mxu0 0.0
      %4902 = vmatpush1.msra.mxu0 0.0
      %4903 = vmatprep.subr.mxu0 0.0
      %4904 = vmatpush1.msra.mxu0 0.0
      %4905 = vmatprep.subr.mxu0 0.0
      %4906 = vmatpush1.msra.mxu0 0.0
      %4907 = vmatprep.subr.mxu0 0.0
      %4908 = vmatpush1.msra.mxu0 0.0
      %4909 = vmatprep.subr.mxu0 0.0
      %4910 = vmatpush1.msra.mxu0 0.0
      %4911 = vmatprep.subr.mxu0 0.0
      %4912 = vmatpush1.msra.mxu0 0.0
      %4913 = vmatprep.subr.mxu0 0.0
      %4914 = vmatpush1.msra.mxu0 0.0
      %4915 = vmatprep.subr.mxu0 0.0
      %4916 = vmatpush1.msra.mxu0 0.0
      %4917 = vmatprep.subr.mxu0 0.0
      %4918 = vmatpush1.msra.mxu0 0.0
      %4919 = vmatprep.subr.mxu0 0.0
      %4920 = vmatpush1.msra.mxu0 0.0
      %4921 = vmatprep.subr.mxu0 0.0
      %4922 = vmatpush1.msra.mxu0 0.0
      %4923 = vmatprep.subr.mxu0 0.0
      %4924 = vmatpush1.msra.mxu0 0.0
      %4925 = vmatprep.subr.mxu0 0.0
      %4926 = vmatpush1.msra.mxu0 0.0
      %4927 = vmatprep.subr.mxu0 0.0
      %4928 = vmatpush1.msra.mxu0 %v4869
      %4929 = vmatprep.subr.mxu0 0.0
      %4930 = vmatpush1.msra.mxu0 %v4868
      %4931 = vmatprep.subr.mxu0 0.0
      %4932 = vmatpush2.msra.mxu0 0.0
      %4933 = vmatprep.subr.mxu0 0.0
      %4934 = vmatpush2.msra.mxu0 0.0
      %4935 = vmatprep.subr.mxu0 0.0
      %4936 = vmatpush2.msra.mxu0 0.0
      %4937 = vmatprep.subr.mxu0 0.0
      %4938 = vmatpush2.msra.mxu0 0.0
      %4939 = vmatprep.subr.mxu0 0.0
      %4940 = vmatpush2.msra.mxu0 0.0
      %4941 = vmatprep.subr.mxu0 0.0
      %4942 = vmatpush2.msra.mxu0 0.0
      %4943 = vmatprep.subr.mxu0 0.0
      %4944 = vmatpush2.msra.mxu0 0.0
      %4945 = vmatprep.subr.mxu0 0.0
      %4946 = vmatpush2.msra.mxu0 0.0
      %4947 = vmatprep.subr.mxu0 0.0
      %4948 = vmatpush2.msra.mxu0 0.0
      %4949 = vmatprep.subr.mxu0 0.0
      %4950 = vmatpush2.msra.mxu0 0.0
      %4951 = vmatprep.subr.mxu0 0.0
      %4952 = vmatpush2.msra.mxu0 0.0
      %4953 = vmatprep.subr.mxu0 0.0
      %4954 = vmatpush2.msra.mxu0 0.0
      %4955 = vmatprep.subr.mxu0 0.0
      %4956 = vmatpush2.msra.mxu0 0.0
      %4957 = vmatprep.subr.mxu0 0.0
      %4958 = vmatpush2.msra.mxu0 0.0
      %4959 = vmatprep.subr.mxu0 0.0
      %4960 = vmatpush2.msra.mxu0 0.0
      %4961 = vmatprep.subr.mxu0 0.0
      %4962 = vmatpush2.msra.mxu0 0.0
      %4963 = vmatprep.mubr.f32.mxu0 0.0
      %4964 = vmatmul.mubr.f32.gmra.mxu0 %v4885
      %v4965 = vpop.f32.mrf.mxu0
      %v4966 = vadd.f32 0.0, %v4965
      %v4967 = vpop.f32.mrf.mxu0
      %4968 = vmatprep.mubr.f32.mxu0 0.0
      %4969 = vmatmul.mubr.f32.gmra.mxu0 %v4887
      %v4970 = vpop.f32.mrf.mxu0
      %v4971 = vadd.f32 0.0, %v4970
      %v4972 = vpop.f32.mrf.mxu0
      %4973 = vmatprep.mubr.f32.mxu0 0.0
      %4974 = vmatmul.mubr.f32.gmra.mxu0 %v4889
      %v4975 = vpop.f32.mrf.mxu0
      %v4976 = vadd.f32 0.0, %v4975
      %v4977 = vpop.f32.mrf.mxu0
      %4978 = vmatprep.mubr.f32.mxu0 0.0
      %4979 = vmatmul.mubr.f32.gmra.mxu0 %v4891
      %v4980 = vpop.f32.mrf.mxu0
      %v4981 = vadd.f32 0.0, %v4980
      %v4982 = vpop.f32.mrf.mxu0
      %4983 = vmatprep.mubr.f32.mxu0 0.0
      %4984 = vmatmul.mubr.f32.gmra.mxu0 %v4893
      %v4985 = vpop.f32.mrf.mxu0
      %v4986 = vadd.f32 0.0, %v4985
      %v4987 = vpop.f32.mrf.mxu0
      %4988 = vmatprep.mubr.f32.mxu0 0.0
      %4989 = vmatmul.mubr.f32.gmra.mxu0 %v4895
      %v4990 = vpop.f32.mrf.mxu0
      %v4991 = vadd.f32 0.0, %v4990
      %v4992 = vpop.f32.mrf.mxu0
      %4993 = vmatprep.mubr.f32.mxu0 0.0
      %4994 = vmatmul.mubr.f32.gmra.mxu0 %v4897
      %v4995 = vpop.f32.mrf.mxu0
      %v4996 = vadd.f32 0.0, %v4995
      %v4997 = vpop.f32.mrf.mxu0
      %4998 = vdwg.mxu0
      %v4999 = vadd.f32 %v4861, %v4966
      %v5000 = vadd.f32 %v4862, %v4971
      %v5001 = vadd.f32 %v4863, %v4976
      %v5002 = vadd.f32 %v4864, %v4981
      %v5003 = vadd.f32 %v4865, %v4986
      %v5004 = vadd.f32 %v4866, %v4991
      %v5005 = vadd.f32 %v4867, %v4996
      %v5006 = vld [vmem:[%s1936] sm:$0xff]
      %v5007 = vld [vmem:[%s1936 + $0x8] sm:$0xff]
      %v5008 = vsel %vm764, %v3927, 0
      %5010 = vmatprep.subr.mxu0 0.0
      %5011 = vmatpush1.msra.mxu0 0.0
      %5012 = vmatprep.subr.mxu0 0.0
      %5013 = vmatpush1.msra.mxu0 0.0
      %5014 = vmatprep.subr.mxu0 0.0
      %5015 = vmatpush1.msra.mxu0 0.0
      %5016 = vmatprep.subr.mxu0 0.0
      %5017 = vmatpush1.msra.mxu0 0.0
      %5018 = vmatprep.subr.mxu0 0.0
      %5019 = vmatpush1.msra.mxu0 0.0
      %5020 = vmatprep.subr.mxu0 0.0
      %5021 = vmatpush1.msra.mxu0 0.0
      %5022 = vmatprep.subr.mxu0 0.0
      %5023 = vmatpush1.msra.mxu0 0.0
      %5024 = vmatprep.subr.mxu0 0.0
      %5025 = vmatpush1.msra.mxu0 0.0
      %5026 = vmatprep.subr.mxu0 0.0
      %5027 = vmatpush1.msra.mxu0 0.0
      %5028 = vmatprep.subr.mxu0 0.0
      %5029 = vmatpush1.msra.mxu0 0.0
      %5030 = vmatprep.subr.mxu0 0.0
      %5031 = vmatpush1.msra.mxu0 0.0
      %5032 = vmatprep.subr.mxu0 0.0
      %5033 = vmatpush1.msra.mxu0 0.0
      %5034 = vmatprep.subr.mxu0 0.0
      %5035 = vmatpush1.msra.mxu0 0.0
      %5036 = vmatprep.subr.mxu0 0.0
      %5037 = vmatpush1.msra.mxu0 0.0
      %5038 = vmatprep.subr.mxu0 0.0
      %5039 = vmatpush1.msra.mxu0 %v5007
      %5040 = vmatprep.subr.mxu0 0.0
      %5041 = vmatpush1.msra.mxu0 %v5006
      %5042 = vmatprep.subr.mxu0 0.0
      %5043 = vmatpush2.msra.mxu0 0.0
      %5044 = vmatprep.subr.mxu0 0.0
      %5045 = vmatpush2.msra.mxu0 0.0
      %5046 = vmatprep.subr.mxu0 0.0
      %5047 = vmatpush2.msra.mxu0 0.0
      %5048 = vmatprep.subr.mxu0 0.0
      %5049 = vmatpush2.msra.mxu0 0.0
      %5050 = vmatprep.subr.mxu0 0.0
      %5051 = vmatpush2.msra.mxu0 0.0
      %5052 = vmatprep.subr.mxu0 0.0
      %5053 = vmatpush2.msra.mxu0 0.0
      %5054 = vmatprep.subr.mxu0 0.0
      %5055 = vmatpush2.msra.mxu0 0.0
      %5056 = vmatprep.subr.mxu0 0.0
      %5057 = vmatpush2.msra.mxu0 0.0
      %5058 = vmatprep.subr.mxu0 0.0
      %5059 = vmatpush2.msra.mxu0 0.0
      %5060 = vmatprep.subr.mxu0 0.0
      %5061 = vmatpush2.msra.mxu0 0.0
      %5062 = vmatprep.subr.mxu0 0.0
      %5063 = vmatpush2.msra.mxu0 0.0
      %5064 = vmatprep.subr.mxu0 0.0
      %5065 = vmatpush2.msra.mxu0 0.0
      %5066 = vmatprep.subr.mxu0 0.0
      %5067 = vmatpush2.msra.mxu0 0.0
      %5068 = vmatprep.subr.mxu0 0.0
      %5069 = vmatpush2.msra.mxu0 0.0
      %5070 = vmatprep.subr.mxu0 0.0
      %5071 = vmatpush2.msra.mxu0 0.0
      %5072 = vmatprep.subr.mxu0 0.0
      %5073 = vmatpush2.msra.mxu0 0.0
      %5074 = vmatprep.mubr.f32.mxu0 0.0
      %5075 = vmatmul.mubr.f32.gmra.mxu0 %v4069
      %v5076 = vpop.f32.mrf.mxu0
      %v5077 = vadd.f32 0.0, %v5076
      %v5078 = vpop.f32.mrf.mxu0
      %5079 = vmatprep.mubr.f32.mxu0 0.0
      %5080 = vmatmul.mubr.f32.gmra.mxu0 %v4071
      %v5081 = vpop.f32.mrf.mxu0
      %v5082 = vadd.f32 0.0, %v5081
      %v5083 = vpop.f32.mrf.mxu0
      %5084 = vmatprep.mubr.f32.mxu0 0.0
      %5085 = vmatmul.mubr.f32.gmra.mxu0 %v4073
      %v5086 = vpop.f32.mrf.mxu0
      %v5087 = vadd.f32 0.0, %v5086
      %v5088 = vpop.f32.mrf.mxu0
      %5089 = vmatprep.mubr.f32.mxu0 0.0
      %5090 = vmatmul.mubr.f32.gmra.mxu0 %v4075
      %v5091 = vpop.f32.mrf.mxu0
      %v5092 = vadd.f32 0.0, %v5091
      %v5093 = vpop.f32.mrf.mxu0
      %5094 = vmatprep.mubr.f32.mxu0 0.0
      %5095 = vmatmul.mubr.f32.gmra.mxu0 %v4077
      %v5096 = vpop.f32.mrf.mxu0
      %v5097 = vadd.f32 0.0, %v5096
      %v5098 = vpop.f32.mrf.mxu0
      %5099 = vmatprep.mubr.f32.mxu0 0.0
      %5100 = vmatmul.mubr.f32.gmra.mxu0 %v4079
      %v5101 = vpop.f32.mrf.mxu0
      %v5102 = vadd.f32 0.0, %v5101
      %v5103 = vpop.f32.mrf.mxu0
      %5104 = vmatprep.mubr.f32.mxu0 0.0
      %5105 = vmatmul.mubr.f32.gmra.mxu0 %v5008
      %v5106 = vpop.f32.mrf.mxu0
      %v5107 = vadd.f32 0.0, %v5106
      %v5108 = vpop.f32.mrf.mxu0
      %5109 = vdwg.mxu0
      %v5110 = vadd.f32 %v4999, %v5077
      %v5111 = vadd.f32 %v5000, %v5082
      %v5112 = vadd.f32 %v5001, %v5087
      %v5113 = vadd.f32 %v5002, %v5092
      %v5114 = vadd.f32 %v5003, %v5097
      %v5115 = vadd.f32 %v5004, %v5102
      %v5116 = vadd.f32 %v5005, %v5107
      %v5117 = vld [vmem:[%s2048] sm:$0xff]
      %v5118 = vld [vmem:[%s2048 + $0x8] sm:$0xff]
      %v5119 = vrot.slane %v3927, 1
      %v5120 = vsel %vm857, %v3951, %v5119
      %v5121 = vsel %vm764, %v5120, 0
      %v5123 = vsel %vm764, %v5119, 0
      %5125 = vmatprep.subr.mxu0 0.0
      %5126 = vmatpush1.msra.mxu0 0.0
      %5127 = vmatprep.subr.mxu0 0.0
      %5128 = vmatpush1.msra.mxu0 0.0
      %5129 = vmatprep.subr.mxu0 0.0
      %5130 = vmatpush1.msra.mxu0 0.0
      %5131 = vmatprep.subr.mxu0 0.0
      %5132 = vmatpush1.msra.mxu0 0.0
      %5133 = vmatprep.subr.mxu0 0.0
      %5134 = vmatpush1.msra.mxu0 0.0
      %5135 = vmatprep.subr.mxu0 0.0
      %5136 = vmatpush1.msra.mxu0 0.0
      %5137 = vmatprep.subr.mxu0 0.0
      %5138 = vmatpush1.msra.mxu0 0.0
      %5139 = vmatprep.subr.mxu0 0.0
      %5140 = vmatpush1.msra.mxu0 0.0
      %5141 = vmatprep.subr.mxu0 0.0
      %5142 = vmatpush1.msra.mxu0 0.0
      %5143 = vmatprep.subr.mxu0 0.0
      %5144 = vmatpush1.msra.mxu0 0.0
      %5145 = vmatprep.subr.mxu0 0.0
      %5146 = vmatpush1.msra.mxu0 0.0
      %5147 = vmatprep.subr.mxu0 0.0
      %5148 = vmatpush1.msra.mxu0 0.0
      %5149 = vmatprep.subr.mxu0 0.0
      %5150 = vmatpush1.msra.mxu0 0.0
      %5151 = vmatprep.subr.mxu0 0.0
      %5152 = vmatpush1.msra.mxu0 0.0
      %5153 = vmatprep.subr.mxu0 0.0
      %5154 = vmatpush1.msra.mxu0 %v5118
      %5155 = vmatprep.subr.mxu0 0.0
      %5156 = vmatpush1.msra.mxu0 %v5117
      %5157 = vmatprep.subr.mxu0 0.0
      %5158 = vmatpush2.msra.mxu0 0.0
      %5159 = vmatprep.subr.mxu0 0.0
      %5160 = vmatpush2.msra.mxu0 0.0
      %5161 = vmatprep.subr.mxu0 0.0
      %5162 = vmatpush2.msra.mxu0 0.0
      %5163 = vmatprep.subr.mxu0 0.0
      %5164 = vmatpush2.msra.mxu0 0.0
      %5165 = vmatprep.subr.mxu0 0.0
      %5166 = vmatpush2.msra.mxu0 0.0
      %5167 = vmatprep.subr.mxu0 0.0
      %5168 = vmatpush2.msra.mxu0 0.0
      %5169 = vmatprep.subr.mxu0 0.0
      %5170 = vmatpush2.msra.mxu0 0.0
      %5171 = vmatprep.subr.mxu0 0.0
      %5172 = vmatpush2.msra.mxu0 0.0
      %5173 = vmatprep.subr.mxu0 0.0
      %5174 = vmatpush2.msra.mxu0 0.0
      %5175 = vmatprep.subr.mxu0 0.0
      %5176 = vmatpush2.msra.mxu0 0.0
      %5177 = vmatprep.subr.mxu0 0.0
      %5178 = vmatpush2.msra.mxu0 0.0
      %5179 = vmatprep.subr.mxu0 0.0
      %5180 = vmatpush2.msra.mxu0 0.0
      %5181 = vmatprep.subr.mxu0 0.0
      %5182 = vmatpush2.msra.mxu0 0.0
      %5183 = vmatprep.subr.mxu0 0.0
      %5184 = vmatpush2.msra.mxu0 0.0
      %5185 = vmatprep.subr.mxu0 0.0
      %5186 = vmatpush2.msra.mxu0 0.0
      %5187 = vmatprep.subr.mxu0 0.0
      %5188 = vmatpush2.msra.mxu0 0.0
      %5189 = vmatprep.mubr.f32.mxu0 0.0
      %5190 = vmatmul.mubr.f32.gmra.mxu0 %v3955
      %v5191 = vpop.f32.mrf.mxu0
      %v5192 = vadd.f32 0.0, %v5191
      %v5193 = vpop.f32.mrf.mxu0
      %5194 = vmatprep.mubr.f32.mxu0 0.0
      %5195 = vmatmul.mubr.f32.gmra.mxu0 %v3957
      %v5196 = vpop.f32.mrf.mxu0
      %v5197 = vadd.f32 0.0, %v5196
      %v5198 = vpop.f32.mrf.mxu0
      %5199 = vmatprep.mubr.f32.mxu0 0.0
      %5200 = vmatmul.mubr.f32.gmra.mxu0 %v3959
      %v5201 = vpop.f32.mrf.mxu0
      %v5202 = vadd.f32 0.0, %v5201
      %v5203 = vpop.f32.mrf.mxu0
      %5204 = vmatprep.mubr.f32.mxu0 0.0
      %5205 = vmatmul.mubr.f32.gmra.mxu0 %v3961
      %v5206 = vpop.f32.mrf.mxu0
      %v5207 = vadd.f32 0.0, %v5206
      %v5208 = vpop.f32.mrf.mxu0
      %5209 = vmatprep.mubr.f32.mxu0 0.0
      %5210 = vmatmul.mubr.f32.gmra.mxu0 %v3963
      %v5211 = vpop.f32.mrf.mxu0
      %v5212 = vadd.f32 0.0, %v5211
      %v5213 = vpop.f32.mrf.mxu0
      %5214 = vmatprep.mubr.f32.mxu0 0.0
      %5215 = vmatmul.mubr.f32.gmra.mxu0 %v5121
      %v5216 = vpop.f32.mrf.mxu0
      %v5217 = vadd.f32 0.0, %v5216
      %v5218 = vpop.f32.mrf.mxu0
      %5219 = vmatprep.mubr.f32.mxu0 0.0
      %5220 = vmatmul.mubr.f32.gmra.mxu0 %v5123
      %v5221 = vpop.f32.mrf.mxu0
      %v5222 = vadd.f32 0.0, %v5221
      %v5223 = vpop.f32.mrf.mxu0
      %5224 = vdwg.mxu0
      %v5225 = vadd.f32 %v5110, %v5192
      %v5226 = vadd.f32 %v5111, %v5197
      %v5227 = vadd.f32 %v5112, %v5202
      %v5228 = vadd.f32 %v5113, %v5207
      %v5229 = vadd.f32 %v5114, %v5212
      %v5230 = vadd.f32 %v5115, %v5217
      %v5231 = vadd.f32 %v5116, %v5222
      %v5232 = vld [vmem:[%s2164] sm:$0xff]
      %v5233 = vld [vmem:[%s2164 + $0x8] sm:$0xff]
      %v5234 = vrot.slane %v3927, 2
      %v5235 = vsel %vm1102, %v4194, %v5234
      %v5236 = vsel %vm764, %v5235, 0
      %v5238 = vsel %vm764, %v5234, 0
      %5240 = vmatprep.subr.mxu0 0.0
      %5241 = vmatpush1.msra.mxu0 0.0
      %5242 = vmatprep.subr.mxu0 0.0
      %5243 = vmatpush1.msra.mxu0 0.0
      %5244 = vmatprep.subr.mxu0 0.0
      %5245 = vmatpush1.msra.mxu0 0.0
      %5246 = vmatprep.subr.mxu0 0.0
      %5247 = vmatpush1.msra.mxu0 0.0
      %5248 = vmatprep.subr.mxu0 0.0
      %5249 = vmatpush1.msra.mxu0 0.0
      %5250 = vmatprep.subr.mxu0 0.0
      %5251 = vmatpush1.msra.mxu0 0.0
      %5252 = vmatprep.subr.mxu0 0.0
      %5253 = vmatpush1.msra.mxu0 0.0
      %5254 = vmatprep.subr.mxu0 0.0
      %5255 = vmatpush1.msra.mxu0 0.0
      %5256 = vmatprep.subr.mxu0 0.0
      %5257 = vmatpush1.msra.mxu0 0.0
      %5258 = vmatprep.subr.mxu0 0.0
      %5259 = vmatpush1.msra.mxu0 0.0
      %5260 = vmatprep.subr.mxu0 0.0
      %5261 = vmatpush1.msra.mxu0 0.0
      %5262 = vmatprep.subr.mxu0 0.0
      %5263 = vmatpush1.msra.mxu0 0.0
      %5264 = vmatprep.subr.mxu0 0.0
      %5265 = vmatpush1.msra.mxu0 0.0
      %5266 = vmatprep.subr.mxu0 0.0
      %5267 = vmatpush1.msra.mxu0 0.0
      %5268 = vmatprep.subr.mxu0 0.0
      %5269 = vmatpush1.msra.mxu0 %v5233
      %5270 = vmatprep.subr.mxu0 0.0
      %5271 = vmatpush1.msra.mxu0 %v5232
      %5272 = vmatprep.subr.mxu0 0.0
      %5273 = vmatpush2.msra.mxu0 0.0
      %5274 = vmatprep.subr.mxu0 0.0
      %5275 = vmatpush2.msra.mxu0 0.0
      %5276 = vmatprep.subr.mxu0 0.0
      %5277 = vmatpush2.msra.mxu0 0.0
      %5278 = vmatprep.subr.mxu0 0.0
      %5279 = vmatpush2.msra.mxu0 0.0
      %5280 = vmatprep.subr.mxu0 0.0
      %5281 = vmatpush2.msra.mxu0 0.0
      %5282 = vmatprep.subr.mxu0 0.0
      %5283 = vmatpush2.msra.mxu0 0.0
      %5284 = vmatprep.subr.mxu0 0.0
      %5285 = vmatpush2.msra.mxu0 0.0
      %5286 = vmatprep.subr.mxu0 0.0
      %5287 = vmatpush2.msra.mxu0 0.0
      %5288 = vmatprep.subr.mxu0 0.0
      %5289 = vmatpush2.msra.mxu0 0.0
      %5290 = vmatprep.subr.mxu0 0.0
      %5291 = vmatpush2.msra.mxu0 0.0
      %5292 = vmatprep.subr.mxu0 0.0
      %5293 = vmatpush2.msra.mxu0 0.0
      %5294 = vmatprep.subr.mxu0 0.0
      %5295 = vmatpush2.msra.mxu0 0.0
      %5296 = vmatprep.subr.mxu0 0.0
      %5297 = vmatpush2.msra.mxu0 0.0
      %5298 = vmatprep.subr.mxu0 0.0
      %5299 = vmatpush2.msra.mxu0 0.0
      %5300 = vmatprep.subr.mxu0 0.0
      %5301 = vmatpush2.msra.mxu0 0.0
      %5302 = vmatprep.subr.mxu0 0.0
      %5303 = vmatpush2.msra.mxu0 0.0
      %5304 = vmatprep.mubr.f32.mxu0 0.0
      %5305 = vmatmul.mubr.f32.gmra.mxu0 %v4198
      %v5306 = vpop.f32.mrf.mxu0
      %v5307 = vadd.f32 0.0, %v5306
      %v5308 = vpop.f32.mrf.mxu0
      %5309 = vmatprep.mubr.f32.mxu0 0.0
      %5310 = vmatmul.mubr.f32.gmra.mxu0 %v4200
      %v5311 = vpop.f32.mrf.mxu0
      %v5312 = vadd.f32 0.0, %v5311
      %v5313 = vpop.f32.mrf.mxu0
      %5314 = vmatprep.mubr.f32.mxu0 0.0
      %5315 = vmatmul.mubr.f32.gmra.mxu0 %v4202
      %v5316 = vpop.f32.mrf.mxu0
      %v5317 = vadd.f32 0.0, %v5316
      %v5318 = vpop.f32.mrf.mxu0
      %5319 = vmatprep.mubr.f32.mxu0 0.0
      %5320 = vmatmul.mubr.f32.gmra.mxu0 %v4204
      %v5321 = vpop.f32.mrf.mxu0
      %v5322 = vadd.f32 0.0, %v5321
      %v5323 = vpop.f32.mrf.mxu0
      %5324 = vmatprep.mubr.f32.mxu0 0.0
      %5325 = vmatmul.mubr.f32.gmra.mxu0 %v4206
      %v5326 = vpop.f32.mrf.mxu0
      %v5327 = vadd.f32 0.0, %v5326
      %v5328 = vpop.f32.mrf.mxu0
      %5329 = vmatprep.mubr.f32.mxu0 0.0
      %5330 = vmatmul.mubr.f32.gmra.mxu0 %v5236
      %v5331 = vpop.f32.mrf.mxu0
      %v5332 = vadd.f32 0.0, %v5331
      %v5333 = vpop.f32.mrf.mxu0
      %5334 = vmatprep.mubr.f32.mxu0 0.0
      %5335 = vmatmul.mubr.f32.gmra.mxu0 %v5238
      %v5336 = vpop.f32.mrf.mxu0
      %v5337 = vadd.f32 0.0, %v5336
      %v5338 = vpop.f32.mrf.mxu0
      %5339 = vdwg.mxu0
      %v5340 = vadd.f32 %v5225, %v5307
      %v5341 = vadd.f32 %v5226, %v5312
      %v5342 = vadd.f32 %v5227, %v5317
      %v5343 = vadd.f32 %v5228, %v5322
      %v5344 = vadd.f32 %v5229, %v5327
      %v5345 = vadd.f32 %v5230, %v5332
      %v5346 = vadd.f32 %v5231, %v5337
      %v5347 = vld [vmem:[%s2280] sm:$0xff]
      %v5348 = vld [vmem:[%s2280 + $0x8] sm:$0xff]
      %v5349 = vrot.slane %v3927, 3
      %v5350 = vsel %vm1240, %v4330, %v5349
      %v5351 = vsel %vm764, %v5350, 0
      %v5353 = vsel %vm764, %v5349, 0
      %5355 = vmatprep.subr.mxu0 0.0
      %5356 = vmatpush1.msra.mxu0 0.0
      %5357 = vmatprep.subr.mxu0 0.0
      %5358 = vmatpush1.msra.mxu0 0.0
      %5359 = vmatprep.subr.mxu0 0.0
      %5360 = vmatpush1.msra.mxu0 0.0
      %5361 = vmatprep.subr.mxu0 0.0
      %5362 = vmatpush1.msra.mxu0 0.0
      %5363 = vmatprep.subr.mxu0 0.0
      %5364 = vmatpush1.msra.mxu0 0.0
      %5365 = vmatprep.subr.mxu0 0.0
      %5366 = vmatpush1.msra.mxu0 0.0
      %5367 = vmatprep.subr.mxu0 0.0
      %5368 = vmatpush1.msra.mxu0 0.0
      %5369 = vmatprep.subr.mxu0 0.0
      %5370 = vmatpush1.msra.mxu0 0.0
      %5371 = vmatprep.subr.mxu0 0.0
      %5372 = vmatpush1.msra.mxu0 0.0
      %5373 = vmatprep.subr.mxu0 0.0
      %5374 = vmatpush1.msra.mxu0 0.0
      %5375 = vmatprep.subr.mxu0 0.0
      %5376 = vmatpush1.msra.mxu0 0.0
      %5377 = vmatprep.subr.mxu0 0.0
      %5378 = vmatpush1.msra.mxu0 0.0
      %5379 = vmatprep.subr.mxu0 0.0
      %5380 = vmatpush1.msra.mxu0 0.0
      %5381 = vmatprep.subr.mxu0 0.0
      %5382 = vmatpush1.msra.mxu0 0.0
      %5383 = vmatprep.subr.mxu0 0.0
      %5384 = vmatpush1.msra.mxu0 %v5348
      %5385 = vmatprep.subr.mxu0 0.0
      %5386 = vmatpush1.msra.mxu0 %v5347
      %5387 = vmatprep.subr.mxu0 0.0
      %5388 = vmatpush2.msra.mxu0 0.0
      %5389 = vmatprep.subr.mxu0 0.0
      %5390 = vmatpush2.msra.mxu0 0.0
      %5391 = vmatprep.subr.mxu0 0.0
      %5392 = vmatpush2.msra.mxu0 0.0
      %5393 = vmatprep.subr.mxu0 0.0
      %5394 = vmatpush2.msra.mxu0 0.0
      %5395 = vmatprep.subr.mxu0 0.0
      %5396 = vmatpush2.msra.mxu0 0.0
      %5397 = vmatprep.subr.mxu0 0.0
      %5398 = vmatpush2.msra.mxu0 0.0
      %5399 = vmatprep.subr.mxu0 0.0
      %5400 = vmatpush2.msra.mxu0 0.0
      %5401 = vmatprep.subr.mxu0 0.0
      %5402 = vmatpush2.msra.mxu0 0.0
      %5403 = vmatprep.subr.mxu0 0.0
      %5404 = vmatpush2.msra.mxu0 0.0
      %5405 = vmatprep.subr.mxu0 0.0
      %5406 = vmatpush2.msra.mxu0 0.0
      %5407 = vmatprep.subr.mxu0 0.0
      %5408 = vmatpush2.msra.mxu0 0.0
      %5409 = vmatprep.subr.mxu0 0.0
      %5410 = vmatpush2.msra.mxu0 0.0
      %5411 = vmatprep.subr.mxu0 0.0
      %5412 = vmatpush2.msra.mxu0 0.0
      %5413 = vmatprep.subr.mxu0 0.0
      %5414 = vmatpush2.msra.mxu0 0.0
      %5415 = vmatprep.subr.mxu0 0.0
      %5416 = vmatpush2.msra.mxu0 0.0
      %5417 = vmatprep.subr.mxu0 0.0
      %5418 = vmatpush2.msra.mxu0 0.0
      %5419 = vmatprep.mubr.f32.mxu0 0.0
      %5420 = vmatmul.mubr.f32.gmra.mxu0 %v4334
      %v5421 = vpop.f32.mrf.mxu0
      %v5422 = vadd.f32 0.0, %v5421
      %v5423 = vpop.f32.mrf.mxu0
      %5424 = vmatprep.mubr.f32.mxu0 0.0
      %5425 = vmatmul.mubr.f32.gmra.mxu0 %v4336
      %v5426 = vpop.f32.mrf.mxu0
      %v5427 = vadd.f32 0.0, %v5426
      %v5428 = vpop.f32.mrf.mxu0
      %5429 = vmatprep.mubr.f32.mxu0 0.0
      %5430 = vmatmul.mubr.f32.gmra.mxu0 %v4338
      %v5431 = vpop.f32.mrf.mxu0
      %v5432 = vadd.f32 0.0, %v5431
      %v5433 = vpop.f32.mrf.mxu0
      %5434 = vmatprep.mubr.f32.mxu0 0.0
      %5435 = vmatmul.mubr.f32.gmra.mxu0 %v4340
      %v5436 = vpop.f32.mrf.mxu0
      %v5437 = vadd.f32 0.0, %v5436
      %v5438 = vpop.f32.mrf.mxu0
      %5439 = vmatprep.mubr.f32.mxu0 0.0
      %5440 = vmatmul.mubr.f32.gmra.mxu0 %v4342
      %v5441 = vpop.f32.mrf.mxu0
      %v5442 = vadd.f32 0.0, %v5441
      %v5443 = vpop.f32.mrf.mxu0
      %5444 = vmatprep.mubr.f32.mxu0 0.0
      %5445 = vmatmul.mubr.f32.gmra.mxu0 %v5351
      %v5446 = vpop.f32.mrf.mxu0
      %v5447 = vadd.f32 0.0, %v5446
      %v5448 = vpop.f32.mrf.mxu0
      %5449 = vmatprep.mubr.f32.mxu0 0.0
      %5450 = vmatmul.mubr.f32.gmra.mxu0 %v5353
      %v5451 = vpop.f32.mrf.mxu0
      %v5452 = vadd.f32 0.0, %v5451
      %v5453 = vpop.f32.mrf.mxu0
      %5454 = vdwg.mxu0
      %v5455 = vadd.f32 %v5340, %v5422
      %v5456 = vadd.f32 %v5341, %v5427
      %v5457 = vadd.f32 %v5342, %v5432
      %v5458 = vadd.f32 %v5343, %v5437
      %v5459 = vadd.f32 %v5344, %v5442
      %v5460 = vadd.f32 %v5345, %v5447
      %v5461 = vadd.f32 %v5346, %v5452
      %v5462 = vld [vmem:[%s2396] sm:$0xff]
      %v5463 = vld [vmem:[%s2396 + $0x8] sm:$0xff]
      %v5465 = vrot.slane %v3928, 4
      %v5466 = vsel %vm1379, %v4469, %v5465
      %v5467 = vsel %vm764, %v5466, 0
      %5469 = vmatprep.subr.mxu0 0.0
      %5470 = vmatpush1.msra.mxu0 0.0
      %5471 = vmatprep.subr.mxu0 0.0
      %5472 = vmatpush1.msra.mxu0 0.0
      %5473 = vmatprep.subr.mxu0 0.0
      %5474 = vmatpush1.msra.mxu0 0.0
      %5475 = vmatprep.subr.mxu0 0.0
      %5476 = vmatpush1.msra.mxu0 0.0
      %5477 = vmatprep.subr.mxu0 0.0
      %5478 = vmatpush1.msra.mxu0 0.0
      %5479 = vmatprep.subr.mxu0 0.0
      %5480 = vmatpush1.msra.mxu0 0.0
      %5481 = vmatprep.subr.mxu0 0.0
      %5482 = vmatpush1.msra.mxu0 0.0
      %5483 = vmatprep.subr.mxu0 0.0
      %5484 = vmatpush1.msra.mxu0 0.0
      %5485 = vmatprep.subr.mxu0 0.0
      %5486 = vmatpush1.msra.mxu0 0.0
      %5487 = vmatprep.subr.mxu0 0.0
      %5488 = vmatpush1.msra.mxu0 0.0
      %5489 = vmatprep.subr.mxu0 0.0
      %5490 = vmatpush1.msra.mxu0 0.0
      %5491 = vmatprep.subr.mxu0 0.0
      %5492 = vmatpush1.msra.mxu0 0.0
      %5493 = vmatprep.subr.mxu0 0.0
      %5494 = vmatpush1.msra.mxu0 0.0
      %5495 = vmatprep.subr.mxu0 0.0
      %5496 = vmatpush1.msra.mxu0 0.0
      %5497 = vmatprep.subr.mxu0 0.0
      %5498 = vmatpush1.msra.mxu0 %v5463
      %5499 = vmatprep.subr.mxu0 0.0
      %5500 = vmatpush1.msra.mxu0 %v5462
      %5501 = vmatprep.subr.mxu0 0.0
      %5502 = vmatpush2.msra.mxu0 0.0
      %5503 = vmatprep.subr.mxu0 0.0
      %5504 = vmatpush2.msra.mxu0 0.0
      %5505 = vmatprep.subr.mxu0 0.0
      %5506 = vmatpush2.msra.mxu0 0.0
      %5507 = vmatprep.subr.mxu0 0.0
      %5508 = vmatpush2.msra.mxu0 0.0
      %5509 = vmatprep.subr.mxu0 0.0
      %5510 = vmatpush2.msra.mxu0 0.0
      %5511 = vmatprep.subr.mxu0 0.0
      %5512 = vmatpush2.msra.mxu0 0.0
      %5513 = vmatprep.subr.mxu0 0.0
      %5514 = vmatpush2.msra.mxu0 0.0
      %5515 = vmatprep.subr.mxu0 0.0
      %5516 = vmatpush2.msra.mxu0 0.0
      %5517 = vmatprep.subr.mxu0 0.0
      %5518 = vmatpush2.msra.mxu0 0.0
      %5519 = vmatprep.subr.mxu0 0.0
      %5520 = vmatpush2.msra.mxu0 0.0
      %5521 = vmatprep.subr.mxu0 0.0
      %5522 = vmatpush2.msra.mxu0 0.0
      %5523 = vmatprep.subr.mxu0 0.0
      %5524 = vmatpush2.msra.mxu0 0.0
      %5525 = vmatprep.subr.mxu0 0.0
      %5526 = vmatpush2.msra.mxu0 0.0
      %5527 = vmatprep.subr.mxu0 0.0
      %5528 = vmatpush2.msra.mxu0 0.0
      %5529 = vmatprep.subr.mxu0 0.0
      %5530 = vmatpush2.msra.mxu0 0.0
      %5531 = vmatprep.subr.mxu0 0.0
      %5532 = vmatpush2.msra.mxu0 0.0
      %5533 = vmatprep.mubr.f32.mxu0 0.0
      %5534 = vmatmul.mubr.f32.gmra.mxu0 %v4473
      %v5535 = vpop.f32.mrf.mxu0
      %v5536 = vadd.f32 0.0, %v5535
      %v5537 = vpop.f32.mrf.mxu0
      %5538 = vmatprep.mubr.f32.mxu0 0.0
      %5539 = vmatmul.mubr.f32.gmra.mxu0 %v4475
      %v5540 = vpop.f32.mrf.mxu0
      %v5541 = vadd.f32 0.0, %v5540
      %v5542 = vpop.f32.mrf.mxu0
      %5543 = vmatprep.mubr.f32.mxu0 0.0
      %5544 = vmatmul.mubr.f32.gmra.mxu0 %v4477
      %v5545 = vpop.f32.mrf.mxu0
      %v5546 = vadd.f32 0.0, %v5545
      %v5547 = vpop.f32.mrf.mxu0
      %5548 = vmatprep.mubr.f32.mxu0 0.0
      %5549 = vmatmul.mubr.f32.gmra.mxu0 %v4479
      %v5550 = vpop.f32.mrf.mxu0
      %v5551 = vadd.f32 0.0, %v5550
      %v5552 = vpop.f32.mrf.mxu0
      %5553 = vmatprep.mubr.f32.mxu0 0.0
      %5554 = vmatmul.mubr.f32.gmra.mxu0 %v4481
      %v5555 = vpop.f32.mrf.mxu0
      %v5556 = vadd.f32 0.0, %v5555
      %v5557 = vpop.f32.mrf.mxu0
      %5558 = vmatprep.mubr.f32.mxu0 0.0
      %5559 = vmatmul.mubr.f32.gmra.mxu0 %v4483
      %v5560 = vpop.f32.mrf.mxu0
      %v5561 = vadd.f32 0.0, %v5560
      %v5562 = vpop.f32.mrf.mxu0
      %5563 = vmatprep.mubr.f32.mxu0 0.0
      %5564 = vmatmul.mubr.f32.gmra.mxu0 %v5467
      %v5565 = vpop.f32.mrf.mxu0
      %v5566 = vadd.f32 0.0, %v5565
      %v5567 = vpop.f32.mrf.mxu0
      %5568 = vdwg.mxu0
      %v5569 = vadd.f32 %v5455, %v5536
      %v5570 = vadd.f32 %v5456, %v5541
      %v5571 = vadd.f32 %v5457, %v5546
      %v5572 = vadd.f32 %v5458, %v5551
      %v5573 = vadd.f32 %v5459, %v5556
      %v5574 = vadd.f32 %v5460, %v5561
      %v5575 = vadd.f32 %v5461, %v5566
      %v5576 = vld [vmem:[%s2511] sm:$0xff]
      %v5577 = vld [vmem:[%s2511 + $0x8] sm:$0xff]
      %v5578 = vrot.slane %v3928, 5
      %v5579 = vsel %vm1519, %v4607, %v5578
      %v5580 = vsel %vm764, %v5579, 0
      %5582 = vmatprep.subr.mxu0 0.0
      %5583 = vmatpush1.msra.mxu0 0.0
      %5584 = vmatprep.subr.mxu0 0.0
      %5585 = vmatpush1.msra.mxu0 0.0
      %5586 = vmatprep.subr.mxu0 0.0
      %5587 = vmatpush1.msra.mxu0 0.0
      %5588 = vmatprep.subr.mxu0 0.0
      %5589 = vmatpush1.msra.mxu0 0.0
      %5590 = vmatprep.subr.mxu0 0.0
      %5591 = vmatpush1.msra.mxu0 0.0
      %5592 = vmatprep.subr.mxu0 0.0
      %5593 = vmatpush1.msra.mxu0 0.0
      %5594 = vmatprep.subr.mxu0 0.0
      %5595 = vmatpush1.msra.mxu0 0.0
      %5596 = vmatprep.subr.mxu0 0.0
      %5597 = vmatpush1.msra.mxu0 0.0
      %5598 = vmatprep.subr.mxu0 0.0
      %5599 = vmatpush1.msra.mxu0 0.0
      %5600 = vmatprep.subr.mxu0 0.0
      %5601 = vmatpush1.msra.mxu0 0.0
      %5602 = vmatprep.subr.mxu0 0.0
      %5603 = vmatpush1.msra.mxu0 0.0
      %5604 = vmatprep.subr.mxu0 0.0
      %5605 = vmatpush1.msra.mxu0 0.0
      %5606 = vmatprep.subr.mxu0 0.0
      %5607 = vmatpush1.msra.mxu0 0.0
      %5608 = vmatprep.subr.mxu0 0.0
      %5609 = vmatpush1.msra.mxu0 0.0
      %5610 = vmatprep.subr.mxu0 0.0
      %5611 = vmatpush1.msra.mxu0 %v5577
      %5612 = vmatprep.subr.mxu0 0.0
      %5613 = vmatpush1.msra.mxu0 %v5576
      %5614 = vmatprep.subr.mxu0 0.0
      %5615 = vmatpush2.msra.mxu0 0.0
      %5616 = vmatprep.subr.mxu0 0.0
      %5617 = vmatpush2.msra.mxu0 0.0
      %5618 = vmatprep.subr.mxu0 0.0
      %5619 = vmatpush2.msra.mxu0 0.0
      %5620 = vmatprep.subr.mxu0 0.0
      %5621 = vmatpush2.msra.mxu0 0.0
      %5622 = vmatprep.subr.mxu0 0.0
      %5623 = vmatpush2.msra.mxu0 0.0
      %5624 = vmatprep.subr.mxu0 0.0
      %5625 = vmatpush2.msra.mxu0 0.0
      %5626 = vmatprep.subr.mxu0 0.0
      %5627 = vmatpush2.msra.mxu0 0.0
      %5628 = vmatprep.subr.mxu0 0.0
      %5629 = vmatpush2.msra.mxu0 0.0
      %5630 = vmatprep.subr.mxu0 0.0
      %5631 = vmatpush2.msra.mxu0 0.0
      %5632 = vmatprep.subr.mxu0 0.0
      %5633 = vmatpush2.msra.mxu0 0.0
      %5634 = vmatprep.subr.mxu0 0.0
      %5635 = vmatpush2.msra.mxu0 0.0
      %5636 = vmatprep.subr.mxu0 0.0
      %5637 = vmatpush2.msra.mxu0 0.0
      %5638 = vmatprep.subr.mxu0 0.0
      %5639 = vmatpush2.msra.mxu0 0.0
      %5640 = vmatprep.subr.mxu0 0.0
      %5641 = vmatpush2.msra.mxu0 0.0
      %5642 = vmatprep.subr.mxu0 0.0
      %5643 = vmatpush2.msra.mxu0 0.0
      %5644 = vmatprep.subr.mxu0 0.0
      %5645 = vmatpush2.msra.mxu0 0.0
      %5646 = vmatprep.mubr.f32.mxu0 0.0
      %5647 = vmatmul.mubr.f32.gmra.mxu0 %v4611
      %v5648 = vpop.f32.mrf.mxu0
      %v5649 = vadd.f32 0.0, %v5648
      %v5650 = vpop.f32.mrf.mxu0
      %5651 = vmatprep.mubr.f32.mxu0 0.0
      %5652 = vmatmul.mubr.f32.gmra.mxu0 %v4613
      %v5653 = vpop.f32.mrf.mxu0
      %v5654 = vadd.f32 0.0, %v5653
      %v5655 = vpop.f32.mrf.mxu0
      %5656 = vmatprep.mubr.f32.mxu0 0.0
      %5657 = vmatmul.mubr.f32.gmra.mxu0 %v4615
      %v5658 = vpop.f32.mrf.mxu0
      %v5659 = vadd.f32 0.0, %v5658
      %v5660 = vpop.f32.mrf.mxu0
      %5661 = vmatprep.mubr.f32.mxu0 0.0
      %5662 = vmatmul.mubr.f32.gmra.mxu0 %v4617
      %v5663 = vpop.f32.mrf.mxu0
      %v5664 = vadd.f32 0.0, %v5663
      %v5665 = vpop.f32.mrf.mxu0
      %5666 = vmatprep.mubr.f32.mxu0 0.0
      %5667 = vmatmul.mubr.f32.gmra.mxu0 %v4619
      %v5668 = vpop.f32.mrf.mxu0
      %v5669 = vadd.f32 0.0, %v5668
      %v5670 = vpop.f32.mrf.mxu0
      %5671 = vmatprep.mubr.f32.mxu0 0.0
      %5672 = vmatmul.mubr.f32.gmra.mxu0 %v4621
      %v5673 = vpop.f32.mrf.mxu0
      %v5674 = vadd.f32 0.0, %v5673
      %v5675 = vpop.f32.mrf.mxu0
      %5676 = vmatprep.mubr.f32.mxu0 0.0
      %5677 = vmatmul.mubr.f32.gmra.mxu0 %v5580
      %v5678 = vpop.f32.mrf.mxu0
      %v5679 = vadd.f32 0.0, %v5678
      %v5680 = vpop.f32.mrf.mxu0
      %5681 = vdwg.mxu0
      %v5682 = vadd.f32 %v5569, %v5649
      %v5683 = vadd.f32 %v5570, %v5654
      %v5684 = vadd.f32 %v5571, %v5659
      %v5685 = vadd.f32 %v5572, %v5664
      %v5686 = vadd.f32 %v5573, %v5669
      %v5687 = vadd.f32 %v5574, %v5674
      %v5688 = vadd.f32 %v5575, %v5679
      %v5689 = vld [vmem:[%s2625] sm:$0xff]
      %v5690 = vld [vmem:[%s2625 + $0x8] sm:$0xff]
      %v5691 = vrot.slane %v3928, 6
      %v5692 = vsel %vm1659, %v4745, %v5691
      %v5693 = vsel %vm764, %v5692, 0
      %5695 = vmatprep.subr.mxu0 0.0
      %5696 = vmatpush1.msra.mxu0 0.0
      %5697 = vmatprep.subr.mxu0 0.0
      %5698 = vmatpush1.msra.mxu0 0.0
      %5699 = vmatprep.subr.mxu0 0.0
      %5700 = vmatpush1.msra.mxu0 0.0
      %5701 = vmatprep.subr.mxu0 0.0
      %5702 = vmatpush1.msra.mxu0 0.0
      %5703 = vmatprep.subr.mxu0 0.0
      %5704 = vmatpush1.msra.mxu0 0.0
      %5705 = vmatprep.subr.mxu0 0.0
      %5706 = vmatpush1.msra.mxu0 0.0
      %5707 = vmatprep.subr.mxu0 0.0
      %5708 = vmatpush1.msra.mxu0 0.0
      %5709 = vmatprep.subr.mxu0 0.0
      %5710 = vmatpush1.msra.mxu0 0.0
      %5711 = vmatprep.subr.mxu0 0.0
      %5712 = vmatpush1.msra.mxu0 0.0
      %5713 = vmatprep.subr.mxu0 0.0
      %5714 = vmatpush1.msra.mxu0 0.0
      %5715 = vmatprep.subr.mxu0 0.0
      %5716 = vmatpush1.msra.mxu0 0.0
      %5717 = vmatprep.subr.mxu0 0.0
      %5718 = vmatpush1.msra.mxu0 0.0
      %5719 = vmatprep.subr.mxu0 0.0
      %5720 = vmatpush1.msra.mxu0 0.0
      %5721 = vmatprep.subr.mxu0 0.0
      %5722 = vmatpush1.msra.mxu0 0.0
      %5723 = vmatprep.subr.mxu0 0.0
      %5724 = vmatpush1.msra.mxu0 %v5690
      %5725 = vmatprep.subr.mxu0 0.0
      %5726 = vmatpush1.msra.mxu0 %v5689
      %5727 = vmatprep.subr.mxu0 0.0
      %5728 = vmatpush2.msra.mxu0 0.0
      %5729 = vmatprep.subr.mxu0 0.0
      %5730 = vmatpush2.msra.mxu0 0.0
      %5731 = vmatprep.subr.mxu0 0.0
      %5732 = vmatpush2.msra.mxu0 0.0
      %5733 = vmatprep.subr.mxu0 0.0
      %5734 = vmatpush2.msra.mxu0 0.0
      %5735 = vmatprep.subr.mxu0 0.0
      %5736 = vmatpush2.msra.mxu0 0.0
      %5737 = vmatprep.subr.mxu0 0.0
      %5738 = vmatpush2.msra.mxu0 0.0
      %5739 = vmatprep.subr.mxu0 0.0
      %5740 = vmatpush2.msra.mxu0 0.0
      %5741 = vmatprep.subr.mxu0 0.0
      %5742 = vmatpush2.msra.mxu0 0.0
      %5743 = vmatprep.subr.mxu0 0.0
      %5744 = vmatpush2.msra.mxu0 0.0
      %5745 = vmatprep.subr.mxu0 0.0
      %5746 = vmatpush2.msra.mxu0 0.0
      %5747 = vmatprep.subr.mxu0 0.0
      %5748 = vmatpush2.msra.mxu0 0.0
      %5749 = vmatprep.subr.mxu0 0.0
      %5750 = vmatpush2.msra.mxu0 0.0
      %5751 = vmatprep.subr.mxu0 0.0
      %5752 = vmatpush2.msra.mxu0 0.0
      %5753 = vmatprep.subr.mxu0 0.0
      %5754 = vmatpush2.msra.mxu0 0.0
      %5755 = vmatprep.subr.mxu0 0.0
      %5756 = vmatpush2.msra.mxu0 0.0
      %5757 = vmatprep.subr.mxu0 0.0
      %5758 = vmatpush2.msra.mxu0 0.0
      %5759 = vmatprep.mubr.f32.mxu0 0.0
      %5760 = vmatmul.mubr.f32.gmra.mxu0 %v4749
      %v5761 = vpop.f32.mrf.mxu0
      %v5762 = vadd.f32 0.0, %v5761
      %v5763 = vpop.f32.mrf.mxu0
      %5764 = vmatprep.mubr.f32.mxu0 0.0
      %5765 = vmatmul.mubr.f32.gmra.mxu0 %v4751
      %v5766 = vpop.f32.mrf.mxu0
      %v5767 = vadd.f32 0.0, %v5766
      %v5768 = vpop.f32.mrf.mxu0
      %5769 = vmatprep.mubr.f32.mxu0 0.0
      %5770 = vmatmul.mubr.f32.gmra.mxu0 %v4753
      %v5771 = vpop.f32.mrf.mxu0
      %v5772 = vadd.f32 0.0, %v5771
      %v5773 = vpop.f32.mrf.mxu0
      %5774 = vmatprep.mubr.f32.mxu0 0.0
      %5775 = vmatmul.mubr.f32.gmra.mxu0 %v4755
      %v5776 = vpop.f32.mrf.mxu0
      %v5777 = vadd.f32 0.0, %v5776
      %v5778 = vpop.f32.mrf.mxu0
      %5779 = vmatprep.mubr.f32.mxu0 0.0
      %5780 = vmatmul.mubr.f32.gmra.mxu0 %v4757
      %v5781 = vpop.f32.mrf.mxu0
      %v5782 = vadd.f32 0.0, %v5781
      %v5783 = vpop.f32.mrf.mxu0
      %5784 = vmatprep.mubr.f32.mxu0 0.0
      %5785 = vmatmul.mubr.f32.gmra.mxu0 %v4759
      %v5786 = vpop.f32.mrf.mxu0
      %v5787 = vadd.f32 0.0, %v5786
      %v5788 = vpop.f32.mrf.mxu0
      %5789 = vmatprep.mubr.f32.mxu0 0.0
      %5790 = vmatmul.mubr.f32.gmra.mxu0 %v5693
      %v5791 = vpop.f32.mrf.mxu0
      %v5792 = vadd.f32 0.0, %v5791
      %v5793 = vpop.f32.mrf.mxu0
      %5794 = vdwg.mxu0
      %v5795 = vadd.f32 %v5682, %v5762
      %v5796 = vadd.f32 %v5683, %v5767
      %v5797 = vadd.f32 %v5684, %v5772
      %v5798 = vadd.f32 %v5685, %v5777
      %v5799 = vadd.f32 %v5686, %v5782
      %v5800 = vadd.f32 %v5687, %v5787
      %v5801 = vadd.f32 %v5688, %v5792
      %v5802 = vld [vmem:[%s2739] sm:$0xff]
      %v5803 = vld [vmem:[%s2739 + $0x8] sm:$0xff]
      %v5804 = vrot.slane %v3928, 7
      %v5805 = vsel %vm1799, %v4883, %v5804
      %v5806 = vsel %vm764, %v5805, 0
      %5808 = vmatprep.subr.mxu0 0.0
      %5809 = vmatpush1.msra.mxu0 0.0
      %5810 = vmatprep.subr.mxu0 0.0
      %5811 = vmatpush1.msra.mxu0 0.0
      %5812 = vmatprep.subr.mxu0 0.0
      %5813 = vmatpush1.msra.mxu0 0.0
      %5814 = vmatprep.subr.mxu0 0.0
      %5815 = vmatpush1.msra.mxu0 0.0
      %5816 = vmatprep.subr.mxu0 0.0
      %5817 = vmatpush1.msra.mxu0 0.0
      %5818 = vmatprep.subr.mxu0 0.0
      %5819 = vmatpush1.msra.mxu0 0.0
      %5820 = vmatprep.subr.mxu0 0.0
      %5821 = vmatpush1.msra.mxu0 0.0
      %5822 = vmatprep.subr.mxu0 0.0
      %5823 = vmatpush1.msra.mxu0 0.0
      %5824 = vmatprep.subr.mxu0 0.0
      %5825 = vmatpush1.msra.mxu0 0.0
      %5826 = vmatprep.subr.mxu0 0.0
      %5827 = vmatpush1.msra.mxu0 0.0
      %5828 = vmatprep.subr.mxu0 0.0
      %5829 = vmatpush1.msra.mxu0 0.0
      %5830 = vmatprep.subr.mxu0 0.0
      %5831 = vmatpush1.msra.mxu0 0.0
      %5832 = vmatprep.subr.mxu0 0.0
      %5833 = vmatpush1.msra.mxu0 0.0
      %5834 = vmatprep.subr.mxu0 0.0
      %5835 = vmatpush1.msra.mxu0 0.0
      %5836 = vmatprep.subr.mxu0 0.0
      %5837 = vmatpush1.msra.mxu0 %v5803
      %5838 = vmatprep.subr.mxu0 0.0
      %5839 = vmatpush1.msra.mxu0 %v5802
      %5840 = vmatprep.subr.mxu0 0.0
      %5841 = vmatpush2.msra.mxu0 0.0
      %5842 = vmatprep.subr.mxu0 0.0
      %5843 = vmatpush2.msra.mxu0 0.0
      %5844 = vmatprep.subr.mxu0 0.0
      %5845 = vmatpush2.msra.mxu0 0.0
      %5846 = vmatprep.subr.mxu0 0.0
      %5847 = vmatpush2.msra.mxu0 0.0
      %5848 = vmatprep.subr.mxu0 0.0
      %5849 = vmatpush2.msra.mxu0 0.0
      %5850 = vmatprep.subr.mxu0 0.0
      %5851 = vmatpush2.msra.mxu0 0.0
      %5852 = vmatprep.subr.mxu0 0.0
      %5853 = vmatpush2.msra.mxu0 0.0
      %5854 = vmatprep.subr.mxu0 0.0
      %5855 = vmatpush2.msra.mxu0 0.0
      %5856 = vmatprep.subr.mxu0 0.0
      %5857 = vmatpush2.msra.mxu0 0.0
      %5858 = vmatprep.subr.mxu0 0.0
      %5859 = vmatpush2.msra.mxu0 0.0
      %5860 = vmatprep.subr.mxu0 0.0
      %5861 = vmatpush2.msra.mxu0 0.0
      %5862 = vmatprep.subr.mxu0 0.0
      %5863 = vmatpush2.msra.mxu0 0.0
      %5864 = vmatprep.subr.mxu0 0.0
      %5865 = vmatpush2.msra.mxu0 0.0
      %5866 = vmatprep.subr.mxu0 0.0
      %5867 = vmatpush2.msra.mxu0 0.0
      %5868 = vmatprep.subr.mxu0 0.0
      %5869 = vmatpush2.msra.mxu0 0.0
      %5870 = vmatprep.subr.mxu0 0.0
      %5871 = vmatpush2.msra.mxu0 0.0
      %5872 = vmatprep.mubr.f32.mxu0 0.0
      %5873 = vmatmul.mubr.f32.gmra.mxu0 %v4887
      %v5874 = vpop.f32.mrf.mxu0
      %v5875 = vadd.f32 0.0, %v5874
      %v5876 = vpop.f32.mrf.mxu0
      %5877 = vmatprep.mubr.f32.mxu0 0.0
      %5878 = vmatmul.mubr.f32.gmra.mxu0 %v4889
      %v5879 = vpop.f32.mrf.mxu0
      %v5880 = vadd.f32 0.0, %v5879
      %v5881 = vpop.f32.mrf.mxu0
      %5882 = vmatprep.mubr.f32.mxu0 0.0
      %5883 = vmatmul.mubr.f32.gmra.mxu0 %v4891
      %v5884 = vpop.f32.mrf.mxu0
      %v5885 = vadd.f32 0.0, %v5884
      %v5886 = vpop.f32.mrf.mxu0
      %5887 = vmatprep.mubr.f32.mxu0 0.0
      %5888 = vmatmul.mubr.f32.gmra.mxu0 %v4893
      %v5889 = vpop.f32.mrf.mxu0
      %v5890 = vadd.f32 0.0, %v5889
      %v5891 = vpop.f32.mrf.mxu0
      %5892 = vmatprep.mubr.f32.mxu0 0.0
      %5893 = vmatmul.mubr.f32.gmra.mxu0 %v4895
      %v5894 = vpop.f32.mrf.mxu0
      %v5895 = vadd.f32 0.0, %v5894
      %v5896 = vpop.f32.mrf.mxu0
      %5897 = vmatprep.mubr.f32.mxu0 0.0
      %5898 = vmatmul.mubr.f32.gmra.mxu0 %v4897
      %v5899 = vpop.f32.mrf.mxu0
      %v5900 = vadd.f32 0.0, %v5899
      %v5901 = vpop.f32.mrf.mxu0
      %5902 = vmatprep.mubr.f32.mxu0 0.0
      %5903 = vmatmul.mubr.f32.gmra.mxu0 %v5806
      %v5904 = vpop.f32.mrf.mxu0
      %v5905 = vadd.f32 0.0, %v5904
      %v5906 = vpop.f32.mrf.mxu0
      %5907 = vdwg.mxu0
      %v5908 = vadd.f32 %v5795, %v5875
      %v5909 = vadd.f32 %v5796, %v5880
      %v5910 = vadd.f32 %v5797, %v5885
      %v5911 = vadd.f32 %v5798, %v5890
      %v5912 = vadd.f32 %v5799, %v5895
      %v5913 = vadd.f32 %v5800, %v5900
      %v5914 = vadd.f32 %v5801, %v5905
      %v5915 = vld [vmem:[%s4] sm:$0x1]
      %v5917 = vlaneseq
      %v5918 = vshrl.u32 %v5917, 7
      %v5919 = vsub.s32 0, %v5918
      %v5920 = vrot.slane %v5915, %v5919
      %v5922 = vadd.f32 %v5908, %v5920
      %v5923 = vadd.f32 %v5909, %v5920
      %v5924 = vadd.f32 %v5910, %v5920
      %v5925 = vadd.f32 %v5911, %v5920
      %v5926 = vadd.f32 %v5912, %v5920
      %v5927 = vadd.f32 %v5913, %v5920
      %v5928 = vadd.f32 %v5914, %v5920
      %v5929 = vmax.f32 %v5922, 0.0
      %v5930 = vmax.f32 %v5923, 0.0
      %v5931 = vmax.f32 %v5924, 0.0
      %v5932 = vmax.f32 %v5925, 0.0
      %v5933 = vmax.f32 %v5926, 0.0
      %v5934 = vmax.f32 %v5927, 0.0
      %v5935 = vmax.f32 %v5928, 0.0
      %5936 = vst.msk [vmem:[#allocation3] sm:$0xff] %vm2874, %v5929
      %5937 = vst.msk [vmem:[#allocation3 + $0x8] sm:$0xff] %vm2874, %v5930
      %5938 = vst.msk [vmem:[#allocation3 + $0x10] sm:$0xff] %vm2874, %v5931
      %5939 = vst.msk [vmem:[#allocation3 + $0x18] sm:$0xff] %vm2874, %v5932
      %5940 = vst.msk [vmem:[#allocation3 + $0x20] sm:$0xff] %vm2874, %v5933
      %5941 = vst.msk [vmem:[#allocation3 + $0x28] sm:$0xff] %vm2874, %v5934
      %5942 = vst.msk [vmem:[#allocation3 + $0x30] sm:$0x1f] %vm2881, %v5935
      %v5943 = vld [vmem:[#allocation3] ss:$2 sm:$0xff]
      %v5944 = vld [vmem:[%s2884] ss:$2 sm:$0xff]
      %v5945 = vld [vmem:[%s2886] ss:$2 sm:$0xff]
      %v5946 = vld [vmem:[%s2888] ss:$2 sm:$0x3]
      %v5947 = vld [vmem:[%s2890] ss:$2 sm:$0xff]
      %v5948 = vld [vmem:[%s2892] ss:$2 sm:$0xff]
      %v5949 = vld [vmem:[%s2894] ss:$2 sm:$0xff]
      %v5950 = vld [vmem:[%s2896] ss:$2 sm:$0x3]
      %v5951 = vmax.f32 %v5943, %v5947
      %v5952 = vmax.f32 %v5944, %v5948
      %v5953 = vmax.f32 %v5945, %v5949
      %v5954 = vmax.f32 %v5946, %v5950
      %v5955 = vld [vmem:[%s5] sm:$0xff]
      %v5956 = vld [vmem:[%s5 + $0x8] sm:$0xff]
      %v5957 = vld [vmem:[%s5 + $0x10] sm:$0xff]
      %v5958 = vld [vmem:[%s5 + $0x18] sm:$0xff]
      %v5959 = vld [vmem:[%s2906] sm:$0xff]
      %v5960 = vld [vmem:[%s2906 + $0x8] sm:$0xff]
      %v5961 = vld [vmem:[%s2906 + $0x10] sm:$0xff]
      %v5962 = vld [vmem:[%s2906 + $0x18] sm:$0xff]
      %v5966 = vrot.slane %v5951, 1
      %v5967 = vrot.slane %v5952, 1
      %v5968 = vsel %vm857, %v5966, %v5967
      %v5969 = vrot.slane %v5953, 1
      %v5970 = vsel %vm857, %v5967, %v5969
      %v5971 = vsel %vm2874, %v5968, 0
      %v5973 = vsel %vm2874, %v5970, 0
      %v5975 = vsel %vm2874, %v5969, 0
      %5977 = vmatprep.subr.mxu0 0.0
      %5978 = vmatpush1.msra.mxu0 0.0
      %5979 = vmatprep.subr.mxu0 0.0
      %5980 = vmatpush1.msra.mxu0 0.0
      %5981 = vmatprep.subr.mxu0 0.0
      %5982 = vmatpush1.msra.mxu0 0.0
      %5983 = vmatprep.subr.mxu0 0.0
      %5984 = vmatpush1.msra.mxu0 0.0
      %5985 = vmatprep.subr.mxu0 0.0
      %5986 = vmatpush1.msra.mxu0 0.0
      %5987 = vmatprep.subr.mxu0 0.0
      %5988 = vmatpush1.msra.mxu0 0.0
      %5989 = vmatprep.subr.mxu0 0.0
      %5990 = vmatpush1.msra.mxu0 0.0
      %5991 = vmatprep.subr.mxu0 0.0
      %5992 = vmatpush1.msra.mxu0 0.0
      %5993 = vmatprep.subr.mxu0 0.0
      %5994 = vmatpush1.msra.mxu0 0.0
      %5995 = vmatprep.subr.mxu0 0.0
      %5996 = vmatpush1.msra.mxu0 0.0
      %5997 = vmatprep.subr.mxu0 0.0
      %5998 = vmatpush1.msra.mxu0 0.0
      %5999 = vmatprep.subr.mxu0 0.0
      %6000 = vmatpush1.msra.mxu0 0.0
      %6001 = vmatprep.subr.mxu0 0.0
      %6002 = vmatpush1.msra.mxu0 %v5962
      %6003 = vmatprep.subr.mxu0 0.0
      %6004 = vmatpush1.msra.mxu0 %v5961
      %6005 = vmatprep.subr.mxu0 0.0
      %6006 = vmatpush1.msra.mxu0 %v5960
      %6007 = vmatprep.subr.mxu0 0.0
      %6008 = vmatpush1.msra.mxu0 %v5959
      %6009 = vmatprep.subr.mxu0 0.0
      %6010 = vmatpush2.msra.mxu0 0.0
      %6011 = vmatprep.subr.mxu0 0.0
      %6012 = vmatpush2.msra.mxu0 0.0
      %6013 = vmatprep.subr.mxu0 0.0
      %6014 = vmatpush2.msra.mxu0 0.0
      %6015 = vmatprep.subr.mxu0 0.0
      %6016 = vmatpush2.msra.mxu0 0.0
      %6017 = vmatprep.subr.mxu0 0.0
      %6018 = vmatpush2.msra.mxu0 0.0
      %6019 = vmatprep.subr.mxu0 0.0
      %6020 = vmatpush2.msra.mxu0 0.0
      %6021 = vmatprep.subr.mxu0 0.0
      %6022 = vmatpush2.msra.mxu0 0.0
      %6023 = vmatprep.subr.mxu0 0.0
      %6024 = vmatpush2.msra.mxu0 0.0
      %6025 = vmatprep.subr.mxu0 0.0
      %6026 = vmatpush2.msra.mxu0 0.0
      %6027 = vmatprep.subr.mxu0 0.0
      %6028 = vmatpush2.msra.mxu0 0.0
      %6029 = vmatprep.subr.mxu0 0.0
      %6030 = vmatpush2.msra.mxu0 0.0
      %6031 = vmatprep.subr.mxu0 0.0
      %6032 = vmatpush2.msra.mxu0 0.0
      %6033 = vmatprep.subr.mxu0 0.0
      %6034 = vmatpush2.msra.mxu0 0.0
      %6035 = vmatprep.subr.mxu0 0.0
      %6036 = vmatpush2.msra.mxu0 0.0
      %6037 = vmatprep.subr.mxu0 0.0
      %6038 = vmatpush2.msra.mxu0 0.0
      %6039 = vmatprep.subr.mxu0 0.0
      %6040 = vmatpush2.msra.mxu0 0.0
      %6041 = vmatprep.mubr.f32.mxu0 0.0
      %6042 = vmatmul.mubr.f32.gmra.mxu0 %v5971
      %v6043 = vpop.f32.mrf.mxu0
      %v6044 = vadd.f32 0.0, %v6043
      %v6045 = vpop.f32.mrf.mxu0
      %6046 = vmatprep.mubr.f32.mxu0 0.0
      %6047 = vmatmul.mubr.f32.gmra.mxu0 %v5973
      %v6048 = vpop.f32.mrf.mxu0
      %v6049 = vadd.f32 0.0, %v6048
      %v6050 = vpop.f32.mrf.mxu0
      %6051 = vmatprep.mubr.f32.mxu0 0.0
      %6052 = vmatmul.mubr.f32.gmra.mxu0 %v5975
      %v6053 = vpop.f32.mrf.mxu0
      %v6054 = vadd.f32 0.0, %v6053
      %v6055 = vpop.f32.mrf.mxu0
      %6056 = vdwg.mxu0
      %v6057 = vsel %vm2874, %v5951, 0
      %v6059 = vsel %vm2874, %v5952, 0
      %v6061 = vsel %vm2874, %v5953, 0
      %6063 = vmatprep.subr.mxu0 0.0
      %6064 = vmatpush1.msra.mxu0 0.0
      %6065 = vmatprep.subr.mxu0 0.0
      %6066 = vmatpush1.msra.mxu0 0.0
      %6067 = vmatprep.subr.mxu0 0.0
      %6068 = vmatpush1.msra.mxu0 0.0
      %6069 = vmatprep.subr.mxu0 0.0
      %6070 = vmatpush1.msra.mxu0 0.0
      %6071 = vmatprep.subr.mxu0 0.0
      %6072 = vmatpush1.msra.mxu0 0.0
      %6073 = vmatprep.subr.mxu0 0.0
      %6074 = vmatpush1.msra.mxu0 0.0
      %6075 = vmatprep.subr.mxu0 0.0
      %6076 = vmatpush1.msra.mxu0 0.0
      %6077 = vmatprep.subr.mxu0 0.0
      %6078 = vmatpush1.msra.mxu0 0.0
      %6079 = vmatprep.subr.mxu0 0.0
      %6080 = vmatpush1.msra.mxu0 0.0
      %6081 = vmatprep.subr.mxu0 0.0
      %6082 = vmatpush1.msra.mxu0 0.0
      %6083 = vmatprep.subr.mxu0 0.0
      %6084 = vmatpush1.msra.mxu0 0.0
      %6085 = vmatprep.subr.mxu0 0.0
      %6086 = vmatpush1.msra.mxu0 0.0
      %6087 = vmatprep.subr.mxu0 0.0
      %6088 = vmatpush1.msra.mxu0 %v5958
      %6089 = vmatprep.subr.mxu0 0.0
      %6090 = vmatpush1.msra.mxu0 %v5957
      %6091 = vmatprep.subr.mxu0 0.0
      %6092 = vmatpush1.msra.mxu0 %v5956
      %6093 = vmatprep.subr.mxu0 0.0
      %6094 = vmatpush1.msra.mxu0 %v5955
      %6095 = vmatprep.subr.mxu0 0.0
      %6096 = vmatpush2.msra.mxu0 0.0
      %6097 = vmatprep.subr.mxu0 0.0
      %6098 = vmatpush2.msra.mxu0 0.0
      %6099 = vmatprep.subr.mxu0 0.0
      %6100 = vmatpush2.msra.mxu0 0.0
      %6101 = vmatprep.subr.mxu0 0.0
      %6102 = vmatpush2.msra.mxu0 0.0
      %6103 = vmatprep.subr.mxu0 0.0
      %6104 = vmatpush2.msra.mxu0 0.0
      %6105 = vmatprep.subr.mxu0 0.0
      %6106 = vmatpush2.msra.mxu0 0.0
      %6107 = vmatprep.subr.mxu0 0.0
      %6108 = vmatpush2.msra.mxu0 0.0
      %6109 = vmatprep.subr.mxu0 0.0
      %6110 = vmatpush2.msra.mxu0 0.0
      %6111 = vmatprep.subr.mxu0 0.0
      %6112 = vmatpush2.msra.mxu0 0.0
      %6113 = vmatprep.subr.mxu0 0.0
      %6114 = vmatpush2.msra.mxu0 0.0
      %6115 = vmatprep.subr.mxu0 0.0
      %6116 = vmatpush2.msra.mxu0 0.0
      %6117 = vmatprep.subr.mxu0 0.0
      %6118 = vmatpush2.msra.mxu0 0.0
      %6119 = vmatprep.subr.mxu0 0.0
      %6120 = vmatpush2.msra.mxu0 0.0
      %6121 = vmatprep.subr.mxu0 0.0
      %6122 = vmatpush2.msra.mxu0 0.0
      %6123 = vmatprep.subr.mxu0 0.0
      %6124 = vmatpush2.msra.mxu0 0.0
      %6125 = vmatprep.subr.mxu0 0.0
      %6126 = vmatpush2.msra.mxu0 0.0
      %6127 = vmatprep.mubr.f32.mxu0 0.0
      %6128 = vmatmul.mubr.f32.gmra.mxu0 %v6057
      %v6129 = vpop.f32.mrf.mxu0
      %v6130 = vadd.f32 %v6044, %v6129
      %v6131 = vpop.f32.mrf.mxu0
      %6132 = vmatprep.mubr.f32.mxu0 0.0
      %6133 = vmatmul.mubr.f32.gmra.mxu0 %v6059
      %v6134 = vpop.f32.mrf.mxu0
      %v6135 = vadd.f32 %v6049, %v6134
      %v6136 = vpop.f32.mrf.mxu0
      %6137 = vmatprep.mubr.f32.mxu0 0.0
      %6138 = vmatmul.mubr.f32.gmra.mxu0 %v6061
      %v6139 = vpop.f32.mrf.mxu0
      %v6140 = vadd.f32 %v6054, %v6139
      %v6141 = vpop.f32.mrf.mxu0
      %6142 = vdwg.mxu0
      %v6143 = vld [vmem:[%s3091] sm:$0xff]
      %v6144 = vld [vmem:[%s3091 + $0x8] sm:$0xff]
      %v6145 = vld [vmem:[%s3091 + $0x10] sm:$0xff]
      %v6146 = vld [vmem:[%s3091 + $0x18] sm:$0xff]
      %v6147 = vrot.slane %v5951, 2
      %v6148 = vrot.slane %v5952, 2
      %v6149 = vsel %vm1102, %v6147, %v6148
      %v6150 = vrot.slane %v5953, 2
      %v6151 = vsel %vm1102, %v6148, %v6150
      %v6152 = vsel %vm2874, %v6149, 0
      %v6154 = vsel %vm2874, %v6151, 0
      %v6156 = vsel %vm2874, %v6150, 0
      %6158 = vmatprep.subr.mxu0 0.0
      %6159 = vmatpush1.msra.mxu0 0.0
      %6160 = vmatprep.subr.mxu0 0.0
      %6161 = vmatpush1.msra.mxu0 0.0
      %6162 = vmatprep.subr.mxu0 0.0
      %6163 = vmatpush1.msra.mxu0 0.0
      %6164 = vmatprep.subr.mxu0 0.0
      %6165 = vmatpush1.msra.mxu0 0.0
      %6166 = vmatprep.subr.mxu0 0.0
      %6167 = vmatpush1.msra.mxu0 0.0
      %6168 = vmatprep.subr.mxu0 0.0
      %6169 = vmatpush1.msra.mxu0 0.0
      %6170 = vmatprep.subr.mxu0 0.0
      %6171 = vmatpush1.msra.mxu0 0.0
      %6172 = vmatprep.subr.mxu0 0.0
      %6173 = vmatpush1.msra.mxu0 0.0
      %6174 = vmatprep.subr.mxu0 0.0
      %6175 = vmatpush1.msra.mxu0 0.0
      %6176 = vmatprep.subr.mxu0 0.0
      %6177 = vmatpush1.msra.mxu0 0.0
      %6178 = vmatprep.subr.mxu0 0.0
      %6179 = vmatpush1.msra.mxu0 0.0
      %6180 = vmatprep.subr.mxu0 0.0
      %6181 = vmatpush1.msra.mxu0 0.0
      %6182 = vmatprep.subr.mxu0 0.0
      %6183 = vmatpush1.msra.mxu0 %v6146
      %6184 = vmatprep.subr.mxu0 0.0
      %6185 = vmatpush1.msra.mxu0 %v6145
      %6186 = vmatprep.subr.mxu0 0.0
      %6187 = vmatpush1.msra.mxu0 %v6144
      %6188 = vmatprep.subr.mxu0 0.0
      %6189 = vmatpush1.msra.mxu0 %v6143
      %6190 = vmatprep.subr.mxu0 0.0
      %6191 = vmatpush2.msra.mxu0 0.0
      %6192 = vmatprep.subr.mxu0 0.0
      %6193 = vmatpush2.msra.mxu0 0.0
      %6194 = vmatprep.subr.mxu0 0.0
      %6195 = vmatpush2.msra.mxu0 0.0
      %6196 = vmatprep.subr.mxu0 0.0
      %6197 = vmatpush2.msra.mxu0 0.0
      %6198 = vmatprep.subr.mxu0 0.0
      %6199 = vmatpush2.msra.mxu0 0.0
      %6200 = vmatprep.subr.mxu0 0.0
      %6201 = vmatpush2.msra.mxu0 0.0
      %6202 = vmatprep.subr.mxu0 0.0
      %6203 = vmatpush2.msra.mxu0 0.0
      %6204 = vmatprep.subr.mxu0 0.0
      %6205 = vmatpush2.msra.mxu0 0.0
      %6206 = vmatprep.subr.mxu0 0.0
      %6207 = vmatpush2.msra.mxu0 0.0
      %6208 = vmatprep.subr.mxu0 0.0
      %6209 = vmatpush2.msra.mxu0 0.0
      %6210 = vmatprep.subr.mxu0 0.0
      %6211 = vmatpush2.msra.mxu0 0.0
      %6212 = vmatprep.subr.mxu0 0.0
      %6213 = vmatpush2.msra.mxu0 0.0
      %6214 = vmatprep.subr.mxu0 0.0
      %6215 = vmatpush2.msra.mxu0 0.0
      %6216 = vmatprep.subr.mxu0 0.0
      %6217 = vmatpush2.msra.mxu0 0.0
      %6218 = vmatprep.subr.mxu0 0.0
      %6219 = vmatpush2.msra.mxu0 0.0
      %6220 = vmatprep.subr.mxu0 0.0
      %6221 = vmatpush2.msra.mxu0 0.0
      %6222 = vmatprep.mubr.f32.mxu0 0.0
      %6223 = vmatmul.mubr.f32.gmra.mxu0 %v6152
      %v6224 = vpop.f32.mrf.mxu0
      %v6225 = vadd.f32 0.0, %v6224
      %v6226 = vpop.f32.mrf.mxu0
      %6227 = vmatprep.mubr.f32.mxu0 0.0
      %6228 = vmatmul.mubr.f32.gmra.mxu0 %v6154
      %v6229 = vpop.f32.mrf.mxu0
      %v6230 = vadd.f32 0.0, %v6229
      %v6231 = vpop.f32.mrf.mxu0
      %6232 = vmatprep.mubr.f32.mxu0 0.0
      %6233 = vmatmul.mubr.f32.gmra.mxu0 %v6156
      %v6234 = vpop.f32.mrf.mxu0
      %v6235 = vadd.f32 0.0, %v6234
      %v6236 = vpop.f32.mrf.mxu0
      %6237 = vdwg.mxu0
      %v6238 = vadd.f32 %v6130, %v6225
      %v6239 = vadd.f32 %v6135, %v6230
      %v6240 = vadd.f32 %v6140, %v6235
      %v6241 = vld [vmem:[%s3190] sm:$0xff]
      %v6242 = vld [vmem:[%s3190 + $0x8] sm:$0xff]
      %v6243 = vld [vmem:[%s3190 + $0x10] sm:$0xff]
      %v6244 = vld [vmem:[%s3190 + $0x18] sm:$0xff]
      %v6246 = vrot.slane %v5951, 3
      %v6247 = vrot.slane %v5952, 3
      %v6248 = vsel %vm1240, %v6246, %v6247
      %v6249 = vrot.slane %v5953, 3
      %v6250 = vsel %vm1240, %v6247, %v6249
      %v6251 = vrot.slane %v5954, 3
      %v6252 = vsel %vm1240, %v6249, %v6251
      %v6253 = vsel %vm2874, %v6248, 0
      %v6255 = vsel %vm2874, %v6250, 0
      %v6257 = vsel %vm2874, %v6252, 0
      %6259 = vmatprep.subr.mxu0 0.0
      %6260 = vmatpush1.msra.mxu0 0.0
      %6261 = vmatprep.subr.mxu0 0.0
      %6262 = vmatpush1.msra.mxu0 0.0
      %6263 = vmatprep.subr.mxu0 0.0
      %6264 = vmatpush1.msra.mxu0 0.0
      %6265 = vmatprep.subr.mxu0 0.0
      %6266 = vmatpush1.msra.mxu0 0.0
      %6267 = vmatprep.subr.mxu0 0.0
      %6268 = vmatpush1.msra.mxu0 0.0
      %6269 = vmatprep.subr.mxu0 0.0
      %6270 = vmatpush1.msra.mxu0 0.0
      %6271 = vmatprep.subr.mxu0 0.0
      %6272 = vmatpush1.msra.mxu0 0.0
      %6273 = vmatprep.subr.mxu0 0.0
      %6274 = vmatpush1.msra.mxu0 0.0
      %6275 = vmatprep.subr.mxu0 0.0
      %6276 = vmatpush1.msra.mxu0 0.0
      %6277 = vmatprep.subr.mxu0 0.0
      %6278 = vmatpush1.msra.mxu0 0.0
      %6279 = vmatprep.subr.mxu0 0.0
      %6280 = vmatpush1.msra.mxu0 0.0
      %6281 = vmatprep.subr.mxu0 0.0
      %6282 = vmatpush1.msra.mxu0 0.0
      %6283 = vmatprep.subr.mxu0 0.0
      %6284 = vmatpush1.msra.mxu0 %v6244
      %6285 = vmatprep.subr.mxu0 0.0
      %6286 = vmatpush1.msra.mxu0 %v6243
      %6287 = vmatprep.subr.mxu0 0.0
      %6288 = vmatpush1.msra.mxu0 %v6242
      %6289 = vmatprep.subr.mxu0 0.0
      %6290 = vmatpush1.msra.mxu0 %v6241
      %6291 = vmatprep.subr.mxu0 0.0
      %6292 = vmatpush2.msra.mxu0 0.0
      %6293 = vmatprep.subr.mxu0 0.0
      %6294 = vmatpush2.msra.mxu0 0.0
      %6295 = vmatprep.subr.mxu0 0.0
      %6296 = vmatpush2.msra.mxu0 0.0
      %6297 = vmatprep.subr.mxu0 0.0
      %6298 = vmatpush2.msra.mxu0 0.0
      %6299 = vmatprep.subr.mxu0 0.0
      %6300 = vmatpush2.msra.mxu0 0.0
      %6301 = vmatprep.subr.mxu0 0.0
      %6302 = vmatpush2.msra.mxu0 0.0
      %6303 = vmatprep.subr.mxu0 0.0
      %6304 = vmatpush2.msra.mxu0 0.0
      %6305 = vmatprep.subr.mxu0 0.0
      %6306 = vmatpush2.msra.mxu0 0.0
      %6307 = vmatprep.subr.mxu0 0.0
      %6308 = vmatpush2.msra.mxu0 0.0
      %6309 = vmatprep.subr.mxu0 0.0
      %6310 = vmatpush2.msra.mxu0 0.0
      %6311 = vmatprep.subr.mxu0 0.0
      %6312 = vmatpush2.msra.mxu0 0.0
      %6313 = vmatprep.subr.mxu0 0.0
      %6314 = vmatpush2.msra.mxu0 0.0
      %6315 = vmatprep.subr.mxu0 0.0
      %6316 = vmatpush2.msra.mxu0 0.0
      %6317 = vmatprep.subr.mxu0 0.0
      %6318 = vmatpush2.msra.mxu0 0.0
      %6319 = vmatprep.subr.mxu0 0.0
      %6320 = vmatpush2.msra.mxu0 0.0
      %6321 = vmatprep.subr.mxu0 0.0
      %6322 = vmatpush2.msra.mxu0 0.0
      %6323 = vmatprep.mubr.f32.mxu0 0.0
      %6324 = vmatmul.mubr.f32.gmra.mxu0 %v6253
      %v6325 = vpop.f32.mrf.mxu0
      %v6326 = vadd.f32 0.0, %v6325
      %v6327 = vpop.f32.mrf.mxu0
      %6328 = vmatprep.mubr.f32.mxu0 0.0
      %6329 = vmatmul.mubr.f32.gmra.mxu0 %v6255
      %v6330 = vpop.f32.mrf.mxu0
      %v6331 = vadd.f32 0.0, %v6330
      %v6332 = vpop.f32.mrf.mxu0
      %6333 = vmatprep.mubr.f32.mxu0 0.0
      %6334 = vmatmul.mubr.f32.gmra.mxu0 %v6257
      %v6335 = vpop.f32.mrf.mxu0
      %v6336 = vadd.f32 0.0, %v6335
      %v6337 = vpop.f32.mrf.mxu0
      %6338 = vdwg.mxu0
      %v6339 = vadd.f32 %v6238, %v6326
      %v6340 = vadd.f32 %v6239, %v6331
      %v6341 = vadd.f32 %v6240, %v6336
      %v6342 = vld [vmem:[%s3292] sm:$0xff]
      %v6343 = vld [vmem:[%s3292 + $0x8] sm:$0xff]
      %v6344 = vld [vmem:[%s3292 + $0x10] sm:$0xff]
      %v6345 = vld [vmem:[%s3292 + $0x18] sm:$0xff]
      %v6346 = vrot.slane %v5951, 4
      %v6347 = vrot.slane %v5952, 4
      %v6348 = vsel %vm1379, %v6346, %v6347
      %v6349 = vrot.slane %v5953, 4
      %v6350 = vsel %vm1379, %v6347, %v6349
      %v6351 = vrot.slane %v5954, 4
      %v6352 = vsel %vm1379, %v6349, %v6351
      %v6353 = vsel %vm2874, %v6348, 0
      %v6355 = vsel %vm2874, %v6350, 0
      %v6357 = vsel %vm2874, %v6352, 0
      %6359 = vmatprep.subr.mxu0 0.0
      %6360 = vmatpush1.msra.mxu0 0.0
      %6361 = vmatprep.subr.mxu0 0.0
      %6362 = vmatpush1.msra.mxu0 0.0
      %6363 = vmatprep.subr.mxu0 0.0
      %6364 = vmatpush1.msra.mxu0 0.0
      %6365 = vmatprep.subr.mxu0 0.0
      %6366 = vmatpush1.msra.mxu0 0.0
      %6367 = vmatprep.subr.mxu0 0.0
      %6368 = vmatpush1.msra.mxu0 0.0
      %6369 = vmatprep.subr.mxu0 0.0
      %6370 = vmatpush1.msra.mxu0 0.0
      %6371 = vmatprep.subr.mxu0 0.0
      %6372 = vmatpush1.msra.mxu0 0.0
      %6373 = vmatprep.subr.mxu0 0.0
      %6374 = vmatpush1.msra.mxu0 0.0
      %6375 = vmatprep.subr.mxu0 0.0
      %6376 = vmatpush1.msra.mxu0 0.0
      %6377 = vmatprep.subr.mxu0 0.0
      %6378 = vmatpush1.msra.mxu0 0.0
      %6379 = vmatprep.subr.mxu0 0.0
      %6380 = vmatpush1.msra.mxu0 0.0
      %6381 = vmatprep.subr.mxu0 0.0
      %6382 = vmatpush1.msra.mxu0 0.0
      %6383 = vmatprep.subr.mxu0 0.0
      %6384 = vmatpush1.msra.mxu0 %v6345
      %6385 = vmatprep.subr.mxu0 0.0
      %6386 = vmatpush1.msra.mxu0 %v6344
      %6387 = vmatprep.subr.mxu0 0.0
      %6388 = vmatpush1.msra.mxu0 %v6343
      %6389 = vmatprep.subr.mxu0 0.0
      %6390 = vmatpush1.msra.mxu0 %v6342
      %6391 = vmatprep.subr.mxu0 0.0
      %6392 = vmatpush2.msra.mxu0 0.0
      %6393 = vmatprep.subr.mxu0 0.0
      %6394 = vmatpush2.msra.mxu0 0.0
      %6395 = vmatprep.subr.mxu0 0.0
      %6396 = vmatpush2.msra.mxu0 0.0
      %6397 = vmatprep.subr.mxu0 0.0
      %6398 = vmatpush2.msra.mxu0 0.0
      %6399 = vmatprep.subr.mxu0 0.0
      %6400 = vmatpush2.msra.mxu0 0.0
      %6401 = vmatprep.subr.mxu0 0.0
      %6402 = vmatpush2.msra.mxu0 0.0
      %6403 = vmatprep.subr.mxu0 0.0
      %6404 = vmatpush2.msra.mxu0 0.0
      %6405 = vmatprep.subr.mxu0 0.0
      %6406 = vmatpush2.msra.mxu0 0.0
      %6407 = vmatprep.subr.mxu0 0.0
      %6408 = vmatpush2.msra.mxu0 0.0
      %6409 = vmatprep.subr.mxu0 0.0
      %6410 = vmatpush2.msra.mxu0 0.0
      %6411 = vmatprep.subr.mxu0 0.0
      %6412 = vmatpush2.msra.mxu0 0.0
      %6413 = vmatprep.subr.mxu0 0.0
      %6414 = vmatpush2.msra.mxu0 0.0
      %6415 = vmatprep.subr.mxu0 0.0
      %6416 = vmatpush2.msra.mxu0 0.0
      %6417 = vmatprep.subr.mxu0 0.0
      %6418 = vmatpush2.msra.mxu0 0.0
      %6419 = vmatprep.subr.mxu0 0.0
      %6420 = vmatpush2.msra.mxu0 0.0
      %6421 = vmatprep.subr.mxu0 0.0
      %6422 = vmatpush2.msra.mxu0 0.0
      %6423 = vmatprep.mubr.f32.mxu0 0.0
      %6424 = vmatmul.mubr.f32.gmra.mxu0 %v6353
      %v6425 = vpop.f32.mrf.mxu0
      %v6426 = vadd.f32 0.0, %v6425
      %v6427 = vpop.f32.mrf.mxu0
      %6428 = vmatprep.mubr.f32.mxu0 0.0
      %6429 = vmatmul.mubr.f32.gmra.mxu0 %v6355
      %v6430 = vpop.f32.mrf.mxu0
      %v6431 = vadd.f32 0.0, %v6430
      %v6432 = vpop.f32.mrf.mxu0
      %6433 = vmatprep.mubr.f32.mxu0 0.0
      %6434 = vmatmul.mubr.f32.gmra.mxu0 %v6357
      %v6435 = vpop.f32.mrf.mxu0
      %v6436 = vadd.f32 0.0, %v6435
      %v6437 = vpop.f32.mrf.mxu0
      %6438 = vdwg.mxu0
      %v6439 = vadd.f32 %v6339, %v6426
      %v6440 = vadd.f32 %v6340, %v6431
      %v6441 = vadd.f32 %v6341, %v6436
      %v6442 = vld [vmem:[%s6] sm:$0x1]
      %v6444 = vlaneseq
      %v6445 = vshrl.u32 %v6444, 7
      %v6446 = vsub.s32 0, %v6445
      %v6447 = vrot.slane %v6442, %v6446
      %v6449 = vadd.f32 %v6439, %v6447
      %v6450 = vadd.f32 %v6440, %v6447
      %v6451 = vadd.f32 %v6441, %v6447
      %v6452 = vmax.f32 %v6449, 0.0
      %v6453 = vmax.f32 %v6450, 0.0
      %v6454 = vmax.f32 %v6451, 0.0
      %6455 = vst.msk [vmem:[#allocation4] sm:$0xff] %vm383, %v6452
      %6456 = vst.msk [vmem:[#allocation4 + $0x8] sm:$0xff] %vm383, %v6453
      %6457 = vst.msk [vmem:[#allocation4 + $0x10] sm:$0x3f] %vm3408, %v6454
      %v6458 = vld [vmem:[#allocation4] ss:$2 sm:$0xff]
      %v6459 = vld [vmem:[%s3411] ss:$2 sm:$0x7]
      %v6460 = vld [vmem:[%s3413] ss:$2 sm:$0xff]
      %v6461 = vld [vmem:[%s3415] ss:$2 sm:$0x7]
      %v6462 = vmax.f32 %v6458, %v6460
      %v6463 = vmax.f32 %v6459, %v6461
      %v6464 = vld [vmem:[%s7] sm:$0xff]
      %v6465 = vld [vmem:[%s7 + $0x8] sm:$0xff]
      %v6466 = vld [vmem:[%s7 + $0x10] sm:$0xff]
      %v6467 = vld [vmem:[%s7 + $0x18] sm:$0xff]
      %v6468 = vld [vmem:[%s7 + $0x20] sm:$0xff]
      %v6469 = vld [vmem:[%s7 + $0x28] sm:$0xff]
      %v6470 = vld [vmem:[%s7 + $0x30] sm:$0xff]
      %v6471 = vld [vmem:[%s7 + $0x38] sm:$0xff]
      %v6472 = vld [vmem:[%s3427] sm:$0xff]
      %v6473 = vld [vmem:[%s3427 + $0x8] sm:$0xff]
      %v6474 = vld [vmem:[%s3427 + $0x10] sm:$0xff]
      %v6475 = vld [vmem:[%s3427 + $0x18] sm:$0xff]
      %v6476 = vld [vmem:[%s3427 + $0x20] sm:$0xff]
      %v6477 = vld [vmem:[%s3427 + $0x28] sm:$0xff]
      %v6478 = vld [vmem:[%s3427 + $0x30] sm:$0xff]
      %v6479 = vld [vmem:[%s3427 + $0x38] sm:$0xff]
      %v6481 = vrot.slane %v6462, 1
      %v6482 = vsel %vm383, %v6481, 0
      %6484 = vmatprep.subr.mxu0 0.0
      %6485 = vmatpush1.msra.mxu0 0.0
      %6486 = vmatprep.subr.mxu0 0.0
      %6487 = vmatpush1.msra.mxu0 0.0
      %6488 = vmatprep.subr.mxu0 0.0
      %6489 = vmatpush1.msra.mxu0 0.0
      %6490 = vmatprep.subr.mxu0 0.0
      %6491 = vmatpush1.msra.mxu0 0.0
      %6492 = vmatprep.subr.mxu0 0.0
      %6493 = vmatpush1.msra.mxu0 0.0
      %6494 = vmatprep.subr.mxu0 0.0
      %6495 = vmatpush1.msra.mxu0 0.0
      %6496 = vmatprep.subr.mxu0 0.0
      %6497 = vmatpush1.msra.mxu0 0.0
      %6498 = vmatprep.subr.mxu0 0.0
      %6499 = vmatpush1.msra.mxu0 0.0
      %6500 = vmatprep.subr.mxu0 0.0
      %6501 = vmatpush1.msra.mxu0 %v6479
      %6502 = vmatprep.subr.mxu0 0.0
      %6503 = vmatpush1.msra.mxu0 %v6478
      %6504 = vmatprep.subr.mxu0 0.0
      %6505 = vmatpush1.msra.mxu0 %v6477
      %6506 = vmatprep.subr.mxu0 0.0
      %6507 = vmatpush1.msra.mxu0 %v6476
      %6508 = vmatprep.subr.mxu0 0.0
      %6509 = vmatpush1.msra.mxu0 %v6475
      %6510 = vmatprep.subr.mxu0 0.0
      %6511 = vmatpush1.msra.mxu0 %v6474
      %6512 = vmatprep.subr.mxu0 0.0
      %6513 = vmatpush1.msra.mxu0 %v6473
      %6514 = vmatprep.subr.mxu0 0.0
      %6515 = vmatpush1.msra.mxu0 %v6472
      %6516 = vmatprep.subr.mxu0 0.0
      %6517 = vmatpush2.msra.mxu0 0.0
      %6518 = vmatprep.subr.mxu0 0.0
      %6519 = vmatpush2.msra.mxu0 0.0
      %6520 = vmatprep.subr.mxu0 0.0
      %6521 = vmatpush2.msra.mxu0 0.0
      %6522 = vmatprep.subr.mxu0 0.0
      %6523 = vmatpush2.msra.mxu0 0.0
      %6524 = vmatprep.subr.mxu0 0.0
      %6525 = vmatpush2.msra.mxu0 0.0
      %6526 = vmatprep.subr.mxu0 0.0
      %6527 = vmatpush2.msra.mxu0 0.0
      %6528 = vmatprep.subr.mxu0 0.0
      %6529 = vmatpush2.msra.mxu0 0.0
      %6530 = vmatprep.subr.mxu0 0.0
      %6531 = vmatpush2.msra.mxu0 0.0
      %6532 = vmatprep.subr.mxu0 0.0
      %6533 = vmatpush2.msra.mxu0 0.0
      %6534 = vmatprep.subr.mxu0 0.0
      %6535 = vmatpush2.msra.mxu0 0.0
      %6536 = vmatprep.subr.mxu0 0.0
      %6537 = vmatpush2.msra.mxu0 0.0
      %6538 = vmatprep.subr.mxu0 0.0
      %6539 = vmatpush2.msra.mxu0 0.0
      %6540 = vmatprep.subr.mxu0 0.0
      %6541 = vmatpush2.msra.mxu0 0.0
      %6542 = vmatprep.subr.mxu0 0.0
      %6543 = vmatpush2.msra.mxu0 0.0
      %6544 = vmatprep.subr.mxu0 0.0
      %6545 = vmatpush2.msra.mxu0 0.0
      %6546 = vmatprep.subr.mxu0 0.0
      %6547 = vmatpush2.msra.mxu0 0.0
      %6548 = vmatprep.mubr.f32.mxu0 0.0
      %6549 = vmatmul.mubr.f32.gmra.mxu0 %v6482
      %v6550 = vpop.f32.mrf.mxu0
      %v6551 = vadd.f32 0.0, %v6550
      %v6552 = vpop.f32.mrf.mxu0
      %6553 = vdwg.mxu0
      %v6554 = vsel %vm383, %v6462, 0
      %6556 = vmatprep.subr.mxu0 0.0
      %6557 = vmatpush1.msra.mxu0 0.0
      %6558 = vmatprep.subr.mxu0 0.0
      %6559 = vmatpush1.msra.mxu0 0.0
      %6560 = vmatprep.subr.mxu0 0.0
      %6561 = vmatpush1.msra.mxu0 0.0
      %6562 = vmatprep.subr.mxu0 0.0
      %6563 = vmatpush1.msra.mxu0 0.0
      %6564 = vmatprep.subr.mxu0 0.0
      %6565 = vmatpush1.msra.mxu0 0.0
      %6566 = vmatprep.subr.mxu0 0.0
      %6567 = vmatpush1.msra.mxu0 0.0
      %6568 = vmatprep.subr.mxu0 0.0
      %6569 = vmatpush1.msra.mxu0 0.0
      %6570 = vmatprep.subr.mxu0 0.0
      %6571 = vmatpush1.msra.mxu0 0.0
      %6572 = vmatprep.subr.mxu0 0.0
      %6573 = vmatpush1.msra.mxu0 %v6471
      %6574 = vmatprep.subr.mxu0 0.0
      %6575 = vmatpush1.msra.mxu0 %v6470
      %6576 = vmatprep.subr.mxu0 0.0
      %6577 = vmatpush1.msra.mxu0 %v6469
      %6578 = vmatprep.subr.mxu0 0.0
      %6579 = vmatpush1.msra.mxu0 %v6468
      %6580 = vmatprep.subr.mxu0 0.0
      %6581 = vmatpush1.msra.mxu0 %v6467
      %6582 = vmatprep.subr.mxu0 0.0
      %6583 = vmatpush1.msra.mxu0 %v6466
      %6584 = vmatprep.subr.mxu0 0.0
      %6585 = vmatpush1.msra.mxu0 %v6465
      %6586 = vmatprep.subr.mxu0 0.0
      %6587 = vmatpush1.msra.mxu0 %v6464
      %6588 = vmatprep.subr.mxu0 0.0
      %6589 = vmatpush2.msra.mxu0 0.0
      %6590 = vmatprep.subr.mxu0 0.0
      %6591 = vmatpush2.msra.mxu0 0.0
      %6592 = vmatprep.subr.mxu0 0.0
      %6593 = vmatpush2.msra.mxu0 0.0
      %6594 = vmatprep.subr.mxu0 0.0
      %6595 = vmatpush2.msra.mxu0 0.0
      %6596 = vmatprep.subr.mxu0 0.0
      %6597 = vmatpush2.msra.mxu0 0.0
      %6598 = vmatprep.subr.mxu0 0.0
      %6599 = vmatpush2.msra.mxu0 0.0
      %6600 = vmatprep.subr.mxu0 0.0
      %6601 = vmatpush2.msra.mxu0 0.0
      %6602 = vmatprep.subr.mxu0 0.0
      %6603 = vmatpush2.msra.mxu0 0.0
      %6604 = vmatprep.subr.mxu0 0.0
      %6605 = vmatpush2.msra.mxu0 0.0
      %6606 = vmatprep.subr.mxu0 0.0
      %6607 = vmatpush2.msra.mxu0 0.0
      %6608 = vmatprep.subr.mxu0 0.0
      %6609 = vmatpush2.msra.mxu0 0.0
      %6610 = vmatprep.subr.mxu0 0.0
      %6611 = vmatpush2.msra.mxu0 0.0
      %6612 = vmatprep.subr.mxu0 0.0
      %6613 = vmatpush2.msra.mxu0 0.0
      %6614 = vmatprep.subr.mxu0 0.0
      %6615 = vmatpush2.msra.mxu0 0.0
      %6616 = vmatprep.subr.mxu0 0.0
      %6617 = vmatpush2.msra.mxu0 0.0
      %6618 = vmatprep.subr.mxu0 0.0
      %6619 = vmatpush2.msra.mxu0 0.0
      %6620 = vmatprep.mubr.f32.mxu0 0.0
      %6621 = vmatmul.mubr.f32.gmra.mxu0 %v6554
      %v6622 = vpop.f32.mrf.mxu0
      %v6623 = vadd.f32 %v6551, %v6622
      %v6624 = vpop.f32.mrf.mxu0
      %6625 = vdwg.mxu0
      %v6626 = vld [vmem:[%s3582] sm:$0xff]
      %v6627 = vld [vmem:[%s3582 + $0x8] sm:$0xff]
      %v6628 = vld [vmem:[%s3582 + $0x10] sm:$0xff]
      %v6629 = vld [vmem:[%s3582 + $0x18] sm:$0xff]
      %v6630 = vld [vmem:[%s3582 + $0x20] sm:$0xff]
      %v6631 = vld [vmem:[%s3582 + $0x28] sm:$0xff]
      %v6632 = vld [vmem:[%s3582 + $0x30] sm:$0xff]
      %v6633 = vld [vmem:[%s3582 + $0x38] sm:$0xff]
      %v6635 = vrot.slane %v6462, 2
      %v6636 = vrot.slane %v6463, 2
      %v6637 = vsel %vm1102, %v6635, %v6636
      %v6638 = vsel %vm383, %v6637, 0
      %6640 = vmatprep.subr.mxu0 0.0
      %6641 = vmatpush1.msra.mxu0 0.0
      %6642 = vmatprep.subr.mxu0 0.0
      %6643 = vmatpush1.msra.mxu0 0.0
      %6644 = vmatprep.subr.mxu0 0.0
      %6645 = vmatpush1.msra.mxu0 0.0
      %6646 = vmatprep.subr.mxu0 0.0
      %6647 = vmatpush1.msra.mxu0 0.0
      %6648 = vmatprep.subr.mxu0 0.0
      %6649 = vmatpush1.msra.mxu0 0.0
      %6650 = vmatprep.subr.mxu0 0.0
      %6651 = vmatpush1.msra.mxu0 0.0
      %6652 = vmatprep.subr.mxu0 0.0
      %6653 = vmatpush1.msra.mxu0 0.0
      %6654 = vmatprep.subr.mxu0 0.0
      %6655 = vmatpush1.msra.mxu0 0.0
      %6656 = vmatprep.subr.mxu0 0.0
      %6657 = vmatpush1.msra.mxu0 %v6633
      %6658 = vmatprep.subr.mxu0 0.0
      %6659 = vmatpush1.msra.mxu0 %v6632
      %6660 = vmatprep.subr.mxu0 0.0
      %6661 = vmatpush1.msra.mxu0 %v6631
      %6662 = vmatprep.subr.mxu0 0.0
      %6663 = vmatpush1.msra.mxu0 %v6630
      %6664 = vmatprep.subr.mxu0 0.0
      %6665 = vmatpush1.msra.mxu0 %v6629
      %6666 = vmatprep.subr.mxu0 0.0
      %6667 = vmatpush1.msra.mxu0 %v6628
      %6668 = vmatprep.subr.mxu0 0.0
      %6669 = vmatpush1.msra.mxu0 %v6627
      %6670 = vmatprep.subr.mxu0 0.0
      %6671 = vmatpush1.msra.mxu0 %v6626
      %6672 = vmatprep.subr.mxu0 0.0
      %6673 = vmatpush2.msra.mxu0 0.0
      %6674 = vmatprep.subr.mxu0 0.0
      %6675 = vmatpush2.msra.mxu0 0.0
      %6676 = vmatprep.subr.mxu0 0.0
      %6677 = vmatpush2.msra.mxu0 0.0
      %6678 = vmatprep.subr.mxu0 0.0
      %6679 = vmatpush2.msra.mxu0 0.0
      %6680 = vmatprep.subr.mxu0 0.0
      %6681 = vmatpush2.msra.mxu0 0.0
      %6682 = vmatprep.subr.mxu0 0.0
      %6683 = vmatpush2.msra.mxu0 0.0
      %6684 = vmatprep.subr.mxu0 0.0
      %6685 = vmatpush2.msra.mxu0 0.0
      %6686 = vmatprep.subr.mxu0 0.0
      %6687 = vmatpush2.msra.mxu0 0.0
      %6688 = vmatprep.subr.mxu0 0.0
      %6689 = vmatpush2.msra.mxu0 0.0
      %6690 = vmatprep.subr.mxu0 0.0
      %6691 = vmatpush2.msra.mxu0 0.0
      %6692 = vmatprep.subr.mxu0 0.0
      %6693 = vmatpush2.msra.mxu0 0.0
      %6694 = vmatprep.subr.mxu0 0.0
      %6695 = vmatpush2.msra.mxu0 0.0
      %6696 = vmatprep.subr.mxu0 0.0
      %6697 = vmatpush2.msra.mxu0 0.0
      %6698 = vmatprep.subr.mxu0 0.0
      %6699 = vmatpush2.msra.mxu0 0.0
      %6700 = vmatprep.subr.mxu0 0.0
      %6701 = vmatpush2.msra.mxu0 0.0
      %6702 = vmatprep.subr.mxu0 0.0
      %6703 = vmatpush2.msra.mxu0 0.0
      %6704 = vmatprep.mubr.f32.mxu0 0.0
      %6705 = vmatmul.mubr.f32.gmra.mxu0 %v6638
      %v6706 = vpop.f32.mrf.mxu0
      %v6707 = vadd.f32 0.0, %v6706
      %v6708 = vpop.f32.mrf.mxu0
      %6709 = vdwg.mxu0
      %v6710 = vadd.f32 %v6623, %v6707
      %v6711 = vld [vmem:[%s3668] sm:$0xff]
      %v6712 = vld [vmem:[%s3668 + $0x8] sm:$0xff]
      %v6713 = vld [vmem:[%s3668 + $0x10] sm:$0xff]
      %v6714 = vld [vmem:[%s3668 + $0x18] sm:$0xff]
      %v6715 = vld [vmem:[%s3668 + $0x20] sm:$0xff]
      %v6716 = vld [vmem:[%s3668 + $0x28] sm:$0xff]
      %v6717 = vld [vmem:[%s3668 + $0x30] sm:$0xff]
      %v6718 = vld [vmem:[%s3668 + $0x38] sm:$0xff]
      %v6719 = vrot.slane %v6462, 3
      %v6720 = vrot.slane %v6463, 3
      %v6721 = vsel %vm1240, %v6719, %v6720
      %v6722 = vsel %vm383, %v6721, 0
      %6724 = vmatprep.subr.mxu0 0.0
      %6725 = vmatpush1.msra.mxu0 0.0
      %6726 = vmatprep.subr.mxu0 0.0
      %6727 = vmatpush1.msra.mxu0 0.0
      %6728 = vmatprep.subr.mxu0 0.0
      %6729 = vmatpush1.msra.mxu0 0.0
      %6730 = vmatprep.subr.mxu0 0.0
      %6731 = vmatpush1.msra.mxu0 0.0
      %6732 = vmatprep.subr.mxu0 0.0
      %6733 = vmatpush1.msra.mxu0 0.0
      %6734 = vmatprep.subr.mxu0 0.0
      %6735 = vmatpush1.msra.mxu0 0.0
      %6736 = vmatprep.subr.mxu0 0.0
      %6737 = vmatpush1.msra.mxu0 0.0
      %6738 = vmatprep.subr.mxu0 0.0
      %6739 = vmatpush1.msra.mxu0 0.0
      %6740 = vmatprep.subr.mxu0 0.0
      %6741 = vmatpush1.msra.mxu0 %v6718
      %6742 = vmatprep.subr.mxu0 0.0
      %6743 = vmatpush1.msra.mxu0 %v6717
      %6744 = vmatprep.subr.mxu0 0.0
      %6745 = vmatpush1.msra.mxu0 %v6716
      %6746 = vmatprep.subr.mxu0 0.0
      %6747 = vmatpush1.msra.mxu0 %v6715
      %6748 = vmatprep.subr.mxu0 0.0
      %6749 = vmatpush1.msra.mxu0 %v6714
      %6750 = vmatprep.subr.mxu0 0.0
      %6751 = vmatpush1.msra.mxu0 %v6713
      %6752 = vmatprep.subr.mxu0 0.0
      %6753 = vmatpush1.msra.mxu0 %v6712
      %6754 = vmatprep.subr.mxu0 0.0
      %6755 = vmatpush1.msra.mxu0 %v6711
      %6756 = vmatprep.subr.mxu0 0.0
      %6757 = vmatpush2.msra.mxu0 0.0
      %6758 = vmatprep.subr.mxu0 0.0
      %6759 = vmatpush2.msra.mxu0 0.0
      %6760 = vmatprep.subr.mxu0 0.0
      %6761 = vmatpush2.msra.mxu0 0.0
      %6762 = vmatprep.subr.mxu0 0.0
      %6763 = vmatpush2.msra.mxu0 0.0
      %6764 = vmatprep.subr.mxu0 0.0
      %6765 = vmatpush2.msra.mxu0 0.0
      %6766 = vmatprep.subr.mxu0 0.0
      %6767 = vmatpush2.msra.mxu0 0.0
      %6768 = vmatprep.subr.mxu0 0.0
      %6769 = vmatpush2.msra.mxu0 0.0
      %6770 = vmatprep.subr.mxu0 0.0
      %6771 = vmatpush2.msra.mxu0 0.0
      %6772 = vmatprep.subr.mxu0 0.0
      %6773 = vmatpush2.msra.mxu0 0.0
      %6774 = vmatprep.subr.mxu0 0.0
      %6775 = vmatpush2.msra.mxu0 0.0
      %6776 = vmatprep.subr.mxu0 0.0
      %6777 = vmatpush2.msra.mxu0 0.0
      %6778 = vmatprep.subr.mxu0 0.0
      %6779 = vmatpush2.msra.mxu0 0.0
      %6780 = vmatprep.subr.mxu0 0.0
      %6781 = vmatpush2.msra.mxu0 0.0
      %6782 = vmatprep.subr.mxu0 0.0
      %6783 = vmatpush2.msra.mxu0 0.0
      %6784 = vmatprep.subr.mxu0 0.0
      %6785 = vmatpush2.msra.mxu0 0.0
      %6786 = vmatprep.subr.mxu0 0.0
      %6787 = vmatpush2.msra.mxu0 0.0
      %6788 = vmatprep.mubr.f32.mxu0 0.0
      %6789 = vmatmul.mubr.f32.gmra.mxu0 %v6722
      %v6790 = vpop.f32.mrf.mxu0
      %v6791 = vadd.f32 0.0, %v6790
      %v6792 = vpop.f32.mrf.mxu0
      %6793 = vdwg.mxu0
      %v6794 = vadd.f32 %v6710, %v6791
      %v6795 = vld [vmem:[%s3753] sm:$0xff]
      %v6796 = vld [vmem:[%s3753 + $0x8] sm:$0xff]
      %v6797 = vld [vmem:[%s3753 + $0x10] sm:$0xff]
      %v6798 = vld [vmem:[%s3753 + $0x18] sm:$0xff]
      %v6799 = vld [vmem:[%s3753 + $0x20] sm:$0xff]
      %v6800 = vld [vmem:[%s3753 + $0x28] sm:$0xff]
      %v6801 = vld [vmem:[%s3753 + $0x30] sm:$0xff]
      %v6802 = vld [vmem:[%s3753 + $0x38] sm:$0xff]
      %v6803 = vrot.slane %v6462, 4
      %v6804 = vrot.slane %v6463, 4
      %v6805 = vsel %vm1379, %v6803, %v6804
      %v6806 = vsel %vm383, %v6805, 0
      %6808 = vmatprep.subr.mxu0 0.0
      %6809 = vmatpush1.msra.mxu0 0.0
      %6810 = vmatprep.subr.mxu0 0.0
      %6811 = vmatpush1.msra.mxu0 0.0
      %6812 = vmatprep.subr.mxu0 0.0
      %6813 = vmatpush1.msra.mxu0 0.0
      %6814 = vmatprep.subr.mxu0 0.0
      %6815 = vmatpush1.msra.mxu0 0.0
      %6816 = vmatprep.subr.mxu0 0.0
      %6817 = vmatpush1.msra.mxu0 0.0
      %6818 = vmatprep.subr.mxu0 0.0
      %6819 = vmatpush1.msra.mxu0 0.0
      %6820 = vmatprep.subr.mxu0 0.0
      %6821 = vmatpush1.msra.mxu0 0.0
      %6822 = vmatprep.subr.mxu0 0.0
      %6823 = vmatpush1.msra.mxu0 0.0
      %6824 = vmatprep.subr.mxu0 0.0
      %6825 = vmatpush1.msra.mxu0 %v6802
      %6826 = vmatprep.subr.mxu0 0.0
      %6827 = vmatpush1.msra.mxu0 %v6801
      %6828 = vmatprep.subr.mxu0 0.0
      %6829 = vmatpush1.msra.mxu0 %v6800
      %6830 = vmatprep.subr.mxu0 0.0
      %6831 = vmatpush1.msra.mxu0 %v6799
      %6832 = vmatprep.subr.mxu0 0.0
      %6833 = vmatpush1.msra.mxu0 %v6798
      %6834 = vmatprep.subr.mxu0 0.0
      %6835 = vmatpush1.msra.mxu0 %v6797
      %6836 = vmatprep.subr.mxu0 0.0
      %6837 = vmatpush1.msra.mxu0 %v6796
      %6838 = vmatprep.subr.mxu0 0.0
      %6839 = vmatpush1.msra.mxu0 %v6795
      %6840 = vmatprep.subr.mxu0 0.0
      %6841 = vmatpush2.msra.mxu0 0.0
      %6842 = vmatprep.subr.mxu0 0.0
      %6843 = vmatpush2.msra.mxu0 0.0
      %6844 = vmatprep.subr.mxu0 0.0
      %6845 = vmatpush2.msra.mxu0 0.0
      %6846 = vmatprep.subr.mxu0 0.0
      %6847 = vmatpush2.msra.mxu0 0.0
      %6848 = vmatprep.subr.mxu0 0.0
      %6849 = vmatpush2.msra.mxu0 0.0
      %6850 = vmatprep.subr.mxu0 0.0
      %6851 = vmatpush2.msra.mxu0 0.0
      %6852 = vmatprep.subr.mxu0 0.0
      %6853 = vmatpush2.msra.mxu0 0.0
      %6854 = vmatprep.subr.mxu0 0.0
      %6855 = vmatpush2.msra.mxu0 0.0
      %6856 = vmatprep.subr.mxu0 0.0
      %6857 = vmatpush2.msra.mxu0 0.0
      %6858 = vmatprep.subr.mxu0 0.0
      %6859 = vmatpush2.msra.mxu0 0.0
      %6860 = vmatprep.subr.mxu0 0.0
      %6861 = vmatpush2.msra.mxu0 0.0
      %6862 = vmatprep.subr.mxu0 0.0
      %6863 = vmatpush2.msra.mxu0 0.0
      %6864 = vmatprep.subr.mxu0 0.0
      %6865 = vmatpush2.msra.mxu0 0.0
      %6866 = vmatprep.subr.mxu0 0.0
      %6867 = vmatpush2.msra.mxu0 0.0
      %6868 = vmatprep.subr.mxu0 0.0
      %6869 = vmatpush2.msra.mxu0 0.0
      %6870 = vmatprep.subr.mxu0 0.0
      %6871 = vmatpush2.msra.mxu0 0.0
      %6872 = vmatprep.mubr.f32.mxu0 0.0
      %6873 = vmatmul.mubr.f32.gmra.mxu0 %v6806
      %v6874 = vpop.f32.mrf.mxu0
      %v6875 = vadd.f32 0.0, %v6874
      %v6876 = vpop.f32.mrf.mxu0
      %6877 = vdwg.mxu0
      %v6878 = vadd.f32 %v6794, %v6875
      %v6879 = vld [vmem:[%s8] sm:$0x1]
      %v6881 = vlaneseq
      %v6882 = vshrl.u32 %v6881, 7
      %v6883 = vsub.s32 0, %v6882
      %v6884 = vrot.slane %v6879, %v6883
      %v6886 = vadd.f32 %v6878, %v6884
      %v6887 = vmax.f32 %v6886, 0.0
      %v6888 = vsel %vm3847, %v6887, -inf
      %v6889 = vrot.slane %v6888, 4
      %v6890 = vmax.f32 %v6888, %v6889
      %v6891 = vrot.slane %v6890, 2
      %v6892 = vmax.f32 %v6890, %v6891
      %v6893 = vrot.slane %v6892, 1
      %v6894 = vmax.f32 %v6892, %v6893
      %v6895 = vsel %vm3855, %v6887, -inf
      %v6896 = vrot.slane %v6895, 4
      %v6897 = vmax.f32 %v6895, %v6896
      %v6898 = vrot.slane %v6897, 2
      %v6899 = vmax.f32 %v6897, %v6898
      %v6900 = vrot.slane %v6899, 1
      %v6901 = vmax.f32 %v6899, %v6900
      %v6902 = vsel %vm3863, %v6887, -inf
      %v6903 = vrot.slane %v6902, 4
      %v6904 = vmax.f32 %v6902, %v6903
      %v6905 = vrot.slane %v6904, 2
      %v6906 = vmax.f32 %v6904, %v6905
      %v6907 = vrot.slane %v6906, 1
      %v6908 = vmax.f32 %v6906, %v6907
      %v6909 = vsel %vm3871, %v6887, -inf
      %v6910 = vrot.slane %v6909, 4
      %v6911 = vmax.f32 %v6909, %v6910
      %v6912 = vrot.slane %v6911, 2
      %v6913 = vmax.f32 %v6911, %v6912
      %v6914 = vrot.slane %v6913, 1
      %v6915 = vmax.f32 %v6913, %v6914
      %v6916 = vsel %vm1799, %v6894, %v6901
      %v6917 = vsel %vm1659, %v6916, %v6908
      %v6918 = vsel %vm1519, %v6917, %v6915
      %s6919 = scalar_lea.vmem %s332, 4
      %6920 = vst.msk [vmem:[%s6919] sm:$0xf] %vm3882, %v6918
      %p6921 = scmp.lt.s32.totalorder %s20, 1
      %s6922 = scalar_select %p6921, %s20, 1
      %s6923 = smul.addr %s6922, 2
      %s6924 = smul.addr %s6923, 4
      %s6925 = scalar_lea.vmem %s9, %s6924
      // Predicated region
      $region57: #{_lambda_.2} parent=55 // pred_check
        %p6926 = pneg %p232
      $region58: #{_lambda_.2} parent=55 // pred_check_branch
        %6928 = sbr.rel (%p6926) target = $region60
      $region59: #{_lambda_.2} parent=55 // pred_region
        _
      $region60: #{_lambda_.2} parent=55 // pred_fallthru
        _
    $region56: #{_lambda_.2} parent=5 // pred_fallthru
      _
    %p6929 = scmp.le.s32.totalorder 2, %s15
    // Predicated region
    $region61: #{_lambda_.2} parent=5 // pred_check
      %p6930 = pneg %p6929
    $region62: #{_lambda_.2} parent=5 // pred_check_branch
      %6932 = sbr.rel (%p6930) target = $region64
    $region63: #{_lambda_.2} parent=5 // pred_region
      %s6933 = ssub.s32 %s15, 2
      // Predicated region
      $region65: #{_lambda_.2} parent=63 // pred_check
        %p6934 = pneg %p238
      $region66: #{_lambda_.2} parent=63 // pred_check_branch
        %6936 = sbr.rel (%p6934) target = $region68
      $region67: #{_lambda_.2} parent=63 // pred_region
        %p6937 = scmp.lt.s32.totalorder %s21, 1
        %s6938 = scalar_select %p6937, %s21, 1
        %s6939 = smul.addr %s6938, 2
        %s6940 = smul.addr %s6939, 4
        %s6941 = scalar_lea.vmem %s9, %s6940
      $region68: #{_lambda_.2} parent=63 // pred_fallthru
        _
    $region64: #{_lambda_.2} parent=5 // pred_fallthru
      _
  $region6: #{_lambda_.2} parent=0 // loop_footer
    %s19 = sadd.s32 1, %s15
  $region7: #{_lambda_.2} parent=0 // loop_footer_branch
    %14 = sbr.rel target = $region3
  $region8: #{_lambda_.2} parent=0 // loop_exit
    _

</llo_original>
